<compile_context>
chip_gen: v7x
topology: tpu7x:2x2x1
jax: 0.10.0
libtpu: 0.0.40
codegen_flags: <defaults>
</compile_context>

<pallas_src>
import jax
import jax.numpy as jnp
from jax.experimental import pallas as pl
from jax.experimental.pallas import tpu as pltpu

# ---- small synthetic config (real: hidden=4096, heads=32, Dh=128, 32 layers) ----
BATCH = 2
SEQ = 8
N_HEADS = 2
HEAD_DIM = 128                      # keep Dh=128 (lane-dense) even at toy scale
HIDDEN = N_HEADS * HEAD_DIM         # 256
INTERMEDIATE = 512
N_LAYERS = 2
VOCAB = 64
EPS = 1e-6
DTYPE = jnp.bfloat16                # storage dtype (matches torch_dtype=bfloat16)


def _rmsnorm_f32(x, w):
    var = jnp.mean(x * x, axis=-1, keepdims=True)
    return x * jax.lax.rsqrt(var + EPS) * w


# ------------------------ fused attention block kernel ------------------------
# Grid: (B,).  Per step:
#   x:[1,S,H]  mask:[1,1,S]  cos/sin:[S,Dh] (sin sign-folded)  norm:[1,H]
#   wqkv:[H,3H] bf16 (Q columns pre-scaled by 1/sqrt(Dh))  wo:[H,H] bf16
# RMSNorm -> fused QKV matmul -> RoPE (pltpu.roll) -> softmax attention with additive
# key-padding bias (bidirectional, LLM2Vec) -> fused O-proj -> residual add.
def _attn_block_kernel(x_ref, mask_ref, cos_ref, sin_ref, norm_ref,
                       wqkv_ref, wo_ref, o_ref):
    x = x_ref[0].astype(jnp.float32)                                  # [S, H]
    h = _rmsnorm_f32(x, norm_ref[...].astype(jnp.float32))
    h = h.astype(wqkv_ref.dtype)                                      # bf16 MXU input

    # one fused QKV matmul (bf16 x bf16 -> f32 accumulate)
    qkv = jnp.dot(h, wqkv_ref[...], preferred_element_type=jnp.float32)  # [S, 3H]

    cos = cos_ref[...]                                                # [S, Dh] f32
    sin = sin_ref[...]                                                # sign-folded sin
    # additive key-padding bias built in-kernel from the tiny [1,1,S] mask
    bias = jnp.where(mask_ref[0] > 0.0, 0.0, -1e30)                   # [1, S]

    # Per-head attention core; NH=2 at toy scale so this unroll is tiny.
    # TODO(synk): at NH=32 this becomes a (batch, head) parallel grid axis with a
    # KV-blocked lax.fori_loop (flash-attention style), not a Python unroll.
    head_outs = []
    for hd in range(N_HEADS):
        q = qkv[:, hd * HEAD_DIM:(hd + 1) * HEAD_DIM]                 # [S, Dh] (scaled)
        k = qkv[:, HIDDEN + hd * HEAD_DIM: HIDDEN + (hd + 1) * HEAD_DIM]
        v = qkv[:, 2 * HIDDEN + hd * HEAD_DIM: 2 * HIDDEN + (hd + 1) * HEAD_DIM]

        # RoPE: rotate_half via XLU roll; the sign flip is folded into the sin table
        q = q * cos + pltpu.roll(q, HEAD_DIM // 2, axis=1) * sin
        k = k * cos + pltpu.roll(k, HEAD_DIM // 2, axis=1) * sin

        s = jnp.einsum("qd,kd->qk", q.astype(jnp.bfloat16), k.astype(jnp.bfloat16),
                       preferred_element_type=jnp.float32) + bias     # [S, S]
        m = jnp.max(s, axis=-1, keepdims=True)
        p = jnp.exp(s - m)
        p = p * pl.reciprocal(jnp.sum(p, axis=-1, keepdims=True), approx=True)
        head_outs.append(jnp.dot(p.astype(jnp.bfloat16), v.astype(jnp.bfloat16),
                                 preferred_element_type=jnp.float32)) # [S, Dh]

    # concat(heads) @ Wo as a single matmul, fused with the residual add
    o_heads = jnp.concatenate(head_outs, axis=-1).astype(wo_ref.dtype)  # [S, H] bf16
    out = x + jnp.dot(o_heads, wo_ref[...], preferred_element_type=jnp.float32)
    o_ref[0] = out.astype(o_ref.dtype)


def pallas_attn_block(x3d, mask_b1s, cos, sin, norm_w, wqkv, wo):
    b, s, hdim = x3d.shape
    return pl.pallas_call(
        _attn_block_kernel,
        grid=(b,),
        in_specs=[
            pl.BlockSpec((1, s, hdim), lambda i: (i, 0, 0)),
            pl.BlockSpec((1, 1, s), lambda i: (i, 0, 0)),
            pl.BlockSpec(cos.shape, lambda i: (0, 0)),
            pl.BlockSpec(sin.shape, lambda i: (0, 0)),
            pl.BlockSpec(norm_w.shape, lambda i: (0, 0)),
            pl.BlockSpec(wqkv.shape, lambda i: (0, 0)),
            pl.BlockSpec(wo.shape, lambda i: (0, 0)),
        ],
        out_specs=pl.BlockSpec((1, s, hdim), lambda i: (i, 0, 0)),
        out_shape=jax.ShapeDtypeStruct(x3d.shape, x3d.dtype),
        input_output_aliases={0: 0},     # residual stream updated in place
        compiler_params=pltpu.CompilerParams(dimension_semantics=("parallel",)),
    )(x3d, mask_b1s, cos, sin, norm_w, wqkv, wo)


# --------------------------- fused SwiGLU MLP kernel ---------------------------
# Grid: (B,) row blocks.  RMSNorm -> fused gate+up matmul -> SiLU*up -> down-proj -> residual.
def _mlp_block_kernel(x_ref, norm_ref, wgu_ref, wd_ref, o_ref):
    x = x_ref[0].astype(jnp.float32)                                  # [S, H]
    h = _rmsnorm_f32(x, norm_ref[...].astype(jnp.float32)).astype(wgu_ref.dtype)
    gu = jnp.dot(h, wgu_ref[...], preferred_element_type=jnp.float32)  # [S, 2I]
    g = gu[:, :INTERMEDIATE]
    u = gu[:, INTERMEDIATE:]
    a = g * pl.reciprocal(1.0 + jnp.exp(-g), approx=True) * u          # SiLU(g) * u
    out = x + jnp.dot(a.astype(wd_ref.dtype), wd_ref[...],
                      preferred_element_type=jnp.float32)
    o_ref[0] = out.astype(o_ref.dtype)


def pallas_mlp_block(x3d, norm_w, wgu, wd):
    b, s, hdim = x3d.shape
    return pl.pallas_call(
        _mlp_block_kernel,
        grid=(b,),
        in_specs=[
            pl.BlockSpec((1, s, hdim), lambda i: (i, 0, 0)),
            pl.BlockSpec(norm_w.shape, lambda i: (0, 0)),
            pl.BlockSpec(wgu.shape, lambda i: (0, 0)),
            pl.BlockSpec(wd.shape, lambda i: (0, 0)),
        ],
        out_specs=pl.BlockSpec((1, s, hdim), lambda i: (i, 0, 0)),
        out_shape=jax.ShapeDtypeStruct(x3d.shape, x3d.dtype),
        input_output_aliases={0: 0},
        compiler_params=pltpu.CompilerParams(dimension_semantics=("parallel",)),
    )(x3d, norm_w, wgu, wd)


# ------------------- fused final RMSNorm + masked mean pool -------------------
def _final_pool_kernel(x_ref, mask_ref, norm_ref, o_ref):
    x = x_ref[0].astype(jnp.float32)                                  # [S, H]
    xn = _rmsnorm_f32(x, norm_ref[...].astype(jnp.float32))
    m = mask_ref[0].astype(jnp.float32)                               # [S, 1]
    num = jnp.sum(xn * m, axis=0, keepdims=True)                      # [1, H]
    den = jnp.maximum(jnp.sum(m, axis=0, keepdims=True), 1e-9)        # [1, 1]
    o_ref[0] = (num / den).astype(o_ref.dtype)                        # exact divide


def pallas_final_pool(x3d, mask_pool, norm_w):
    b, s, hdim = x3d.shape
    out = pl.pallas_call(
        _final_pool_kernel,
        grid=(b,),
        in_specs=[
            pl.BlockSpec((1, s, hdim), lambda i: (i, 0, 0)),
            pl.BlockSpec((1, s, 1), lambda i: (i, 0, 0)),
            pl.BlockSpec(norm_w.shape, lambda i: (0, 0)),
        ],
        out_specs=pl.BlockSpec((1, 1, hdim), lambda i: (i, 0, 0)),
        out_shape=jax.ShapeDtypeStruct((b, 1, hdim), x3d.dtype),
        compiler_params=pltpu.CompilerParams(dimension_semantics=("parallel",)),
    )(x3d, mask_pool, norm_w)
    return out.reshape(b, hdim)


# --------------------------- JAX glue (RoPE, params, loop) ---------------------------

def rope_tables(seq, dim, base=10000.0):
    """cos[S,Dh] and sign-folded sin[S,Dh]: rotate_half(x)*sin == roll(x, Dh/2)*sin_signed."""
    inv_freq = 1.0 / (base ** (jnp.arange(0, dim, 2, dtype=jnp.float32) / dim))
    t = jnp.arange(seq, dtype=jnp.float32)
    freqs = jnp.outer(t, inv_freq)
    emb = jnp.concatenate([freqs, freqs], -1)                         # [S, Dh]
    sign = jnp.concatenate([-jnp.ones((dim // 2,), jnp.float32),
                            jnp.ones((dim // 2,), jnp.float32)])
    return jnp.cos(emb), jnp.sin(emb) * sign[None, :]


def init_params(key):
    """Weights fused at load time: wqkv=[H,3H] (Q pre-scaled by 1/sqrt(Dh)), wo=[H,H],
    wgu=[H,2I], wd=[I,H]; equivalent to the separate q/k/v/o/gate/up/down Linears."""
    def w(k, shape):
        return jax.random.normal(k, shape, jnp.float32) * 0.02

    scale = 1.0 / float(HEAD_DIM) ** 0.5
    keys = jax.random.split(key, 1 + N_LAYERS)
    params = {
        "embed": w(keys[0], (VOCAB, HIDDEN)).astype(DTYPE),
        "final_norm": jnp.ones((1, HIDDEN), DTYPE),
        "layers": [],
    }
    for i in range(N_LAYERS):
        lk = jax.random.split(keys[1 + i], 7)
        wq = w(lk[0], (HIDDEN, HIDDEN)) * scale        # fold 1/sqrt(Dh) into Q
        wk = w(lk[1], (HIDDEN, HIDDEN))
        wv = w(lk[2], (HIDDEN, HIDDEN))
        wo = w(lk[3], (HIDDEN, HIDDEN))
        wg = w(lk[4], (HIDDEN, INTERMEDIATE))
        wu = w(lk[5], (HIDDEN, INTERMEDIATE))
        wd = w(lk[6], (INTERMEDIATE, HIDDEN))
        params["layers"].append({
            "attn_norm": jnp.ones((1, HIDDEN), DTYPE),
            "wqkv": jnp.concatenate([wq, wk, wv], axis=1).astype(DTYPE),
            "wo": wo.astype(DTYPE),
            "mlp_norm": jnp.ones((1, HIDDEN), DTYPE),
            "wgu": jnp.concatenate([wg, wu], axis=1).astype(DTYPE),
            "wd": wd.astype(DTYPE),
        })
    return params


def encoder_forward(params, token_ids, attention_mask):
    """self.encoder.forward(features): token ids -> mean-pooled embeddings [B, HIDDEN]."""
    b, s = token_ids.shape
    x = jnp.take(params["embed"], token_ids, axis=0)                  # [B, S, H] bf16

    cos, sin_signed = rope_tables(s, HEAD_DIM)                        # [S, Dh] f32
    mask_f = attention_mask.astype(jnp.float32)
    mask_b1s = mask_f.reshape(b, 1, s)
    mask_pool = mask_f.reshape(b, s, 1)

    # TODO(synk): at real depth, prefetch layer L+1's stacked weights (pl.ANY +
    # make_async_copy, cross-call future) while layer L computes to hide the HBM-bound
    # weight stream at small batch (v6e).
    for layer in params["layers"]:
        x = pallas_attn_block(x, mask_b1s, cos, sin_signed,
                              layer["attn_norm"], layer["wqkv"], layer["wo"])
        x = pallas_mlp_block(x, layer["mlp_norm"], layer["wgu"], layer["wd"])

    return pallas_final_pool(x, mask_pool, params["final_norm"])      # [B, H]


# NOTE: queue / queue_labels / EMA target encoder / MoCo buffers / LoRA-PEFT init in the
# PyTorch module are training-time state, not touched by forward(); omitted.
# TODO(synk): HF AutoTokenizer (string -> token ids) has no Pallas equivalent; token ids
# and attention mask are constructed directly below.

if __name__ == "__main__":
    key = jax.random.PRNGKey(0)
    pkey, ikey = jax.random.split(key)

    params = init_params(pkey)
    token_ids = jax.random.randint(ikey, (BATCH, SEQ), 0, VOCAB, dtype=jnp.int32)
    # second sequence has 2 padding tokens
    attention_mask = jnp.array(
        [[1] * SEQ, [1] * (SEQ - 2) + [0] * 2], dtype=jnp.int32
    )

    fwd = jax.jit(encoder_forward)
    emb = fwd(params, token_ids, attention_mask)
    emb = jax.block_until_ready(emb)

    assert emb.shape == (BATCH, HIDDEN), emb.shape
    assert bool(jnp.all(jnp.isfinite(emb.astype(jnp.float32))))
    print("KERNEL_OK")
</pallas_src>

<mosaic_0001>
module attributes {stable_mosaic.version = 11 : i64} {
  func.func @_attn_block_kernel(%arg0: i32, %arg1: memref<1x8x256xbf16, #tpu.memory_space<vmem>>, %arg2: memref<1x1x8xf32, #tpu.memory_space<vmem>>, %arg3: memref<8x128xf32, #tpu.memory_space<vmem>>, %arg4: memref<8x128xf32, #tpu.memory_space<vmem>>, %arg5: memref<1x256xbf16, #tpu.memory_space<vmem>>, %arg6: memref<256x768xbf16, #tpu.memory_space<vmem>>, %arg7: memref<256x256xbf16, #tpu.memory_space<vmem>>, %arg8: memref<1x8x256xbf16, #tpu.memory_space<vmem>>) attributes {dimension_semantics = [#tpu.dimension_semantics<parallel>], iteration_bounds = array<i64: 2>, scalar_prefetch = 0 : i64, scratch_operands = 0 : i64, tpu.core_type = #tpu.core_type<tc>, window_params = [{transform_indices = @transform_0, window_bounds = array<i64: 1, 8, 256>}, {transform_indices = @transform_1, window_bounds = array<i64: 1, 1, 8>}, {pipeline_mode = #tpu.pipeline_mode<synchronous>, transform_indices = @transform_2, window_bounds = array<i64: 8, 128>}, {pipeline_mode = #tpu.pipeline_mode<synchronous>, transform_indices = @transform_3, window_bounds = array<i64: 8, 128>}, {pipeline_mode = #tpu.pipeline_mode<synchronous>, transform_indices = @transform_4, window_bounds = array<i64: 1, 256>}, {pipeline_mode = #tpu.pipeline_mode<synchronous>, transform_indices = @transform_5, window_bounds = array<i64: 256, 768>}, {pipeline_mode = #tpu.pipeline_mode<synchronous>, transform_indices = @transform_6, window_bounds = array<i64: 256, 256>}, {transform_indices = @transform_7, window_bounds = array<i64: 1, 8, 256>}]} {
    %c0 = arith.constant 0 : index
    %c0_0 = arith.constant 0 : index
    %c0_1 = arith.constant 0 : index
    %0 = vector.load %arg1[%c0, %c0_0, %c0_1] : memref<1x8x256xbf16, #tpu.memory_space<vmem>>, vector<1x8x256xbf16>
    %1 = vector.shape_cast %0 : vector<1x8x256xbf16> to vector<8x256xbf16>
    %2 = arith.extf %1 : vector<8x256xbf16> to vector<8x256xf32>
    %c0_2 = arith.constant 0 : index
    %c0_3 = arith.constant 0 : index
    %3 = vector.load %arg5[%c0_2, %c0_3] : memref<1x256xbf16, #tpu.memory_space<vmem>>, vector<1x256xbf16>
    %4 = arith.extf %3 : vector<1x256xbf16> to vector<1x256xf32>
    %5 = arith.mulf %2, %2 : vector<8x256xf32>
    %cst = arith.constant dense<0.000000e+00> : vector<8xf32>
    %6 = vector.multi_reduction <add>, %5, %cst [1] : vector<8x256xf32> to vector<8xf32>
    %7 = vector.shape_cast %6 : vector<8xf32> to vector<8x1xf32>
    %cst_4 = arith.constant 2.560000e+02 : f32
    %8 = vector.broadcast %cst_4 : f32 to vector<8x1xf32>
    %9 = arith.divf %7, %8 : vector<8x1xf32>
    %cst_5 = arith.constant 9.99999997E-7 : f32
    %10 = vector.broadcast %cst_5 : f32 to vector<8x1xf32>
    %11 = arith.addf %9, %10 : vector<8x1xf32>
    %12 = math.rsqrt %11 : vector<8x1xf32>
    %13 = vector.broadcast %12 : vector<8x1xf32> to vector<8x256xf32>
    %14 = arith.mulf %2, %13 : vector<8x256xf32>
    %15 = vector.broadcast %4 : vector<1x256xf32> to vector<8x256xf32>
    %16 = arith.mulf %14, %15 : vector<8x256xf32>
    %17 = arith.truncf %16 : vector<8x256xf32> to vector<8x256xbf16>
    %c0_6 = arith.constant 0 : index
    %c0_7 = arith.constant 0 : index
    %18 = vector.load %arg6[%c0_6, %c0_7] : memref<256x768xbf16, #tpu.memory_space<vmem>>, vector<256x768xbf16>
    %cst_8 = arith.constant dense<0.000000e+00> : vector<8x768xf32>
    %19 = tpu.matmul %17, %18, %cst_8 {dimension_numbers = #tpu.dot_dimension_numbers<[1], [0], [0], [1], [0, 0, 1, 1], [], []>} : vector<8x256xbf16>, vector<256x768xbf16>, vector<8x768xf32> -> vector<8x768xf32>
    %c0_9 = arith.constant 0 : index
    %c0_10 = arith.constant 0 : index
    %20 = vector.load %arg3[%c0_9, %c0_10] : memref<8x128xf32, #tpu.memory_space<vmem>>, vector<8x128xf32>
    %c0_11 = arith.constant 0 : index
    %c0_12 = arith.constant 0 : index
    %21 = vector.load %arg4[%c0_11, %c0_12] : memref<8x128xf32, #tpu.memory_space<vmem>>, vector<8x128xf32>
    %c0_13 = arith.constant 0 : index
    %c0_14 = arith.constant 0 : index
    %c0_15 = arith.constant 0 : index
    %22 = vector.load %arg2[%c0_13, %c0_14, %c0_15] : memref<1x1x8xf32, #tpu.memory_space<vmem>>, vector<1x1x8xf32>
    %23 = vector.shape_cast %22 : vector<1x1x8xf32> to vector<1x8xf32>
    %cst_16 = arith.constant 0.000000e+00 : f32
    %24 = vector.broadcast %cst_16 : f32 to vector<1x8xf32>
    %25 = arith.cmpf ogt, %23, %24 : vector<1x8xf32>
    %cst_17 = arith.constant 0.000000e+00 : f32
    %cst_18 = arith.constant -1.000000e+30 : f32
    %26 = vector.broadcast %cst_17 : f32 to vector<1x8xf32>
    %27 = vector.broadcast %cst_18 : f32 to vector<1x8xf32>
    %28 = arith.select %25, %26, %27 : vector<1x8xi1>, vector<1x8xf32>
    %29 = vector.extract_strided_slice %19 {offsets = [0, 0], sizes = [8, 128], strides = [1, 1]} : vector<8x768xf32> to vector<8x128xf32>
    %30 = vector.extract_strided_slice %19 {offsets = [0, 256], sizes = [8, 128], strides = [1, 1]} : vector<8x768xf32> to vector<8x128xf32>
    %31 = vector.extract_strided_slice %19 {offsets = [0, 512], sizes = [8, 128], strides = [1, 1]} : vector<8x768xf32> to vector<8x128xf32>
    %32 = arith.mulf %29, %20 : vector<8x128xf32>
    %c64_i32 = arith.constant 64 : i32
    %33 = tpu.dynamic_rotate %29 by %c64_i32 dim 1 : vector<8x128xf32>, i32 -> vector<8x128xf32>
    %34 = arith.mulf %33, %21 : vector<8x128xf32>
    %35 = arith.addf %32, %34 : vector<8x128xf32>
    %36 = arith.mulf %30, %20 : vector<8x128xf32>
    %c64_i32_19 = arith.constant 64 : i32
    %37 = tpu.dynamic_rotate %30 by %c64_i32_19 dim 1 : vector<8x128xf32>, i32 -> vector<8x128xf32>
    %38 = arith.mulf %37, %21 : vector<8x128xf32>
    %39 = arith.addf %36, %38 : vector<8x128xf32>
    %40 = arith.truncf %35 : vector<8x128xf32> to vector<8x128xbf16>
    %41 = arith.truncf %39 : vector<8x128xf32> to vector<8x128xbf16>
    "tpu.trace_start"() <{level = 10 : i32, message = "qd,kd->qk"}> : () -> ()
    %cst_20 = arith.constant dense<0.000000e+00> : vector<8x8xf32>
    %42 = tpu.matmul %40, %41, %cst_20 {dimension_numbers = #tpu.dot_dimension_numbers<[1], [1], [0], [0], [0, 0, 1, 0], [], []>} : vector<8x128xbf16>, vector<8x128xbf16>, vector<8x8xf32> -> vector<8x8xf32>
    "tpu.trace_stop"() : () -> ()
    %43 = vector.broadcast %28 : vector<1x8xf32> to vector<8x8xf32>
    %44 = arith.addf %42, %43 : vector<8x8xf32>
    %cst_21 = arith.constant dense<0xFF800000> : vector<8xf32>
    %45 = vector.multi_reduction <maximumf>, %44, %cst_21 [1] : vector<8x8xf32> to vector<8xf32>
    %46 = vector.shape_cast %45 : vector<8xf32> to vector<8x1xf32>
    %47 = vector.broadcast %46 : vector<8x1xf32> to vector<8x8xf32>
    %48 = arith.subf %44, %47 : vector<8x8xf32>
    %49 = math.exp %48 : vector<8x8xf32>
    %cst_22 = arith.constant dense<0.000000e+00> : vector<8xf32>
    %50 = vector.multi_reduction <add>, %49, %cst_22 [1] : vector<8x8xf32> to vector<8xf32>
    %51 = vector.shape_cast %50 : vector<8xf32> to vector<8x1xf32>
    %52 = tpu.reciprocal %51 {approx = true} : vector<8x1xf32> -> vector<8x1xf32>
    %53 = vector.broadcast %52 : vector<8x1xf32> to vector<8x8xf32>
    %54 = arith.mulf %49, %53 : vector<8x8xf32>
    %55 = arith.truncf %54 : vector<8x8xf32> to vector<8x8xbf16>
    %56 = arith.truncf %31 : vector<8x128xf32> to vector<8x128xbf16>
    %cst_23 = arith.constant dense<0.000000e+00> : vector<8x128xf32>
    %57 = tpu.matmul %55, %56, %cst_23 {dimension_numbers = #tpu.dot_dimension_numbers<[1], [0], [0], [1], [0, 0, 1, 1], [], []>} : vector<8x8xbf16>, vector<8x128xbf16>, vector<8x128xf32> -> vector<8x128xf32>
    %58 = vector.extract_strided_slice %19 {offsets = [0, 128], sizes = [8, 128], strides = [1, 1]} : vector<8x768xf32> to vector<8x128xf32>
    %59 = vector.extract_strided_slice %19 {offsets = [0, 384], sizes = [8, 128], strides = [1, 1]} : vector<8x768xf32> to vector<8x128xf32>
    %60 = vector.extract_strided_slice %19 {offsets = [0, 640], sizes = [8, 128], strides = [1, 1]} : vector<8x768xf32> to vector<8x128xf32>
    %61 = arith.mulf %58, %20 : vector<8x128xf32>
    %c64_i32_24 = arith.constant 64 : i32
    %62 = tpu.dynamic_rotate %58 by %c64_i32_24 dim 1 : vector<8x128xf32>, i32 -> vector<8x128xf32>
    %63 = arith.mulf %62, %21 : vector<8x128xf32>
    %64 = arith.addf %61, %63 : vector<8x128xf32>
    %65 = arith.mulf %59, %20 : vector<8x128xf32>
    %c64_i32_25 = arith.constant 64 : i32
    %66 = tpu.dynamic_rotate %59 by %c64_i32_25 dim 1 : vector<8x128xf32>, i32 -> vector<8x128xf32>
    %67 = arith.mulf %66, %21 : vector<8x128xf32>
    %68 = arith.addf %65, %67 : vector<8x128xf32>
    %69 = arith.truncf %64 : vector<8x128xf32> to vector<8x128xbf16>
    %70 = arith.truncf %68 : vector<8x128xf32> to vector<8x128xbf16>
    "tpu.trace_start"() <{level = 10 : i32, message = "qd,kd->qk"}> : () -> ()
    %cst_26 = arith.constant dense<0.000000e+00> : vector<8x8xf32>
    %71 = tpu.matmul %69, %70, %cst_26 {dimension_numbers = #tpu.dot_dimension_numbers<[1], [1], [0], [0], [0, 0, 1, 0], [], []>} : vector<8x128xbf16>, vector<8x128xbf16>, vector<8x8xf32> -> vector<8x8xf32>
    "tpu.trace_stop"() : () -> ()
    %72 = vector.broadcast %28 : vector<1x8xf32> to vector<8x8xf32>
    %73 = arith.addf %71, %72 : vector<8x8xf32>
    %cst_27 = arith.constant dense<0xFF800000> : vector<8xf32>
    %74 = vector.multi_reduction <maximumf>, %73, %cst_27 [1] : vector<8x8xf32> to vector<8xf32>
    %75 = vector.shape_cast %74 : vector<8xf32> to vector<8x1xf32>
    %76 = vector.broadcast %75 : vector<8x1xf32> to vector<8x8xf32>
    %77 = arith.subf %73, %76 : vector<8x8xf32>
    %78 = math.exp %77 : vector<8x8xf32>
    %cst_28 = arith.constant dense<0.000000e+00> : vector<8xf32>
    %79 = vector.multi_reduction <add>, %78, %cst_28 [1] : vector<8x8xf32> to vector<8xf32>
    %80 = vector.shape_cast %79 : vector<8xf32> to vector<8x1xf32>
    %81 = tpu.reciprocal %80 {approx = true} : vector<8x1xf32> -> vector<8x1xf32>
    %82 = vector.broadcast %81 : vector<8x1xf32> to vector<8x8xf32>
    %83 = arith.mulf %78, %82 : vector<8x8xf32>
    %84 = arith.truncf %83 : vector<8x8xf32> to vector<8x8xbf16>
    %85 = arith.truncf %60 : vector<8x128xf32> to vector<8x128xbf16>
    %cst_29 = arith.constant dense<0.000000e+00> : vector<8x128xf32>
    %86 = tpu.matmul %84, %85, %cst_29 {dimension_numbers = #tpu.dot_dimension_numbers<[1], [0], [0], [1], [0, 0, 1, 1], [], []>} : vector<8x8xbf16>, vector<8x128xbf16>, vector<8x128xf32> -> vector<8x128xf32>
    %87 = tpu.concatenate %57, %86 in 1 : vector<8x128xf32>, vector<8x128xf32> -> vector<8x256xf32>
    %88 = arith.truncf %87 : vector<8x256xf32> to vector<8x256xbf16>
    %c0_30 = arith.constant 0 : index
    %c0_31 = arith.constant 0 : index
    %89 = vector.load %arg7[%c0_30, %c0_31] : memref<256x256xbf16, #tpu.memory_space<vmem>>, vector<256x256xbf16>
    %cst_32 = arith.constant dense<0.000000e+00> : vector<8x256xf32>
    %90 = tpu.matmul %88, %89, %cst_32 {dimension_numbers = #tpu.dot_dimension_numbers<[1], [0], [0], [1], [0, 0, 1, 1], [], []>} : vector<8x256xbf16>, vector<256x256xbf16>, vector<8x256xf32> -> vector<8x256xf32>
    %91 = arith.addf %2, %90 : vector<8x256xf32>
    %92 = arith.truncf %91 : vector<8x256xf32> to vector<8x256xbf16>
    %c0_33 = arith.constant 0 : index
    %c0_34 = arith.constant 0 : index
    %c0_35 = arith.constant 0 : index
    %93 = vector.load %arg8[%c0_33, %c0_34, %c0_35] : memref<1x8x256xbf16, #tpu.memory_space<vmem>>, vector<1x8x256xbf16>
    %94 = vector.shape_cast %93 : vector<1x8x256xbf16> to vector<8x256xbf16>
    %95 = vector.shape_cast %92 : vector<8x256xbf16> to vector<1x8x256xbf16>
    tpu.vector_store %arg8[%c0_33, %c0_34, %c0_35], %95 {strides = array<i32>} : memref<1x8x256xbf16, #tpu.memory_space<vmem>>, vector<1x8x256xbf16>,
    return
  }
  func.func @transform_0(%arg0: i32) -> (i32, i32, i32) {
    %c0_i32 = arith.constant 0 : i32
    %c0_i32_0 = arith.constant 0 : i32
    %c0_i32_1 = arith.constant 0 : i32
    return %arg0, %c0_i32, %c0_i32_0 : i32, i32, i32
  }
  func.func @transform_1(%arg0: i32) -> (i32, i32, i32) {
    %c0_i32 = arith.constant 0 : i32
    %c0_i32_0 = arith.constant 0 : i32
    %c0_i32_1 = arith.constant 0 : i32
    return %arg0, %c0_i32, %c0_i32_0 : i32, i32, i32
  }
  func.func @transform_2(%arg0: i32) -> (i32, i32) {
    %c0_i32 = arith.constant 0 : i32
    %c0_i32_0 = arith.constant 0 : i32
    %c0_i32_1 = arith.constant 0 : i32
    return %c0_i32, %c0_i32_0 : i32, i32
  }
  func.func @transform_3(%arg0: i32) -> (i32, i32) {
    %c0_i32 = arith.constant 0 : i32
    %c0_i32_0 = arith.constant 0 : i32
    %c0_i32_1 = arith.constant 0 : i32
    return %c0_i32, %c0_i32_0 : i32, i32
  }
  func.func @transform_4(%arg0: i32) -> (i32, i32) {
    %c0_i32 = arith.constant 0 : i32
    %c0_i32_0 = arith.constant 0 : i32
    %c0_i32_1 = arith.constant 0 : i32
    return %c0_i32, %c0_i32_0 : i32, i32
  }
  func.func @transform_5(%arg0: i32) -> (i32, i32) {
    %c0_i32 = arith.constant 0 : i32
    %c0_i32_0 = arith.constant 0 : i32
    %c0_i32_1 = arith.constant 0 : i32
    return %c0_i32, %c0_i32_0 : i32, i32
  }
  func.func @transform_6(%arg0: i32) -> (i32, i32) {
    %c0_i32 = arith.constant 0 : i32
    %c0_i32_0 = arith.constant 0 : i32
    %c0_i32_1 = arith.constant 0 : i32
    return %c0_i32, %c0_i32_0 : i32, i32
  }
  func.func @transform_7(%arg0: i32) -> (i32, i32, i32) {
    %c0_i32 = arith.constant 0 : i32
    %c0_i32_0 = arith.constant 0 : i32
    %c0_i32_1 = arith.constant 0 : i32
    return %arg0, %c0_i32, %c0_i32_0 : i32, i32, i32
  }
}

module attributes {stable_mosaic.version = 11 : i64} {
  func.func @_mlp_block_kernel(%arg0: i32, %arg1: memref<1x8x256xbf16, #tpu.memory_space<vmem>>, %arg2: memref<1x256xbf16, #tpu.memory_space<vmem>>, %arg3: memref<256x1024xbf16, #tpu.memory_space<vmem>>, %arg4: memref<512x256xbf16, #tpu.memory_space<vmem>>, %arg5: memref<1x8x256xbf16, #tpu.memory_space<vmem>>) attributes {dimension_semantics = [#tpu.dimension_semantics<parallel>], iteration_bounds = array<i64: 2>, scalar_prefetch = 0 : i64, scratch_operands = 0 : i64, tpu.core_type = #tpu.core_type<tc>, window_params = [{transform_indices = @transform_0, window_bounds = array<i64: 1, 8, 256>}, {pipeline_mode = #tpu.pipeline_mode<synchronous>, transform_indices = @transform_1, window_bounds = array<i64: 1, 256>}, {pipeline_mode = #tpu.pipeline_mode<synchronous>, transform_indices = @transform_2, window_bounds = array<i64: 256, 1024>}, {pipeline_mode = #tpu.pipeline_mode<synchronous>, transform_indices = @transform_3, window_bounds = array<i64: 512, 256>}, {transform_indices = @transform_4, window_bounds = array<i64: 1, 8, 256>}]} {
    %c0 = arith.constant 0 : index
    %c0_0 = arith.constant 0 : index
    %c0_1 = arith.constant 0 : index
    %0 = vector.load %arg1[%c0, %c0_0, %c0_1] : memref<1x8x256xbf16, #tpu.memory_space<vmem>>, vector<1x8x256xbf16>
    %1 = vector.shape_cast %0 : vector<1x8x256xbf16> to vector<8x256xbf16>
    %2 = arith.extf %1 : vector<8x256xbf16> to vector<8x256xf32>
    %c0_2 = arith.constant 0 : index
    %c0_3 = arith.constant 0 : index
    %3 = vector.load %arg2[%c0_2, %c0_3] : memref<1x256xbf16, #tpu.memory_space<vmem>>, vector<1x256xbf16>
    %4 = arith.extf %3 : vector<1x256xbf16> to vector<1x256xf32>
    %5 = arith.mulf %2, %2 : vector<8x256xf32>
    %cst = arith.constant dense<0.000000e+00> : vector<8xf32>
    %6 = vector.multi_reduction <add>, %5, %cst [1] : vector<8x256xf32> to vector<8xf32>
    %7 = vector.shape_cast %6 : vector<8xf32> to vector<8x1xf32>
    %cst_4 = arith.constant 2.560000e+02 : f32
    %8 = vector.broadcast %cst_4 : f32 to vector<8x1xf32>
    %9 = arith.divf %7, %8 : vector<8x1xf32>
    %cst_5 = arith.constant 9.99999997E-7 : f32
    %10 = vector.broadcast %cst_5 : f32 to vector<8x1xf32>
    %11 = arith.addf %9, %10 : vector<8x1xf32>
    %12 = math.rsqrt %11 : vector<8x1xf32>
    %13 = vector.broadcast %12 : vector<8x1xf32> to vector<8x256xf32>
    %14 = arith.mulf %2, %13 : vector<8x256xf32>
    %15 = vector.broadcast %4 : vector<1x256xf32> to vector<8x256xf32>
    %16 = arith.mulf %14, %15 : vector<8x256xf32>
    %17 = arith.truncf %16 : vector<8x256xf32> to vector<8x256xbf16>
    %c0_6 = arith.constant 0 : index
    %c0_7 = arith.constant 0 : index
    %18 = vector.load %arg3[%c0_6, %c0_7] : memref<256x1024xbf16, #tpu.memory_space<vmem>>, vector<256x1024xbf16>
    %cst_8 = arith.constant dense<0.000000e+00> : vector<8x1024xf32>
    %19 = tpu.matmul %17, %18, %cst_8 {dimension_numbers = #tpu.dot_dimension_numbers<[1], [0], [0], [1], [0, 0, 1, 1], [], []>} : vector<8x256xbf16>, vector<256x1024xbf16>, vector<8x1024xf32> -> vector<8x1024xf32>
    %20 = vector.extract_strided_slice %19 {offsets = [0, 0], sizes = [8, 512], strides = [1, 1]} : vector<8x1024xf32> to vector<8x512xf32>
    %21 = vector.extract_strided_slice %19 {offsets = [0, 512], sizes = [8, 512], strides = [1, 1]} : vector<8x1024xf32> to vector<8x512xf32>
    %cst_9 = arith.constant 0.000000e+00 : f32
    %22 = vector.broadcast %cst_9 : f32 to vector<8x512xf32>
    %23 = arith.subf %22, %20 : vector<8x512xf32>
    %24 = math.exp %23 : vector<8x512xf32>
    %cst_10 = arith.constant 1.000000e+00 : f32
    %25 = vector.broadcast %cst_10 : f32 to vector<8x512xf32>
    %26 = arith.addf %25, %24 : vector<8x512xf32>
    %27 = tpu.reciprocal %26 {approx = true} : vector<8x512xf32> -> vector<8x512xf32>
    %28 = arith.mulf %20, %27 : vector<8x512xf32>
    %29 = arith.mulf %28, %21 : vector<8x512xf32>
    %30 = arith.truncf %29 : vector<8x512xf32> to vector<8x512xbf16>
    %c0_11 = arith.constant 0 : index
    %c0_12 = arith.constant 0 : index
    %31 = vector.load %arg4[%c0_11, %c0_12] : memref<512x256xbf16, #tpu.memory_space<vmem>>, vector<512x256xbf16>
    %cst_13 = arith.constant dense<0.000000e+00> : vector<8x256xf32>
    %32 = tpu.matmul %30, %31, %cst_13 {dimension_numbers = #tpu.dot_dimension_numbers<[1], [0], [0], [1], [0, 0, 1, 1], [], []>} : vector<8x512xbf16>, vector<512x256xbf16>, vector<8x256xf32> -> vector<8x256xf32>
    %33 = arith.addf %2, %32 : vector<8x256xf32>
    %34 = arith.truncf %33 : vector<8x256xf32> to vector<8x256xbf16>
    %c0_14 = arith.constant 0 : index
    %c0_15 = arith.constant 0 : index
    %c0_16 = arith.constant 0 : index
    %35 = vector.load %arg5[%c0_14, %c0_15, %c0_16] : memref<1x8x256xbf16, #tpu.memory_space<vmem>>, vector<1x8x256xbf16>
    %36 = vector.shape_cast %35 : vector<1x8x256xbf16> to vector<8x256xbf16>
    %37 = vector.shape_cast %34 : vector<8x256xbf16> to vector<1x8x256xbf16>
    tpu.vector_store %arg5[%c0_14, %c0_15, %c0_16], %37 {strides = array<i32>} : memref<1x8x256xbf16, #tpu.memory_space<vmem>>, vector<1x8x256xbf16>,
    return
  }
  func.func @transform_0(%arg0: i32) -> (i32, i32, i32) {
    %c0_i32 = arith.constant 0 : i32
    %c0_i32_0 = arith.constant 0 : i32
    %c0_i32_1 = arith.constant 0 : i32
    return %arg0, %c0_i32, %c0_i32_0 : i32, i32, i32
  }
  func.func @transform_1(%arg0: i32) -> (i32, i32) {
    %c0_i32 = arith.constant 0 : i32
    %c0_i32_0 = arith.constant 0 : i32
    %c0_i32_1 = arith.constant 0 : i32
    return %c0_i32, %c0_i32_0 : i32, i32
  }
  func.func @transform_2(%arg0: i32) -> (i32, i32) {
    %c0_i32 = arith.constant 0 : i32
    %c0_i32_0 = arith.constant 0 : i32
    %c0_i32_1 = arith.constant 0 : i32
    return %c0_i32, %c0_i32_0 : i32, i32
  }
  func.func @transform_3(%arg0: i32) -> (i32, i32) {
    %c0_i32 = arith.constant 0 : i32
    %c0_i32_0 = arith.constant 0 : i32
    %c0_i32_1 = arith.constant 0 : i32
    return %c0_i32, %c0_i32_0 : i32, i32
  }
  func.func @transform_4(%arg0: i32) -> (i32, i32, i32) {
    %c0_i32 = arith.constant 0 : i32
    %c0_i32_0 = arith.constant 0 : i32
    %c0_i32_1 = arith.constant 0 : i32
    return %arg0, %c0_i32, %c0_i32_0 : i32, i32, i32
  }
}

module attributes {stable_mosaic.version = 11 : i64} {
  func.func @_attn_block_kernel(%arg0: i32, %arg1: memref<1x8x256xbf16, #tpu.memory_space<vmem>>, %arg2: memref<1x1x8xf32, #tpu.memory_space<vmem>>, %arg3: memref<8x128xf32, #tpu.memory_space<vmem>>, %arg4: memref<8x128xf32, #tpu.memory_space<vmem>>, %arg5: memref<1x256xbf16, #tpu.memory_space<vmem>>, %arg6: memref<256x768xbf16, #tpu.memory_space<vmem>>, %arg7: memref<256x256xbf16, #tpu.memory_space<vmem>>, %arg8: memref<1x8x256xbf16, #tpu.memory_space<vmem>>) attributes {dimension_semantics = [#tpu.dimension_semantics<parallel>], iteration_bounds = array<i64: 2>, scalar_prefetch = 0 : i64, scratch_operands = 0 : i64, tpu.core_type = #tpu.core_type<tc>, window_params = [{transform_indices = @transform_0, window_bounds = array<i64: 1, 8, 256>}, {transform_indices = @transform_1, window_bounds = array<i64: 1, 1, 8>}, {pipeline_mode = #tpu.pipeline_mode<synchronous>, transform_indices = @transform_2, window_bounds = array<i64: 8, 128>}, {pipeline_mode = #tpu.pipeline_mode<synchronous>, transform_indices = @transform_3, window_bounds = array<i64: 8, 128>}, {pipeline_mode = #tpu.pipeline_mode<synchronous>, transform_indices = @transform_4, window_bounds = array<i64: 1, 256>}, {pipeline_mode = #tpu.pipeline_mode<synchronous>, transform_indices = @transform_5, window_bounds = array<i64: 256, 768>}, {pipeline_mode = #tpu.pipeline_mode<synchronous>, transform_indices = @transform_6, window_bounds = array<i64: 256, 256>}, {transform_indices = @transform_7, window_bounds = array<i64: 1, 8, 256>}]} {
    %c0 = arith.constant 0 : index
    %c0_0 = arith.constant 0 : index
    %c0_1 = arith.constant 0 : index
    %0 = vector.load %arg1[%c0, %c0_0, %c0_1] : memref<1x8x256xbf16, #tpu.memory_space<vmem>>, vector<1x8x256xbf16>
    %1 = vector.shape_cast %0 : vector<1x8x256xbf16> to vector<8x256xbf16>
    %2 = arith.extf %1 : vector<8x256xbf16> to vector<8x256xf32>
    %c0_2 = arith.constant 0 : index
    %c0_3 = arith.constant 0 : index
    %3 = vector.load %arg5[%c0_2, %c0_3] : memref<1x256xbf16, #tpu.memory_space<vmem>>, vector<1x256xbf16>
    %4 = arith.extf %3 : vector<1x256xbf16> to vector<1x256xf32>
    %5 = arith.mulf %2, %2 : vector<8x256xf32>
    %cst = arith.constant dense<0.000000e+00> : vector<8xf32>
    %6 = vector.multi_reduction <add>, %5, %cst [1] : vector<8x256xf32> to vector<8xf32>
    %7 = vector.shape_cast %6 : vector<8xf32> to vector<8x1xf32>
    %cst_4 = arith.constant 2.560000e+02 : f32
    %8 = vector.broadcast %cst_4 : f32 to vector<8x1xf32>
    %9 = arith.divf %7, %8 : vector<8x1xf32>
    %cst_5 = arith.constant 9.99999997E-7 : f32
    %10 = vector.broadcast %cst_5 : f32 to vector<8x1xf32>
    %11 = arith.addf %9, %10 : vector<8x1xf32>
    %12 = math.rsqrt %11 : vector<8x1xf32>
    %13 = vector.broadcast %12 : vector<8x1xf32> to vector<8x256xf32>
    %14 = arith.mulf %2, %13 : vector<8x256xf32>
    %15 = vector.broadcast %4 : vector<1x256xf32> to vector<8x256xf32>
    %16 = arith.mulf %14, %15 : vector<8x256xf32>
    %17 = arith.truncf %16 : vector<8x256xf32> to vector<8x256xbf16>
    %c0_6 = arith.constant 0 : index
    %c0_7 = arith.constant 0 : index
    %18 = vector.load %arg6[%c0_6, %c0_7] : memref<256x768xbf16, #tpu.memory_space<vmem>>, vector<256x768xbf16>
    %cst_8 = arith.constant dense<0.000000e+00> : vector<8x768xf32>
    %19 = tpu.matmul %17, %18, %cst_8 {dimension_numbers = #tpu.dot_dimension_numbers<[1], [0], [0], [1], [0, 0, 1, 1], [], []>} : vector<8x256xbf16>, vector<256x768xbf16>, vector<8x768xf32> -> vector<8x768xf32>
    %c0_9 = arith.constant 0 : index
    %c0_10 = arith.constant 0 : index
    %20 = vector.load %arg3[%c0_9, %c0_10] : memref<8x128xf32, #tpu.memory_space<vmem>>, vector<8x128xf32>
    %c0_11 = arith.constant 0 : index
    %c0_12 = arith.constant 0 : index
    %21 = vector.load %arg4[%c0_11, %c0_12] : memref<8x128xf32, #tpu.memory_space<vmem>>, vector<8x128xf32>
    %c0_13 = arith.constant 0 : index
    %c0_14 = arith.constant 0 : index
    %c0_15 = arith.constant 0 : index
    %22 = vector.load %arg2[%c0_13, %c0_14, %c0_15] : memref<1x1x8xf32, #tpu.memory_space<vmem>>, vector<1x1x8xf32>
    %23 = vector.shape_cast %22 : vector<1x1x8xf32> to vector<1x8xf32>
    %cst_16 = arith.constant 0.000000e+00 : f32
    %24 = vector.broadcast %cst_16 : f32 to vector<1x8xf32>
    %25 = arith.cmpf ogt, %23, %24 : vector<1x8xf32>
    %cst_17 = arith.constant 0.000000e+00 : f32
    %cst_18 = arith.constant -1.000000e+30 : f32
    %26 = vector.broadcast %cst_17 : f32 to vector<1x8xf32>
    %27 = vector.broadcast %cst_18 : f32 to vector<1x8xf32>
    %28 = arith.select %25, %26, %27 : vector<1x8xi1>, vector<1x8xf32>
    %29 = vector.extract_strided_slice %19 {offsets = [0, 0], sizes = [8, 128], strides = [1, 1]} : vector<8x768xf32> to vector<8x128xf32>
    %30 = vector.extract_strided_slice %19 {offsets = [0, 256], sizes = [8, 128], strides = [1, 1]} : vector<8x768xf32> to vector<8x128xf32>
    %31 = vector.extract_strided_slice %19 {offsets = [0, 512], sizes = [8, 128], strides = [1, 1]} : vector<8x768xf32> to vector<8x128xf32>
    %32 = arith.mulf %29, %20 : vector<8x128xf32>
    %c64_i32 = arith.constant 64 : i32
    %33 = tpu.dynamic_rotate %29 by %c64_i32 dim 1 : vector<8x128xf32>, i32 -> vector<8x128xf32>
    %34 = arith.mulf %33, %21 : vector<8x128xf32>
    %35 = arith.addf %32, %34 : vector<8x128xf32>
    %36 = arith.mulf %30, %20 : vector<8x128xf32>
    %c64_i32_19 = arith.constant 64 : i32
    %37 = tpu.dynamic_rotate %30 by %c64_i32_19 dim 1 : vector<8x128xf32>, i32 -> vector<8x128xf32>
    %38 = arith.mulf %37, %21 : vector<8x128xf32>
    %39 = arith.addf %36, %38 : vector<8x128xf32>
    %40 = arith.truncf %35 : vector<8x128xf32> to vector<8x128xbf16>
    %41 = arith.truncf %39 : vector<8x128xf32> to vector<8x128xbf16>
    "tpu.trace_start"() <{level = 10 : i32, message = "qd,kd->qk"}> : () -> ()
    %cst_20 = arith.constant dense<0.000000e+00> : vector<8x8xf32>
    %42 = tpu.matmul %40, %41, %cst_20 {dimension_numbers = #tpu.dot_dimension_numbers<[1], [1], [0], [0], [0, 0, 1, 0], [], []>} : vector<8x128xbf16>, vector<8x128xbf16>, vector<8x8xf32> -> vector<8x8xf32>
    "tpu.trace_stop"() : () -> ()
    %43 = vector.broadcast %28 : vector<1x8xf32> to vector<8x8xf32>
    %44 = arith.addf %42, %43 : vector<8x8xf32>
    %cst_21 = arith.constant dense<0xFF800000> : vector<8xf32>
    %45 = vector.multi_reduction <maximumf>, %44, %cst_21 [1] : vector<8x8xf32> to vector<8xf32>
    %46 = vector.shape_cast %45 : vector<8xf32> to vector<8x1xf32>
    %47 = vector.broadcast %46 : vector<8x1xf32> to vector<8x8xf32>
    %48 = arith.subf %44, %47 : vector<8x8xf32>
    %49 = math.exp %48 : vector<8x8xf32>
    %cst_22 = arith.constant dense<0.000000e+00> : vector<8xf32>
    %50 = vector.multi_reduction <add>, %49, %cst_22 [1] : vector<8x8xf32> to vector<8xf32>
    %51 = vector.shape_cast %50 : vector<8xf32> to vector<8x1xf32>
    %52 = tpu.reciprocal %51 {approx = true} : vector<8x1xf32> -> vector<8x1xf32>
    %53 = vector.broadcast %52 : vector<8x1xf32> to vector<8x8xf32>
    %54 = arith.mulf %49, %53 : vector<8x8xf32>
    %55 = arith.truncf %54 : vector<8x8xf32> to vector<8x8xbf16>
    %56 = arith.truncf %31 : vector<8x128xf32> to vector<8x128xbf16>
    %cst_23 = arith.constant dense<0.000000e+00> : vector<8x128xf32>
    %57 = tpu.matmul %55, %56, %cst_23 {dimension_numbers = #tpu.dot_dimension_numbers<[1], [0], [0], [1], [0, 0, 1, 1], [], []>} : vector<8x8xbf16>, vector<8x128xbf16>, vector<8x128xf32> -> vector<8x128xf32>
    %58 = vector.extract_strided_slice %19 {offsets = [0, 128], sizes = [8, 128], strides = [1, 1]} : vector<8x768xf32> to vector<8x128xf32>
    %59 = vector.extract_strided_slice %19 {offsets = [0, 384], sizes = [8, 128], strides = [1, 1]} : vector<8x768xf32> to vector<8x128xf32>
    %60 = vector.extract_strided_slice %19 {offsets = [0, 640], sizes = [8, 128], strides = [1, 1]} : vector<8x768xf32> to vector<8x128xf32>
    %61 = arith.mulf %58, %20 : vector<8x128xf32>
    %c64_i32_24 = arith.constant 64 : i32
    %62 = tpu.dynamic_rotate %58 by %c64_i32_24 dim 1 : vector<8x128xf32>, i32 -> vector<8x128xf32>
    %63 = arith.mulf %62, %21 : vector<8x128xf32>
    %64 = arith.addf %61, %63 : vector<8x128xf32>
    %65 = arith.mulf %59, %20 : vector<8x128xf32>
    %c64_i32_25 = arith.constant 64 : i32
    %66 = tpu.dynamic_rotate %59 by %c64_i32_25 dim 1 : vector<8x128xf32>, i32 -> vector<8x128xf32>
    %67 = arith.mulf %66, %21 : vector<8x128xf32>
    %68 = arith.addf %65, %67 : vector<8x128xf32>
    %69 = arith.truncf %64 : vector<8x128xf32> to vector<8x128xbf16>
    %70 = arith.truncf %68 : vector<8x128xf32> to vector<8x128xbf16>
    "tpu.trace_start"() <{level = 10 : i32, message = "qd,kd->qk"}> : () -> ()
    %cst_26 = arith.constant dense<0.000000e+00> : vector<8x8xf32>
    %71 = tpu.matmul %69, %70, %cst_26 {dimension_numbers = #tpu.dot_dimension_numbers<[1], [1], [0], [0], [0, 0, 1, 0], [], []>} : vector<8x128xbf16>, vector<8x128xbf16>, vector<8x8xf32> -> vector<8x8xf32>
    "tpu.trace_stop"() : () -> ()
    %72 = vector.broadcast %28 : vector<1x8xf32> to vector<8x8xf32>
    %73 = arith.addf %71, %72 : vector<8x8xf32>
    %cst_27 = arith.constant dense<0xFF800000> : vector<8xf32>
    %74 = vector.multi_reduction <maximumf>, %73, %cst_27 [1] : vector<8x8xf32> to vector<8xf32>
    %75 = vector.shape_cast %74 : vector<8xf32> to vector<8x1xf32>
    %76 = vector.broadcast %75 : vector<8x1xf32> to vector<8x8xf32>
    %77 = arith.subf %73, %76 : vector<8x8xf32>
    %78 = math.exp %77 : vector<8x8xf32>
    %cst_28 = arith.constant dense<0.000000e+00> : vector<8xf32>
    %79 = vector.multi_reduction <add>, %78, %cst_28 [1] : vector<8x8xf32> to vector<8xf32>
    %80 = vector.shape_cast %79 : vector<8xf32> to vector<8x1xf32>
    %81 = tpu.reciprocal %80 {approx = true} : vector<8x1xf32> -> vector<8x1xf32>
    %82 = vector.broadcast %81 : vector<8x1xf32> to vector<8x8xf32>
    %83 = arith.mulf %78, %82 : vector<8x8xf32>
    %84 = arith.truncf %83 : vector<8x8xf32> to vector<8x8xbf16>
    %85 = arith.truncf %60 : vector<8x128xf32> to vector<8x128xbf16>
    %cst_29 = arith.constant dense<0.000000e+00> : vector<8x128xf32>
    %86 = tpu.matmul %84, %85, %cst_29 {dimension_numbers = #tpu.dot_dimension_numbers<[1], [0], [0], [1], [0, 0, 1, 1], [], []>} : vector<8x8xbf16>, vector<8x128xbf16>, vector<8x128xf32> -> vector<8x128xf32>
    %87 = tpu.concatenate %57, %86 in 1 : vector<8x128xf32>, vector<8x128xf32> -> vector<8x256xf32>
    %88 = arith.truncf %87 : vector<8x256xf32> to vector<8x256xbf16>
    %c0_30 = arith.constant 0 : index
    %c0_31 = arith.constant 0 : index
    %89 = vector.load %arg7[%c0_30, %c0_31] : memref<256x256xbf16, #tpu.memory_space<vmem>>, vector<256x256xbf16>
    %cst_32 = arith.constant dense<0.000000e+00> : vector<8x256xf32>
    %90 = tpu.matmul %88, %89, %cst_32 {dimension_numbers = #tpu.dot_dimension_numbers<[1], [0], [0], [1], [0, 0, 1, 1], [], []>} : vector<8x256xbf16>, vector<256x256xbf16>, vector<8x256xf32> -> vector<8x256xf32>
    %91 = arith.addf %2, %90 : vector<8x256xf32>
    %92 = arith.truncf %91 : vector<8x256xf32> to vector<8x256xbf16>
    %c0_33 = arith.constant 0 : index
    %c0_34 = arith.constant 0 : index
    %c0_35 = arith.constant 0 : index
    %93 = vector.load %arg8[%c0_33, %c0_34, %c0_35] : memref<1x8x256xbf16, #tpu.memory_space<vmem>>, vector<1x8x256xbf16>
    %94 = vector.shape_cast %93 : vector<1x8x256xbf16> to vector<8x256xbf16>
    %95 = vector.shape_cast %92 : vector<8x256xbf16> to vector<1x8x256xbf16>
    tpu.vector_store %arg8[%c0_33, %c0_34, %c0_35], %95 {strides = array<i32>} : memref<1x8x256xbf16, #tpu.memory_space<vmem>>, vector<1x8x256xbf16>,
    return
  }
  func.func @transform_0(%arg0: i32) -> (i32, i32, i32) {
    %c0_i32 = arith.constant 0 : i32
    %c0_i32_0 = arith.constant 0 : i32
    %c0_i32_1 = arith.constant 0 : i32
    return %arg0, %c0_i32, %c0_i32_0 : i32, i32, i32
  }
  func.func @transform_1(%arg0: i32) -> (i32, i32, i32) {
    %c0_i32 = arith.constant 0 : i32
    %c0_i32_0 = arith.constant 0 : i32
    %c0_i32_1 = arith.constant 0 : i32
    return %arg0, %c0_i32, %c0_i32_0 : i32, i32, i32
  }
  func.func @transform_2(%arg0: i32) -> (i32, i32) {
    %c0_i32 = arith.constant 0 : i32
    %c0_i32_0 = arith.constant 0 : i32
    %c0_i32_1 = arith.constant 0 : i32
    return %c0_i32, %c0_i32_0 : i32, i32
  }
  func.func @transform_3(%arg0: i32) -> (i32, i32) {
    %c0_i32 = arith.constant 0 : i32
    %c0_i32_0 = arith.constant 0 : i32
    %c0_i32_1 = arith.constant 0 : i32
    return %c0_i32, %c0_i32_0 : i32, i32
  }
  func.func @transform_4(%arg0: i32) -> (i32, i32) {
    %c0_i32 = arith.constant 0 : i32
    %c0_i32_0 = arith.constant 0 : i32
    %c0_i32_1 = arith.constant 0 : i32
    return %c0_i32, %c0_i32_0 : i32, i32
  }
  func.func @transform_5(%arg0: i32) -> (i32, i32) {
    %c0_i32 = arith.constant 0 : i32
    %c0_i32_0 = arith.constant 0 : i32
    %c0_i32_1 = arith.constant 0 : i32
    return %c0_i32, %c0_i32_0 : i32, i32
  }
  func.func @transform_6(%arg0: i32) -> (i32, i32) {
    %c0_i32 = arith.constant 0 : i32
    %c0_i32_0 = arith.constant 0 : i32
    %c0_i32_1 = arith.constant 0 : i32
    return %c0_i32, %c0_i32_0 : i32, i32
  }
  func.func @transform_7(%arg0: i32) -> (i32, i32, i32) {
    %c0_i32 = arith.constant 0 : i32
    %c0_i32_0 = arith.constant 0 : i32
    %c0_i32_1 = arith.constant 0 : i32
    return %arg0, %c0_i32, %c0_i32_0 : i32, i32, i32
  }
}

module attributes {stable_mosaic.version = 11 : i64} {
  func.func @_mlp_block_kernel(%arg0: i32, %arg1: memref<1x8x256xbf16, #tpu.memory_space<vmem>>, %arg2: memref<1x256xbf16, #tpu.memory_space<vmem>>, %arg3: memref<256x1024xbf16, #tpu.memory_space<vmem>>, %arg4: memref<512x256xbf16, #tpu.memory_space<vmem>>, %arg5: memref<1x8x256xbf16, #tpu.memory_space<vmem>>) attributes {dimension_semantics = [#tpu.dimension_semantics<parallel>], iteration_bounds = array<i64: 2>, scalar_prefetch = 0 : i64, scratch_operands = 0 : i64, tpu.core_type = #tpu.core_type<tc>, window_params = [{transform_indices = @transform_0, window_bounds = array<i64: 1, 8, 256>}, {pipeline_mode = #tpu.pipeline_mode<synchronous>, transform_indices = @transform_1, window_bounds = array<i64: 1, 256>}, {pipeline_mode = #tpu.pipeline_mode<synchronous>, transform_indices = @transform_2, window_bounds = array<i64: 256, 1024>}, {pipeline_mode = #tpu.pipeline_mode<synchronous>, transform_indices = @transform_3, window_bounds = array<i64: 512, 256>}, {transform_indices = @transform_4, window_bounds = array<i64: 1, 8, 256>}]} {
    %c0 = arith.constant 0 : index
    %c0_0 = arith.constant 0 : index
    %c0_1 = arith.constant 0 : index
    %0 = vector.load %arg1[%c0, %c0_0, %c0_1] : memref<1x8x256xbf16, #tpu.memory_space<vmem>>, vector<1x8x256xbf16>
    %1 = vector.shape_cast %0 : vector<1x8x256xbf16> to vector<8x256xbf16>
    %2 = arith.extf %1 : vector<8x256xbf16> to vector<8x256xf32>
    %c0_2 = arith.constant 0 : index
    %c0_3 = arith.constant 0 : index
    %3 = vector.load %arg2[%c0_2, %c0_3] : memref<1x256xbf16, #tpu.memory_space<vmem>>, vector<1x256xbf16>
    %4 = arith.extf %3 : vector<1x256xbf16> to vector<1x256xf32>
    %5 = arith.mulf %2, %2 : vector<8x256xf32>
    %cst = arith.constant dense<0.000000e+00> : vector<8xf32>
    %6 = vector.multi_reduction <add>, %5, %cst [1] : vector<8x256xf32> to vector<8xf32>
    %7 = vector.shape_cast %6 : vector<8xf32> to vector<8x1xf32>
    %cst_4 = arith.constant 2.560000e+02 : f32
    %8 = vector.broadcast %cst_4 : f32 to vector<8x1xf32>
    %9 = arith.divf %7, %8 : vector<8x1xf32>
    %cst_5 = arith.constant 9.99999997E-7 : f32
    %10 = vector.broadcast %cst_5 : f32 to vector<8x1xf32>
    %11 = arith.addf %9, %10 : vector<8x1xf32>
    %12 = math.rsqrt %11 : vector<8x1xf32>
    %13 = vector.broadcast %12 : vector<8x1xf32> to vector<8x256xf32>
    %14 = arith.mulf %2, %13 : vector<8x256xf32>
    %15 = vector.broadcast %4 : vector<1x256xf32> to vector<8x256xf32>
    %16 = arith.mulf %14, %15 : vector<8x256xf32>
    %17 = arith.truncf %16 : vector<8x256xf32> to vector<8x256xbf16>
    %c0_6 = arith.constant 0 : index
    %c0_7 = arith.constant 0 : index
    %18 = vector.load %arg3[%c0_6, %c0_7] : memref<256x1024xbf16, #tpu.memory_space<vmem>>, vector<256x1024xbf16>
    %cst_8 = arith.constant dense<0.000000e+00> : vector<8x1024xf32>
    %19 = tpu.matmul %17, %18, %cst_8 {dimension_numbers = #tpu.dot_dimension_numbers<[1], [0], [0], [1], [0, 0, 1, 1], [], []>} : vector<8x256xbf16>, vector<256x1024xbf16>, vector<8x1024xf32> -> vector<8x1024xf32>
    %20 = vector.extract_strided_slice %19 {offsets = [0, 0], sizes = [8, 512], strides = [1, 1]} : vector<8x1024xf32> to vector<8x512xf32>
    %21 = vector.extract_strided_slice %19 {offsets = [0, 512], sizes = [8, 512], strides = [1, 1]} : vector<8x1024xf32> to vector<8x512xf32>
    %cst_9 = arith.constant 0.000000e+00 : f32
    %22 = vector.broadcast %cst_9 : f32 to vector<8x512xf32>
    %23 = arith.subf %22, %20 : vector<8x512xf32>
    %24 = math.exp %23 : vector<8x512xf32>
    %cst_10 = arith.constant 1.000000e+00 : f32
    %25 = vector.broadcast %cst_10 : f32 to vector<8x512xf32>
    %26 = arith.addf %25, %24 : vector<8x512xf32>
    %27 = tpu.reciprocal %26 {approx = true} : vector<8x512xf32> -> vector<8x512xf32>
    %28 = arith.mulf %20, %27 : vector<8x512xf32>
    %29 = arith.mulf %28, %21 : vector<8x512xf32>
    %30 = arith.truncf %29 : vector<8x512xf32> to vector<8x512xbf16>
    %c0_11 = arith.constant 0 : index
    %c0_12 = arith.constant 0 : index
    %31 = vector.load %arg4[%c0_11, %c0_12] : memref<512x256xbf16, #tpu.memory_space<vmem>>, vector<512x256xbf16>
    %cst_13 = arith.constant dense<0.000000e+00> : vector<8x256xf32>
    %32 = tpu.matmul %30, %31, %cst_13 {dimension_numbers = #tpu.dot_dimension_numbers<[1], [0], [0], [1], [0, 0, 1, 1], [], []>} : vector<8x512xbf16>, vector<512x256xbf16>, vector<8x256xf32> -> vector<8x256xf32>
    %33 = arith.addf %2, %32 : vector<8x256xf32>
    %34 = arith.truncf %33 : vector<8x256xf32> to vector<8x256xbf16>
    %c0_14 = arith.constant 0 : index
    %c0_15 = arith.constant 0 : index
    %c0_16 = arith.constant 0 : index
    %35 = vector.load %arg5[%c0_14, %c0_15, %c0_16] : memref<1x8x256xbf16, #tpu.memory_space<vmem>>, vector<1x8x256xbf16>
    %36 = vector.shape_cast %35 : vector<1x8x256xbf16> to vector<8x256xbf16>
    %37 = vector.shape_cast %34 : vector<8x256xbf16> to vector<1x8x256xbf16>
    tpu.vector_store %arg5[%c0_14, %c0_15, %c0_16], %37 {strides = array<i32>} : memref<1x8x256xbf16, #tpu.memory_space<vmem>>, vector<1x8x256xbf16>,
    return
  }
  func.func @transform_0(%arg0: i32) -> (i32, i32, i32) {
    %c0_i32 = arith.constant 0 : i32
    %c0_i32_0 = arith.constant 0 : i32
    %c0_i32_1 = arith.constant 0 : i32
    return %arg0, %c0_i32, %c0_i32_0 : i32, i32, i32
  }
  func.func @transform_1(%arg0: i32) -> (i32, i32) {
    %c0_i32 = arith.constant 0 : i32
    %c0_i32_0 = arith.constant 0 : i32
    %c0_i32_1 = arith.constant 0 : i32
    return %c0_i32, %c0_i32_0 : i32, i32
  }
  func.func @transform_2(%arg0: i32) -> (i32, i32) {
    %c0_i32 = arith.constant 0 : i32
    %c0_i32_0 = arith.constant 0 : i32
    %c0_i32_1 = arith.constant 0 : i32
    return %c0_i32, %c0_i32_0 : i32, i32
  }
  func.func @transform_3(%arg0: i32) -> (i32, i32) {
    %c0_i32 = arith.constant 0 : i32
    %c0_i32_0 = arith.constant 0 : i32
    %c0_i32_1 = arith.constant 0 : i32
    return %c0_i32, %c0_i32_0 : i32, i32
  }
  func.func @transform_4(%arg0: i32) -> (i32, i32, i32) {
    %c0_i32 = arith.constant 0 : i32
    %c0_i32_0 = arith.constant 0 : i32
    %c0_i32_1 = arith.constant 0 : i32
    return %arg0, %c0_i32, %c0_i32_0 : i32, i32, i32
  }
}

module attributes {stable_mosaic.version = 11 : i64} {
  func.func @_final_pool_kernel(%arg0: i32, %arg1: memref<1x8x256xbf16, #tpu.memory_space<vmem>>, %arg2: memref<1x8x1xf32, #tpu.memory_space<vmem>>, %arg3: memref<1x256xbf16, #tpu.memory_space<vmem>>, %arg4: memref<1x1x256xbf16, #tpu.memory_space<vmem>>) attributes {dimension_semantics = [#tpu.dimension_semantics<parallel>], iteration_bounds = array<i64: 2>, scalar_prefetch = 0 : i64, scratch_operands = 0 : i64, tpu.core_type = #tpu.core_type<tc>, window_params = [{transform_indices = @transform_0, window_bounds = array<i64: 1, 8, 256>}, {transform_indices = @transform_1, window_bounds = array<i64: 1, 8, 1>}, {pipeline_mode = #tpu.pipeline_mode<synchronous>, transform_indices = @transform_2, window_bounds = array<i64: 1, 256>}, {transform_indices = @transform_3, window_bounds = array<i64: 1, 1, 256>}]} {
    %c0 = arith.constant 0 : index
    %c0_0 = arith.constant 0 : index
    %c0_1 = arith.constant 0 : index
    %0 = vector.load %arg1[%c0, %c0_0, %c0_1] : memref<1x8x256xbf16, #tpu.memory_space<vmem>>, vector<1x8x256xbf16>
    %1 = vector.shape_cast %0 : vector<1x8x256xbf16> to vector<8x256xbf16>
    %2 = arith.extf %1 : vector<8x256xbf16> to vector<8x256xf32>
    %c0_2 = arith.constant 0 : index
    %c0_3 = arith.constant 0 : index
    %3 = vector.load %arg3[%c0_2, %c0_3] : memref<1x256xbf16, #tpu.memory_space<vmem>>, vector<1x256xbf16>
    %4 = arith.extf %3 : vector<1x256xbf16> to vector<1x256xf32>
    %5 = arith.mulf %2, %2 : vector<8x256xf32>
    %cst = arith.constant dense<0.000000e+00> : vector<8xf32>
    %6 = vector.multi_reduction <add>, %5, %cst [1] : vector<8x256xf32> to vector<8xf32>
    %7 = vector.shape_cast %6 : vector<8xf32> to vector<8x1xf32>
    %cst_4 = arith.constant 2.560000e+02 : f32
    %8 = vector.broadcast %cst_4 : f32 to vector<8x1xf32>
    %9 = arith.divf %7, %8 : vector<8x1xf32>
    %cst_5 = arith.constant 9.99999997E-7 : f32
    %10 = vector.broadcast %cst_5 : f32 to vector<8x1xf32>
    %11 = arith.addf %9, %10 : vector<8x1xf32>
    %12 = math.rsqrt %11 : vector<8x1xf32>
    %13 = vector.broadcast %12 : vector<8x1xf32> to vector<8x256xf32>
    %14 = arith.mulf %2, %13 : vector<8x256xf32>
    %15 = vector.broadcast %4 : vector<1x256xf32> to vector<8x256xf32>
    %16 = arith.mulf %14, %15 : vector<8x256xf32>
    %c0_6 = arith.constant 0 : index
    %c0_7 = arith.constant 0 : index
    %c0_8 = arith.constant 0 : index
    %17 = vector.load %arg2[%c0_6, %c0_7, %c0_8] : memref<1x8x1xf32, #tpu.memory_space<vmem>>, vector<1x8x1xf32>
    %18 = vector.shape_cast %17 : vector<1x8x1xf32> to vector<8x1xf32>
    %19 = vector.broadcast %18 : vector<8x1xf32> to vector<8x256xf32>
    %20 = arith.mulf %16, %19 : vector<8x256xf32>
    %cst_9 = arith.constant dense<0.000000e+00> : vector<256xf32>
    %21 = vector.multi_reduction <add>, %20, %cst_9 [0] : vector<8x256xf32> to vector<256xf32>
    %22 = vector.shape_cast %21 : vector<256xf32> to vector<1x256xf32>
    %cst_10 = arith.constant dense<0.000000e+00> : vector<1xf32>
    %23 = vector.multi_reduction <add>, %18, %cst_10 [0] : vector<8x1xf32> to vector<1xf32>
    %24 = vector.shape_cast %23 : vector<1xf32> to vector<1x1xf32>
    %cst_11 = arith.constant 9.99999971E-10 : f32
    %25 = vector.broadcast %cst_11 : f32 to vector<1x1xf32>
    %26 = arith.maximumf %24, %25 : vector<1x1xf32>
    %27 = vector.broadcast %26 : vector<1x1xf32> to vector<1x256xf32>
    %28 = arith.divf %22, %27 : vector<1x256xf32>
    %29 = arith.truncf %28 : vector<1x256xf32> to vector<1x256xbf16>
    %c0_12 = arith.constant 0 : index
    %c0_13 = arith.constant 0 : index
    %c0_14 = arith.constant 0 : index
    %30 = vector.load %arg4[%c0_12, %c0_13, %c0_14] : memref<1x1x256xbf16, #tpu.memory_space<vmem>>, vector<1x1x256xbf16>
    %31 = vector.shape_cast %30 : vector<1x1x256xbf16> to vector<1x256xbf16>
    %32 = vector.shape_cast %29 : vector<1x256xbf16> to vector<1x1x256xbf16>
    tpu.vector_store %arg4[%c0_12, %c0_13, %c0_14], %32 {strides = array<i32>} : memref<1x1x256xbf16, #tpu.memory_space<vmem>>, vector<1x1x256xbf16>,
    return
  }
  func.func @transform_0(%arg0: i32) -> (i32, i32, i32) {
    %c0_i32 = arith.constant 0 : i32
    %c0_i32_0 = arith.constant 0 : i32
    %c0_i32_1 = arith.constant 0 : i32
    return %arg0, %c0_i32, %c0_i32_0 : i32, i32, i32
  }
  func.func @transform_1(%arg0: i32) -> (i32, i32, i32) {
    %c0_i32 = arith.constant 0 : i32
    %c0_i32_0 = arith.constant 0 : i32
    %c0_i32_1 = arith.constant 0 : i32
    return %arg0, %c0_i32, %c0_i32_0 : i32, i32, i32
  }
  func.func @transform_2(%arg0: i32) -> (i32, i32) {
    %c0_i32 = arith.constant 0 : i32
    %c0_i32_0 = arith.constant 0 : i32
    %c0_i32_1 = arith.constant 0 : i32
    return %c0_i32, %c0_i32_0 : i32, i32
  }
  func.func @transform_3(%arg0: i32) -> (i32, i32, i32) {
    %c0_i32 = arith.constant 0 : i32
    %c0_i32_0 = arith.constant 0 : i32
    %c0_i32_1 = arith.constant 0 : i32
    return %arg0, %c0_i32, %c0_i32_0 : i32, i32, i32
  }
}

</mosaic_0001>

<llo_original>
// kernel: encoder_forward.8
$region0: #{encoder_forward.8}
  #allocation0 [shape = 'u32[]', space=smem, size = 0x4, offset = 0x4, fixed_abs, tag = 'smem constant byte address 0x4 - core index']
  #allocation1 [shape = 'u32[144,128]{1,0:T(1,128)}', space=vmem, size = 0x12000, scoped, tag = 'internal scratch']
  %s0 = inlined_call_operand.vmem [shape: bf16[2,8,256], index: 0, kind: input, shape index: {}, may-alias: {0,4}]
  %s1 = inlined_call_operand.vmem [shape: bf16[1,256], index: 1, kind: input, shape index: {}]
  %s2 = inlined_call_operand.vmem [shape: bf16[256,1024], index: 2, kind: input, shape index: {}]
  %s3 = inlined_call_operand.vmem [shape: bf16[512,256], index: 3, kind: input, shape index: {}]
  %s4 = inlined_call_operand.vmem [shape: bf16[2,8,256], index: 4, kind: output, shape index: {}, may-alias: {0,4}]
  %s5 = sld [smem:[#allocation0]]
  $region49: #{encoder_forward.8} parent=0
    _
  %s7 = ssub.s32 1, %s5
  %s8 = scalar_select 0, %s7, %s5
  loop: start=0, step=1, limit=4
  $region2: #{encoder_forward.8} parent=0 // loop_pre_header
    _
  $region3: #{encoder_forward.8} parent=0 // loop_header
    %s10 = sphi 0, %s14
    %p11 = scmp.ge.s32.totalorder %s10, 4
    %s20 = sphi 0, %s22
    %s23 = sphi 0, %s20
    %s24 = sphi 0, %s23
    %s40 = sphi 0, %s24
    %s44 = sphi 0, %s44
    %s46 = sphi 0, %s44
    %s47 = sphi 0, %s46
    %s61 = sphi 0, %s47
    %s65 = sphi 0, %s65
    %s67 = sphi 0, %s65
    %s68 = sphi 0, %s67
    %s82 = sphi 0, %s68
    %s86 = sphi 0, %s86
    %s88 = sphi 0, %s86
    %s89 = sphi 0, %s88
    %s103 = sphi 0, %s89
    %s109 = sphi 0, %s111
    %s112 = sphi 0, %s109
    %s113 = sphi 0, %s112
    %s129 = sphi 0, %s113
  $region4: #{encoder_forward.8} parent=0 // loop_header_branch
    %13 = sbr.rel (%p11) target = $region8
  $region5: #{encoder_forward.8} parent=0 // loop_body
    %s15 = ssub.s32 %s10, 1
    %s16 = ssub.s32 %s10, 2
    %s17 = sadd.s32 %s10, 1
    %s18 = ssub.s32 %s10, %s17
    %p19 = scmp.eq.s32.totalorder %s18, 0
    %s21 = sadd.s32 %s20, 1
    %s22 = scalar_select %p19, %s20, %s21
    %p25 = pneg %p19
    %p26 = scmp.eq.s32.totalorder %s10, 1
    %p27 = por %p25, %p26
    %p28 = scmp.ne.s32.totalorder %s20, %s23
    %p29 = scmp.eq.s32.totalorder %s10, 0
    %p30 = por %p28, %p29
    %p31 = scmp.ne.s32.totalorder %s20, %s23
    %p32 = scmp.eq.s32.totalorder %s15, 1
    %p33 = por %p31, %p32
    %p34 = scmp.ne.s32.totalorder %s23, %s24
    %p35 = scmp.eq.s32.totalorder %s15, 0
    %p36 = por %p34, %p35
    %p37 = scmp.ne.s32.totalorder %s23, %s24
    %p38 = scmp.eq.s32.totalorder %s16, 1
    %p39 = por %p37, %p38
    %p41 = scmp.ne.s32.totalorder %s24, %s40
    %p42 = scmp.eq.s32.totalorder %s16, 0
    %p43 = por %p41, %p42
    %s45 = sadd.s32 %s44, 1
    %p48 = scmp.eq.s32.totalorder %s10, 1
    %p49 = scmp.ne.s32.totalorder %s44, %s46
    %p50 = scmp.eq.s32.totalorder %s10, 0
    %p51 = por %p49, %p50
    %p52 = scmp.ne.s32.totalorder %s44, %s46
    %p53 = scmp.eq.s32.totalorder %s15, 1
    %p54 = por %p52, %p53
    %p55 = scmp.ne.s32.totalorder %s46, %s47
    %p56 = scmp.eq.s32.totalorder %s15, 0
    %p57 = por %p55, %p56
    %p58 = scmp.ne.s32.totalorder %s46, %s47
    %p59 = scmp.eq.s32.totalorder %s16, 1
    %p60 = por %p58, %p59
    %p62 = scmp.ne.s32.totalorder %s47, %s61
    %p63 = scmp.eq.s32.totalorder %s16, 0
    %p64 = por %p62, %p63
    %s66 = sadd.s32 %s65, 1
    %p69 = scmp.eq.s32.totalorder %s10, 1
    %p70 = scmp.ne.s32.totalorder %s65, %s67
    %p71 = scmp.eq.s32.totalorder %s10, 0
    %p72 = por %p70, %p71
    %p73 = scmp.ne.s32.totalorder %s65, %s67
    %p74 = scmp.eq.s32.totalorder %s15, 1
    %p75 = por %p73, %p74
    %p76 = scmp.ne.s32.totalorder %s67, %s68
    %p77 = scmp.eq.s32.totalorder %s15, 0
    %p78 = por %p76, %p77
    %p79 = scmp.ne.s32.totalorder %s67, %s68
    %p80 = scmp.eq.s32.totalorder %s16, 1
    %p81 = por %p79, %p80
    %p83 = scmp.ne.s32.totalorder %s68, %s82
    %p84 = scmp.eq.s32.totalorder %s16, 0
    %p85 = por %p83, %p84
    %s87 = sadd.s32 %s86, 1
    %p90 = scmp.eq.s32.totalorder %s10, 1
    %p91 = scmp.ne.s32.totalorder %s86, %s88
    %p92 = scmp.eq.s32.totalorder %s10, 0
    %p93 = por %p91, %p92
    %p94 = scmp.ne.s32.totalorder %s86, %s88
    %p95 = scmp.eq.s32.totalorder %s15, 1
    %p96 = por %p94, %p95
    %p97 = scmp.ne.s32.totalorder %s88, %s89
    %p98 = scmp.eq.s32.totalorder %s15, 0
    %p99 = por %p97, %p98
    %p100 = scmp.ne.s32.totalorder %s88, %s89
    %p101 = scmp.eq.s32.totalorder %s16, 1
    %p102 = por %p100, %p101
    %p104 = scmp.ne.s32.totalorder %s89, %s103
    %p105 = scmp.eq.s32.totalorder %s16, 0
    %p106 = por %p104, %p105
    %s107 = ssub.s32 %s10, %s17
    %p108 = scmp.eq.s32.totalorder %s107, 0
    %s110 = sadd.s32 %s109, 1
    %s111 = scalar_select %p108, %s109, %s110
    %p114 = pneg %p108
    %p115 = scmp.eq.s32.totalorder %s10, 1
    %p116 = por %p114, %p115
    %p117 = scmp.ne.s32.totalorder %s109, %s112
    %p118 = scmp.eq.s32.totalorder %s10, 0
    %p119 = por %p117, %p118
    %p120 = scmp.ne.s32.totalorder %s109, %s112
    %p121 = scmp.eq.s32.totalorder %s15, 1
    %p122 = por %p120, %p121
    %p123 = scmp.ne.s32.totalorder %s112, %s113
    %p124 = scmp.eq.s32.totalorder %s15, 0
    %p125 = por %p123, %p124
    %p126 = scmp.ne.s32.totalorder %s112, %s113
    %p127 = scmp.eq.s32.totalorder %s16, 1
    %p128 = por %p126, %p127
    %p130 = scmp.ne.s32.totalorder %s113, %s129
    %p131 = scmp.eq.s32.totalorder %s16, 0
    %p132 = por %p130, %p131
    %p133 = scmp.le.s32.totalorder 1, %s10
    %p134 = scmp.lt.s32.totalorder %s10, 3
    %p135 = pnand %p133, %p134
    %p136 = pneg %p135
    // Predicated region
    $region9: #{encoder_forward.8} parent=5 // pred_check
      _
    $region10: #{encoder_forward.8} parent=5 // pred_check_branch
      %138 = sbr.rel (%p135) target = $region12
    $region11: #{encoder_forward.8} parent=5 // pred_region
      %s139 = ssub.s32 %s10, 1
      // Predicated region
      $region13: #{encoder_forward.8} parent=11 // pred_check
        %p140 = pneg %p57
      $region14: #{encoder_forward.8} parent=11 // pred_check_branch
        %142 = sbr.rel (%p140) target = $region16
      $region15: #{encoder_forward.8} parent=11 // pred_region
        _
      $region16: #{encoder_forward.8} parent=11 // pred_fallthru
        _
      // Predicated region
      $region17: #{encoder_forward.8} parent=11 // pred_check
        %p143 = pneg %p78
      $region18: #{encoder_forward.8} parent=11 // pred_check_branch
        %145 = sbr.rel (%p143) target = $region20
      $region19: #{encoder_forward.8} parent=11 // pred_region
        _
      $region20: #{encoder_forward.8} parent=11 // pred_fallthru
        _
      // Predicated region
      $region21: #{encoder_forward.8} parent=11 // pred_check
        %p146 = pneg %p99
      $region22: #{encoder_forward.8} parent=11 // pred_check_branch
        %148 = sbr.rel (%p146) target = $region24
      $region23: #{encoder_forward.8} parent=11 // pred_region
        _
      $region24: #{encoder_forward.8} parent=11 // pred_fallthru
        _
    $region12: #{encoder_forward.8} parent=5 // pred_fallthru
      _
    %p149 = scmp.lt.s32.totalorder %s10, 2
    // Predicated region
    $region25: #{encoder_forward.8} parent=5 // pred_check
      %p150 = pneg %p149
    $region26: #{encoder_forward.8} parent=5 // pred_check_branch
      %152 = sbr.rel (%p150) target = $region28
    $region27: #{encoder_forward.8} parent=5 // pred_region
      // Predicated region
      $region29: #{encoder_forward.8} parent=27 // pred_check
        %p153 = pneg %p30
      $region30: #{encoder_forward.8} parent=27 // pred_check_branch
        %155 = sbr.rel (%p153) target = $region32
      $region31: #{encoder_forward.8} parent=27 // pred_region
        %p156 = scmp.lt.s32.totalorder %s10, 1
        %s157 = scalar_select %p156, %s10, 1
        %s158 = smul.addr %s157, 2
        %s159 = smul.addr %s158, 4
        %s160 = scalar_lea.vmem %s0, %s159
      $region32: #{encoder_forward.8} parent=27 // pred_fallthru
        _
    $region28: #{encoder_forward.8} parent=5 // pred_fallthru
      _
    %p161 = scmp.le.s32.totalorder 1, %s10
    %p162 = scmp.lt.s32.totalorder %s10, 3
    %p163 = pnand %p161, %p162
    %p164 = pneg %p163
    // Predicated region
    $region33: #{encoder_forward.8} parent=5 // pred_check
      _
    $region34: #{encoder_forward.8} parent=5 // pred_check_branch
      %166 = sbr.rel (%p163) target = $region36
    $region35: #{encoder_forward.8} parent=5 // pred_region
      %s167 = ssub.s32 %s10, 1
      %p168 = scmp.lt.s32.totalorder %s15, 1
      %s169 = scalar_select %p168, %s15, 1
      %s170 = smul.addr %s169, 2
      %s171 = smul.addr %s170, 4
      %s172 = scalar_lea.vmem %s0, %s171
      %p173 = pneg %p36
      %p174 = pneg %p33
      %p175 = pneg %p57
      %p176 = pneg %p54
      %p177 = pneg %p78
      %p178 = pneg %p75
      %p179 = pneg %p99
      %p180 = pneg %p96
      %p181 = pneg %p125
      %p182 = pneg %p122
      %p183 = scmp.lt.s32.totalorder %s15, 1
      %s184 = scalar_select %p183, %s15, 1
      %s185 = smul.addr %s184, 2
      %s186 = smul.addr %s185, 4
      %s187 = scalar_lea.vmem %s4, %s186
      %p188 = scmp.lt.s32.totalorder %s15, 1
      %s189 = scalar_select %p188, %s15, 1
      %s190 = smul.addr %s189, 2
      %s191 = smul.addr %s190, 4
      %s192 = scalar_lea.vmem %s0, %s191
      %p193 = scmp.lt.s32.totalorder %s15, 1
      %s194 = scalar_select %p193, %s15, 1
      %s195 = smul.addr %s194, 2
      %s196 = smul.addr %s195, 4
      %s197 = scalar_lea.vmem %s4, %s196
      %v198 = vld [vmem:[%s192] sm:$0xff]
      %v199 = vunpack.c.l.bf16 %v198
      %v200 = vunpack.c.h.bf16 %v198
      %v201 = vld [vmem:[%s1] sm:$0x3]
      %v202 = vunpack.c.l.bf16 %v201
      %v203 = vmul.f32 %v199, %v199
      %v204 = vmul.f32 %v200, %v200
      %v205 = vadd.f32 %v203, %v204
      %206 = vadd.xlane.f32.xlu0 %v205
      %v207 = vpop.xlane.xlu0 %206
      %v208 = vrcp.pop 256.0
      %v209 = vmul.f32 %v207, %v208
      %v210 = vadd.f32 %v209, 1e-06
      %v211 = vrsqrt.pop %v210
      %v212 = vmul.f32 %v199, %v211
      %v213 = vmul.f32 %v200, %v211
      %v215 = vlaneseq
      %v216 = vshrl.u32 %v215, 7
      %v217 = vsub.s32 0, %v216
      %v218 = vrot.slane %v202, %v217
      %v219 = vlaneseq
      %v220 = vshrl.u32 %v219, 7
      %v221 = vsub.s32 2, %v220
      %v222 = vrot.slane %v202, %v221
      %v225 = vlaneseq
      %v226 = vshrl.u32 %v225, 7
      %v227 = vsub.s32 0, %v226
      %v228 = vrot.slane %v218, %v227
      %v229 = vlaneseq
      %v230 = vshrl.u32 %v229, 7
      %v231 = vsub.s32 0, %v230
      %v232 = vrot.slane %v222, %v231
      %v233 = vmul.f32 %v212, %v228
      %v234 = vmul.f32 %v213, %v232
      %v235 = vpack.c.bf16 %v233, %v233
      %v236 = vpack.c.bf16 %v234, %v234
      %v237 = vld [vmem:[%s2] sm:$0xff]
      %v238 = vld [vmem:[%s2 + $0x8] sm:$0xff]
      %v239 = vld [vmem:[%s2 + $0x10] sm:$0xff]
      %v240 = vld [vmem:[%s2 + $0x18] sm:$0xff]
      %v241 = vld [vmem:[%s2 + $0x20] sm:$0xff]
      %v242 = vld [vmem:[%s2 + $0x28] sm:$0xff]
      %v243 = vld [vmem:[%s2 + $0x30] sm:$0xff]
      %v244 = vld [vmem:[%s2 + $0x38] sm:$0xff]
      %v245 = vld [vmem:[%s2 + $0x40] sm:$0xff]
      %v246 = vld [vmem:[%s2 + $0x48] sm:$0xff]
      %v247 = vld [vmem:[%s2 + $0x50] sm:$0xff]
      %v248 = vld [vmem:[%s2 + $0x58] sm:$0xff]
      %v249 = vld [vmem:[%s2 + $0x60] sm:$0xff]
      %v250 = vld [vmem:[%s2 + $0x68] sm:$0xff]
      %v251 = vld [vmem:[%s2 + $0x70] sm:$0xff]
      %v252 = vld [vmem:[%s2 + $0x78] sm:$0xff]
      %v253 = vld [vmem:[%s2 + $0x80] sm:$0xff]
      %v254 = vld [vmem:[%s2 + $0x88] sm:$0xff]
      %v255 = vld [vmem:[%s2 + $0x90] sm:$0xff]
      %v256 = vld [vmem:[%s2 + $0x98] sm:$0xff]
      %v257 = vld [vmem:[%s2 + $0xa0] sm:$0xff]
      %v258 = vld [vmem:[%s2 + $0xa8] sm:$0xff]
      %v259 = vld [vmem:[%s2 + $0xb0] sm:$0xff]
      %v260 = vld [vmem:[%s2 + $0xb8] sm:$0xff]
      %v261 = vld [vmem:[%s2 + $0xc0] sm:$0xff]
      %v262 = vld [vmem:[%s2 + $0xc8] sm:$0xff]
      %v263 = vld [vmem:[%s2 + $0xd0] sm:$0xff]
      %v264 = vld [vmem:[%s2 + $0xd8] sm:$0xff]
      %v265 = vld [vmem:[%s2 + $0xe0] sm:$0xff]
      %v266 = vld [vmem:[%s2 + $0xe8] sm:$0xff]
      %v267 = vld [vmem:[%s2 + $0xf0] sm:$0xff]
      %v268 = vld [vmem:[%s2 + $0xf8] sm:$0xff]
      %v269 = vld [vmem:[%s2 + $0x100] sm:$0xff]
      %v270 = vld [vmem:[%s2 + $0x108] sm:$0xff]
      %v271 = vld [vmem:[%s2 + $0x110] sm:$0xff]
      %v272 = vld [vmem:[%s2 + $0x118] sm:$0xff]
      %v273 = vld [vmem:[%s2 + $0x120] sm:$0xff]
      %v274 = vld [vmem:[%s2 + $0x128] sm:$0xff]
      %v275 = vld [vmem:[%s2 + $0x130] sm:$0xff]
      %v276 = vld [vmem:[%s2 + $0x138] sm:$0xff]
      %v277 = vld [vmem:[%s2 + $0x140] sm:$0xff]
      %v278 = vld [vmem:[%s2 + $0x148] sm:$0xff]
      %v279 = vld [vmem:[%s2 + $0x150] sm:$0xff]
      %v280 = vld [vmem:[%s2 + $0x158] sm:$0xff]
      %v281 = vld [vmem:[%s2 + $0x160] sm:$0xff]
      %v282 = vld [vmem:[%s2 + $0x168] sm:$0xff]
      %v283 = vld [vmem:[%s2 + $0x170] sm:$0xff]
      %v284 = vld [vmem:[%s2 + $0x178] sm:$0xff]
      %v285 = vld [vmem:[%s2 + $0x180] sm:$0xff]
      %v286 = vld [vmem:[%s2 + $0x188] sm:$0xff]
      %v287 = vld [vmem:[%s2 + $0x190] sm:$0xff]
      %v288 = vld [vmem:[%s2 + $0x198] sm:$0xff]
      %v289 = vld [vmem:[%s2 + $0x1a0] sm:$0xff]
      %v290 = vld [vmem:[%s2 + $0x1a8] sm:$0xff]
      %v291 = vld [vmem:[%s2 + $0x1b0] sm:$0xff]
      %v292 = vld [vmem:[%s2 + $0x1b8] sm:$0xff]
      %v293 = vld [vmem:[%s2 + $0x1c0] sm:$0xff]
      %v294 = vld [vmem:[%s2 + $0x1c8] sm:$0xff]
      %v295 = vld [vmem:[%s2 + $0x1d0] sm:$0xff]
      %v296 = vld [vmem:[%s2 + $0x1d8] sm:$0xff]
      %v297 = vld [vmem:[%s2 + $0x1e0] sm:$0xff]
      %v298 = vld [vmem:[%s2 + $0x1e8] sm:$0xff]
      %v299 = vld [vmem:[%s2 + $0x1f0] sm:$0xff]
      %v300 = vld [vmem:[%s2 + $0x1f8] sm:$0xff]
      %v301 = vld [vmem:[%s2 + $0x200] sm:$0xff]
      %v302 = vld [vmem:[%s2 + $0x208] sm:$0xff]
      %v303 = vld [vmem:[%s2 + $0x210] sm:$0xff]
      %v304 = vld [vmem:[%s2 + $0x218] sm:$0xff]
      %v305 = vld [vmem:[%s2 + $0x220] sm:$0xff]
      %v306 = vld [vmem:[%s2 + $0x228] sm:$0xff]
      %v307 = vld [vmem:[%s2 + $0x230] sm:$0xff]
      %v308 = vld [vmem:[%s2 + $0x238] sm:$0xff]
      %v309 = vld [vmem:[%s2 + $0x240] sm:$0xff]
      %v310 = vld [vmem:[%s2 + $0x248] sm:$0xff]
      %v311 = vld [vmem:[%s2 + $0x250] sm:$0xff]
      %v312 = vld [vmem:[%s2 + $0x258] sm:$0xff]
      %v313 = vld [vmem:[%s2 + $0x260] sm:$0xff]
      %v314 = vld [vmem:[%s2 + $0x268] sm:$0xff]
      %v315 = vld [vmem:[%s2 + $0x270] sm:$0xff]
      %v316 = vld [vmem:[%s2 + $0x278] sm:$0xff]
      %v317 = vld [vmem:[%s2 + $0x280] sm:$0xff]
      %v318 = vld [vmem:[%s2 + $0x288] sm:$0xff]
      %v319 = vld [vmem:[%s2 + $0x290] sm:$0xff]
      %v320 = vld [vmem:[%s2 + $0x298] sm:$0xff]
      %v321 = vld [vmem:[%s2 + $0x2a0] sm:$0xff]
      %v322 = vld [vmem:[%s2 + $0x2a8] sm:$0xff]
      %v323 = vld [vmem:[%s2 + $0x2b0] sm:$0xff]
      %v324 = vld [vmem:[%s2 + $0x2b8] sm:$0xff]
      %v325 = vld [vmem:[%s2 + $0x2c0] sm:$0xff]
      %v326 = vld [vmem:[%s2 + $0x2c8] sm:$0xff]
      %v327 = vld [vmem:[%s2 + $0x2d0] sm:$0xff]
      %v328 = vld [vmem:[%s2 + $0x2d8] sm:$0xff]
      %v329 = vld [vmem:[%s2 + $0x2e0] sm:$0xff]
      %v330 = vld [vmem:[%s2 + $0x2e8] sm:$0xff]
      %v331 = vld [vmem:[%s2 + $0x2f0] sm:$0xff]
      %v332 = vld [vmem:[%s2 + $0x2f8] sm:$0xff]
      %v333 = vld [vmem:[%s2 + $0x300] sm:$0xff]
      %v334 = vld [vmem:[%s2 + $0x308] sm:$0xff]
      %v335 = vld [vmem:[%s2 + $0x310] sm:$0xff]
      %v336 = vld [vmem:[%s2 + $0x318] sm:$0xff]
      %v337 = vld [vmem:[%s2 + $0x320] sm:$0xff]
      %v338 = vld [vmem:[%s2 + $0x328] sm:$0xff]
      %v339 = vld [vmem:[%s2 + $0x330] sm:$0xff]
      %v340 = vld [vmem:[%s2 + $0x338] sm:$0xff]
      %v341 = vld [vmem:[%s2 + $0x340] sm:$0xff]
      %v342 = vld [vmem:[%s2 + $0x348] sm:$0xff]
      %v343 = vld [vmem:[%s2 + $0x350] sm:$0xff]
      %v344 = vld [vmem:[%s2 + $0x358] sm:$0xff]
      %v345 = vld [vmem:[%s2 + $0x360] sm:$0xff]
      %v346 = vld [vmem:[%s2 + $0x368] sm:$0xff]
      %v347 = vld [vmem:[%s2 + $0x370] sm:$0xff]
      %v348 = vld [vmem:[%s2 + $0x378] sm:$0xff]
      %v349 = vld [vmem:[%s2 + $0x380] sm:$0xff]
      %v350 = vld [vmem:[%s2 + $0x388] sm:$0xff]
      %v351 = vld [vmem:[%s2 + $0x390] sm:$0xff]
      %v352 = vld [vmem:[%s2 + $0x398] sm:$0xff]
      %v353 = vld [vmem:[%s2 + $0x3a0] sm:$0xff]
      %v354 = vld [vmem:[%s2 + $0x3a8] sm:$0xff]
      %v355 = vld [vmem:[%s2 + $0x3b0] sm:$0xff]
      %v356 = vld [vmem:[%s2 + $0x3b8] sm:$0xff]
      %v357 = vld [vmem:[%s2 + $0x3c0] sm:$0xff]
      %v358 = vld [vmem:[%s2 + $0x3c8] sm:$0xff]
      %v359 = vld [vmem:[%s2 + $0x3d0] sm:$0xff]
      %v360 = vld [vmem:[%s2 + $0x3d8] sm:$0xff]
      %v361 = vld [vmem:[%s2 + $0x3e0] sm:$0xff]
      %v362 = vld [vmem:[%s2 + $0x3e8] sm:$0xff]
      %v363 = vld [vmem:[%s2 + $0x3f0] sm:$0xff]
      %v364 = vld [vmem:[%s2 + $0x3f8] sm:$0xff]
      %v493 = vunpack.c.l.b16 %v237
      %v494 = vunpack.c.h.b16 %v237
      %v495 = vunpack.c.l.b16 %v238
      %v496 = vunpack.c.h.b16 %v238
      %v497 = vunpack.c.l.b16 %v239
      %v498 = vunpack.c.h.b16 %v239
      %v499 = vunpack.c.l.b16 %v240
      %v500 = vunpack.c.h.b16 %v240
      %v501 = vunpack.c.l.b16 %v241
      %v502 = vunpack.c.h.b16 %v241
      %v503 = vunpack.c.l.b16 %v242
      %v504 = vunpack.c.h.b16 %v242
      %v505 = vunpack.c.l.b16 %v243
      %v506 = vunpack.c.h.b16 %v243
      %v507 = vunpack.c.l.b16 %v244
      %v508 = vunpack.c.h.b16 %v244
      %v509 = vunpack.c.l.b16 %v245
      %v510 = vunpack.c.h.b16 %v245
      %v511 = vunpack.c.l.b16 %v246
      %v512 = vunpack.c.h.b16 %v246
      %v513 = vunpack.c.l.b16 %v247
      %v514 = vunpack.c.h.b16 %v247
      %v515 = vunpack.c.l.b16 %v248
      %v516 = vunpack.c.h.b16 %v248
      %v517 = vunpack.c.l.b16 %v249
      %v518 = vunpack.c.h.b16 %v249
      %v519 = vunpack.c.l.b16 %v250
      %v520 = vunpack.c.h.b16 %v250
      %v521 = vunpack.c.l.b16 %v251
      %v522 = vunpack.c.h.b16 %v251
      %v523 = vunpack.c.l.b16 %v252
      %v524 = vunpack.c.h.b16 %v252
      %v525 = vunpack.c.l.b16 %v253
      %v526 = vunpack.c.h.b16 %v253
      %v527 = vunpack.c.l.b16 %v254
      %v528 = vunpack.c.h.b16 %v254
      %v529 = vunpack.c.l.b16 %v255
      %v530 = vunpack.c.h.b16 %v255
      %v531 = vunpack.c.l.b16 %v256
      %v532 = vunpack.c.h.b16 %v256
      %v533 = vunpack.c.l.b16 %v257
      %v534 = vunpack.c.h.b16 %v257
      %v535 = vunpack.c.l.b16 %v258
      %v536 = vunpack.c.h.b16 %v258
      %v537 = vunpack.c.l.b16 %v259
      %v538 = vunpack.c.h.b16 %v259
      %v539 = vunpack.c.l.b16 %v260
      %v540 = vunpack.c.h.b16 %v260
      %v541 = vunpack.c.l.b16 %v261
      %v542 = vunpack.c.h.b16 %v261
      %v543 = vunpack.c.l.b16 %v262
      %v544 = vunpack.c.h.b16 %v262
      %v545 = vunpack.c.l.b16 %v263
      %v546 = vunpack.c.h.b16 %v263
      %v547 = vunpack.c.l.b16 %v264
      %v548 = vunpack.c.h.b16 %v264
      %v549 = vunpack.c.l.b16 %v265
      %v550 = vunpack.c.h.b16 %v265
      %v551 = vunpack.c.l.b16 %v266
      %v552 = vunpack.c.h.b16 %v266
      %v553 = vunpack.c.l.b16 %v267
      %v554 = vunpack.c.h.b16 %v267
      %v555 = vunpack.c.l.b16 %v268
      %v556 = vunpack.c.h.b16 %v268
      %v557 = vunpack.c.l.b16 %v269
      %v558 = vunpack.c.h.b16 %v269
      %v559 = vunpack.c.l.b16 %v270
      %v560 = vunpack.c.h.b16 %v270
      %v561 = vunpack.c.l.b16 %v271
      %v562 = vunpack.c.h.b16 %v271
      %v563 = vunpack.c.l.b16 %v272
      %v564 = vunpack.c.h.b16 %v272
      %v565 = vunpack.c.l.b16 %v273
      %v566 = vunpack.c.h.b16 %v273
      %v567 = vunpack.c.l.b16 %v274
      %v568 = vunpack.c.h.b16 %v274
      %v569 = vunpack.c.l.b16 %v275
      %v570 = vunpack.c.h.b16 %v275
      %v571 = vunpack.c.l.b16 %v276
      %v572 = vunpack.c.h.b16 %v276
      %v573 = vunpack.c.l.b16 %v277
      %v574 = vunpack.c.h.b16 %v277
      %v575 = vunpack.c.l.b16 %v278
      %v576 = vunpack.c.h.b16 %v278
      %v577 = vunpack.c.l.b16 %v279
      %v578 = vunpack.c.h.b16 %v279
      %v579 = vunpack.c.l.b16 %v280
      %v580 = vunpack.c.h.b16 %v280
      %v581 = vunpack.c.l.b16 %v281
      %v582 = vunpack.c.h.b16 %v281
      %v583 = vunpack.c.l.b16 %v282
      %v584 = vunpack.c.h.b16 %v282
      %v585 = vunpack.c.l.b16 %v283
      %v586 = vunpack.c.h.b16 %v283
      %v587 = vunpack.c.l.b16 %v284
      %v588 = vunpack.c.h.b16 %v284
      %v589 = vunpack.c.l.b16 %v285
      %v590 = vunpack.c.h.b16 %v285
      %v591 = vunpack.c.l.b16 %v286
      %v592 = vunpack.c.h.b16 %v286
      %v593 = vunpack.c.l.b16 %v287
      %v594 = vunpack.c.h.b16 %v287
      %v595 = vunpack.c.l.b16 %v288
      %v596 = vunpack.c.h.b16 %v288
      %v597 = vunpack.c.l.b16 %v289
      %v598 = vunpack.c.h.b16 %v289
      %v599 = vunpack.c.l.b16 %v290
      %v600 = vunpack.c.h.b16 %v290
      %v601 = vunpack.c.l.b16 %v291
      %v602 = vunpack.c.h.b16 %v291
      %v603 = vunpack.c.l.b16 %v292
      %v604 = vunpack.c.h.b16 %v292
      %v605 = vunpack.c.l.b16 %v293
      %v606 = vunpack.c.h.b16 %v293
      %v607 = vunpack.c.l.b16 %v294
      %v608 = vunpack.c.h.b16 %v294
      %v609 = vunpack.c.l.b16 %v295
      %v610 = vunpack.c.h.b16 %v295
      %v611 = vunpack.c.l.b16 %v296
      %v612 = vunpack.c.h.b16 %v296
      %v613 = vunpack.c.l.b16 %v297
      %v614 = vunpack.c.h.b16 %v297
      %v615 = vunpack.c.l.b16 %v298
      %v616 = vunpack.c.h.b16 %v298
      %v617 = vunpack.c.l.b16 %v299
      %v618 = vunpack.c.h.b16 %v299
      %v619 = vunpack.c.l.b16 %v300
      %v620 = vunpack.c.h.b16 %v300
      %v621 = vunpack.c.l.b16 %v301
      %v622 = vunpack.c.h.b16 %v301
      %v623 = vunpack.c.l.b16 %v302
      %v624 = vunpack.c.h.b16 %v302
      %v625 = vunpack.c.l.b16 %v303
      %v626 = vunpack.c.h.b16 %v303
      %v627 = vunpack.c.l.b16 %v304
      %v628 = vunpack.c.h.b16 %v304
      %v629 = vunpack.c.l.b16 %v305
      %v630 = vunpack.c.h.b16 %v305
      %v631 = vunpack.c.l.b16 %v306
      %v632 = vunpack.c.h.b16 %v306
      %v633 = vunpack.c.l.b16 %v307
      %v634 = vunpack.c.h.b16 %v307
      %v635 = vunpack.c.l.b16 %v308
      %v636 = vunpack.c.h.b16 %v308
      %v637 = vunpack.c.l.b16 %v309
      %v638 = vunpack.c.h.b16 %v309
      %v639 = vunpack.c.l.b16 %v310
      %v640 = vunpack.c.h.b16 %v310
      %v641 = vunpack.c.l.b16 %v311
      %v642 = vunpack.c.h.b16 %v311
      %v643 = vunpack.c.l.b16 %v312
      %v644 = vunpack.c.h.b16 %v312
      %v645 = vunpack.c.l.b16 %v313
      %v646 = vunpack.c.h.b16 %v313
      %v647 = vunpack.c.l.b16 %v314
      %v648 = vunpack.c.h.b16 %v314
      %v649 = vunpack.c.l.b16 %v315
      %v650 = vunpack.c.h.b16 %v315
      %v651 = vunpack.c.l.b16 %v316
      %v652 = vunpack.c.h.b16 %v316
      %v653 = vunpack.c.l.b16 %v317
      %v654 = vunpack.c.h.b16 %v317
      %v655 = vunpack.c.l.b16 %v318
      %v656 = vunpack.c.h.b16 %v318
      %v657 = vunpack.c.l.b16 %v319
      %v658 = vunpack.c.h.b16 %v319
      %v659 = vunpack.c.l.b16 %v320
      %v660 = vunpack.c.h.b16 %v320
      %v661 = vunpack.c.l.b16 %v321
      %v662 = vunpack.c.h.b16 %v321
      %v663 = vunpack.c.l.b16 %v322
      %v664 = vunpack.c.h.b16 %v322
      %v665 = vunpack.c.l.b16 %v323
      %v666 = vunpack.c.h.b16 %v323
      %v667 = vunpack.c.l.b16 %v324
      %v668 = vunpack.c.h.b16 %v324
      %v669 = vunpack.c.l.b16 %v325
      %v670 = vunpack.c.h.b16 %v325
      %v671 = vunpack.c.l.b16 %v326
      %v672 = vunpack.c.h.b16 %v326
      %v673 = vunpack.c.l.b16 %v327
      %v674 = vunpack.c.h.b16 %v327
      %v675 = vunpack.c.l.b16 %v328
      %v676 = vunpack.c.h.b16 %v328
      %v677 = vunpack.c.l.b16 %v329
      %v678 = vunpack.c.h.b16 %v329
      %v679 = vunpack.c.l.b16 %v330
      %v680 = vunpack.c.h.b16 %v330
      %v681 = vunpack.c.l.b16 %v331
      %v682 = vunpack.c.h.b16 %v331
      %v683 = vunpack.c.l.b16 %v332
      %v684 = vunpack.c.h.b16 %v332
      %v685 = vunpack.c.l.b16 %v333
      %v686 = vunpack.c.h.b16 %v333
      %v687 = vunpack.c.l.b16 %v334
      %v688 = vunpack.c.h.b16 %v334
      %v689 = vunpack.c.l.b16 %v335
      %v690 = vunpack.c.h.b16 %v335
      %v691 = vunpack.c.l.b16 %v336
      %v692 = vunpack.c.h.b16 %v336
      %v693 = vunpack.c.l.b16 %v337
      %v694 = vunpack.c.h.b16 %v337
      %v695 = vunpack.c.l.b16 %v338
      %v696 = vunpack.c.h.b16 %v338
      %v697 = vunpack.c.l.b16 %v339
      %v698 = vunpack.c.h.b16 %v339
      %v699 = vunpack.c.l.b16 %v340
      %v700 = vunpack.c.h.b16 %v340
      %v701 = vunpack.c.l.b16 %v341
      %v702 = vunpack.c.h.b16 %v341
      %v703 = vunpack.c.l.b16 %v342
      %v704 = vunpack.c.h.b16 %v342
      %v705 = vunpack.c.l.b16 %v343
      %v706 = vunpack.c.h.b16 %v343
      %v707 = vunpack.c.l.b16 %v344
      %v708 = vunpack.c.h.b16 %v344
      %v709 = vunpack.c.l.b16 %v345
      %v710 = vunpack.c.h.b16 %v345
      %v711 = vunpack.c.l.b16 %v346
      %v712 = vunpack.c.h.b16 %v346
      %v713 = vunpack.c.l.b16 %v347
      %v714 = vunpack.c.h.b16 %v347
      %v715 = vunpack.c.l.b16 %v348
      %v716 = vunpack.c.h.b16 %v348
      %v717 = vunpack.c.l.b16 %v349
      %v718 = vunpack.c.h.b16 %v349
      %v719 = vunpack.c.l.b16 %v350
      %v720 = vunpack.c.h.b16 %v350
      %v721 = vunpack.c.l.b16 %v351
      %v722 = vunpack.c.h.b16 %v351
      %v723 = vunpack.c.l.b16 %v352
      %v724 = vunpack.c.h.b16 %v352
      %v725 = vunpack.c.l.b16 %v353
      %v726 = vunpack.c.h.b16 %v353
      %v727 = vunpack.c.l.b16 %v354
      %v728 = vunpack.c.h.b16 %v354
      %v729 = vunpack.c.l.b16 %v355
      %v730 = vunpack.c.h.b16 %v355
      %v731 = vunpack.c.l.b16 %v356
      %v732 = vunpack.c.h.b16 %v356
      %v733 = vunpack.c.l.b16 %v357
      %v734 = vunpack.c.h.b16 %v357
      %v735 = vunpack.c.l.b16 %v358
      %v736 = vunpack.c.h.b16 %v358
      %v737 = vunpack.c.l.b16 %v359
      %v738 = vunpack.c.h.b16 %v359
      %v739 = vunpack.c.l.b16 %v360
      %v740 = vunpack.c.h.b16 %v360
      %v741 = vunpack.c.l.b16 %v361
      %v742 = vunpack.c.h.b16 %v361
      %v743 = vunpack.c.l.b16 %v362
      %v744 = vunpack.c.h.b16 %v362
      %v745 = vunpack.c.l.b16 %v363
      %v746 = vunpack.c.h.b16 %v363
      %v747 = vunpack.c.l.b16 %v364
      %v748 = vunpack.c.h.b16 %v364
      %v749 = vpack.c.b16 %v501, %v493
      %v750 = vpack.c.b16 %v502, %v494
      %v751 = vpack.c.b16 %v503, %v495
      %v752 = vpack.c.b16 %v504, %v496
      %v753 = vpack.c.b16 %v505, %v497
      %v754 = vpack.c.b16 %v506, %v498
      %v755 = vpack.c.b16 %v507, %v499
      %v756 = vpack.c.b16 %v508, %v500
      %v757 = vpack.c.b16 %v517, %v509
      %v758 = vpack.c.b16 %v518, %v510
      %v759 = vpack.c.b16 %v519, %v511
      %v760 = vpack.c.b16 %v520, %v512
      %v761 = vpack.c.b16 %v521, %v513
      %v762 = vpack.c.b16 %v522, %v514
      %v763 = vpack.c.b16 %v523, %v515
      %v764 = vpack.c.b16 %v524, %v516
      %v765 = vpack.c.b16 %v533, %v525
      %v766 = vpack.c.b16 %v534, %v526
      %v767 = vpack.c.b16 %v535, %v527
      %v768 = vpack.c.b16 %v536, %v528
      %v769 = vpack.c.b16 %v537, %v529
      %v770 = vpack.c.b16 %v538, %v530
      %v771 = vpack.c.b16 %v539, %v531
      %v772 = vpack.c.b16 %v540, %v532
      %v773 = vpack.c.b16 %v549, %v541
      %v774 = vpack.c.b16 %v550, %v542
      %v775 = vpack.c.b16 %v551, %v543
      %v776 = vpack.c.b16 %v552, %v544
      %v777 = vpack.c.b16 %v553, %v545
      %v778 = vpack.c.b16 %v554, %v546
      %v779 = vpack.c.b16 %v555, %v547
      %v780 = vpack.c.b16 %v556, %v548
      %v781 = vpack.c.b16 %v565, %v557
      %v782 = vpack.c.b16 %v566, %v558
      %v783 = vpack.c.b16 %v567, %v559
      %v784 = vpack.c.b16 %v568, %v560
      %v785 = vpack.c.b16 %v569, %v561
      %v786 = vpack.c.b16 %v570, %v562
      %v787 = vpack.c.b16 %v571, %v563
      %v788 = vpack.c.b16 %v572, %v564
      %v789 = vpack.c.b16 %v581, %v573
      %v790 = vpack.c.b16 %v582, %v574
      %v791 = vpack.c.b16 %v583, %v575
      %v792 = vpack.c.b16 %v584, %v576
      %v793 = vpack.c.b16 %v585, %v577
      %v794 = vpack.c.b16 %v586, %v578
      %v795 = vpack.c.b16 %v587, %v579
      %v796 = vpack.c.b16 %v588, %v580
      %v797 = vpack.c.b16 %v597, %v589
      %v798 = vpack.c.b16 %v598, %v590
      %v799 = vpack.c.b16 %v599, %v591
      %v800 = vpack.c.b16 %v600, %v592
      %v801 = vpack.c.b16 %v601, %v593
      %v802 = vpack.c.b16 %v602, %v594
      %v803 = vpack.c.b16 %v603, %v595
      %v804 = vpack.c.b16 %v604, %v596
      %v805 = vpack.c.b16 %v613, %v605
      %v806 = vpack.c.b16 %v614, %v606
      %v807 = vpack.c.b16 %v615, %v607
      %v808 = vpack.c.b16 %v616, %v608
      %v809 = vpack.c.b16 %v617, %v609
      %v810 = vpack.c.b16 %v618, %v610
      %v811 = vpack.c.b16 %v619, %v611
      %v812 = vpack.c.b16 %v620, %v612
      %v813 = vpack.c.b16 %v629, %v621
      %v814 = vpack.c.b16 %v630, %v622
      %v815 = vpack.c.b16 %v631, %v623
      %v816 = vpack.c.b16 %v632, %v624
      %v817 = vpack.c.b16 %v633, %v625
      %v818 = vpack.c.b16 %v634, %v626
      %v819 = vpack.c.b16 %v635, %v627
      %v820 = vpack.c.b16 %v636, %v628
      %v821 = vpack.c.b16 %v645, %v637
      %v822 = vpack.c.b16 %v646, %v638
      %v823 = vpack.c.b16 %v647, %v639
      %v824 = vpack.c.b16 %v648, %v640
      %v825 = vpack.c.b16 %v649, %v641
      %v826 = vpack.c.b16 %v650, %v642
      %v827 = vpack.c.b16 %v651, %v643
      %v828 = vpack.c.b16 %v652, %v644
      %v829 = vpack.c.b16 %v661, %v653
      %v830 = vpack.c.b16 %v662, %v654
      %v831 = vpack.c.b16 %v663, %v655
      %v832 = vpack.c.b16 %v664, %v656
      %v833 = vpack.c.b16 %v665, %v657
      %v834 = vpack.c.b16 %v666, %v658
      %v835 = vpack.c.b16 %v667, %v659
      %v836 = vpack.c.b16 %v668, %v660
      %v837 = vpack.c.b16 %v677, %v669
      %v838 = vpack.c.b16 %v678, %v670
      %v839 = vpack.c.b16 %v679, %v671
      %v840 = vpack.c.b16 %v680, %v672
      %v841 = vpack.c.b16 %v681, %v673
      %v842 = vpack.c.b16 %v682, %v674
      %v843 = vpack.c.b16 %v683, %v675
      %v844 = vpack.c.b16 %v684, %v676
      %v845 = vpack.c.b16 %v693, %v685
      %v846 = vpack.c.b16 %v694, %v686
      %v847 = vpack.c.b16 %v695, %v687
      %v848 = vpack.c.b16 %v696, %v688
      %v849 = vpack.c.b16 %v697, %v689
      %v850 = vpack.c.b16 %v698, %v690
      %v851 = vpack.c.b16 %v699, %v691
      %v852 = vpack.c.b16 %v700, %v692
      %v853 = vpack.c.b16 %v709, %v701
      %v854 = vpack.c.b16 %v710, %v702
      %v855 = vpack.c.b16 %v711, %v703
      %v856 = vpack.c.b16 %v712, %v704
      %v857 = vpack.c.b16 %v713, %v705
      %v858 = vpack.c.b16 %v714, %v706
      %v859 = vpack.c.b16 %v715, %v707
      %v860 = vpack.c.b16 %v716, %v708
      %v861 = vpack.c.b16 %v725, %v717
      %v862 = vpack.c.b16 %v726, %v718
      %v863 = vpack.c.b16 %v727, %v719
      %v864 = vpack.c.b16 %v728, %v720
      %v865 = vpack.c.b16 %v729, %v721
      %v866 = vpack.c.b16 %v730, %v722
      %v867 = vpack.c.b16 %v731, %v723
      %v868 = vpack.c.b16 %v732, %v724
      %v869 = vpack.c.b16 %v741, %v733
      %v870 = vpack.c.b16 %v742, %v734
      %v871 = vpack.c.b16 %v743, %v735
      %v872 = vpack.c.b16 %v744, %v736
      %v873 = vpack.c.b16 %v745, %v737
      %v874 = vpack.c.b16 %v746, %v738
      %v875 = vpack.c.b16 %v747, %v739
      %v876 = vpack.c.b16 %v748, %v740
      %1005 = vmatprep.subr.bf16.mxu0 %v750
      %1006 = vmatpush1.bf16.msra.mxu0 %v749
      %1007 = vmatprep.subr.bf16.mxu0 %v758
      %1008 = vmatpush1.bf16.msra.mxu0 %v757
      %1009 = vmatprep.subr.bf16.mxu0 %v766
      %1010 = vmatpush1.bf16.msra.mxu0 %v765
      %1011 = vmatprep.subr.bf16.mxu0 %v774
      %1012 = vmatpush1.bf16.msra.mxu0 %v773
      %1013 = vmatprep.subr.bf16.mxu0 %v782
      %1014 = vmatpush1.bf16.msra.mxu0 %v781
      %1015 = vmatprep.subr.bf16.mxu0 %v790
      %1016 = vmatpush1.bf16.msra.mxu0 %v789
      %1017 = vmatprep.subr.bf16.mxu0 %v798
      %1018 = vmatpush1.bf16.msra.mxu0 %v797
      %1019 = vmatprep.subr.bf16.mxu0 %v806
      %1020 = vmatpush1.bf16.msra.mxu0 %v805
      %1021 = vmatprep.subr.bf16.mxu0 %v814
      %1022 = vmatpush1.bf16.msra.mxu0 %v813
      %1023 = vmatprep.subr.bf16.mxu0 %v822
      %1024 = vmatpush1.bf16.msra.mxu0 %v821
      %1025 = vmatprep.subr.bf16.mxu0 %v830
      %1026 = vmatpush1.bf16.msra.mxu0 %v829
      %1027 = vmatprep.subr.bf16.mxu0 %v838
      %1028 = vmatpush1.bf16.msra.mxu0 %v837
      %1029 = vmatprep.subr.bf16.mxu0 %v846
      %1030 = vmatpush1.bf16.msra.mxu0 %v845
      %1031 = vmatprep.subr.bf16.mxu0 %v854
      %1032 = vmatpush1.bf16.msra.mxu0 %v853
      %1033 = vmatprep.subr.bf16.mxu0 %v862
      %1034 = vmatpush1.bf16.msra.mxu0 %v861
      %1035 = vmatprep.subr.bf16.mxu0 %v870
      %1036 = vmatpush1.bf16.msra.mxu0 %v869
      %1037 = vmatprep.mubr.bf16.mxu0 %v236
      %1038 = vmatmul.mubr.bf16.gmra.mrb[0].mxu0 %v235
      %v1039 = vpop.f32.mrb[0].mxu0
      %v1040 = vadd.f32 0.0, %v1039
      %v1041 = vpop.f32.mrb[0].mxu0
      %v1042 = vadd.f32 0.0, %v1041
      %v1043 = vpop.f32.mrb[0].mxu0
      %v1044 = vpop.f32.mrb[0].mxu0
      %1045 = vdwg.mxu0
      %1046 = vmatprep.subr.bf16.mxu0 %v752
      %1047 = vmatpush1.bf16.msra.mxu0 %v751
      %1048 = vmatprep.subr.bf16.mxu0 %v760
      %1049 = vmatpush1.bf16.msra.mxu0 %v759
      %1050 = vmatprep.subr.bf16.mxu0 %v768
      %1051 = vmatpush1.bf16.msra.mxu0 %v767
      %1052 = vmatprep.subr.bf16.mxu0 %v776
      %1053 = vmatpush1.bf16.msra.mxu0 %v775
      %1054 = vmatprep.subr.bf16.mxu0 %v784
      %1055 = vmatpush1.bf16.msra.mxu0 %v783
      %1056 = vmatprep.subr.bf16.mxu0 %v792
      %1057 = vmatpush1.bf16.msra.mxu0 %v791
      %1058 = vmatprep.subr.bf16.mxu0 %v800
      %1059 = vmatpush1.bf16.msra.mxu0 %v799
      %1060 = vmatprep.subr.bf16.mxu0 %v808
      %1061 = vmatpush1.bf16.msra.mxu0 %v807
      %1062 = vmatprep.subr.bf16.mxu0 %v816
      %1063 = vmatpush1.bf16.msra.mxu0 %v815
      %1064 = vmatprep.subr.bf16.mxu0 %v824
      %1065 = vmatpush1.bf16.msra.mxu0 %v823
      %1066 = vmatprep.subr.bf16.mxu0 %v832
      %1067 = vmatpush1.bf16.msra.mxu0 %v831
      %1068 = vmatprep.subr.bf16.mxu0 %v840
      %1069 = vmatpush1.bf16.msra.mxu0 %v839
      %1070 = vmatprep.subr.bf16.mxu0 %v848
      %1071 = vmatpush1.bf16.msra.mxu0 %v847
      %1072 = vmatprep.subr.bf16.mxu0 %v856
      %1073 = vmatpush1.bf16.msra.mxu0 %v855
      %1074 = vmatprep.subr.bf16.mxu0 %v864
      %1075 = vmatpush1.bf16.msra.mxu0 %v863
      %1076 = vmatprep.subr.bf16.mxu0 %v872
      %1077 = vmatpush1.bf16.msra.mxu0 %v871
      %1078 = vmatprep.mubr.bf16.mxu0 %v236
      %1079 = vmatmul.mubr.bf16.gmra.mrb[0].mxu0 %v235
      %v1080 = vpop.f32.mrb[0].mxu0
      %v1081 = vadd.f32 0.0, %v1080
      %v1082 = vpop.f32.mrb[0].mxu0
      %v1083 = vadd.f32 0.0, %v1082
      %v1084 = vpop.f32.mrb[0].mxu0
      %v1085 = vpop.f32.mrb[0].mxu0
      %1086 = vdwg.mxu0
      %1087 = vmatprep.subr.bf16.mxu0 %v754
      %1088 = vmatpush1.bf16.msra.mxu0 %v753
      %1089 = vmatprep.subr.bf16.mxu0 %v762
      %1090 = vmatpush1.bf16.msra.mxu0 %v761
      %1091 = vmatprep.subr.bf16.mxu0 %v770
      %1092 = vmatpush1.bf16.msra.mxu0 %v769
      %1093 = vmatprep.subr.bf16.mxu0 %v778
      %1094 = vmatpush1.bf16.msra.mxu0 %v777
      %1095 = vmatprep.subr.bf16.mxu0 %v786
      %1096 = vmatpush1.bf16.msra.mxu0 %v785
      %1097 = vmatprep.subr.bf16.mxu0 %v794
      %1098 = vmatpush1.bf16.msra.mxu0 %v793
      %1099 = vmatprep.subr.bf16.mxu0 %v802
      %1100 = vmatpush1.bf16.msra.mxu0 %v801
      %1101 = vmatprep.subr.bf16.mxu0 %v810
      %1102 = vmatpush1.bf16.msra.mxu0 %v809
      %1103 = vmatprep.subr.bf16.mxu0 %v818
      %1104 = vmatpush1.bf16.msra.mxu0 %v817
      %1105 = vmatprep.subr.bf16.mxu0 %v826
      %1106 = vmatpush1.bf16.msra.mxu0 %v825
      %1107 = vmatprep.subr.bf16.mxu0 %v834
      %1108 = vmatpush1.bf16.msra.mxu0 %v833
      %1109 = vmatprep.subr.bf16.mxu0 %v842
      %1110 = vmatpush1.bf16.msra.mxu0 %v841
      %1111 = vmatprep.subr.bf16.mxu0 %v850
      %1112 = vmatpush1.bf16.msra.mxu0 %v849
      %1113 = vmatprep.subr.bf16.mxu0 %v858
      %1114 = vmatpush1.bf16.msra.mxu0 %v857
      %1115 = vmatprep.subr.bf16.mxu0 %v866
      %1116 = vmatpush1.bf16.msra.mxu0 %v865
      %1117 = vmatprep.subr.bf16.mxu0 %v874
      %1118 = vmatpush1.bf16.msra.mxu0 %v873
      %1119 = vmatprep.mubr.bf16.mxu0 %v236
      %1120 = vmatmul.mubr.bf16.gmra.mrb[0].mxu0 %v235
      %v1121 = vpop.f32.mrb[0].mxu0
      %v1122 = vadd.f32 0.0, %v1121
      %v1123 = vpop.f32.mrb[0].mxu0
      %v1124 = vadd.f32 0.0, %v1123
      %v1125 = vpop.f32.mrb[0].mxu0
      %v1126 = vpop.f32.mrb[0].mxu0
      %1127 = vdwg.mxu0
      %1128 = vmatprep.subr.bf16.mxu0 %v756
      %1129 = vmatpush1.bf16.msra.mxu0 %v755
      %1130 = vmatprep.subr.bf16.mxu0 %v764
      %1131 = vmatpush1.bf16.msra.mxu0 %v763
      %1132 = vmatprep.subr.bf16.mxu0 %v772
      %1133 = vmatpush1.bf16.msra.mxu0 %v771
      %1134 = vmatprep.subr.bf16.mxu0 %v780
      %1135 = vmatpush1.bf16.msra.mxu0 %v779
      %1136 = vmatprep.subr.bf16.mxu0 %v788
      %1137 = vmatpush1.bf16.msra.mxu0 %v787
      %1138 = vmatprep.subr.bf16.mxu0 %v796
      %1139 = vmatpush1.bf16.msra.mxu0 %v795
      %1140 = vmatprep.subr.bf16.mxu0 %v804
      %1141 = vmatpush1.bf16.msra.mxu0 %v803
      %1142 = vmatprep.subr.bf16.mxu0 %v812
      %1143 = vmatpush1.bf16.msra.mxu0 %v811
      %1144 = vmatprep.subr.bf16.mxu0 %v820
      %1145 = vmatpush1.bf16.msra.mxu0 %v819
      %1146 = vmatprep.subr.bf16.mxu0 %v828
      %1147 = vmatpush1.bf16.msra.mxu0 %v827
      %1148 = vmatprep.subr.bf16.mxu0 %v836
      %1149 = vmatpush1.bf16.msra.mxu0 %v835
      %1150 = vmatprep.subr.bf16.mxu0 %v844
      %1151 = vmatpush1.bf16.msra.mxu0 %v843
      %1152 = vmatprep.subr.bf16.mxu0 %v852
      %1153 = vmatpush1.bf16.msra.mxu0 %v851
      %1154 = vmatprep.subr.bf16.mxu0 %v860
      %1155 = vmatpush1.bf16.msra.mxu0 %v859
      %1156 = vmatprep.subr.bf16.mxu0 %v868
      %1157 = vmatpush1.bf16.msra.mxu0 %v867
      %1158 = vmatprep.subr.bf16.mxu0 %v876
      %1159 = vmatpush1.bf16.msra.mxu0 %v875
      %1160 = vmatprep.mubr.bf16.mxu0 %v236
      %1161 = vmatmul.mubr.bf16.gmra.mrb[0].mxu0 %v235
      %v1162 = vpop.f32.mrb[0].mxu0
      %v1163 = vadd.f32 0.0, %v1162
      %v1164 = vpop.f32.mrb[0].mxu0
      %v1165 = vadd.f32 0.0, %v1164
      %v1166 = vpop.f32.mrb[0].mxu0
      %v1167 = vpop.f32.mrb[0].mxu0
      %1168 = vdwg.mxu0
      %v1169 = vsub.f32 0.0, %v1040
      %v1170 = vsub.f32 0.0, %v1042
      %v1171 = vsub.f32 0.0, %v1081
      %v1172 = vsub.f32 0.0, %v1083
      %v1173 = vmul.f32 %v1169, 1.442695
      %v1174 = vpow.pop %v1173
      %v1175 = vmul.f32 %v1170, 1.442695
      %v1176 = vpow.pop %v1175
      %v1177 = vmul.f32 %v1171, 1.442695
      %v1178 = vpow.pop %v1177
      %v1179 = vmul.f32 %v1172, 1.442695
      %v1180 = vpow.pop %v1179
      %v1181 = vadd.f32 %v1174, 1.0
      %v1182 = vadd.f32 %v1176, 1.0
      %v1183 = vadd.f32 %v1178, 1.0
      %v1184 = vadd.f32 %v1180, 1.0
      %v1185 = vrcp.pop %v1181
      %v1186 = vrcp.pop %v1182
      %v1187 = vrcp.pop %v1183
      %v1188 = vrcp.pop %v1184
      %v1189 = vmul.f32 %v1040, %v1185
      %v1190 = vmul.f32 %v1042, %v1186
      %v1191 = vmul.f32 %v1081, %v1187
      %v1192 = vmul.f32 %v1083, %v1188
      %v1193 = vmul.f32 %v1189, %v1122
      %v1194 = vmul.f32 %v1190, %v1124
      %v1195 = vmul.f32 %v1191, %v1163
      %v1196 = vmul.f32 %v1192, %v1165
      %v1197 = vpack.c.bf16 %v1193, %v1193
      %v1198 = vpack.c.bf16 %v1194, %v1194
      %v1199 = vpack.c.bf16 %v1195, %v1195
      %v1200 = vpack.c.bf16 %v1196, %v1196
      %v1201 = vld [vmem:[%s3] sm:$0xff]
      %v1202 = vld [vmem:[%s3 + $0x8] sm:$0xff]
      %v1203 = vld [vmem:[%s3 + $0x10] sm:$0xff]
      %v1204 = vld [vmem:[%s3 + $0x18] sm:$0xff]
      %v1205 = vld [vmem:[%s3 + $0x20] sm:$0xff]
      %v1206 = vld [vmem:[%s3 + $0x28] sm:$0xff]
      %v1207 = vld [vmem:[%s3 + $0x30] sm:$0xff]
      %v1208 = vld [vmem:[%s3 + $0x38] sm:$0xff]
      %v1209 = vld [vmem:[%s3 + $0x40] sm:$0xff]
      %v1210 = vld [vmem:[%s3 + $0x48] sm:$0xff]
      %v1211 = vld [vmem:[%s3 + $0x50] sm:$0xff]
      %v1212 = vld [vmem:[%s3 + $0x58] sm:$0xff]
      %v1213 = vld [vmem:[%s3 + $0x60] sm:$0xff]
      %v1214 = vld [vmem:[%s3 + $0x68] sm:$0xff]
      %v1215 = vld [vmem:[%s3 + $0x70] sm:$0xff]
      %v1216 = vld [vmem:[%s3 + $0x78] sm:$0xff]
      %v1217 = vld [vmem:[%s3 + $0x80] sm:$0xff]
      %v1218 = vld [vmem:[%s3 + $0x88] sm:$0xff]
      %v1219 = vld [vmem:[%s3 + $0x90] sm:$0xff]
      %v1220 = vld [vmem:[%s3 + $0x98] sm:$0xff]
      %v1221 = vld [vmem:[%s3 + $0xa0] sm:$0xff]
      %v1222 = vld [vmem:[%s3 + $0xa8] sm:$0xff]
      %v1223 = vld [vmem:[%s3 + $0xb0] sm:$0xff]
      %v1224 = vld [vmem:[%s3 + $0xb8] sm:$0xff]
      %v1225 = vld [vmem:[%s3 + $0xc0] sm:$0xff]
      %v1226 = vld [vmem:[%s3 + $0xc8] sm:$0xff]
      %v1227 = vld [vmem:[%s3 + $0xd0] sm:$0xff]
      %v1228 = vld [vmem:[%s3 + $0xd8] sm:$0xff]
      %v1229 = vld [vmem:[%s3 + $0xe0] sm:$0xff]
      %v1230 = vld [vmem:[%s3 + $0xe8] sm:$0xff]
      %v1231 = vld [vmem:[%s3 + $0xf0] sm:$0xff]
      %v1232 = vld [vmem:[%s3 + $0xf8] sm:$0xff]
      %v1233 = vld [vmem:[%s3 + $0x100] sm:$0xff]
      %v1234 = vld [vmem:[%s3 + $0x108] sm:$0xff]
      %v1235 = vld [vmem:[%s3 + $0x110] sm:$0xff]
      %v1236 = vld [vmem:[%s3 + $0x118] sm:$0xff]
      %v1237 = vld [vmem:[%s3 + $0x120] sm:$0xff]
      %v1238 = vld [vmem:[%s3 + $0x128] sm:$0xff]
      %v1239 = vld [vmem:[%s3 + $0x130] sm:$0xff]
      %v1240 = vld [vmem:[%s3 + $0x138] sm:$0xff]
      %v1241 = vld [vmem:[%s3 + $0x140] sm:$0xff]
      %v1242 = vld [vmem:[%s3 + $0x148] sm:$0xff]
      %v1243 = vld [vmem:[%s3 + $0x150] sm:$0xff]
      %v1244 = vld [vmem:[%s3 + $0x158] sm:$0xff]
      %v1245 = vld [vmem:[%s3 + $0x160] sm:$0xff]
      %v1246 = vld [vmem:[%s3 + $0x168] sm:$0xff]
      %v1247 = vld [vmem:[%s3 + $0x170] sm:$0xff]
      %v1248 = vld [vmem:[%s3 + $0x178] sm:$0xff]
      %v1249 = vld [vmem:[%s3 + $0x180] sm:$0xff]
      %v1250 = vld [vmem:[%s3 + $0x188] sm:$0xff]
      %v1251 = vld [vmem:[%s3 + $0x190] sm:$0xff]
      %v1252 = vld [vmem:[%s3 + $0x198] sm:$0xff]
      %v1253 = vld [vmem:[%s3 + $0x1a0] sm:$0xff]
      %v1254 = vld [vmem:[%s3 + $0x1a8] sm:$0xff]
      %v1255 = vld [vmem:[%s3 + $0x1b0] sm:$0xff]
      %v1256 = vld [vmem:[%s3 + $0x1b8] sm:$0xff]
      %v1257 = vld [vmem:[%s3 + $0x1c0] sm:$0xff]
      %v1258 = vld [vmem:[%s3 + $0x1c8] sm:$0xff]
      %v1259 = vld [vmem:[%s3 + $0x1d0] sm:$0xff]
      %v1260 = vld [vmem:[%s3 + $0x1d8] sm:$0xff]
      %v1261 = vld [vmem:[%s3 + $0x1e0] sm:$0xff]
      %v1262 = vld [vmem:[%s3 + $0x1e8] sm:$0xff]
      %v1263 = vld [vmem:[%s3 + $0x1f0] sm:$0xff]
      %v1264 = vld [vmem:[%s3 + $0x1f8] sm:$0xff]
      %v1329 = vunpack.c.l.b16 %v1201
      %v1330 = vunpack.c.h.b16 %v1201
      %v1331 = vunpack.c.l.b16 %v1202
      %v1332 = vunpack.c.h.b16 %v1202
      %v1333 = vunpack.c.l.b16 %v1203
      %v1334 = vunpack.c.h.b16 %v1203
      %v1335 = vunpack.c.l.b16 %v1204
      %v1336 = vunpack.c.h.b16 %v1204
      %v1337 = vunpack.c.l.b16 %v1205
      %v1338 = vunpack.c.h.b16 %v1205
      %v1339 = vunpack.c.l.b16 %v1206
      %v1340 = vunpack.c.h.b16 %v1206
      %v1341 = vunpack.c.l.b16 %v1207
      %v1342 = vunpack.c.h.b16 %v1207
      %v1343 = vunpack.c.l.b16 %v1208
      %v1344 = vunpack.c.h.b16 %v1208
      %v1345 = vunpack.c.l.b16 %v1209
      %v1346 = vunpack.c.h.b16 %v1209
      %v1347 = vunpack.c.l.b16 %v1210
      %v1348 = vunpack.c.h.b16 %v1210
      %v1349 = vunpack.c.l.b16 %v1211
      %v1350 = vunpack.c.h.b16 %v1211
      %v1351 = vunpack.c.l.b16 %v1212
      %v1352 = vunpack.c.h.b16 %v1212
      %v1353 = vunpack.c.l.b16 %v1213
      %v1354 = vunpack.c.h.b16 %v1213
      %v1355 = vunpack.c.l.b16 %v1214
      %v1356 = vunpack.c.h.b16 %v1214
      %v1357 = vunpack.c.l.b16 %v1215
      %v1358 = vunpack.c.h.b16 %v1215
      %v1359 = vunpack.c.l.b16 %v1216
      %v1360 = vunpack.c.h.b16 %v1216
      %v1361 = vunpack.c.l.b16 %v1217
      %v1362 = vunpack.c.h.b16 %v1217
      %v1363 = vunpack.c.l.b16 %v1218
      %v1364 = vunpack.c.h.b16 %v1218
      %v1365 = vunpack.c.l.b16 %v1219
      %v1366 = vunpack.c.h.b16 %v1219
      %v1367 = vunpack.c.l.b16 %v1220
      %v1368 = vunpack.c.h.b16 %v1220
      %v1369 = vunpack.c.l.b16 %v1221
      %v1370 = vunpack.c.h.b16 %v1221
      %v1371 = vunpack.c.l.b16 %v1222
      %v1372 = vunpack.c.h.b16 %v1222
      %v1373 = vunpack.c.l.b16 %v1223
      %v1374 = vunpack.c.h.b16 %v1223
      %v1375 = vunpack.c.l.b16 %v1224
      %v1376 = vunpack.c.h.b16 %v1224
      %v1377 = vunpack.c.l.b16 %v1225
      %v1378 = vunpack.c.h.b16 %v1225
      %v1379 = vunpack.c.l.b16 %v1226
      %v1380 = vunpack.c.h.b16 %v1226
      %v1381 = vunpack.c.l.b16 %v1227
      %v1382 = vunpack.c.h.b16 %v1227
      %v1383 = vunpack.c.l.b16 %v1228
      %v1384 = vunpack.c.h.b16 %v1228
      %v1385 = vunpack.c.l.b16 %v1229
      %v1386 = vunpack.c.h.b16 %v1229
      %v1387 = vunpack.c.l.b16 %v1230
      %v1388 = vunpack.c.h.b16 %v1230
      %v1389 = vunpack.c.l.b16 %v1231
      %v1390 = vunpack.c.h.b16 %v1231
      %v1391 = vunpack.c.l.b16 %v1232
      %v1392 = vunpack.c.h.b16 %v1232
      %v1393 = vunpack.c.l.b16 %v1233
      %v1394 = vunpack.c.h.b16 %v1233
      %v1395 = vunpack.c.l.b16 %v1234
      %v1396 = vunpack.c.h.b16 %v1234
      %v1397 = vunpack.c.l.b16 %v1235
      %v1398 = vunpack.c.h.b16 %v1235
      %v1399 = vunpack.c.l.b16 %v1236
      %v1400 = vunpack.c.h.b16 %v1236
      %v1401 = vunpack.c.l.b16 %v1237
      %v1402 = vunpack.c.h.b16 %v1237
      %v1403 = vunpack.c.l.b16 %v1238
      %v1404 = vunpack.c.h.b16 %v1238
      %v1405 = vunpack.c.l.b16 %v1239
      %v1406 = vunpack.c.h.b16 %v1239
      %v1407 = vunpack.c.l.b16 %v1240
      %v1408 = vunpack.c.h.b16 %v1240
      %v1409 = vunpack.c.l.b16 %v1241
      %v1410 = vunpack.c.h.b16 %v1241
      %v1411 = vunpack.c.l.b16 %v1242
      %v1412 = vunpack.c.h.b16 %v1242
      %v1413 = vunpack.c.l.b16 %v1243
      %v1414 = vunpack.c.h.b16 %v1243
      %v1415 = vunpack.c.l.b16 %v1244
      %v1416 = vunpack.c.h.b16 %v1244
      %v1417 = vunpack.c.l.b16 %v1245
      %v1418 = vunpack.c.h.b16 %v1245
      %v1419 = vunpack.c.l.b16 %v1246
      %v1420 = vunpack.c.h.b16 %v1246
      %v1421 = vunpack.c.l.b16 %v1247
      %v1422 = vunpack.c.h.b16 %v1247
      %v1423 = vunpack.c.l.b16 %v1248
      %v1424 = vunpack.c.h.b16 %v1248
      %v1425 = vunpack.c.l.b16 %v1249
      %v1426 = vunpack.c.h.b16 %v1249
      %v1427 = vunpack.c.l.b16 %v1250
      %v1428 = vunpack.c.h.b16 %v1250
      %v1429 = vunpack.c.l.b16 %v1251
      %v1430 = vunpack.c.h.b16 %v1251
      %v1431 = vunpack.c.l.b16 %v1252
      %v1432 = vunpack.c.h.b16 %v1252
      %v1433 = vunpack.c.l.b16 %v1253
      %v1434 = vunpack.c.h.b16 %v1253
      %v1435 = vunpack.c.l.b16 %v1254
      %v1436 = vunpack.c.h.b16 %v1254
      %v1437 = vunpack.c.l.b16 %v1255
      %v1438 = vunpack.c.h.b16 %v1255
      %v1439 = vunpack.c.l.b16 %v1256
      %v1440 = vunpack.c.h.b16 %v1256
      %v1441 = vunpack.c.l.b16 %v1257
      %v1442 = vunpack.c.h.b16 %v1257
      %v1443 = vunpack.c.l.b16 %v1258
      %v1444 = vunpack.c.h.b16 %v1258
      %v1445 = vunpack.c.l.b16 %v1259
      %v1446 = vunpack.c.h.b16 %v1259
      %v1447 = vunpack.c.l.b16 %v1260
      %v1448 = vunpack.c.h.b16 %v1260
      %v1449 = vunpack.c.l.b16 %v1261
      %v1450 = vunpack.c.h.b16 %v1261
      %v1451 = vunpack.c.l.b16 %v1262
      %v1452 = vunpack.c.h.b16 %v1262
      %v1453 = vunpack.c.l.b16 %v1263
      %v1454 = vunpack.c.h.b16 %v1263
      %v1455 = vunpack.c.l.b16 %v1264
      %v1456 = vunpack.c.h.b16 %v1264
      %v1457 = vpack.c.b16 %v1331, %v1329
      %v1458 = vpack.c.b16 %v1332, %v1330
      %v1459 = vpack.c.b16 %v1335, %v1333
      %v1460 = vpack.c.b16 %v1336, %v1334
      %v1461 = vpack.c.b16 %v1339, %v1337
      %v1462 = vpack.c.b16 %v1340, %v1338
      %v1463 = vpack.c.b16 %v1343, %v1341
      %v1464 = vpack.c.b16 %v1344, %v1342
      %v1465 = vpack.c.b16 %v1347, %v1345
      %v1466 = vpack.c.b16 %v1348, %v1346
      %v1467 = vpack.c.b16 %v1351, %v1349
      %v1468 = vpack.c.b16 %v1352, %v1350
      %v1469 = vpack.c.b16 %v1355, %v1353
      %v1470 = vpack.c.b16 %v1356, %v1354
      %v1471 = vpack.c.b16 %v1359, %v1357
      %v1472 = vpack.c.b16 %v1360, %v1358
      %v1473 = vpack.c.b16 %v1363, %v1361
      %v1474 = vpack.c.b16 %v1364, %v1362
      %v1475 = vpack.c.b16 %v1367, %v1365
      %v1476 = vpack.c.b16 %v1368, %v1366
      %v1477 = vpack.c.b16 %v1371, %v1369
      %v1478 = vpack.c.b16 %v1372, %v1370
      %v1479 = vpack.c.b16 %v1375, %v1373
      %v1480 = vpack.c.b16 %v1376, %v1374
      %v1481 = vpack.c.b16 %v1379, %v1377
      %v1482 = vpack.c.b16 %v1380, %v1378
      %v1483 = vpack.c.b16 %v1383, %v1381
      %v1484 = vpack.c.b16 %v1384, %v1382
      %v1485 = vpack.c.b16 %v1387, %v1385
      %v1486 = vpack.c.b16 %v1388, %v1386
      %v1487 = vpack.c.b16 %v1391, %v1389
      %v1488 = vpack.c.b16 %v1392, %v1390
      %v1489 = vpack.c.b16 %v1395, %v1393
      %v1490 = vpack.c.b16 %v1396, %v1394
      %v1491 = vpack.c.b16 %v1399, %v1397
      %v1492 = vpack.c.b16 %v1400, %v1398
      %v1493 = vpack.c.b16 %v1403, %v1401
      %v1494 = vpack.c.b16 %v1404, %v1402
      %v1495 = vpack.c.b16 %v1407, %v1405
      %v1496 = vpack.c.b16 %v1408, %v1406
      %v1497 = vpack.c.b16 %v1411, %v1409
      %v1498 = vpack.c.b16 %v1412, %v1410
      %v1499 = vpack.c.b16 %v1415, %v1413
      %v1500 = vpack.c.b16 %v1416, %v1414
      %v1501 = vpack.c.b16 %v1419, %v1417
      %v1502 = vpack.c.b16 %v1420, %v1418
      %v1503 = vpack.c.b16 %v1423, %v1421
      %v1504 = vpack.c.b16 %v1424, %v1422
      %v1505 = vpack.c.b16 %v1427, %v1425
      %v1506 = vpack.c.b16 %v1428, %v1426
      %v1507 = vpack.c.b16 %v1431, %v1429
      %v1508 = vpack.c.b16 %v1432, %v1430
      %v1509 = vpack.c.b16 %v1435, %v1433
      %v1510 = vpack.c.b16 %v1436, %v1434
      %v1511 = vpack.c.b16 %v1439, %v1437
      %v1512 = vpack.c.b16 %v1440, %v1438
      %v1513 = vpack.c.b16 %v1443, %v1441
      %v1514 = vpack.c.b16 %v1444, %v1442
      %v1515 = vpack.c.b16 %v1447, %v1445
      %v1516 = vpack.c.b16 %v1448, %v1446
      %v1517 = vpack.c.b16 %v1451, %v1449
      %v1518 = vpack.c.b16 %v1452, %v1450
      %v1519 = vpack.c.b16 %v1455, %v1453
      %v1520 = vpack.c.b16 %v1456, %v1454
      %1585 = vmatprep.subr.bf16.mxu0 %v1458
      %1586 = vmatpush1.bf16.msra.mxu0 %v1457
      %1587 = vmatprep.subr.bf16.mxu0 %v1460
      %1588 = vmatpush1.bf16.msra.mxu0 %v1459
      %1589 = vmatprep.subr.bf16.mxu0 %v1462
      %1590 = vmatpush1.bf16.msra.mxu0 %v1461
      %1591 = vmatprep.subr.bf16.mxu0 %v1464
      %1592 = vmatpush1.bf16.msra.mxu0 %v1463
      %1593 = vmatprep.subr.bf16.mxu0 %v1466
      %1594 = vmatpush1.bf16.msra.mxu0 %v1465
      %1595 = vmatprep.subr.bf16.mxu0 %v1468
      %1596 = vmatpush1.bf16.msra.mxu0 %v1467
      %1597 = vmatprep.subr.bf16.mxu0 %v1470
      %1598 = vmatpush1.bf16.msra.mxu0 %v1469
      %1599 = vmatprep.subr.bf16.mxu0 %v1472
      %1600 = vmatpush1.bf16.msra.mxu0 %v1471
      %1601 = vmatprep.subr.bf16.mxu0 %v1474
      %1602 = vmatpush1.bf16.msra.mxu0 %v1473
      %1603 = vmatprep.subr.bf16.mxu0 %v1476
      %1604 = vmatpush1.bf16.msra.mxu0 %v1475
      %1605 = vmatprep.subr.bf16.mxu0 %v1478
      %1606 = vmatpush1.bf16.msra.mxu0 %v1477
      %1607 = vmatprep.subr.bf16.mxu0 %v1480
      %1608 = vmatpush1.bf16.msra.mxu0 %v1479
      %1609 = vmatprep.subr.bf16.mxu0 %v1482
      %1610 = vmatpush1.bf16.msra.mxu0 %v1481
      %1611 = vmatprep.subr.bf16.mxu0 %v1484
      %1612 = vmatpush1.bf16.msra.mxu0 %v1483
      %1613 = vmatprep.subr.bf16.mxu0 %v1486
      %1614 = vmatpush1.bf16.msra.mxu0 %v1485
      %1615 = vmatprep.subr.bf16.mxu0 %v1488
      %1616 = vmatpush1.bf16.msra.mxu0 %v1487
      %1617 = vmatprep.mubr.bf16.mxu0 %v1198
      %1618 = vmatmul.mubr.bf16.gmra.mrb[0].mxu0 %v1197
      %v1619 = vpop.f32.mrb[0].mxu0
      %v1620 = vadd.f32 0.0, %v1619
      %v1621 = vpop.f32.mrb[0].mxu0
      %v1622 = vadd.f32 0.0, %v1621
      %v1623 = vpop.f32.mrb[0].mxu0
      %v1624 = vpop.f32.mrb[0].mxu0
      %1625 = vdwg.mxu0
      %1626 = vmatprep.subr.bf16.mxu0 %v1490
      %1627 = vmatpush1.bf16.msra.mxu0 %v1489
      %1628 = vmatprep.subr.bf16.mxu0 %v1492
      %1629 = vmatpush1.bf16.msra.mxu0 %v1491
      %1630 = vmatprep.subr.bf16.mxu0 %v1494
      %1631 = vmatpush1.bf16.msra.mxu0 %v1493
      %1632 = vmatprep.subr.bf16.mxu0 %v1496
      %1633 = vmatpush1.bf16.msra.mxu0 %v1495
      %1634 = vmatprep.subr.bf16.mxu0 %v1498
      %1635 = vmatpush1.bf16.msra.mxu0 %v1497
      %1636 = vmatprep.subr.bf16.mxu0 %v1500
      %1637 = vmatpush1.bf16.msra.mxu0 %v1499
      %1638 = vmatprep.subr.bf16.mxu0 %v1502
      %1639 = vmatpush1.bf16.msra.mxu0 %v1501
      %1640 = vmatprep.subr.bf16.mxu0 %v1504
      %1641 = vmatpush1.bf16.msra.mxu0 %v1503
      %1642 = vmatprep.subr.bf16.mxu0 %v1506
      %1643 = vmatpush1.bf16.msra.mxu0 %v1505
      %1644 = vmatprep.subr.bf16.mxu0 %v1508
      %1645 = vmatpush1.bf16.msra.mxu0 %v1507
      %1646 = vmatprep.subr.bf16.mxu0 %v1510
      %1647 = vmatpush1.bf16.msra.mxu0 %v1509
      %1648 = vmatprep.subr.bf16.mxu0 %v1512
      %1649 = vmatpush1.bf16.msra.mxu0 %v1511
      %1650 = vmatprep.subr.bf16.mxu0 %v1514
      %1651 = vmatpush1.bf16.msra.mxu0 %v1513
      %1652 = vmatprep.subr.bf16.mxu0 %v1516
      %1653 = vmatpush1.bf16.msra.mxu0 %v1515
      %1654 = vmatprep.subr.bf16.mxu0 %v1518
      %1655 = vmatpush1.bf16.msra.mxu0 %v1517
      %1656 = vmatprep.subr.bf16.mxu0 %v1520
      %1657 = vmatpush1.bf16.msra.mxu0 %v1519
      %1658 = vmatprep.mubr.bf16.mxu0 %v1200
      %1659 = vmatmul.mubr.bf16.gmra.mrb[0].mxu0 %v1199
      %v1660 = vpop.f32.mrb[0].mxu0
      %v1661 = vadd.f32 %v1620, %v1660
      %v1662 = vpop.f32.mrb[0].mxu0
      %v1663 = vadd.f32 %v1622, %v1662
      %v1664 = vpop.f32.mrb[0].mxu0
      %v1665 = vpop.f32.mrb[0].mxu0
      %1666 = vdwg.mxu0
      %v1667 = vadd.f32 %v199, %v1661
      %v1668 = vadd.f32 %v200, %v1663
      %v1669 = vpack.c.bf16 %v1667, %v1667
      %v1670 = vpack.c.bf16 %v1668, %v1668
      %v1673 = vunpack.c.l.b16 %v1669
      %v1674 = vunpack.c.l.b16 %v1670
      %v1675 = vpack.c.b16 %v1674, %v1673
      %1677 = vst [vmem:[%s197] sm:$0xff] %v1675
      %p1678 = scmp.lt.s32.totalorder %s15, 1
      %s1679 = scalar_select %p1678, %s15, 1
      %s1680 = smul.addr %s1679, 2
      %s1681 = smul.addr %s1680, 4
      %s1682 = scalar_lea.vmem %s4, %s1681
      // Predicated region
      $region37: #{encoder_forward.8} parent=35 // pred_check
        %p1683 = pneg %p122
      $region38: #{encoder_forward.8} parent=35 // pred_check_branch
        %1685 = sbr.rel (%p1683) target = $region40
      $region39: #{encoder_forward.8} parent=35 // pred_region
        _
      $region40: #{encoder_forward.8} parent=35 // pred_fallthru
        _
    $region36: #{encoder_forward.8} parent=5 // pred_fallthru
      _
    %p1686 = scmp.le.s32.totalorder 2, %s10
    // Predicated region
    $region41: #{encoder_forward.8} parent=5 // pred_check
      %p1687 = pneg %p1686
    $region42: #{encoder_forward.8} parent=5 // pred_check_branch
      %1689 = sbr.rel (%p1687) target = $region44
    $region43: #{encoder_forward.8} parent=5 // pred_region
      %s1690 = ssub.s32 %s10, 2
      // Predicated region
      $region45: #{encoder_forward.8} parent=43 // pred_check
        %p1691 = pneg %p128
      $region46: #{encoder_forward.8} parent=43 // pred_check_branch
        %1693 = sbr.rel (%p1691) target = $region48
      $region47: #{encoder_forward.8} parent=43 // pred_region
        %p1694 = scmp.lt.s32.totalorder %s16, 1
        %s1695 = scalar_select %p1694, %s16, 1
        %s1696 = smul.addr %s1695, 2
        %s1697 = smul.addr %s1696, 4
        %s1698 = scalar_lea.vmem %s4, %s1697
      $region48: #{encoder_forward.8} parent=43 // pred_fallthru
        _
    $region44: #{encoder_forward.8} parent=5 // pred_fallthru
      _
  $region6: #{encoder_forward.8} parent=0 // loop_footer
    %s14 = sadd.s32 1, %s10
  $region7: #{encoder_forward.8} parent=0 // loop_footer_branch
    %9 = sbr.rel target = $region3
  $region8: #{encoder_forward.8} parent=0 // loop_exit
    _

// kernel: encoder_forward.5
$region0: #{encoder_forward.5}
  #allocation0 [shape = 'u32[]', space=smem, size = 0x4, offset = 0x4, fixed_abs, tag = 'smem constant byte address 0x4 - core index']
  #allocation1 [shape = 'u32[144,128]{1,0:T(1,128)}', space=vmem, size = 0x12000, scoped, tag = 'internal scratch']
  %s0 = inlined_call_operand.vmem [shape: bf16[2,8,256], index: 0, kind: input, shape index: {}, may-alias: {0,7}]
  %s1 = inlined_call_operand.vmem [shape: f32[2,1,8], index: 1, kind: input, shape index: {}]
  %s2 = inlined_call_operand.vmem [shape: f32[8,128], index: 2, kind: input, shape index: {}]
  %s3 = inlined_call_operand.vmem [shape: f32[8,128], index: 3, kind: input, shape index: {}]
  %s4 = inlined_call_operand.hbm [shape: bf16[1,256], index: 4, kind: input, shape index: {}]
  %s5 = inlined_call_operand.hbm [shape: bf16[256,768], index: 5, kind: input, shape index: {}]
  %s6 = inlined_call_operand.vmem [shape: bf16[256,256], index: 6, kind: input, shape index: {}]
  %s7 = inlined_call_operand.vmem [shape: bf16[2,8,256], index: 7, kind: output, shape index: {}, may-alias: {0,7}]
  %s8 = sld [smem:[#allocation0]]
  $region69: #{encoder_forward.5} parent=0
    _
  %s10 = ssub.s32 1, %s8
  %s11 = scalar_select 0, %s10, %s8
  $region1: #{encoder_forward.5} parent=0
    #allocation2 [shape = 'u8[1024]{0}', space=vmem, size = 0x400, scoped, tag = 'input window, operand 4, single buffered']
    #allocation3 [shape = 's32[2]{0}', space=sflag, size = 0x8, scoped, tag = 'scoped memory for encoder_forward.5']
    #allocation4 [shape = 'u8[393216]{0}', space=vmem, size = 0x60000, scoped, tag = 'input window, operand 5, single buffered']
    #allocation5 [shape = 's32[1]{0}', space=sflag, size = 0x4, scoped, tag = 'scoped memory for encoder_forward.5']
    %12 = vsyncpa [#allocation3], 0
    %13 = vsyncpa [#allocation5], 0
    loop: start=0, step=1, limit=4
    $region2: #{encoder_forward.5} parent=1 // loop_pre_header
      _
    $region3: #{encoder_forward.5} parent=1 // loop_header
      %s15 = sphi 0, %s19
      %p16 = scmp.ge.s32.totalorder %s15, 4
      %s25 = sphi 0, %s27
      %s28 = sphi 0, %s25
      %s29 = sphi 0, %s28
      %s45 = sphi 0, %s29
      %s51 = sphi 0, %s53
      %s54 = sphi 0, %s51
      %s55 = sphi 0, %s54
      %s71 = sphi 0, %s55
      %s75 = sphi 0, %s75
      %s77 = sphi 0, %s75
      %s78 = sphi 0, %s77
      %s92 = sphi 0, %s78
      %s96 = sphi 0, %s96
      %s98 = sphi 0, %s96
      %s99 = sphi 0, %s98
      %s113 = sphi 0, %s99
      %s117 = sphi 0, %s117
      %s119 = sphi 0, %s117
      %s120 = sphi 0, %s119
      %s134 = sphi 0, %s120
      %s138 = sphi 0, %s138
      %s140 = sphi 0, %s138
      %s141 = sphi 0, %s140
      %s155 = sphi 0, %s141
      %s159 = sphi 0, %s159
      %s161 = sphi 0, %s159
      %s162 = sphi 0, %s161
      %s176 = sphi 0, %s162
      %s182 = sphi 0, %s184
      %s185 = sphi 0, %s182
      %s186 = sphi 0, %s185
      %s202 = sphi 0, %s186
    $region4: #{encoder_forward.5} parent=1 // loop_header_branch
      %18 = sbr.rel (%p16) target = $region8
    $region5: #{encoder_forward.5} parent=1 // loop_body
      %s20 = ssub.s32 %s15, 1
      %s21 = ssub.s32 %s15, 2
      %s22 = sadd.s32 %s15, 1
      %s23 = ssub.s32 %s15, %s22
      %p24 = scmp.eq.s32.totalorder %s23, 0
      %s26 = sadd.s32 %s25, 1
      %s27 = scalar_select %p24, %s25, %s26
      %p30 = pneg %p24
      %p31 = scmp.eq.s32.totalorder %s15, 1
      %p32 = por %p30, %p31
      %p33 = scmp.ne.s32.totalorder %s25, %s28
      %p34 = scmp.eq.s32.totalorder %s15, 0
      %p35 = por %p33, %p34
      %p36 = scmp.ne.s32.totalorder %s25, %s28
      %p37 = scmp.eq.s32.totalorder %s20, 1
      %p38 = por %p36, %p37
      %p39 = scmp.ne.s32.totalorder %s28, %s29
      %p40 = scmp.eq.s32.totalorder %s20, 0
      %p41 = por %p39, %p40
      %p42 = scmp.ne.s32.totalorder %s28, %s29
      %p43 = scmp.eq.s32.totalorder %s21, 1
      %p44 = por %p42, %p43
      %p46 = scmp.ne.s32.totalorder %s29, %s45
      %p47 = scmp.eq.s32.totalorder %s21, 0
      %p48 = por %p46, %p47
      %s49 = ssub.s32 %s15, %s22
      %p50 = scmp.eq.s32.totalorder %s49, 0
      %s52 = sadd.s32 %s51, 1
      %s53 = scalar_select %p50, %s51, %s52
      %p56 = pneg %p50
      %p57 = scmp.eq.s32.totalorder %s15, 1
      %p58 = por %p56, %p57
      %p59 = scmp.ne.s32.totalorder %s51, %s54
      %p60 = scmp.eq.s32.totalorder %s15, 0
      %p61 = por %p59, %p60
      %p62 = scmp.ne.s32.totalorder %s51, %s54
      %p63 = scmp.eq.s32.totalorder %s20, 1
      %p64 = por %p62, %p63
      %p65 = scmp.ne.s32.totalorder %s54, %s55
      %p66 = scmp.eq.s32.totalorder %s20, 0
      %p67 = por %p65, %p66
      %p68 = scmp.ne.s32.totalorder %s54, %s55
      %p69 = scmp.eq.s32.totalorder %s21, 1
      %p70 = por %p68, %p69
      %p72 = scmp.ne.s32.totalorder %s55, %s71
      %p73 = scmp.eq.s32.totalorder %s21, 0
      %p74 = por %p72, %p73
      %s76 = sadd.s32 %s75, 1
      %p79 = scmp.eq.s32.totalorder %s15, 1
      %p80 = scmp.ne.s32.totalorder %s75, %s77
      %p81 = scmp.eq.s32.totalorder %s15, 0
      %p82 = por %p80, %p81
      %p83 = scmp.ne.s32.totalorder %s75, %s77
      %p84 = scmp.eq.s32.totalorder %s20, 1
      %p85 = por %p83, %p84
      %p86 = scmp.ne.s32.totalorder %s77, %s78
      %p87 = scmp.eq.s32.totalorder %s20, 0
      %p88 = por %p86, %p87
      %p89 = scmp.ne.s32.totalorder %s77, %s78
      %p90 = scmp.eq.s32.totalorder %s21, 1
      %p91 = por %p89, %p90
      %p93 = scmp.ne.s32.totalorder %s78, %s92
      %p94 = scmp.eq.s32.totalorder %s21, 0
      %p95 = por %p93, %p94
      %s97 = sadd.s32 %s96, 1
      %p100 = scmp.eq.s32.totalorder %s15, 1
      %p101 = scmp.ne.s32.totalorder %s96, %s98
      %p102 = scmp.eq.s32.totalorder %s15, 0
      %p103 = por %p101, %p102
      %p104 = scmp.ne.s32.totalorder %s96, %s98
      %p105 = scmp.eq.s32.totalorder %s20, 1
      %p106 = por %p104, %p105
      %p107 = scmp.ne.s32.totalorder %s98, %s99
      %p108 = scmp.eq.s32.totalorder %s20, 0
      %p109 = por %p107, %p108
      %p110 = scmp.ne.s32.totalorder %s98, %s99
      %p111 = scmp.eq.s32.totalorder %s21, 1
      %p112 = por %p110, %p111
      %p114 = scmp.ne.s32.totalorder %s99, %s113
      %p115 = scmp.eq.s32.totalorder %s21, 0
      %p116 = por %p114, %p115
      %s118 = sadd.s32 %s117, 1
      %p121 = scmp.eq.s32.totalorder %s15, 1
      %p122 = scmp.ne.s32.totalorder %s117, %s119
      %p123 = scmp.eq.s32.totalorder %s15, 0
      %p124 = por %p122, %p123
      %p125 = scmp.ne.s32.totalorder %s117, %s119
      %p126 = scmp.eq.s32.totalorder %s20, 1
      %p127 = por %p125, %p126
      %p128 = scmp.ne.s32.totalorder %s119, %s120
      %p129 = scmp.eq.s32.totalorder %s20, 0
      %p130 = por %p128, %p129
      %p131 = scmp.ne.s32.totalorder %s119, %s120
      %p132 = scmp.eq.s32.totalorder %s21, 1
      %p133 = por %p131, %p132
      %p135 = scmp.ne.s32.totalorder %s120, %s134
      %p136 = scmp.eq.s32.totalorder %s21, 0
      %p137 = por %p135, %p136
      %s139 = sadd.s32 %s138, 1
      %p142 = scmp.eq.s32.totalorder %s15, 1
      %p143 = scmp.ne.s32.totalorder %s138, %s140
      %p144 = scmp.eq.s32.totalorder %s15, 0
      %p145 = por %p143, %p144
      %p146 = scmp.ne.s32.totalorder %s138, %s140
      %p147 = scmp.eq.s32.totalorder %s20, 1
      %p148 = por %p146, %p147
      %p149 = scmp.ne.s32.totalorder %s140, %s141
      %p150 = scmp.eq.s32.totalorder %s20, 0
      %p151 = por %p149, %p150
      %p152 = scmp.ne.s32.totalorder %s140, %s141
      %p153 = scmp.eq.s32.totalorder %s21, 1
      %p154 = por %p152, %p153
      %p156 = scmp.ne.s32.totalorder %s141, %s155
      %p157 = scmp.eq.s32.totalorder %s21, 0
      %p158 = por %p156, %p157
      %s160 = sadd.s32 %s159, 1
      %p163 = scmp.eq.s32.totalorder %s15, 1
      %p164 = scmp.ne.s32.totalorder %s159, %s161
      %p165 = scmp.eq.s32.totalorder %s15, 0
      %p166 = por %p164, %p165
      %p167 = scmp.ne.s32.totalorder %s159, %s161
      %p168 = scmp.eq.s32.totalorder %s20, 1
      %p169 = por %p167, %p168
      %p170 = scmp.ne.s32.totalorder %s161, %s162
      %p171 = scmp.eq.s32.totalorder %s20, 0
      %p172 = por %p170, %p171
      %p173 = scmp.ne.s32.totalorder %s161, %s162
      %p174 = scmp.eq.s32.totalorder %s21, 1
      %p175 = por %p173, %p174
      %p177 = scmp.ne.s32.totalorder %s162, %s176
      %p178 = scmp.eq.s32.totalorder %s21, 0
      %p179 = por %p177, %p178
      %s180 = ssub.s32 %s15, %s22
      %p181 = scmp.eq.s32.totalorder %s180, 0
      %s183 = sadd.s32 %s182, 1
      %s184 = scalar_select %p181, %s182, %s183
      %p187 = pneg %p181
      %p188 = scmp.eq.s32.totalorder %s15, 1
      %p189 = por %p187, %p188
      %p190 = scmp.ne.s32.totalorder %s182, %s185
      %p191 = scmp.eq.s32.totalorder %s15, 0
      %p192 = por %p190, %p191
      %p193 = scmp.ne.s32.totalorder %s182, %s185
      %p194 = scmp.eq.s32.totalorder %s20, 1
      %p195 = por %p193, %p194
      %p196 = scmp.ne.s32.totalorder %s185, %s186
      %p197 = scmp.eq.s32.totalorder %s20, 0
      %p198 = por %p196, %p197
      %p199 = scmp.ne.s32.totalorder %s185, %s186
      %p200 = scmp.eq.s32.totalorder %s21, 1
      %p201 = por %p199, %p200
      %p203 = scmp.ne.s32.totalorder %s186, %s202
      %p204 = scmp.eq.s32.totalorder %s21, 0
      %p205 = por %p203, %p204
      %p206 = scmp.le.s32.totalorder 1, %s15
      %p207 = scmp.lt.s32.totalorder %s15, 3
      %p208 = pnand %p206, %p207
      %p209 = pneg %p208
      // Predicated region
      $region9: #{encoder_forward.5} parent=5 // pred_check
        _
      $region10: #{encoder_forward.5} parent=5 // pred_check_branch
        %211 = sbr.rel (%p208) target = $region12
      $region11: #{encoder_forward.5} parent=5 // pred_region
        %s212 = ssub.s32 %s15, 1
        // Predicated region
        $region13: #{encoder_forward.5} parent=11 // pred_check
          %p213 = pneg %p88
        $region14: #{encoder_forward.5} parent=11 // pred_check_branch
          %215 = sbr.rel (%p213) target = $region16
        $region15: #{encoder_forward.5} parent=11 // pred_region
          _
        $region16: #{encoder_forward.5} parent=11 // pred_fallthru
          _
        // Predicated region
        $region17: #{encoder_forward.5} parent=11 // pred_check
          %p216 = pneg %p109
        $region18: #{encoder_forward.5} parent=11 // pred_check_branch
          %218 = sbr.rel (%p216) target = $region20
        $region19: #{encoder_forward.5} parent=11 // pred_region
          _
        $region20: #{encoder_forward.5} parent=11 // pred_fallthru
          _
        // Predicated region
        $region21: #{encoder_forward.5} parent=11 // pred_check
          %p219 = pneg %p130
        $region22: #{encoder_forward.5} parent=11 // pred_check_branch
          %221 = sbr.rel (%p219) target = $region24
        $region23: #{encoder_forward.5} parent=11 // pred_region
          %s223 = ssub.s32 32, 32
          %224 = vsyncadd [#allocation3], %s223
          %s226 = sshll.u32 [#allocation2], 4
          %s227 = int_to_ptr.vmem [resolvable:$true] %s226
          %229 = dma.hbm_to_vmem [thread:$0]  %s4, 32, %s227, [#allocation3]
        $region24: #{encoder_forward.5} parent=11 // pred_fallthru
          _
        // Predicated region
        $region25: #{encoder_forward.5} parent=11 // pred_check
          %p230 = pneg %p151
        $region26: #{encoder_forward.5} parent=11 // pred_check_branch
          %232 = sbr.rel (%p230) target = $region28
        $region27: #{encoder_forward.5} parent=11 // pred_region
          %s234 = ssub.s32 12288, 12288
          %235 = vsyncadd [#allocation5], %s234
          %s236 = sshll.u32 [#allocation4], 4
          %s237 = int_to_ptr.vmem [resolvable:$true] %s236
          %242 = dma.hbm_to_vmem [thread:$0]  %s5, 12288, %s237, [#allocation5], 384, 384, 24
        $region28: #{encoder_forward.5} parent=11 // pred_fallthru
          _
        // Predicated region
        $region29: #{encoder_forward.5} parent=11 // pred_check
          %p243 = pneg %p172
        $region30: #{encoder_forward.5} parent=11 // pred_check_branch
          %245 = sbr.rel (%p243) target = $region32
        $region31: #{encoder_forward.5} parent=11 // pred_region
          _
        $region32: #{encoder_forward.5} parent=11 // pred_fallthru
          _
      $region12: #{encoder_forward.5} parent=5 // pred_fallthru
        _
      %p246 = scmp.lt.s32.totalorder %s15, 2
      // Predicated region
      $region33: #{encoder_forward.5} parent=5 // pred_check
        %p247 = pneg %p246
      $region34: #{encoder_forward.5} parent=5 // pred_check_branch
        %249 = sbr.rel (%p247) target = $region36
      $region35: #{encoder_forward.5} parent=5 // pred_region
        // Predicated region
        $region37: #{encoder_forward.5} parent=35 // pred_check
          %p250 = pneg %p35
        $region38: #{encoder_forward.5} parent=35 // pred_check_branch
          %252 = sbr.rel (%p250) target = $region40
        $region39: #{encoder_forward.5} parent=35 // pred_region
          %p253 = scmp.lt.s32.totalorder %s15, 1
          %s254 = scalar_select %p253, %s15, 1
          %s255 = smul.addr %s254, 2
          %s256 = smul.addr %s255, 4
          %s257 = scalar_lea.vmem %s0, %s256
        $region40: #{encoder_forward.5} parent=35 // pred_fallthru
          _
        // Predicated region
        $region41: #{encoder_forward.5} parent=35 // pred_check
          %p258 = pneg %p61
        $region42: #{encoder_forward.5} parent=35 // pred_check_branch
          %260 = sbr.rel (%p258) target = $region44
        $region43: #{encoder_forward.5} parent=35 // pred_region
          %p261 = scmp.lt.s32.totalorder %s15, 1
          %s262 = scalar_select %p261, %s15, 1
          %s263 = scalar_lea.vmem %s1, %s262
        $region44: #{encoder_forward.5} parent=35 // pred_fallthru
          _
      $region36: #{encoder_forward.5} parent=5 // pred_fallthru
        _
      %p264 = scmp.le.s32.totalorder 1, %s15
      %p265 = scmp.lt.s32.totalorder %s15, 3
      %p266 = pnand %p264, %p265
      %p267 = pneg %p266
      // Predicated region
      $region45: #{encoder_forward.5} parent=5 // pred_check
        _
      $region46: #{encoder_forward.5} parent=5 // pred_check_branch
        %269 = sbr.rel (%p266) target = $region48
      $region47: #{encoder_forward.5} parent=5 // pred_region
        %s270 = ssub.s32 %s15, 1
        // Predicated region
        $region49: #{encoder_forward.5} parent=47 // pred_check
          %p271 = pneg %p130
        $region50: #{encoder_forward.5} parent=47 // pred_check_branch
          %273 = sbr.rel (%p271) target = $region52
        $region51: #{encoder_forward.5} parent=47 // pred_region
          %274 = dma.done [#allocation3], 32
        $region52: #{encoder_forward.5} parent=47 // pred_fallthru
          _
        // Predicated region
        $region53: #{encoder_forward.5} parent=47 // pred_check
          %p275 = pneg %p151
        $region54: #{encoder_forward.5} parent=47 // pred_check_branch
          %277 = sbr.rel (%p275) target = $region56
        $region55: #{encoder_forward.5} parent=47 // pred_region
          %278 = dma.done [#allocation5], 12288
        $region56: #{encoder_forward.5} parent=47 // pred_fallthru
          _
        %p279 = scmp.lt.s32.totalorder %s20, 1
        %s280 = scalar_select %p279, %s20, 1
        %s281 = smul.addr %s280, 2
        %s282 = smul.addr %s281, 4
        %s283 = scalar_lea.vmem %s0, %s282
        %p284 = pneg %p41
        %p285 = pneg %p38
        %p286 = scmp.lt.s32.totalorder %s20, 1
        %s287 = scalar_select %p286, %s20, 1
        %s288 = scalar_lea.vmem %s1, %s287
        %p289 = pneg %p67
        %p290 = pneg %p64
        %p291 = pneg %p88
        %p292 = pneg %p85
        %p293 = pneg %p109
        %p294 = pneg %p106
        %p295 = pneg %p130
        %p296 = pneg %p127
        %p297 = pneg %p151
        %p298 = pneg %p148
        %p299 = pneg %p172
        %p300 = pneg %p169
        %p301 = pneg %p198
        %p302 = pneg %p195
        %p303 = scmp.lt.s32.totalorder %s20, 1
        %s304 = scalar_select %p303, %s20, 1
        %s305 = smul.addr %s304, 2
        %s306 = smul.addr %s305, 4
        %s307 = scalar_lea.vmem %s7, %s306
        %p308 = scmp.lt.s32.totalorder %s20, 1
        %s309 = scalar_select %p308, %s20, 1
        %s310 = smul.addr %s309, 2
        %s311 = smul.addr %s310, 4
        %s312 = scalar_lea.vmem %s0, %s311
        %p313 = scmp.lt.s32.totalorder %s20, 1
        %s314 = scalar_select %p313, %s20, 1
        %s315 = scalar_lea.vmem %s1, %s314
        %p316 = scmp.lt.s32.totalorder %s20, 1
        %s317 = scalar_select %p316, %s20, 1
        %s318 = smul.addr %s317, 2
        %s319 = smul.addr %s318, 4
        %s320 = scalar_lea.vmem %s7, %s319
        %v322 = vld [vmem:[%s312] sm:$0xff]
        %v323 = vunpack.c.l.bf16 %v322
        %v324 = vunpack.c.h.bf16 %v322
        %v325 = vld [vmem:[#allocation2] sm:$0x3]
        %v326 = vunpack.c.l.bf16 %v325
        %v327 = vmul.f32 %v323, %v323
        %v328 = vmul.f32 %v324, %v324
        %v329 = vadd.f32 %v327, %v328
        %330 = vadd.xlane.f32.xlu0 %v329
        %v331 = vpop.xlane.xlu0 %330
        %v332 = vrcp.pop 256.0
        %v333 = vmul.f32 %v331, %v332
        %v334 = vadd.f32 %v333, 1e-06
        %v335 = vrsqrt.pop %v334
        %v336 = vmul.f32 %v323, %v335
        %v337 = vmul.f32 %v324, %v335
        %v339 = vlaneseq
        %v340 = vshrl.u32 %v339, 7
        %v341 = vsub.s32 0, %v340
        %v342 = vrot.slane %v326, %v341
        %v343 = vlaneseq
        %v344 = vshrl.u32 %v343, 7
        %v345 = vsub.s32 2, %v344
        %v346 = vrot.slane %v326, %v345
        %v349 = vlaneseq
        %v350 = vshrl.u32 %v349, 7
        %v351 = vsub.s32 0, %v350
        %v352 = vrot.slane %v342, %v351
        %v353 = vlaneseq
        %v354 = vshrl.u32 %v353, 7
        %v355 = vsub.s32 0, %v354
        %v356 = vrot.slane %v346, %v355
        %v357 = vmul.f32 %v336, %v352
        %v358 = vmul.f32 %v337, %v356
        %v359 = vpack.c.bf16 %v357, %v357
        %v360 = vpack.c.bf16 %v358, %v358
        %v361 = vld [vmem:[#allocation4] sm:$0xff]
        %v362 = vld [vmem:[#allocation4 + $0x8] sm:$0xff]
        %v363 = vld [vmem:[#allocation4 + $0x10] sm:$0xff]
        %v364 = vld [vmem:[#allocation4 + $0x18] sm:$0xff]
        %v365 = vld [vmem:[#allocation4 + $0x20] sm:$0xff]
        %v366 = vld [vmem:[#allocation4 + $0x28] sm:$0xff]
        %v367 = vld [vmem:[#allocation4 + $0x30] sm:$0xff]
        %v368 = vld [vmem:[#allocation4 + $0x38] sm:$0xff]
        %v369 = vld [vmem:[#allocation4 + $0x40] sm:$0xff]
        %v370 = vld [vmem:[#allocation4 + $0x48] sm:$0xff]
        %v371 = vld [vmem:[#allocation4 + $0x50] sm:$0xff]
        %v372 = vld [vmem:[#allocation4 + $0x58] sm:$0xff]
        %v373 = vld [vmem:[#allocation4 + $0x60] sm:$0xff]
        %v374 = vld [vmem:[#allocation4 + $0x68] sm:$0xff]
        %v375 = vld [vmem:[#allocation4 + $0x70] sm:$0xff]
        %v376 = vld [vmem:[#allocation4 + $0x78] sm:$0xff]
        %v377 = vld [vmem:[#allocation4 + $0x80] sm:$0xff]
        %v378 = vld [vmem:[#allocation4 + $0x88] sm:$0xff]
        %v379 = vld [vmem:[#allocation4 + $0x90] sm:$0xff]
        %v380 = vld [vmem:[#allocation4 + $0x98] sm:$0xff]
        %v381 = vld [vmem:[#allocation4 + $0xa0] sm:$0xff]
        %v382 = vld [vmem:[#allocation4 + $0xa8] sm:$0xff]
        %v383 = vld [vmem:[#allocation4 + $0xb0] sm:$0xff]
        %v384 = vld [vmem:[#allocation4 + $0xb8] sm:$0xff]
        %v385 = vld [vmem:[#allocation4 + $0xc0] sm:$0xff]
        %v386 = vld [vmem:[#allocation4 + $0xc8] sm:$0xff]
        %v387 = vld [vmem:[#allocation4 + $0xd0] sm:$0xff]
        %v388 = vld [vmem:[#allocation4 + $0xd8] sm:$0xff]
        %v389 = vld [vmem:[#allocation4 + $0xe0] sm:$0xff]
        %v390 = vld [vmem:[#allocation4 + $0xe8] sm:$0xff]
        %v391 = vld [vmem:[#allocation4 + $0xf0] sm:$0xff]
        %v392 = vld [vmem:[#allocation4 + $0xf8] sm:$0xff]
        %v393 = vld [vmem:[#allocation4 + $0x100] sm:$0xff]
        %v394 = vld [vmem:[#allocation4 + $0x108] sm:$0xff]
        %v395 = vld [vmem:[#allocation4 + $0x110] sm:$0xff]
        %v396 = vld [vmem:[#allocation4 + $0x118] sm:$0xff]
        %v397 = vld [vmem:[#allocation4 + $0x120] sm:$0xff]
        %v398 = vld [vmem:[#allocation4 + $0x128] sm:$0xff]
        %v399 = vld [vmem:[#allocation4 + $0x130] sm:$0xff]
        %v400 = vld [vmem:[#allocation4 + $0x138] sm:$0xff]
        %v401 = vld [vmem:[#allocation4 + $0x140] sm:$0xff]
        %v402 = vld [vmem:[#allocation4 + $0x148] sm:$0xff]
        %v403 = vld [vmem:[#allocation4 + $0x150] sm:$0xff]
        %v404 = vld [vmem:[#allocation4 + $0x158] sm:$0xff]
        %v405 = vld [vmem:[#allocation4 + $0x160] sm:$0xff]
        %v406 = vld [vmem:[#allocation4 + $0x168] sm:$0xff]
        %v407 = vld [vmem:[#allocation4 + $0x170] sm:$0xff]
        %v408 = vld [vmem:[#allocation4 + $0x178] sm:$0xff]
        %v409 = vld [vmem:[#allocation4 + $0x180] sm:$0xff]
        %v410 = vld [vmem:[#allocation4 + $0x188] sm:$0xff]
        %v411 = vld [vmem:[#allocation4 + $0x190] sm:$0xff]
        %v412 = vld [vmem:[#allocation4 + $0x198] sm:$0xff]
        %v413 = vld [vmem:[#allocation4 + $0x1a0] sm:$0xff]
        %v414 = vld [vmem:[#allocation4 + $0x1a8] sm:$0xff]
        %v415 = vld [vmem:[#allocation4 + $0x1b0] sm:$0xff]
        %v416 = vld [vmem:[#allocation4 + $0x1b8] sm:$0xff]
        %v417 = vld [vmem:[#allocation4 + $0x1c0] sm:$0xff]
        %v418 = vld [vmem:[#allocation4 + $0x1c8] sm:$0xff]
        %v419 = vld [vmem:[#allocation4 + $0x1d0] sm:$0xff]
        %v420 = vld [vmem:[#allocation4 + $0x1d8] sm:$0xff]
        %v421 = vld [vmem:[#allocation4 + $0x1e0] sm:$0xff]
        %v422 = vld [vmem:[#allocation4 + $0x1e8] sm:$0xff]
        %v423 = vld [vmem:[#allocation4 + $0x1f0] sm:$0xff]
        %v424 = vld [vmem:[#allocation4 + $0x1f8] sm:$0xff]
        %v425 = vld [vmem:[#allocation4 + $0x200] sm:$0xff]
        %v426 = vld [vmem:[#allocation4 + $0x208] sm:$0xff]
        %v427 = vld [vmem:[#allocation4 + $0x210] sm:$0xff]
        %v428 = vld [vmem:[#allocation4 + $0x218] sm:$0xff]
        %v429 = vld [vmem:[#allocation4 + $0x220] sm:$0xff]
        %v430 = vld [vmem:[#allocation4 + $0x228] sm:$0xff]
        %v431 = vld [vmem:[#allocation4 + $0x230] sm:$0xff]
        %v432 = vld [vmem:[#allocation4 + $0x238] sm:$0xff]
        %v433 = vld [vmem:[#allocation4 + $0x240] sm:$0xff]
        %v434 = vld [vmem:[#allocation4 + $0x248] sm:$0xff]
        %v435 = vld [vmem:[#allocation4 + $0x250] sm:$0xff]
        %v436 = vld [vmem:[#allocation4 + $0x258] sm:$0xff]
        %v437 = vld [vmem:[#allocation4 + $0x260] sm:$0xff]
        %v438 = vld [vmem:[#allocation4 + $0x268] sm:$0xff]
        %v439 = vld [vmem:[#allocation4 + $0x270] sm:$0xff]
        %v440 = vld [vmem:[#allocation4 + $0x278] sm:$0xff]
        %v441 = vld [vmem:[#allocation4 + $0x280] sm:$0xff]
        %v442 = vld [vmem:[#allocation4 + $0x288] sm:$0xff]
        %v443 = vld [vmem:[#allocation4 + $0x290] sm:$0xff]
        %v444 = vld [vmem:[#allocation4 + $0x298] sm:$0xff]
        %v445 = vld [vmem:[#allocation4 + $0x2a0] sm:$0xff]
        %v446 = vld [vmem:[#allocation4 + $0x2a8] sm:$0xff]
        %v447 = vld [vmem:[#allocation4 + $0x2b0] sm:$0xff]
        %v448 = vld [vmem:[#allocation4 + $0x2b8] sm:$0xff]
        %v449 = vld [vmem:[#allocation4 + $0x2c0] sm:$0xff]
        %v450 = vld [vmem:[#allocation4 + $0x2c8] sm:$0xff]
        %v451 = vld [vmem:[#allocation4 + $0x2d0] sm:$0xff]
        %v452 = vld [vmem:[#allocation4 + $0x2d8] sm:$0xff]
        %v453 = vld [vmem:[#allocation4 + $0x2e0] sm:$0xff]
        %v454 = vld [vmem:[#allocation4 + $0x2e8] sm:$0xff]
        %v455 = vld [vmem:[#allocation4 + $0x2f0] sm:$0xff]
        %v456 = vld [vmem:[#allocation4 + $0x2f8] sm:$0xff]
        %v553 = vunpack.c.l.b16 %v361
        %v554 = vunpack.c.h.b16 %v361
        %v555 = vunpack.c.l.b16 %v362
        %v556 = vunpack.c.h.b16 %v362
        %v557 = vunpack.c.l.b16 %v363
        %v558 = vunpack.c.h.b16 %v363
        %v559 = vunpack.c.l.b16 %v364
        %v560 = vunpack.c.h.b16 %v364
        %v561 = vunpack.c.l.b16 %v365
        %v562 = vunpack.c.h.b16 %v365
        %v563 = vunpack.c.l.b16 %v366
        %v564 = vunpack.c.h.b16 %v366
        %v565 = vunpack.c.l.b16 %v367
        %v566 = vunpack.c.h.b16 %v367
        %v567 = vunpack.c.l.b16 %v368
        %v568 = vunpack.c.h.b16 %v368
        %v569 = vunpack.c.l.b16 %v369
        %v570 = vunpack.c.h.b16 %v369
        %v571 = vunpack.c.l.b16 %v370
        %v572 = vunpack.c.h.b16 %v370
        %v573 = vunpack.c.l.b16 %v371
        %v574 = vunpack.c.h.b16 %v371
        %v575 = vunpack.c.l.b16 %v372
        %v576 = vunpack.c.h.b16 %v372
        %v577 = vunpack.c.l.b16 %v373
        %v578 = vunpack.c.h.b16 %v373
        %v579 = vunpack.c.l.b16 %v374
        %v580 = vunpack.c.h.b16 %v374
        %v581 = vunpack.c.l.b16 %v375
        %v582 = vunpack.c.h.b16 %v375
        %v583 = vunpack.c.l.b16 %v376
        %v584 = vunpack.c.h.b16 %v376
        %v585 = vunpack.c.l.b16 %v377
        %v586 = vunpack.c.h.b16 %v377
        %v587 = vunpack.c.l.b16 %v378
        %v588 = vunpack.c.h.b16 %v378
        %v589 = vunpack.c.l.b16 %v379
        %v590 = vunpack.c.h.b16 %v379
        %v591 = vunpack.c.l.b16 %v380
        %v592 = vunpack.c.h.b16 %v380
        %v593 = vunpack.c.l.b16 %v381
        %v594 = vunpack.c.h.b16 %v381
        %v595 = vunpack.c.l.b16 %v382
        %v596 = vunpack.c.h.b16 %v382
        %v597 = vunpack.c.l.b16 %v383
        %v598 = vunpack.c.h.b16 %v383
        %v599 = vunpack.c.l.b16 %v384
        %v600 = vunpack.c.h.b16 %v384
        %v601 = vunpack.c.l.b16 %v385
        %v602 = vunpack.c.h.b16 %v385
        %v603 = vunpack.c.l.b16 %v386
        %v604 = vunpack.c.h.b16 %v386
        %v605 = vunpack.c.l.b16 %v387
        %v606 = vunpack.c.h.b16 %v387
        %v607 = vunpack.c.l.b16 %v388
        %v608 = vunpack.c.h.b16 %v388
        %v609 = vunpack.c.l.b16 %v389
        %v610 = vunpack.c.h.b16 %v389
        %v611 = vunpack.c.l.b16 %v390
        %v612 = vunpack.c.h.b16 %v390
        %v613 = vunpack.c.l.b16 %v391
        %v614 = vunpack.c.h.b16 %v391
        %v615 = vunpack.c.l.b16 %v392
        %v616 = vunpack.c.h.b16 %v392
        %v617 = vunpack.c.l.b16 %v393
        %v618 = vunpack.c.h.b16 %v393
        %v619 = vunpack.c.l.b16 %v394
        %v620 = vunpack.c.h.b16 %v394
        %v621 = vunpack.c.l.b16 %v395
        %v622 = vunpack.c.h.b16 %v395
        %v623 = vunpack.c.l.b16 %v396
        %v624 = vunpack.c.h.b16 %v396
        %v625 = vunpack.c.l.b16 %v397
        %v626 = vunpack.c.h.b16 %v397
        %v627 = vunpack.c.l.b16 %v398
        %v628 = vunpack.c.h.b16 %v398
        %v629 = vunpack.c.l.b16 %v399
        %v630 = vunpack.c.h.b16 %v399
        %v631 = vunpack.c.l.b16 %v400
        %v632 = vunpack.c.h.b16 %v400
        %v633 = vunpack.c.l.b16 %v401
        %v634 = vunpack.c.h.b16 %v401
        %v635 = vunpack.c.l.b16 %v402
        %v636 = vunpack.c.h.b16 %v402
        %v637 = vunpack.c.l.b16 %v403
        %v638 = vunpack.c.h.b16 %v403
        %v639 = vunpack.c.l.b16 %v404
        %v640 = vunpack.c.h.b16 %v404
        %v641 = vunpack.c.l.b16 %v405
        %v642 = vunpack.c.h.b16 %v405
        %v643 = vunpack.c.l.b16 %v406
        %v644 = vunpack.c.h.b16 %v406
        %v645 = vunpack.c.l.b16 %v407
        %v646 = vunpack.c.h.b16 %v407
        %v647 = vunpack.c.l.b16 %v408
        %v648 = vunpack.c.h.b16 %v408
        %v649 = vunpack.c.l.b16 %v409
        %v650 = vunpack.c.h.b16 %v409
        %v651 = vunpack.c.l.b16 %v410
        %v652 = vunpack.c.h.b16 %v410
        %v653 = vunpack.c.l.b16 %v411
        %v654 = vunpack.c.h.b16 %v411
        %v655 = vunpack.c.l.b16 %v412
        %v656 = vunpack.c.h.b16 %v412
        %v657 = vunpack.c.l.b16 %v413
        %v658 = vunpack.c.h.b16 %v413
        %v659 = vunpack.c.l.b16 %v414
        %v660 = vunpack.c.h.b16 %v414
        %v661 = vunpack.c.l.b16 %v415
        %v662 = vunpack.c.h.b16 %v415
        %v663 = vunpack.c.l.b16 %v416
        %v664 = vunpack.c.h.b16 %v416
        %v665 = vunpack.c.l.b16 %v417
        %v666 = vunpack.c.h.b16 %v417
        %v667 = vunpack.c.l.b16 %v418
        %v668 = vunpack.c.h.b16 %v418
        %v669 = vunpack.c.l.b16 %v419
        %v670 = vunpack.c.h.b16 %v419
        %v671 = vunpack.c.l.b16 %v420
        %v672 = vunpack.c.h.b16 %v420
        %v673 = vunpack.c.l.b16 %v421
        %v674 = vunpack.c.h.b16 %v421
        %v675 = vunpack.c.l.b16 %v422
        %v676 = vunpack.c.h.b16 %v422
        %v677 = vunpack.c.l.b16 %v423
        %v678 = vunpack.c.h.b16 %v423
        %v679 = vunpack.c.l.b16 %v424
        %v680 = vunpack.c.h.b16 %v424
        %v681 = vunpack.c.l.b16 %v425
        %v682 = vunpack.c.h.b16 %v425
        %v683 = vunpack.c.l.b16 %v426
        %v684 = vunpack.c.h.b16 %v426
        %v685 = vunpack.c.l.b16 %v427
        %v686 = vunpack.c.h.b16 %v427
        %v687 = vunpack.c.l.b16 %v428
        %v688 = vunpack.c.h.b16 %v428
        %v689 = vunpack.c.l.b16 %v429
        %v690 = vunpack.c.h.b16 %v429
        %v691 = vunpack.c.l.b16 %v430
        %v692 = vunpack.c.h.b16 %v430
        %v693 = vunpack.c.l.b16 %v431
        %v694 = vunpack.c.h.b16 %v431
        %v695 = vunpack.c.l.b16 %v432
        %v696 = vunpack.c.h.b16 %v432
        %v697 = vunpack.c.l.b16 %v433
        %v698 = vunpack.c.h.b16 %v433
        %v699 = vunpack.c.l.b16 %v434
        %v700 = vunpack.c.h.b16 %v434
        %v701 = vunpack.c.l.b16 %v435
        %v702 = vunpack.c.h.b16 %v435
        %v703 = vunpack.c.l.b16 %v436
        %v704 = vunpack.c.h.b16 %v436
        %v705 = vunpack.c.l.b16 %v437
        %v706 = vunpack.c.h.b16 %v437
        %v707 = vunpack.c.l.b16 %v438
        %v708 = vunpack.c.h.b16 %v438
        %v709 = vunpack.c.l.b16 %v439
        %v710 = vunpack.c.h.b16 %v439
        %v711 = vunpack.c.l.b16 %v440
        %v712 = vunpack.c.h.b16 %v440
        %v713 = vunpack.c.l.b16 %v441
        %v714 = vunpack.c.h.b16 %v441
        %v715 = vunpack.c.l.b16 %v442
        %v716 = vunpack.c.h.b16 %v442
        %v717 = vunpack.c.l.b16 %v443
        %v718 = vunpack.c.h.b16 %v443
        %v719 = vunpack.c.l.b16 %v444
        %v720 = vunpack.c.h.b16 %v444
        %v721 = vunpack.c.l.b16 %v445
        %v722 = vunpack.c.h.b16 %v445
        %v723 = vunpack.c.l.b16 %v446
        %v724 = vunpack.c.h.b16 %v446
        %v725 = vunpack.c.l.b16 %v447
        %v726 = vunpack.c.h.b16 %v447
        %v727 = vunpack.c.l.b16 %v448
        %v728 = vunpack.c.h.b16 %v448
        %v729 = vunpack.c.l.b16 %v449
        %v730 = vunpack.c.h.b16 %v449
        %v731 = vunpack.c.l.b16 %v450
        %v732 = vunpack.c.h.b16 %v450
        %v733 = vunpack.c.l.b16 %v451
        %v734 = vunpack.c.h.b16 %v451
        %v735 = vunpack.c.l.b16 %v452
        %v736 = vunpack.c.h.b16 %v452
        %v737 = vunpack.c.l.b16 %v453
        %v738 = vunpack.c.h.b16 %v453
        %v739 = vunpack.c.l.b16 %v454
        %v740 = vunpack.c.h.b16 %v454
        %v741 = vunpack.c.l.b16 %v455
        %v742 = vunpack.c.h.b16 %v455
        %v743 = vunpack.c.l.b16 %v456
        %v744 = vunpack.c.h.b16 %v456
        %v745 = vpack.c.b16 %v559, %v553
        %v746 = vpack.c.b16 %v560, %v554
        %v747 = vpack.c.b16 %v561, %v555
        %v748 = vpack.c.b16 %v562, %v556
        %v749 = vpack.c.b16 %v563, %v557
        %v750 = vpack.c.b16 %v564, %v558
        %v751 = vpack.c.b16 %v571, %v565
        %v752 = vpack.c.b16 %v572, %v566
        %v753 = vpack.c.b16 %v573, %v567
        %v754 = vpack.c.b16 %v574, %v568
        %v755 = vpack.c.b16 %v575, %v569
        %v756 = vpack.c.b16 %v576, %v570
        %v757 = vpack.c.b16 %v583, %v577
        %v758 = vpack.c.b16 %v584, %v578
        %v759 = vpack.c.b16 %v585, %v579
        %v760 = vpack.c.b16 %v586, %v580
        %v761 = vpack.c.b16 %v587, %v581
        %v762 = vpack.c.b16 %v588, %v582
        %v763 = vpack.c.b16 %v595, %v589
        %v764 = vpack.c.b16 %v596, %v590
        %v765 = vpack.c.b16 %v597, %v591
        %v766 = vpack.c.b16 %v598, %v592
        %v767 = vpack.c.b16 %v599, %v593
        %v768 = vpack.c.b16 %v600, %v594
        %v769 = vpack.c.b16 %v607, %v601
        %v770 = vpack.c.b16 %v608, %v602
        %v771 = vpack.c.b16 %v609, %v603
        %v772 = vpack.c.b16 %v610, %v604
        %v773 = vpack.c.b16 %v611, %v605
        %v774 = vpack.c.b16 %v612, %v606
        %v775 = vpack.c.b16 %v619, %v613
        %v776 = vpack.c.b16 %v620, %v614
        %v777 = vpack.c.b16 %v621, %v615
        %v778 = vpack.c.b16 %v622, %v616
        %v779 = vpack.c.b16 %v623, %v617
        %v780 = vpack.c.b16 %v624, %v618
        %v781 = vpack.c.b16 %v631, %v625
        %v782 = vpack.c.b16 %v632, %v626
        %v783 = vpack.c.b16 %v633, %v627
        %v784 = vpack.c.b16 %v634, %v628
        %v785 = vpack.c.b16 %v635, %v629
        %v786 = vpack.c.b16 %v636, %v630
        %v787 = vpack.c.b16 %v643, %v637
        %v788 = vpack.c.b16 %v644, %v638
        %v789 = vpack.c.b16 %v645, %v639
        %v790 = vpack.c.b16 %v646, %v640
        %v791 = vpack.c.b16 %v647, %v641
        %v792 = vpack.c.b16 %v648, %v642
        %v793 = vpack.c.b16 %v655, %v649
        %v794 = vpack.c.b16 %v656, %v650
        %v795 = vpack.c.b16 %v657, %v651
        %v796 = vpack.c.b16 %v658, %v652
        %v797 = vpack.c.b16 %v659, %v653
        %v798 = vpack.c.b16 %v660, %v654
        %v799 = vpack.c.b16 %v667, %v661
        %v800 = vpack.c.b16 %v668, %v662
        %v801 = vpack.c.b16 %v669, %v663
        %v802 = vpack.c.b16 %v670, %v664
        %v803 = vpack.c.b16 %v671, %v665
        %v804 = vpack.c.b16 %v672, %v666
        %v805 = vpack.c.b16 %v679, %v673
        %v806 = vpack.c.b16 %v680, %v674
        %v807 = vpack.c.b16 %v681, %v675
        %v808 = vpack.c.b16 %v682, %v676
        %v809 = vpack.c.b16 %v683, %v677
        %v810 = vpack.c.b16 %v684, %v678
        %v811 = vpack.c.b16 %v691, %v685
        %v812 = vpack.c.b16 %v692, %v686
        %v813 = vpack.c.b16 %v693, %v687
        %v814 = vpack.c.b16 %v694, %v688
        %v815 = vpack.c.b16 %v695, %v689
        %v816 = vpack.c.b16 %v696, %v690
        %v817 = vpack.c.b16 %v703, %v697
        %v818 = vpack.c.b16 %v704, %v698
        %v819 = vpack.c.b16 %v705, %v699
        %v820 = vpack.c.b16 %v706, %v700
        %v821 = vpack.c.b16 %v707, %v701
        %v822 = vpack.c.b16 %v708, %v702
        %v823 = vpack.c.b16 %v715, %v709
        %v824 = vpack.c.b16 %v716, %v710
        %v825 = vpack.c.b16 %v717, %v711
        %v826 = vpack.c.b16 %v718, %v712
        %v827 = vpack.c.b16 %v719, %v713
        %v828 = vpack.c.b16 %v720, %v714
        %v829 = vpack.c.b16 %v727, %v721
        %v830 = vpack.c.b16 %v728, %v722
        %v831 = vpack.c.b16 %v729, %v723
        %v832 = vpack.c.b16 %v730, %v724
        %v833 = vpack.c.b16 %v731, %v725
        %v834 = vpack.c.b16 %v732, %v726
        %v835 = vpack.c.b16 %v739, %v733
        %v836 = vpack.c.b16 %v740, %v734
        %v837 = vpack.c.b16 %v741, %v735
        %v838 = vpack.c.b16 %v742, %v736
        %v839 = vpack.c.b16 %v743, %v737
        %v840 = vpack.c.b16 %v744, %v738
        %937 = vmatprep.subr.bf16.mxu0 %v746
        %938 = vmatpush1.bf16.msra.mxu0 %v745
        %939 = vmatprep.subr.bf16.mxu0 %v752
        %940 = vmatpush1.bf16.msra.mxu0 %v751
        %941 = vmatprep.subr.bf16.mxu0 %v758
        %942 = vmatpush1.bf16.msra.mxu0 %v757
        %943 = vmatprep.subr.bf16.mxu0 %v764
        %944 = vmatpush1.bf16.msra.mxu0 %v763
        %945 = vmatprep.subr.bf16.mxu0 %v770
        %946 = vmatpush1.bf16.msra.mxu0 %v769
        %947 = vmatprep.subr.bf16.mxu0 %v776
        %948 = vmatpush1.bf16.msra.mxu0 %v775
        %949 = vmatprep.subr.bf16.mxu0 %v782
        %950 = vmatpush1.bf16.msra.mxu0 %v781
        %951 = vmatprep.subr.bf16.mxu0 %v788
        %952 = vmatpush1.bf16.msra.mxu0 %v787
        %953 = vmatprep.subr.bf16.mxu0 %v794
        %954 = vmatpush1.bf16.msra.mxu0 %v793
        %955 = vmatprep.subr.bf16.mxu0 %v800
        %956 = vmatpush1.bf16.msra.mxu0 %v799
        %957 = vmatprep.subr.bf16.mxu0 %v806
        %958 = vmatpush1.bf16.msra.mxu0 %v805
        %959 = vmatprep.subr.bf16.mxu0 %v812
        %960 = vmatpush1.bf16.msra.mxu0 %v811
        %961 = vmatprep.subr.bf16.mxu0 %v818
        %962 = vmatpush1.bf16.msra.mxu0 %v817
        %963 = vmatprep.subr.bf16.mxu0 %v824
        %964 = vmatpush1.bf16.msra.mxu0 %v823
        %965 = vmatprep.subr.bf16.mxu0 %v830
        %966 = vmatpush1.bf16.msra.mxu0 %v829
        %967 = vmatprep.subr.bf16.mxu0 %v836
        %968 = vmatpush1.bf16.msra.mxu0 %v835
        %969 = vmatprep.mubr.bf16.mxu0 %v360
        %970 = vmatmul.mubr.bf16.gmra.mrb[0].mxu0 %v359
        %v971 = vpop.f32.mrb[0].mxu0
        %v972 = vadd.f32 0.0, %v971
        %v973 = vpop.f32.mrb[0].mxu0
        %v974 = vadd.f32 0.0, %v973
        %v975 = vpop.f32.mrb[0].mxu0
        %v976 = vpop.f32.mrb[0].mxu0
        %977 = vdwg.mxu0
        %978 = vmatprep.subr.bf16.mxu0 %v748
        %979 = vmatpush1.bf16.msra.mxu0 %v747
        %980 = vmatprep.subr.bf16.mxu0 %v754
        %981 = vmatpush1.bf16.msra.mxu0 %v753
        %982 = vmatprep.subr.bf16.mxu0 %v760
        %983 = vmatpush1.bf16.msra.mxu0 %v759
        %984 = vmatprep.subr.bf16.mxu0 %v766
        %985 = vmatpush1.bf16.msra.mxu0 %v765
        %986 = vmatprep.subr.bf16.mxu0 %v772
        %987 = vmatpush1.bf16.msra.mxu0 %v771
        %988 = vmatprep.subr.bf16.mxu0 %v778
        %989 = vmatpush1.bf16.msra.mxu0 %v777
        %990 = vmatprep.subr.bf16.mxu0 %v784
        %991 = vmatpush1.bf16.msra.mxu0 %v783
        %992 = vmatprep.subr.bf16.mxu0 %v790
        %993 = vmatpush1.bf16.msra.mxu0 %v789
        %994 = vmatprep.subr.bf16.mxu0 %v796
        %995 = vmatpush1.bf16.msra.mxu0 %v795
        %996 = vmatprep.subr.bf16.mxu0 %v802
        %997 = vmatpush1.bf16.msra.mxu0 %v801
        %998 = vmatprep.subr.bf16.mxu0 %v808
        %999 = vmatpush1.bf16.msra.mxu0 %v807
        %1000 = vmatprep.subr.bf16.mxu0 %v814
        %1001 = vmatpush1.bf16.msra.mxu0 %v813
        %1002 = vmatprep.subr.bf16.mxu0 %v820
        %1003 = vmatpush1.bf16.msra.mxu0 %v819
        %1004 = vmatprep.subr.bf16.mxu0 %v826
        %1005 = vmatpush1.bf16.msra.mxu0 %v825
        %1006 = vmatprep.subr.bf16.mxu0 %v832
        %1007 = vmatpush1.bf16.msra.mxu0 %v831
        %1008 = vmatprep.subr.bf16.mxu0 %v838
        %1009 = vmatpush1.bf16.msra.mxu0 %v837
        %1010 = vmatprep.mubr.bf16.mxu0 %v360
        %1011 = vmatmul.mubr.bf16.gmra.mrb[0].mxu0 %v359
        %v1012 = vpop.f32.mrb[0].mxu0
        %v1013 = vadd.f32 0.0, %v1012
        %v1014 = vpop.f32.mrb[0].mxu0
        %v1015 = vadd.f32 0.0, %v1014
        %v1016 = vpop.f32.mrb[0].mxu0
        %v1017 = vpop.f32.mrb[0].mxu0
        %1018 = vdwg.mxu0
        %1019 = vmatprep.subr.bf16.mxu0 %v750
        %1020 = vmatpush1.bf16.msra.mxu0 %v749
        %1021 = vmatprep.subr.bf16.mxu0 %v756
        %1022 = vmatpush1.bf16.msra.mxu0 %v755
        %1023 = vmatprep.subr.bf16.mxu0 %v762
        %1024 = vmatpush1.bf16.msra.mxu0 %v761
        %1025 = vmatprep.subr.bf16.mxu0 %v768
        %1026 = vmatpush1.bf16.msra.mxu0 %v767
        %1027 = vmatprep.subr.bf16.mxu0 %v774
        %1028 = vmatpush1.bf16.msra.mxu0 %v773
        %1029 = vmatprep.subr.bf16.mxu0 %v780
        %1030 = vmatpush1.bf16.msra.mxu0 %v779
        %1031 = vmatprep.subr.bf16.mxu0 %v786
        %1032 = vmatpush1.bf16.msra.mxu0 %v785
        %1033 = vmatprep.subr.bf16.mxu0 %v792
        %1034 = vmatpush1.bf16.msra.mxu0 %v791
        %1035 = vmatprep.subr.bf16.mxu0 %v798
        %1036 = vmatpush1.bf16.msra.mxu0 %v797
        %1037 = vmatprep.subr.bf16.mxu0 %v804
        %1038 = vmatpush1.bf16.msra.mxu0 %v803
        %1039 = vmatprep.subr.bf16.mxu0 %v810
        %1040 = vmatpush1.bf16.msra.mxu0 %v809
        %1041 = vmatprep.subr.bf16.mxu0 %v816
        %1042 = vmatpush1.bf16.msra.mxu0 %v815
        %1043 = vmatprep.subr.bf16.mxu0 %v822
        %1044 = vmatpush1.bf16.msra.mxu0 %v821
        %1045 = vmatprep.subr.bf16.mxu0 %v828
        %1046 = vmatpush1.bf16.msra.mxu0 %v827
        %1047 = vmatprep.subr.bf16.mxu0 %v834
        %1048 = vmatpush1.bf16.msra.mxu0 %v833
        %1049 = vmatprep.subr.bf16.mxu0 %v840
        %1050 = vmatpush1.bf16.msra.mxu0 %v839
        %1051 = vmatprep.mubr.bf16.mxu0 %v360
        %1052 = vmatmul.mubr.bf16.gmra.mrb[0].mxu0 %v359
        %v1053 = vpop.f32.mrb[0].mxu0
        %v1054 = vadd.f32 0.0, %v1053
        %v1055 = vpop.f32.mrb[0].mxu0
        %v1056 = vadd.f32 0.0, %v1055
        %v1057 = vpop.f32.mrb[0].mxu0
        %v1058 = vpop.f32.mrb[0].mxu0
        %1059 = vdwg.mxu0
        %v1060 = vld [vmem:[%s2] sm:$0xff]
        %v1061 = vld [vmem:[%s3] sm:$0xff]
        %v1062 = vld [vmem:[%s315] sm:$0x1]
        %vm1063 = vcmp.gt.f32.partialorder %v1062, 0.0
        %v1064 = vsel %vm1063, 0.0, -1e+30
        %v1065 = vmul.f32 %v972, %v1060
        %1066 = vrot.lane.b32.xlu0 %v972, 64
        %v1067 = vpop.permute.xlu0 %1066
        %v1068 = vmul.f32 %v1067, %v1061
        %v1069 = vadd.f32 %v1065, %v1068
        %v1070 = vmul.f32 %v1013, %v1060
        %1071 = vrot.lane.b32.xlu0 %v1013, 64
        %v1072 = vpop.permute.xlu0 %1071
        %v1073 = vmul.f32 %v1072, %v1061
        %v1074 = vadd.f32 %v1070, %v1073
        %v1075 = vpack.c.bf16 %v1069, %v1069
        %v1076 = vpack.c.bf16 %v1074, %v1074
        %v1078 = vlaneseq
        %v1079 = vshrl.u32 %v1078, 7
        %v1080 = vsub.s32 0, %v1079
        %v1081 = vrot.slane %v1064, %v1080
        %1083 = vmatprep.subr.bf16.mxu0 0
        %1084 = vmatpush1.bf16.xpose.msra.mxu0 %v1076
        %1085 = vmatprep.subr.bf16.mxu0 0
        %1086 = vmatpush1.bf16.xpose.msra.mxu0 0
        %1087 = vmatprep.subr.bf16.mxu0 0
        %1088 = vmatpush1.bf16.xpose.msra.mxu0 0
        %1089 = vmatprep.subr.bf16.mxu0 0
        %1090 = vmatpush1.bf16.xpose.msra.mxu0 0
        %1091 = vmatprep.subr.bf16.mxu0 0
        %1092 = vmatpush1.bf16.xpose.msra.mxu0 0
        %1093 = vmatprep.subr.bf16.mxu0 0
        %1094 = vmatpush1.bf16.xpose.msra.mxu0 0
        %1095 = vmatprep.subr.bf16.mxu0 0
        %1096 = vmatpush1.bf16.xpose.msra.mxu0 0
        %1097 = vmatprep.subr.bf16.mxu0 0
        %1098 = vmatpush1.bf16.xpose.msra.mxu0 0
        %1099 = vmatprep.subr.bf16.mxu0 0
        %1100 = vmatpush1.bf16.xpose.msra.mxu0 0
        %1101 = vmatprep.subr.bf16.mxu0 0
        %1102 = vmatpush1.bf16.xpose.msra.mxu0 0
        %1103 = vmatprep.subr.bf16.mxu0 0
        %1104 = vmatpush1.bf16.xpose.msra.mxu0 0
        %1105 = vmatprep.subr.bf16.mxu0 0
        %1106 = vmatpush1.bf16.xpose.msra.mxu0 0
        %1107 = vmatprep.subr.bf16.mxu0 0
        %1108 = vmatpush1.bf16.xpose.msra.mxu0 0
        %1109 = vmatprep.subr.bf16.mxu0 0
        %1110 = vmatpush1.bf16.xpose.msra.mxu0 0
        %1111 = vmatprep.subr.bf16.mxu0 0
        %1112 = vmatpush1.bf16.xpose.msra.mxu0 0
        %1113 = vmatprep.subr.bf16.mxu0 0
        %1114 = vmatpush1.bf16.xpose.msra.mxu0 0
        %1115 = vmatprep.mubr.bf16.mxu0 0
        %1116 = vmatmul.mubr.bf16.gmra.mrb[0].mxu0 %v1075
        %v1117 = vpop.f32.mrb[0].mxu0
        %v1118 = vadd.f32 %v1081, %v1117
        %v1119 = vpop.f32.mrb[0].mxu0
        %v1120 = vpop.f32.mrb[0].mxu0
        %v1121 = vpop.f32.mrb[0].mxu0
        %1122 = vdwg.mxu0
        %vm1123 = vcmask 64512
        %v1124 = vsel %vm1123, %v1118, -inf
        %1125 = vmax.xlane.f32.xlu0 %v1124
        %v1126 = vpop.xlane.xlu0 %1125
        %v1127 = vsub.f32 %v1118, %v1126
        %v1128 = vmul.f32 %v1127, 1.442695
        %v1129 = vpow.pop %v1128
        %v1130 = vsel %vm1123, %v1129, 0.0
        %1131 = vadd.xlane.f32.xlu0 %v1130
        %v1132 = vpop.xlane.xlu0 %1131
        %v1133 = vrcp.pop %v1132
        %v1134 = vmul.f32 %v1129, %v1133
        %v1135 = vpack.c.bf16 %v1134, %v1134
        %v1136 = vpack.c.bf16 %v1054, %v1054
        %v1138 = vsel %vm1123, %v1135, 0
        %vm1140 = vcmask 1043456
        %v1142 = vsel %vm1140, %v1136, 0
        %1144 = vmatprep.subr.bf16.mxu0 0
        %1145 = vmatpush1.bf16.msra.mxu0 %v1142
        %1146 = vmatprep.subr.bf16.mxu0 0
        %1147 = vmatpush1.bf16.msra.mxu0 0
        %1148 = vmatprep.subr.bf16.mxu0 0
        %1149 = vmatpush1.bf16.msra.mxu0 0
        %1150 = vmatprep.subr.bf16.mxu0 0
        %1151 = vmatpush1.bf16.msra.mxu0 0
        %1152 = vmatprep.subr.bf16.mxu0 0
        %1153 = vmatpush1.bf16.msra.mxu0 0
        %1154 = vmatprep.subr.bf16.mxu0 0
        %1155 = vmatpush1.bf16.msra.mxu0 0
        %1156 = vmatprep.subr.bf16.mxu0 0
        %1157 = vmatpush1.bf16.msra.mxu0 0
        %1158 = vmatprep.subr.bf16.mxu0 0
        %1159 = vmatpush1.bf16.msra.mxu0 0
        %1160 = vmatprep.subr.bf16.mxu0 0
        %1161 = vmatpush1.bf16.msra.mxu0 0
        %1162 = vmatprep.subr.bf16.mxu0 0
        %1163 = vmatpush1.bf16.msra.mxu0 0
        %1164 = vmatprep.subr.bf16.mxu0 0
        %1165 = vmatpush1.bf16.msra.mxu0 0
        %1166 = vmatprep.subr.bf16.mxu0 0
        %1167 = vmatpush1.bf16.msra.mxu0 0
        %1168 = vmatprep.subr.bf16.mxu0 0
        %1169 = vmatpush1.bf16.msra.mxu0 0
        %1170 = vmatprep.subr.bf16.mxu0 0
        %1171 = vmatpush1.bf16.msra.mxu0 0
        %1172 = vmatprep.subr.bf16.mxu0 0
        %1173 = vmatpush1.bf16.msra.mxu0 0
        %1174 = vmatprep.subr.bf16.mxu0 0
        %1175 = vmatpush1.bf16.msra.mxu0 0
        %1176 = vmatprep.mubr.bf16.mxu0 0
        %1177 = vmatmul.mubr.bf16.gmra.mrb[0].mxu0 %v1138
        %v1178 = vpop.f32.mrb[0].mxu0
        %v1179 = vadd.f32 0.0, %v1178
        %v1180 = vpop.f32.mrb[0].mxu0
        %v1181 = vpop.f32.mrb[0].mxu0
        %v1182 = vpop.f32.mrb[0].mxu0
        %1183 = vdwg.mxu0
        %v1184 = vmul.f32 %v974, %v1060
        %1185 = vrot.lane.b32.xlu0 %v974, 64
        %v1186 = vpop.permute.xlu0 %1185
        %v1187 = vmul.f32 %v1186, %v1061
        %v1188 = vadd.f32 %v1184, %v1187
        %v1189 = vmul.f32 %v1015, %v1060
        %1190 = vrot.lane.b32.xlu0 %v1015, 64
        %v1191 = vpop.permute.xlu0 %1190
        %v1192 = vmul.f32 %v1191, %v1061
        %v1193 = vadd.f32 %v1189, %v1192
        %v1194 = vpack.c.bf16 %v1188, %v1188
        %v1195 = vpack.c.bf16 %v1193, %v1193
        %1196 = vmatprep.subr.bf16.mxu0 0
        %1197 = vmatpush1.bf16.xpose.msra.mxu0 %v1195
        %1198 = vmatprep.subr.bf16.mxu0 0
        %1199 = vmatpush1.bf16.xpose.msra.mxu0 0
        %1200 = vmatprep.subr.bf16.mxu0 0
        %1201 = vmatpush1.bf16.xpose.msra.mxu0 0
        %1202 = vmatprep.subr.bf16.mxu0 0
        %1203 = vmatpush1.bf16.xpose.msra.mxu0 0
        %1204 = vmatprep.subr.bf16.mxu0 0
        %1205 = vmatpush1.bf16.xpose.msra.mxu0 0
        %1206 = vmatprep.subr.bf16.mxu0 0
        %1207 = vmatpush1.bf16.xpose.msra.mxu0 0
        %1208 = vmatprep.subr.bf16.mxu0 0
        %1209 = vmatpush1.bf16.xpose.msra.mxu0 0
        %1210 = vmatprep.subr.bf16.mxu0 0
        %1211 = vmatpush1.bf16.xpose.msra.mxu0 0
        %1212 = vmatprep.subr.bf16.mxu0 0
        %1213 = vmatpush1.bf16.xpose.msra.mxu0 0
        %1214 = vmatprep.subr.bf16.mxu0 0
        %1215 = vmatpush1.bf16.xpose.msra.mxu0 0
        %1216 = vmatprep.subr.bf16.mxu0 0
        %1217 = vmatpush1.bf16.xpose.msra.mxu0 0
        %1218 = vmatprep.subr.bf16.mxu0 0
        %1219 = vmatpush1.bf16.xpose.msra.mxu0 0
        %1220 = vmatprep.subr.bf16.mxu0 0
        %1221 = vmatpush1.bf16.xpose.msra.mxu0 0
        %1222 = vmatprep.subr.bf16.mxu0 0
        %1223 = vmatpush1.bf16.xpose.msra.mxu0 0
        %1224 = vmatprep.subr.bf16.mxu0 0
        %1225 = vmatpush1.bf16.xpose.msra.mxu0 0
        %1226 = vmatprep.subr.bf16.mxu0 0
        %1227 = vmatpush1.bf16.xpose.msra.mxu0 0
        %1228 = vmatprep.mubr.bf16.mxu0 0
        %1229 = vmatmul.mubr.bf16.gmra.mrb[0].mxu0 %v1194
        %v1230 = vpop.f32.mrb[0].mxu0
        %v1231 = vadd.f32 %v1081, %v1230
        %v1232 = vpop.f32.mrb[0].mxu0
        %v1233 = vpop.f32.mrb[0].mxu0
        %v1234 = vpop.f32.mrb[0].mxu0
        %1235 = vdwg.mxu0
        %v1236 = vsel %vm1123, %v1231, -inf
        %1237 = vmax.xlane.f32.xlu0 %v1236
        %v1238 = vpop.xlane.xlu0 %1237
        %v1239 = vsub.f32 %v1231, %v1238
        %v1240 = vmul.f32 %v1239, 1.442695
        %v1241 = vpow.pop %v1240
        %v1242 = vsel %vm1123, %v1241, 0.0
        %1243 = vadd.xlane.f32.xlu0 %v1242
        %v1244 = vpop.xlane.xlu0 %1243
        %v1245 = vrcp.pop %v1244
        %v1246 = vmul.f32 %v1241, %v1245
        %v1247 = vpack.c.bf16 %v1246, %v1246
        %v1248 = vpack.c.bf16 %v1056, %v1056
        %v1250 = vsel %vm1123, %v1247, 0
        %v1253 = vsel %vm1140, %v1248, 0
        %1255 = vmatprep.subr.bf16.mxu0 0
        %1256 = vmatpush1.bf16.msra.mxu0 %v1253
        %1257 = vmatprep.subr.bf16.mxu0 0
        %1258 = vmatpush1.bf16.msra.mxu0 0
        %1259 = vmatprep.subr.bf16.mxu0 0
        %1260 = vmatpush1.bf16.msra.mxu0 0
        %1261 = vmatprep.subr.bf16.mxu0 0
        %1262 = vmatpush1.bf16.msra.mxu0 0
        %1263 = vmatprep.subr.bf16.mxu0 0
        %1264 = vmatpush1.bf16.msra.mxu0 0
        %1265 = vmatprep.subr.bf16.mxu0 0
        %1266 = vmatpush1.bf16.msra.mxu0 0
        %1267 = vmatprep.subr.bf16.mxu0 0
        %1268 = vmatpush1.bf16.msra.mxu0 0
        %1269 = vmatprep.subr.bf16.mxu0 0
        %1270 = vmatpush1.bf16.msra.mxu0 0
        %1271 = vmatprep.subr.bf16.mxu0 0
        %1272 = vmatpush1.bf16.msra.mxu0 0
        %1273 = vmatprep.subr.bf16.mxu0 0
        %1274 = vmatpush1.bf16.msra.mxu0 0
        %1275 = vmatprep.subr.bf16.mxu0 0
        %1276 = vmatpush1.bf16.msra.mxu0 0
        %1277 = vmatprep.subr.bf16.mxu0 0
        %1278 = vmatpush1.bf16.msra.mxu0 0
        %1279 = vmatprep.subr.bf16.mxu0 0
        %1280 = vmatpush1.bf16.msra.mxu0 0
        %1281 = vmatprep.subr.bf16.mxu0 0
        %1282 = vmatpush1.bf16.msra.mxu0 0
        %1283 = vmatprep.subr.bf16.mxu0 0
        %1284 = vmatpush1.bf16.msra.mxu0 0
        %1285 = vmatprep.subr.bf16.mxu0 0
        %1286 = vmatpush1.bf16.msra.mxu0 0
        %1287 = vmatprep.mubr.bf16.mxu0 0
        %1288 = vmatmul.mubr.bf16.gmra.mrb[0].mxu0 %v1250
        %v1289 = vpop.f32.mrb[0].mxu0
        %v1290 = vadd.f32 0.0, %v1289
        %v1291 = vpop.f32.mrb[0].mxu0
        %v1292 = vpop.f32.mrb[0].mxu0
        %v1293 = vpop.f32.mrb[0].mxu0
        %1294 = vdwg.mxu0
        %v1295 = vpack.c.bf16 %v1179, %v1179
        %v1296 = vpack.c.bf16 %v1290, %v1290
        %v1297 = vld [vmem:[%s6] sm:$0xff]
        %v1298 = vld [vmem:[%s6 + $0x8] sm:$0xff]
        %v1299 = vld [vmem:[%s6 + $0x10] sm:$0xff]
        %v1300 = vld [vmem:[%s6 + $0x18] sm:$0xff]
        %v1301 = vld [vmem:[%s6 + $0x20] sm:$0xff]
        %v1302 = vld [vmem:[%s6 + $0x28] sm:$0xff]
        %v1303 = vld [vmem:[%s6 + $0x30] sm:$0xff]
        %v1304 = vld [vmem:[%s6 + $0x38] sm:$0xff]
        %v1305 = vld [vmem:[%s6 + $0x40] sm:$0xff]
        %v1306 = vld [vmem:[%s6 + $0x48] sm:$0xff]
        %v1307 = vld [vmem:[%s6 + $0x50] sm:$0xff]
        %v1308 = vld [vmem:[%s6 + $0x58] sm:$0xff]
        %v1309 = vld [vmem:[%s6 + $0x60] sm:$0xff]
        %v1310 = vld [vmem:[%s6 + $0x68] sm:$0xff]
        %v1311 = vld [vmem:[%s6 + $0x70] sm:$0xff]
        %v1312 = vld [vmem:[%s6 + $0x78] sm:$0xff]
        %v1313 = vld [vmem:[%s6 + $0x80] sm:$0xff]
        %v1314 = vld [vmem:[%s6 + $0x88] sm:$0xff]
        %v1315 = vld [vmem:[%s6 + $0x90] sm:$0xff]
        %v1316 = vld [vmem:[%s6 + $0x98] sm:$0xff]
        %v1317 = vld [vmem:[%s6 + $0xa0] sm:$0xff]
        %v1318 = vld [vmem:[%s6 + $0xa8] sm:$0xff]
        %v1319 = vld [vmem:[%s6 + $0xb0] sm:$0xff]
        %v1320 = vld [vmem:[%s6 + $0xb8] sm:$0xff]
        %v1321 = vld [vmem:[%s6 + $0xc0] sm:$0xff]
        %v1322 = vld [vmem:[%s6 + $0xc8] sm:$0xff]
        %v1323 = vld [vmem:[%s6 + $0xd0] sm:$0xff]
        %v1324 = vld [vmem:[%s6 + $0xd8] sm:$0xff]
        %v1325 = vld [vmem:[%s6 + $0xe0] sm:$0xff]
        %v1326 = vld [vmem:[%s6 + $0xe8] sm:$0xff]
        %v1327 = vld [vmem:[%s6 + $0xf0] sm:$0xff]
        %v1328 = vld [vmem:[%s6 + $0xf8] sm:$0xff]
        %v1361 = vunpack.c.l.b16 %v1297
        %v1362 = vunpack.c.h.b16 %v1297
        %v1363 = vunpack.c.l.b16 %v1298
        %v1364 = vunpack.c.h.b16 %v1298
        %v1365 = vunpack.c.l.b16 %v1299
        %v1366 = vunpack.c.h.b16 %v1299
        %v1367 = vunpack.c.l.b16 %v1300
        %v1368 = vunpack.c.h.b16 %v1300
        %v1369 = vunpack.c.l.b16 %v1301
        %v1370 = vunpack.c.h.b16 %v1301
        %v1371 = vunpack.c.l.b16 %v1302
        %v1372 = vunpack.c.h.b16 %v1302
        %v1373 = vunpack.c.l.b16 %v1303
        %v1374 = vunpack.c.h.b16 %v1303
        %v1375 = vunpack.c.l.b16 %v1304
        %v1376 = vunpack.c.h.b16 %v1304
        %v1377 = vunpack.c.l.b16 %v1305
        %v1378 = vunpack.c.h.b16 %v1305
        %v1379 = vunpack.c.l.b16 %v1306
        %v1380 = vunpack.c.h.b16 %v1306
        %v1381 = vunpack.c.l.b16 %v1307
        %v1382 = vunpack.c.h.b16 %v1307
        %v1383 = vunpack.c.l.b16 %v1308
        %v1384 = vunpack.c.h.b16 %v1308
        %v1385 = vunpack.c.l.b16 %v1309
        %v1386 = vunpack.c.h.b16 %v1309
        %v1387 = vunpack.c.l.b16 %v1310
        %v1388 = vunpack.c.h.b16 %v1310
        %v1389 = vunpack.c.l.b16 %v1311
        %v1390 = vunpack.c.h.b16 %v1311
        %v1391 = vunpack.c.l.b16 %v1312
        %v1392 = vunpack.c.h.b16 %v1312
        %v1393 = vunpack.c.l.b16 %v1313
        %v1394 = vunpack.c.h.b16 %v1313
        %v1395 = vunpack.c.l.b16 %v1314
        %v1396 = vunpack.c.h.b16 %v1314
        %v1397 = vunpack.c.l.b16 %v1315
        %v1398 = vunpack.c.h.b16 %v1315
        %v1399 = vunpack.c.l.b16 %v1316
        %v1400 = vunpack.c.h.b16 %v1316
        %v1401 = vunpack.c.l.b16 %v1317
        %v1402 = vunpack.c.h.b16 %v1317
        %v1403 = vunpack.c.l.b16 %v1318
        %v1404 = vunpack.c.h.b16 %v1318
        %v1405 = vunpack.c.l.b16 %v1319
        %v1406 = vunpack.c.h.b16 %v1319
        %v1407 = vunpack.c.l.b16 %v1320
        %v1408 = vunpack.c.h.b16 %v1320
        %v1409 = vunpack.c.l.b16 %v1321
        %v1410 = vunpack.c.h.b16 %v1321
        %v1411 = vunpack.c.l.b16 %v1322
        %v1412 = vunpack.c.h.b16 %v1322
        %v1413 = vunpack.c.l.b16 %v1323
        %v1414 = vunpack.c.h.b16 %v1323
        %v1415 = vunpack.c.l.b16 %v1324
        %v1416 = vunpack.c.h.b16 %v1324
        %v1417 = vunpack.c.l.b16 %v1325
        %v1418 = vunpack.c.h.b16 %v1325
        %v1419 = vunpack.c.l.b16 %v1326
        %v1420 = vunpack.c.h.b16 %v1326
        %v1421 = vunpack.c.l.b16 %v1327
        %v1422 = vunpack.c.h.b16 %v1327
        %v1423 = vunpack.c.l.b16 %v1328
        %v1424 = vunpack.c.h.b16 %v1328
        %v1425 = vpack.c.b16 %v1363, %v1361
        %v1426 = vpack.c.b16 %v1364, %v1362
        %v1427 = vpack.c.b16 %v1367, %v1365
        %v1428 = vpack.c.b16 %v1368, %v1366
        %v1429 = vpack.c.b16 %v1371, %v1369
        %v1430 = vpack.c.b16 %v1372, %v1370
        %v1431 = vpack.c.b16 %v1375, %v1373
        %v1432 = vpack.c.b16 %v1376, %v1374
        %v1433 = vpack.c.b16 %v1379, %v1377
        %v1434 = vpack.c.b16 %v1380, %v1378
        %v1435 = vpack.c.b16 %v1383, %v1381
        %v1436 = vpack.c.b16 %v1384, %v1382
        %v1437 = vpack.c.b16 %v1387, %v1385
        %v1438 = vpack.c.b16 %v1388, %v1386
        %v1439 = vpack.c.b16 %v1391, %v1389
        %v1440 = vpack.c.b16 %v1392, %v1390
        %v1441 = vpack.c.b16 %v1395, %v1393
        %v1442 = vpack.c.b16 %v1396, %v1394
        %v1443 = vpack.c.b16 %v1399, %v1397
        %v1444 = vpack.c.b16 %v1400, %v1398
        %v1445 = vpack.c.b16 %v1403, %v1401
        %v1446 = vpack.c.b16 %v1404, %v1402
        %v1447 = vpack.c.b16 %v1407, %v1405
        %v1448 = vpack.c.b16 %v1408, %v1406
        %v1449 = vpack.c.b16 %v1411, %v1409
        %v1450 = vpack.c.b16 %v1412, %v1410
        %v1451 = vpack.c.b16 %v1415, %v1413
        %v1452 = vpack.c.b16 %v1416, %v1414
        %v1453 = vpack.c.b16 %v1419, %v1417
        %v1454 = vpack.c.b16 %v1420, %v1418
        %v1455 = vpack.c.b16 %v1423, %v1421
        %v1456 = vpack.c.b16 %v1424, %v1422
        %1489 = vmatprep.subr.bf16.mxu0 %v1426
        %1490 = vmatpush1.bf16.msra.mxu0 %v1425
        %1491 = vmatprep.subr.bf16.mxu0 %v1428
        %1492 = vmatpush1.bf16.msra.mxu0 %v1427
        %1493 = vmatprep.subr.bf16.mxu0 %v1430
        %1494 = vmatpush1.bf16.msra.mxu0 %v1429
        %1495 = vmatprep.subr.bf16.mxu0 %v1432
        %1496 = vmatpush1.bf16.msra.mxu0 %v1431
        %1497 = vmatprep.subr.bf16.mxu0 %v1434
        %1498 = vmatpush1.bf16.msra.mxu0 %v1433
        %1499 = vmatprep.subr.bf16.mxu0 %v1436
        %1500 = vmatpush1.bf16.msra.mxu0 %v1435
        %1501 = vmatprep.subr.bf16.mxu0 %v1438
        %1502 = vmatpush1.bf16.msra.mxu0 %v1437
        %1503 = vmatprep.subr.bf16.mxu0 %v1440
        %1504 = vmatpush1.bf16.msra.mxu0 %v1439
        %1505 = vmatprep.subr.bf16.mxu0 %v1442
        %1506 = vmatpush1.bf16.msra.mxu0 %v1441
        %1507 = vmatprep.subr.bf16.mxu0 %v1444
        %1508 = vmatpush1.bf16.msra.mxu0 %v1443
        %1509 = vmatprep.subr.bf16.mxu0 %v1446
        %1510 = vmatpush1.bf16.msra.mxu0 %v1445
        %1511 = vmatprep.subr.bf16.mxu0 %v1448
        %1512 = vmatpush1.bf16.msra.mxu0 %v1447
        %1513 = vmatprep.subr.bf16.mxu0 %v1450
        %1514 = vmatpush1.bf16.msra.mxu0 %v1449
        %1515 = vmatprep.subr.bf16.mxu0 %v1452
        %1516 = vmatpush1.bf16.msra.mxu0 %v1451
        %1517 = vmatprep.subr.bf16.mxu0 %v1454
        %1518 = vmatpush1.bf16.msra.mxu0 %v1453
        %1519 = vmatprep.subr.bf16.mxu0 %v1456
        %1520 = vmatpush1.bf16.msra.mxu0 %v1455
        %1521 = vmatprep.mubr.bf16.mxu0 %v1296
        %1522 = vmatmul.mubr.bf16.gmra.mrb[0].mxu0 %v1295
        %v1523 = vpop.f32.mrb[0].mxu0
        %v1524 = vadd.f32 0.0, %v1523
        %v1525 = vpop.f32.mrb[0].mxu0
        %v1526 = vadd.f32 0.0, %v1525
        %v1527 = vpop.f32.mrb[0].mxu0
        %v1528 = vpop.f32.mrb[0].mxu0
        %1529 = vdwg.mxu0
        %v1530 = vadd.f32 %v323, %v1524
        %v1531 = vadd.f32 %v324, %v1526
        %v1532 = vpack.c.bf16 %v1530, %v1530
        %v1533 = vpack.c.bf16 %v1531, %v1531
        %v1536 = vunpack.c.l.b16 %v1532
        %v1537 = vunpack.c.l.b16 %v1533
        %v1538 = vpack.c.b16 %v1537, %v1536
        %1540 = vst [vmem:[%s320] sm:$0xff] %v1538
        %p1541 = scmp.lt.s32.totalorder %s20, 1
        %s1542 = scalar_select %p1541, %s20, 1
        %s1543 = smul.addr %s1542, 2
        %s1544 = smul.addr %s1543, 4
        %s1545 = scalar_lea.vmem %s7, %s1544
        // Predicated region
        $region57: #{encoder_forward.5} parent=47 // pred_check
          %p1546 = pneg %p195
        $region58: #{encoder_forward.5} parent=47 // pred_check_branch
          %1548 = sbr.rel (%p1546) target = $region60
        $region59: #{encoder_forward.5} parent=47 // pred_region
          _
        $region60: #{encoder_forward.5} parent=47 // pred_fallthru
          _
      $region48: #{encoder_forward.5} parent=5 // pred_fallthru
        _
      %p1549 = scmp.le.s32.totalorder 2, %s15
      // Predicated region
      $region61: #{encoder_forward.5} parent=5 // pred_check
        %p1550 = pneg %p1549
      $region62: #{encoder_forward.5} parent=5 // pred_check_branch
        %1552 = sbr.rel (%p1550) target = $region64
      $region63: #{encoder_forward.5} parent=5 // pred_region
        %s1553 = ssub.s32 %s15, 2
        // Predicated region
        $region65: #{encoder_forward.5} parent=63 // pred_check
          %p1554 = pneg %p201
        $region66: #{encoder_forward.5} parent=63 // pred_check_branch
          %1556 = sbr.rel (%p1554) target = $region68
        $region67: #{encoder_forward.5} parent=63 // pred_region
          %p1557 = scmp.lt.s32.totalorder %s21, 1
          %s1558 = scalar_select %p1557, %s21, 1
          %s1559 = smul.addr %s1558, 2
          %s1560 = smul.addr %s1559, 4
          %s1561 = scalar_lea.vmem %s7, %s1560
        $region68: #{encoder_forward.5} parent=63 // pred_fallthru
          _
      $region64: #{encoder_forward.5} parent=5 // pred_fallthru
        _
    $region6: #{encoder_forward.5} parent=1 // loop_footer
      %s19 = sadd.s32 1, %s15
    $region7: #{encoder_forward.5} parent=1 // loop_footer_branch
      %14 = sbr.rel target = $region3
    $region8: #{encoder_forward.5} parent=1 // loop_exit
      _
    %1562 = vsyncpa [#allocation3], 1
    %s1563 = scalar_lea.sflag [#allocation3], 1
    %1564 = vsyncpa %s1563, 1
    %1565 = vsyncpa [#allocation5], 1

// kernel: encoder_forward.7
$region0: #{encoder_forward.7}
  #allocation0 [shape = 'u32[]', space=smem, size = 0x4, offset = 0x4, fixed_abs, tag = 'smem constant byte address 0x4 - core index']
  #allocation1 [shape = 'u32[144,128]{1,0:T(1,128)}', space=vmem, size = 0x12000, scoped, tag = 'internal scratch']
  %s0 = inlined_call_operand.vmem [shape: bf16[2,8,256], index: 0, kind: input, shape index: {}, may-alias: {0,7}]
  %s1 = inlined_call_operand.vmem [shape: f32[2,1,8], index: 1, kind: input, shape index: {}]
  %s2 = inlined_call_operand.vmem [shape: f32[8,128], index: 2, kind: input, shape index: {}]
  %s3 = inlined_call_operand.vmem [shape: f32[8,128], index: 3, kind: input, shape index: {}]
  %s4 = inlined_call_operand.vmem [shape: bf16[1,256], index: 4, kind: input, shape index: {}]
  %s5 = inlined_call_operand.vmem [shape: bf16[256,768], index: 5, kind: input, shape index: {}]
  %s6 = inlined_call_operand.vmem [shape: bf16[256,256], index: 6, kind: input, shape index: {}]
  %s7 = inlined_call_operand.vmem [shape: bf16[2,8,256], index: 7, kind: output, shape index: {}, may-alias: {0,7}]
  %s8 = sld [smem:[#allocation0]]
  $region61: #{encoder_forward.7} parent=0
    _
  %s10 = ssub.s32 1, %s8
  %s11 = scalar_select 0, %s10, %s8
  loop: start=0, step=1, limit=4
  $region2: #{encoder_forward.7} parent=0 // loop_pre_header
    _
  $region3: #{encoder_forward.7} parent=0 // loop_header
    %s13 = sphi 0, %s17
    %p14 = scmp.ge.s32.totalorder %s13, 4
    %s23 = sphi 0, %s25
    %s26 = sphi 0, %s23
    %s27 = sphi 0, %s26
    %s43 = sphi 0, %s27
    %s49 = sphi 0, %s51
    %s52 = sphi 0, %s49
    %s53 = sphi 0, %s52
    %s69 = sphi 0, %s53
    %s73 = sphi 0, %s73
    %s75 = sphi 0, %s73
    %s76 = sphi 0, %s75
    %s90 = sphi 0, %s76
    %s94 = sphi 0, %s94
    %s96 = sphi 0, %s94
    %s97 = sphi 0, %s96
    %s111 = sphi 0, %s97
    %s115 = sphi 0, %s115
    %s117 = sphi 0, %s115
    %s118 = sphi 0, %s117
    %s132 = sphi 0, %s118
    %s136 = sphi 0, %s136
    %s138 = sphi 0, %s136
    %s139 = sphi 0, %s138
    %s153 = sphi 0, %s139
    %s157 = sphi 0, %s157
    %s159 = sphi 0, %s157
    %s160 = sphi 0, %s159
    %s174 = sphi 0, %s160
    %s180 = sphi 0, %s182
    %s183 = sphi 0, %s180
    %s184 = sphi 0, %s183
    %s200 = sphi 0, %s184
  $region4: #{encoder_forward.7} parent=0 // loop_header_branch
    %16 = sbr.rel (%p14) target = $region8
  $region5: #{encoder_forward.7} parent=0 // loop_body
    %s18 = ssub.s32 %s13, 1
    %s19 = ssub.s32 %s13, 2
    %s20 = sadd.s32 %s13, 1
    %s21 = ssub.s32 %s13, %s20
    %p22 = scmp.eq.s32.totalorder %s21, 0
    %s24 = sadd.s32 %s23, 1
    %s25 = scalar_select %p22, %s23, %s24
    %p28 = pneg %p22
    %p29 = scmp.eq.s32.totalorder %s13, 1
    %p30 = por %p28, %p29
    %p31 = scmp.ne.s32.totalorder %s23, %s26
    %p32 = scmp.eq.s32.totalorder %s13, 0
    %p33 = por %p31, %p32
    %p34 = scmp.ne.s32.totalorder %s23, %s26
    %p35 = scmp.eq.s32.totalorder %s18, 1
    %p36 = por %p34, %p35
    %p37 = scmp.ne.s32.totalorder %s26, %s27
    %p38 = scmp.eq.s32.totalorder %s18, 0
    %p39 = por %p37, %p38
    %p40 = scmp.ne.s32.totalorder %s26, %s27
    %p41 = scmp.eq.s32.totalorder %s19, 1
    %p42 = por %p40, %p41
    %p44 = scmp.ne.s32.totalorder %s27, %s43
    %p45 = scmp.eq.s32.totalorder %s19, 0
    %p46 = por %p44, %p45
    %s47 = ssub.s32 %s13, %s20
    %p48 = scmp.eq.s32.totalorder %s47, 0
    %s50 = sadd.s32 %s49, 1
    %s51 = scalar_select %p48, %s49, %s50
    %p54 = pneg %p48
    %p55 = scmp.eq.s32.totalorder %s13, 1
    %p56 = por %p54, %p55
    %p57 = scmp.ne.s32.totalorder %s49, %s52
    %p58 = scmp.eq.s32.totalorder %s13, 0
    %p59 = por %p57, %p58
    %p60 = scmp.ne.s32.totalorder %s49, %s52
    %p61 = scmp.eq.s32.totalorder %s18, 1
    %p62 = por %p60, %p61
    %p63 = scmp.ne.s32.totalorder %s52, %s53
    %p64 = scmp.eq.s32.totalorder %s18, 0
    %p65 = por %p63, %p64
    %p66 = scmp.ne.s32.totalorder %s52, %s53
    %p67 = scmp.eq.s32.totalorder %s19, 1
    %p68 = por %p66, %p67
    %p70 = scmp.ne.s32.totalorder %s53, %s69
    %p71 = scmp.eq.s32.totalorder %s19, 0
    %p72 = por %p70, %p71
    %s74 = sadd.s32 %s73, 1
    %p77 = scmp.eq.s32.totalorder %s13, 1
    %p78 = scmp.ne.s32.totalorder %s73, %s75
    %p79 = scmp.eq.s32.totalorder %s13, 0
    %p80 = por %p78, %p79
    %p81 = scmp.ne.s32.totalorder %s73, %s75
    %p82 = scmp.eq.s32.totalorder %s18, 1
    %p83 = por %p81, %p82
    %p84 = scmp.ne.s32.totalorder %s75, %s76
    %p85 = scmp.eq.s32.totalorder %s18, 0
    %p86 = por %p84, %p85
    %p87 = scmp.ne.s32.totalorder %s75, %s76
    %p88 = scmp.eq.s32.totalorder %s19, 1
    %p89 = por %p87, %p88
    %p91 = scmp.ne.s32.totalorder %s76, %s90
    %p92 = scmp.eq.s32.totalorder %s19, 0
    %p93 = por %p91, %p92
    %s95 = sadd.s32 %s94, 1
    %p98 = scmp.eq.s32.totalorder %s13, 1
    %p99 = scmp.ne.s32.totalorder %s94, %s96
    %p100 = scmp.eq.s32.totalorder %s13, 0
    %p101 = por %p99, %p100
    %p102 = scmp.ne.s32.totalorder %s94, %s96
    %p103 = scmp.eq.s32.totalorder %s18, 1
    %p104 = por %p102, %p103
    %p105 = scmp.ne.s32.totalorder %s96, %s97
    %p106 = scmp.eq.s32.totalorder %s18, 0
    %p107 = por %p105, %p106
    %p108 = scmp.ne.s32.totalorder %s96, %s97
    %p109 = scmp.eq.s32.totalorder %s19, 1
    %p110 = por %p108, %p109
    %p112 = scmp.ne.s32.totalorder %s97, %s111
    %p113 = scmp.eq.s32.totalorder %s19, 0
    %p114 = por %p112, %p113
    %s116 = sadd.s32 %s115, 1
    %p119 = scmp.eq.s32.totalorder %s13, 1
    %p120 = scmp.ne.s32.totalorder %s115, %s117
    %p121 = scmp.eq.s32.totalorder %s13, 0
    %p122 = por %p120, %p121
    %p123 = scmp.ne.s32.totalorder %s115, %s117
    %p124 = scmp.eq.s32.totalorder %s18, 1
    %p125 = por %p123, %p124
    %p126 = scmp.ne.s32.totalorder %s117, %s118
    %p127 = scmp.eq.s32.totalorder %s18, 0
    %p128 = por %p126, %p127
    %p129 = scmp.ne.s32.totalorder %s117, %s118
    %p130 = scmp.eq.s32.totalorder %s19, 1
    %p131 = por %p129, %p130
    %p133 = scmp.ne.s32.totalorder %s118, %s132
    %p134 = scmp.eq.s32.totalorder %s19, 0
    %p135 = por %p133, %p134
    %s137 = sadd.s32 %s136, 1
    %p140 = scmp.eq.s32.totalorder %s13, 1
    %p141 = scmp.ne.s32.totalorder %s136, %s138
    %p142 = scmp.eq.s32.totalorder %s13, 0
    %p143 = por %p141, %p142
    %p144 = scmp.ne.s32.totalorder %s136, %s138
    %p145 = scmp.eq.s32.totalorder %s18, 1
    %p146 = por %p144, %p145
    %p147 = scmp.ne.s32.totalorder %s138, %s139
    %p148 = scmp.eq.s32.totalorder %s18, 0
    %p149 = por %p147, %p148
    %p150 = scmp.ne.s32.totalorder %s138, %s139
    %p151 = scmp.eq.s32.totalorder %s19, 1
    %p152 = por %p150, %p151
    %p154 = scmp.ne.s32.totalorder %s139, %s153
    %p155 = scmp.eq.s32.totalorder %s19, 0
    %p156 = por %p154, %p155
    %s158 = sadd.s32 %s157, 1
    %p161 = scmp.eq.s32.totalorder %s13, 1
    %p162 = scmp.ne.s32.totalorder %s157, %s159
    %p163 = scmp.eq.s32.totalorder %s13, 0
    %p164 = por %p162, %p163
    %p165 = scmp.ne.s32.totalorder %s157, %s159
    %p166 = scmp.eq.s32.totalorder %s18, 1
    %p167 = por %p165, %p166
    %p168 = scmp.ne.s32.totalorder %s159, %s160
    %p169 = scmp.eq.s32.totalorder %s18, 0
    %p170 = por %p168, %p169
    %p171 = scmp.ne.s32.totalorder %s159, %s160
    %p172 = scmp.eq.s32.totalorder %s19, 1
    %p173 = por %p171, %p172
    %p175 = scmp.ne.s32.totalorder %s160, %s174
    %p176 = scmp.eq.s32.totalorder %s19, 0
    %p177 = por %p175, %p176
    %s178 = ssub.s32 %s13, %s20
    %p179 = scmp.eq.s32.totalorder %s178, 0
    %s181 = sadd.s32 %s180, 1
    %s182 = scalar_select %p179, %s180, %s181
    %p185 = pneg %p179
    %p186 = scmp.eq.s32.totalorder %s13, 1
    %p187 = por %p185, %p186
    %p188 = scmp.ne.s32.totalorder %s180, %s183
    %p189 = scmp.eq.s32.totalorder %s13, 0
    %p190 = por %p188, %p189
    %p191 = scmp.ne.s32.totalorder %s180, %s183
    %p192 = scmp.eq.s32.totalorder %s18, 1
    %p193 = por %p191, %p192
    %p194 = scmp.ne.s32.totalorder %s183, %s184
    %p195 = scmp.eq.s32.totalorder %s18, 0
    %p196 = por %p194, %p195
    %p197 = scmp.ne.s32.totalorder %s183, %s184
    %p198 = scmp.eq.s32.totalorder %s19, 1
    %p199 = por %p197, %p198
    %p201 = scmp.ne.s32.totalorder %s184, %s200
    %p202 = scmp.eq.s32.totalorder %s19, 0
    %p203 = por %p201, %p202
    %p204 = scmp.le.s32.totalorder 1, %s13
    %p205 = scmp.lt.s32.totalorder %s13, 3
    %p206 = pnand %p204, %p205
    %p207 = pneg %p206
    // Predicated region
    $region9: #{encoder_forward.7} parent=5 // pred_check
      _
    $region10: #{encoder_forward.7} parent=5 // pred_check_branch
      %209 = sbr.rel (%p206) target = $region12
    $region11: #{encoder_forward.7} parent=5 // pred_region
      %s210 = ssub.s32 %s13, 1
      // Predicated region
      $region13: #{encoder_forward.7} parent=11 // pred_check
        %p211 = pneg %p86
      $region14: #{encoder_forward.7} parent=11 // pred_check_branch
        %213 = sbr.rel (%p211) target = $region16
      $region15: #{encoder_forward.7} parent=11 // pred_region
        _
      $region16: #{encoder_forward.7} parent=11 // pred_fallthru
        _
      // Predicated region
      $region17: #{encoder_forward.7} parent=11 // pred_check
        %p214 = pneg %p107
      $region18: #{encoder_forward.7} parent=11 // pred_check_branch
        %216 = sbr.rel (%p214) target = $region20
      $region19: #{encoder_forward.7} parent=11 // pred_region
        _
      $region20: #{encoder_forward.7} parent=11 // pred_fallthru
        _
      // Predicated region
      $region21: #{encoder_forward.7} parent=11 // pred_check
        %p217 = pneg %p128
      $region22: #{encoder_forward.7} parent=11 // pred_check_branch
        %219 = sbr.rel (%p217) target = $region24
      $region23: #{encoder_forward.7} parent=11 // pred_region
        _
      $region24: #{encoder_forward.7} parent=11 // pred_fallthru
        _
      // Predicated region
      $region25: #{encoder_forward.7} parent=11 // pred_check
        %p220 = pneg %p149
      $region26: #{encoder_forward.7} parent=11 // pred_check_branch
        %222 = sbr.rel (%p220) target = $region28
      $region27: #{encoder_forward.7} parent=11 // pred_region
        _
      $region28: #{encoder_forward.7} parent=11 // pred_fallthru
        _
      // Predicated region
      $region29: #{encoder_forward.7} parent=11 // pred_check
        %p223 = pneg %p170
      $region30: #{encoder_forward.7} parent=11 // pred_check_branch
        %225 = sbr.rel (%p223) target = $region32
      $region31: #{encoder_forward.7} parent=11 // pred_region
        _
      $region32: #{encoder_forward.7} parent=11 // pred_fallthru
        _
    $region12: #{encoder_forward.7} parent=5 // pred_fallthru
      _
    %p226 = scmp.lt.s32.totalorder %s13, 2
    // Predicated region
    $region33: #{encoder_forward.7} parent=5 // pred_check
      %p227 = pneg %p226
    $region34: #{encoder_forward.7} parent=5 // pred_check_branch
      %229 = sbr.rel (%p227) target = $region36
    $region35: #{encoder_forward.7} parent=5 // pred_region
      // Predicated region
      $region37: #{encoder_forward.7} parent=35 // pred_check
        %p230 = pneg %p33
      $region38: #{encoder_forward.7} parent=35 // pred_check_branch
        %232 = sbr.rel (%p230) target = $region40
      $region39: #{encoder_forward.7} parent=35 // pred_region
        %p233 = scmp.lt.s32.totalorder %s13, 1
        %s234 = scalar_select %p233, %s13, 1
        %s235 = smul.addr %s234, 2
        %s236 = smul.addr %s235, 4
        %s237 = scalar_lea.vmem %s0, %s236
      $region40: #{encoder_forward.7} parent=35 // pred_fallthru
        _
      // Predicated region
      $region41: #{encoder_forward.7} parent=35 // pred_check
        %p238 = pneg %p59
      $region42: #{encoder_forward.7} parent=35 // pred_check_branch
        %240 = sbr.rel (%p238) target = $region44
      $region43: #{encoder_forward.7} parent=35 // pred_region
        %p241 = scmp.lt.s32.totalorder %s13, 1
        %s242 = scalar_select %p241, %s13, 1
        %s243 = scalar_lea.vmem %s1, %s242
      $region44: #{encoder_forward.7} parent=35 // pred_fallthru
        _
    $region36: #{encoder_forward.7} parent=5 // pred_fallthru
      _
    %p244 = scmp.le.s32.totalorder 1, %s13
    %p245 = scmp.lt.s32.totalorder %s13, 3
    %p246 = pnand %p244, %p245
    %p247 = pneg %p246
    // Predicated region
    $region45: #{encoder_forward.7} parent=5 // pred_check
      _
    $region46: #{encoder_forward.7} parent=5 // pred_check_branch
      %249 = sbr.rel (%p246) target = $region48
    $region47: #{encoder_forward.7} parent=5 // pred_region
      %s250 = ssub.s32 %s13, 1
      %p251 = scmp.lt.s32.totalorder %s18, 1
      %s252 = scalar_select %p251, %s18, 1
      %s253 = smul.addr %s252, 2
      %s254 = smul.addr %s253, 4
      %s255 = scalar_lea.vmem %s0, %s254
      %p256 = pneg %p39
      %p257 = pneg %p36
      %p258 = scmp.lt.s32.totalorder %s18, 1
      %s259 = scalar_select %p258, %s18, 1
      %s260 = scalar_lea.vmem %s1, %s259
      %p261 = pneg %p65
      %p262 = pneg %p62
      %p263 = pneg %p86
      %p264 = pneg %p83
      %p265 = pneg %p107
      %p266 = pneg %p104
      %p267 = pneg %p128
      %p268 = pneg %p125
      %p269 = pneg %p149
      %p270 = pneg %p146
      %p271 = pneg %p170
      %p272 = pneg %p167
      %p273 = pneg %p196
      %p274 = pneg %p193
      %p275 = scmp.lt.s32.totalorder %s18, 1
      %s276 = scalar_select %p275, %s18, 1
      %s277 = smul.addr %s276, 2
      %s278 = smul.addr %s277, 4
      %s279 = scalar_lea.vmem %s7, %s278
      %p280 = scmp.lt.s32.totalorder %s18, 1
      %s281 = scalar_select %p280, %s18, 1
      %s282 = smul.addr %s281, 2
      %s283 = smul.addr %s282, 4
      %s284 = scalar_lea.vmem %s0, %s283
      %p285 = scmp.lt.s32.totalorder %s18, 1
      %s286 = scalar_select %p285, %s18, 1
      %s287 = scalar_lea.vmem %s1, %s286
      %p288 = scmp.lt.s32.totalorder %s18, 1
      %s289 = scalar_select %p288, %s18, 1
      %s290 = smul.addr %s289, 2
      %s291 = smul.addr %s290, 4
      %s292 = scalar_lea.vmem %s7, %s291
      %v294 = vld [vmem:[%s284] sm:$0xff]
      %v295 = vunpack.c.l.bf16 %v294
      %v296 = vunpack.c.h.bf16 %v294
      %v297 = vld [vmem:[%s4] sm:$0x3]
      %v298 = vunpack.c.l.bf16 %v297
      %v299 = vmul.f32 %v295, %v295
      %v300 = vmul.f32 %v296, %v296
      %v301 = vadd.f32 %v299, %v300
      %302 = vadd.xlane.f32.xlu0 %v301
      %v303 = vpop.xlane.xlu0 %302
      %v304 = vrcp.pop 256.0
      %v305 = vmul.f32 %v303, %v304
      %v306 = vadd.f32 %v305, 1e-06
      %v307 = vrsqrt.pop %v306
      %v308 = vmul.f32 %v295, %v307
      %v309 = vmul.f32 %v296, %v307
      %v311 = vlaneseq
      %v312 = vshrl.u32 %v311, 7
      %v313 = vsub.s32 0, %v312
      %v314 = vrot.slane %v298, %v313
      %v315 = vlaneseq
      %v316 = vshrl.u32 %v315, 7
      %v317 = vsub.s32 2, %v316
      %v318 = vrot.slane %v298, %v317
      %v321 = vlaneseq
      %v322 = vshrl.u32 %v321, 7
      %v323 = vsub.s32 0, %v322
      %v324 = vrot.slane %v314, %v323
      %v325 = vlaneseq
      %v326 = vshrl.u32 %v325, 7
      %v327 = vsub.s32 0, %v326
      %v328 = vrot.slane %v318, %v327
      %v329 = vmul.f32 %v308, %v324
      %v330 = vmul.f32 %v309, %v328
      %v331 = vpack.c.bf16 %v329, %v329
      %v332 = vpack.c.bf16 %v330, %v330
      %v333 = vld [vmem:[%s5] sm:$0xff]
      %v334 = vld [vmem:[%s5 + $0x8] sm:$0xff]
      %v335 = vld [vmem:[%s5 + $0x10] sm:$0xff]
      %v336 = vld [vmem:[%s5 + $0x18] sm:$0xff]
      %v337 = vld [vmem:[%s5 + $0x20] sm:$0xff]
      %v338 = vld [vmem:[%s5 + $0x28] sm:$0xff]
      %v339 = vld [vmem:[%s5 + $0x30] sm:$0xff]
      %v340 = vld [vmem:[%s5 + $0x38] sm:$0xff]
      %v341 = vld [vmem:[%s5 + $0x40] sm:$0xff]
      %v342 = vld [vmem:[%s5 + $0x48] sm:$0xff]
      %v343 = vld [vmem:[%s5 + $0x50] sm:$0xff]
      %v344 = vld [vmem:[%s5 + $0x58] sm:$0xff]
      %v345 = vld [vmem:[%s5 + $0x60] sm:$0xff]
      %v346 = vld [vmem:[%s5 + $0x68] sm:$0xff]
      %v347 = vld [vmem:[%s5 + $0x70] sm:$0xff]
      %v348 = vld [vmem:[%s5 + $0x78] sm:$0xff]
      %v349 = vld [vmem:[%s5 + $0x80] sm:$0xff]
      %v350 = vld [vmem:[%s5 + $0x88] sm:$0xff]
      %v351 = vld [vmem:[%s5 + $0x90] sm:$0xff]
      %v352 = vld [vmem:[%s5 + $0x98] sm:$0xff]
      %v353 = vld [vmem:[%s5 + $0xa0] sm:$0xff]
      %v354 = vld [vmem:[%s5 + $0xa8] sm:$0xff]
      %v355 = vld [vmem:[%s5 + $0xb0] sm:$0xff]
      %v356 = vld [vmem:[%s5 + $0xb8] sm:$0xff]
      %v357 = vld [vmem:[%s5 + $0xc0] sm:$0xff]
      %v358 = vld [vmem:[%s5 + $0xc8] sm:$0xff]
      %v359 = vld [vmem:[%s5 + $0xd0] sm:$0xff]
      %v360 = vld [vmem:[%s5 + $0xd8] sm:$0xff]
      %v361 = vld [vmem:[%s5 + $0xe0] sm:$0xff]
      %v362 = vld [vmem:[%s5 + $0xe8] sm:$0xff]
      %v363 = vld [vmem:[%s5 + $0xf0] sm:$0xff]
      %v364 = vld [vmem:[%s5 + $0xf8] sm:$0xff]
      %v365 = vld [vmem:[%s5 + $0x100] sm:$0xff]
      %v366 = vld [vmem:[%s5 + $0x108] sm:$0xff]
      %v367 = vld [vmem:[%s5 + $0x110] sm:$0xff]
      %v368 = vld [vmem:[%s5 + $0x118] sm:$0xff]
      %v369 = vld [vmem:[%s5 + $0x120] sm:$0xff]
      %v370 = vld [vmem:[%s5 + $0x128] sm:$0xff]
      %v371 = vld [vmem:[%s5 + $0x130] sm:$0xff]
      %v372 = vld [vmem:[%s5 + $0x138] sm:$0xff]
      %v373 = vld [vmem:[%s5 + $0x140] sm:$0xff]
      %v374 = vld [vmem:[%s5 + $0x148] sm:$0xff]
      %v375 = vld [vmem:[%s5 + $0x150] sm:$0xff]
      %v376 = vld [vmem:[%s5 + $0x158] sm:$0xff]
      %v377 = vld [vmem:[%s5 + $0x160] sm:$0xff]
      %v378 = vld [vmem:[%s5 + $0x168] sm:$0xff]
      %v379 = vld [vmem:[%s5 + $0x170] sm:$0xff]
      %v380 = vld [vmem:[%s5 + $0x178] sm:$0xff]
      %v381 = vld [vmem:[%s5 + $0x180] sm:$0xff]
      %v382 = vld [vmem:[%s5 + $0x188] sm:$0xff]
      %v383 = vld [vmem:[%s5 + $0x190] sm:$0xff]
      %v384 = vld [vmem:[%s5 + $0x198] sm:$0xff]
      %v385 = vld [vmem:[%s5 + $0x1a0] sm:$0xff]
      %v386 = vld [vmem:[%s5 + $0x1a8] sm:$0xff]
      %v387 = vld [vmem:[%s5 + $0x1b0] sm:$0xff]
      %v388 = vld [vmem:[%s5 + $0x1b8] sm:$0xff]
      %v389 = vld [vmem:[%s5 + $0x1c0] sm:$0xff]
      %v390 = vld [vmem:[%s5 + $0x1c8] sm:$0xff]
      %v391 = vld [vmem:[%s5 + $0x1d0] sm:$0xff]
      %v392 = vld [vmem:[%s5 + $0x1d8] sm:$0xff]
      %v393 = vld [vmem:[%s5 + $0x1e0] sm:$0xff]
      %v394 = vld [vmem:[%s5 + $0x1e8] sm:$0xff]
      %v395 = vld [vmem:[%s5 + $0x1f0] sm:$0xff]
      %v396 = vld [vmem:[%s5 + $0x1f8] sm:$0xff]
      %v397 = vld [vmem:[%s5 + $0x200] sm:$0xff]
      %v398 = vld [vmem:[%s5 + $0x208] sm:$0xff]
      %v399 = vld [vmem:[%s5 + $0x210] sm:$0xff]
      %v400 = vld [vmem:[%s5 + $0x218] sm:$0xff]
      %v401 = vld [vmem:[%s5 + $0x220] sm:$0xff]
      %v402 = vld [vmem:[%s5 + $0x228] sm:$0xff]
      %v403 = vld [vmem:[%s5 + $0x230] sm:$0xff]
      %v404 = vld [vmem:[%s5 + $0x238] sm:$0xff]
      %v405 = vld [vmem:[%s5 + $0x240] sm:$0xff]
      %v406 = vld [vmem:[%s5 + $0x248] sm:$0xff]
      %v407 = vld [vmem:[%s5 + $0x250] sm:$0xff]
      %v408 = vld [vmem:[%s5 + $0x258] sm:$0xff]
      %v409 = vld [vmem:[%s5 + $0x260] sm:$0xff]
      %v410 = vld [vmem:[%s5 + $0x268] sm:$0xff]
      %v411 = vld [vmem:[%s5 + $0x270] sm:$0xff]
      %v412 = vld [vmem:[%s5 + $0x278] sm:$0xff]
      %v413 = vld [vmem:[%s5 + $0x280] sm:$0xff]
      %v414 = vld [vmem:[%s5 + $0x288] sm:$0xff]
      %v415 = vld [vmem:[%s5 + $0x290] sm:$0xff]
      %v416 = vld [vmem:[%s5 + $0x298] sm:$0xff]
      %v417 = vld [vmem:[%s5 + $0x2a0] sm:$0xff]
      %v418 = vld [vmem:[%s5 + $0x2a8] sm:$0xff]
      %v419 = vld [vmem:[%s5 + $0x2b0] sm:$0xff]
      %v420 = vld [vmem:[%s5 + $0x2b8] sm:$0xff]
      %v421 = vld [vmem:[%s5 + $0x2c0] sm:$0xff]
      %v422 = vld [vmem:[%s5 + $0x2c8] sm:$0xff]
      %v423 = vld [vmem:[%s5 + $0x2d0] sm:$0xff]
      %v424 = vld [vmem:[%s5 + $0x2d8] sm:$0xff]
      %v425 = vld [vmem:[%s5 + $0x2e0] sm:$0xff]
      %v426 = vld [vmem:[%s5 + $0x2e8] sm:$0xff]
      %v427 = vld [vmem:[%s5 + $0x2f0] sm:$0xff]
      %v428 = vld [vmem:[%s5 + $0x2f8] sm:$0xff]
      %v525 = vunpack.c.l.b16 %v333
      %v526 = vunpack.c.h.b16 %v333
      %v527 = vunpack.c.l.b16 %v334
      %v528 = vunpack.c.h.b16 %v334
      %v529 = vunpack.c.l.b16 %v335
      %v530 = vunpack.c.h.b16 %v335
      %v531 = vunpack.c.l.b16 %v336
      %v532 = vunpack.c.h.b16 %v336
      %v533 = vunpack.c.l.b16 %v337
      %v534 = vunpack.c.h.b16 %v337
      %v535 = vunpack.c.l.b16 %v338
      %v536 = vunpack.c.h.b16 %v338
      %v537 = vunpack.c.l.b16 %v339
      %v538 = vunpack.c.h.b16 %v339
      %v539 = vunpack.c.l.b16 %v340
      %v540 = vunpack.c.h.b16 %v340
      %v541 = vunpack.c.l.b16 %v341
      %v542 = vunpack.c.h.b16 %v341
      %v543 = vunpack.c.l.b16 %v342
      %v544 = vunpack.c.h.b16 %v342
      %v545 = vunpack.c.l.b16 %v343
      %v546 = vunpack.c.h.b16 %v343
      %v547 = vunpack.c.l.b16 %v344
      %v548 = vunpack.c.h.b16 %v344
      %v549 = vunpack.c.l.b16 %v345
      %v550 = vunpack.c.h.b16 %v345
      %v551 = vunpack.c.l.b16 %v346
      %v552 = vunpack.c.h.b16 %v346
      %v553 = vunpack.c.l.b16 %v347
      %v554 = vunpack.c.h.b16 %v347
      %v555 = vunpack.c.l.b16 %v348
      %v556 = vunpack.c.h.b16 %v348
      %v557 = vunpack.c.l.b16 %v349
      %v558 = vunpack.c.h.b16 %v349
      %v559 = vunpack.c.l.b16 %v350
      %v560 = vunpack.c.h.b16 %v350
      %v561 = vunpack.c.l.b16 %v351
      %v562 = vunpack.c.h.b16 %v351
      %v563 = vunpack.c.l.b16 %v352
      %v564 = vunpack.c.h.b16 %v352
      %v565 = vunpack.c.l.b16 %v353
      %v566 = vunpack.c.h.b16 %v353
      %v567 = vunpack.c.l.b16 %v354
      %v568 = vunpack.c.h.b16 %v354
      %v569 = vunpack.c.l.b16 %v355
      %v570 = vunpack.c.h.b16 %v355
      %v571 = vunpack.c.l.b16 %v356
      %v572 = vunpack.c.h.b16 %v356
      %v573 = vunpack.c.l.b16 %v357
      %v574 = vunpack.c.h.b16 %v357
      %v575 = vunpack.c.l.b16 %v358
      %v576 = vunpack.c.h.b16 %v358
      %v577 = vunpack.c.l.b16 %v359
      %v578 = vunpack.c.h.b16 %v359
      %v579 = vunpack.c.l.b16 %v360
      %v580 = vunpack.c.h.b16 %v360
      %v581 = vunpack.c.l.b16 %v361
      %v582 = vunpack.c.h.b16 %v361
      %v583 = vunpack.c.l.b16 %v362
      %v584 = vunpack.c.h.b16 %v362
      %v585 = vunpack.c.l.b16 %v363
      %v586 = vunpack.c.h.b16 %v363
      %v587 = vunpack.c.l.b16 %v364
      %v588 = vunpack.c.h.b16 %v364
      %v589 = vunpack.c.l.b16 %v365
      %v590 = vunpack.c.h.b16 %v365
      %v591 = vunpack.c.l.b16 %v366
      %v592 = vunpack.c.h.b16 %v366
      %v593 = vunpack.c.l.b16 %v367
      %v594 = vunpack.c.h.b16 %v367
      %v595 = vunpack.c.l.b16 %v368
      %v596 = vunpack.c.h.b16 %v368
      %v597 = vunpack.c.l.b16 %v369
      %v598 = vunpack.c.h.b16 %v369
      %v599 = vunpack.c.l.b16 %v370
      %v600 = vunpack.c.h.b16 %v370
      %v601 = vunpack.c.l.b16 %v371
      %v602 = vunpack.c.h.b16 %v371
      %v603 = vunpack.c.l.b16 %v372
      %v604 = vunpack.c.h.b16 %v372
      %v605 = vunpack.c.l.b16 %v373
      %v606 = vunpack.c.h.b16 %v373
      %v607 = vunpack.c.l.b16 %v374
      %v608 = vunpack.c.h.b16 %v374
      %v609 = vunpack.c.l.b16 %v375
      %v610 = vunpack.c.h.b16 %v375
      %v611 = vunpack.c.l.b16 %v376
      %v612 = vunpack.c.h.b16 %v376
      %v613 = vunpack.c.l.b16 %v377
      %v614 = vunpack.c.h.b16 %v377
      %v615 = vunpack.c.l.b16 %v378
      %v616 = vunpack.c.h.b16 %v378
      %v617 = vunpack.c.l.b16 %v379
      %v618 = vunpack.c.h.b16 %v379
      %v619 = vunpack.c.l.b16 %v380
      %v620 = vunpack.c.h.b16 %v380
      %v621 = vunpack.c.l.b16 %v381
      %v622 = vunpack.c.h.b16 %v381
      %v623 = vunpack.c.l.b16 %v382
      %v624 = vunpack.c.h.b16 %v382
      %v625 = vunpack.c.l.b16 %v383
      %v626 = vunpack.c.h.b16 %v383
      %v627 = vunpack.c.l.b16 %v384
      %v628 = vunpack.c.h.b16 %v384
      %v629 = vunpack.c.l.b16 %v385
      %v630 = vunpack.c.h.b16 %v385
      %v631 = vunpack.c.l.b16 %v386
      %v632 = vunpack.c.h.b16 %v386
      %v633 = vunpack.c.l.b16 %v387
      %v634 = vunpack.c.h.b16 %v387
      %v635 = vunpack.c.l.b16 %v388
      %v636 = vunpack.c.h.b16 %v388
      %v637 = vunpack.c.l.b16 %v389
      %v638 = vunpack.c.h.b16 %v389
      %v639 = vunpack.c.l.b16 %v390
      %v640 = vunpack.c.h.b16 %v390
      %v641 = vunpack.c.l.b16 %v391
      %v642 = vunpack.c.h.b16 %v391
      %v643 = vunpack.c.l.b16 %v392
      %v644 = vunpack.c.h.b16 %v392
      %v645 = vunpack.c.l.b16 %v393
      %v646 = vunpack.c.h.b16 %v393
      %v647 = vunpack.c.l.b16 %v394
      %v648 = vunpack.c.h.b16 %v394
      %v649 = vunpack.c.l.b16 %v395
      %v650 = vunpack.c.h.b16 %v395
      %v651 = vunpack.c.l.b16 %v396
      %v652 = vunpack.c.h.b16 %v396
      %v653 = vunpack.c.l.b16 %v397
      %v654 = vunpack.c.h.b16 %v397
      %v655 = vunpack.c.l.b16 %v398
      %v656 = vunpack.c.h.b16 %v398
      %v657 = vunpack.c.l.b16 %v399
      %v658 = vunpack.c.h.b16 %v399
      %v659 = vunpack.c.l.b16 %v400
      %v660 = vunpack.c.h.b16 %v400
      %v661 = vunpack.c.l.b16 %v401
      %v662 = vunpack.c.h.b16 %v401
      %v663 = vunpack.c.l.b16 %v402
      %v664 = vunpack.c.h.b16 %v402
      %v665 = vunpack.c.l.b16 %v403
      %v666 = vunpack.c.h.b16 %v403
      %v667 = vunpack.c.l.b16 %v404
      %v668 = vunpack.c.h.b16 %v404
      %v669 = vunpack.c.l.b16 %v405
      %v670 = vunpack.c.h.b16 %v405
      %v671 = vunpack.c.l.b16 %v406
      %v672 = vunpack.c.h.b16 %v406
      %v673 = vunpack.c.l.b16 %v407
      %v674 = vunpack.c.h.b16 %v407
      %v675 = vunpack.c.l.b16 %v408
      %v676 = vunpack.c.h.b16 %v408
      %v677 = vunpack.c.l.b16 %v409
      %v678 = vunpack.c.h.b16 %v409
      %v679 = vunpack.c.l.b16 %v410
      %v680 = vunpack.c.h.b16 %v410
      %v681 = vunpack.c.l.b16 %v411
      %v682 = vunpack.c.h.b16 %v411
      %v683 = vunpack.c.l.b16 %v412
      %v684 = vunpack.c.h.b16 %v412
      %v685 = vunpack.c.l.b16 %v413
      %v686 = vunpack.c.h.b16 %v413
      %v687 = vunpack.c.l.b16 %v414
      %v688 = vunpack.c.h.b16 %v414
      %v689 = vunpack.c.l.b16 %v415
      %v690 = vunpack.c.h.b16 %v415
      %v691 = vunpack.c.l.b16 %v416
      %v692 = vunpack.c.h.b16 %v416
      %v693 = vunpack.c.l.b16 %v417
      %v694 = vunpack.c.h.b16 %v417
      %v695 = vunpack.c.l.b16 %v418
      %v696 = vunpack.c.h.b16 %v418
      %v697 = vunpack.c.l.b16 %v419
      %v698 = vunpack.c.h.b16 %v419
      %v699 = vunpack.c.l.b16 %v420
      %v700 = vunpack.c.h.b16 %v420
      %v701 = vunpack.c.l.b16 %v421
      %v702 = vunpack.c.h.b16 %v421
      %v703 = vunpack.c.l.b16 %v422
      %v704 = vunpack.c.h.b16 %v422
      %v705 = vunpack.c.l.b16 %v423
      %v706 = vunpack.c.h.b16 %v423
      %v707 = vunpack.c.l.b16 %v424
      %v708 = vunpack.c.h.b16 %v424
      %v709 = vunpack.c.l.b16 %v425
      %v710 = vunpack.c.h.b16 %v425
      %v711 = vunpack.c.l.b16 %v426
      %v712 = vunpack.c.h.b16 %v426
      %v713 = vunpack.c.l.b16 %v427
      %v714 = vunpack.c.h.b16 %v427
      %v715 = vunpack.c.l.b16 %v428
      %v716 = vunpack.c.h.b16 %v428
      %v717 = vpack.c.b16 %v531, %v525
      %v718 = vpack.c.b16 %v532, %v526
      %v719 = vpack.c.b16 %v533, %v527
      %v720 = vpack.c.b16 %v534, %v528
      %v721 = vpack.c.b16 %v535, %v529
      %v722 = vpack.c.b16 %v536, %v530
      %v723 = vpack.c.b16 %v543, %v537
      %v724 = vpack.c.b16 %v544, %v538
      %v725 = vpack.c.b16 %v545, %v539
      %v726 = vpack.c.b16 %v546, %v540
      %v727 = vpack.c.b16 %v547, %v541
      %v728 = vpack.c.b16 %v548, %v542
      %v729 = vpack.c.b16 %v555, %v549
      %v730 = vpack.c.b16 %v556, %v550
      %v731 = vpack.c.b16 %v557, %v551
      %v732 = vpack.c.b16 %v558, %v552
      %v733 = vpack.c.b16 %v559, %v553
      %v734 = vpack.c.b16 %v560, %v554
      %v735 = vpack.c.b16 %v567, %v561
      %v736 = vpack.c.b16 %v568, %v562
      %v737 = vpack.c.b16 %v569, %v563
      %v738 = vpack.c.b16 %v570, %v564
      %v739 = vpack.c.b16 %v571, %v565
      %v740 = vpack.c.b16 %v572, %v566
      %v741 = vpack.c.b16 %v579, %v573
      %v742 = vpack.c.b16 %v580, %v574
      %v743 = vpack.c.b16 %v581, %v575
      %v744 = vpack.c.b16 %v582, %v576
      %v745 = vpack.c.b16 %v583, %v577
      %v746 = vpack.c.b16 %v584, %v578
      %v747 = vpack.c.b16 %v591, %v585
      %v748 = vpack.c.b16 %v592, %v586
      %v749 = vpack.c.b16 %v593, %v587
      %v750 = vpack.c.b16 %v594, %v588
      %v751 = vpack.c.b16 %v595, %v589
      %v752 = vpack.c.b16 %v596, %v590
      %v753 = vpack.c.b16 %v603, %v597
      %v754 = vpack.c.b16 %v604, %v598
      %v755 = vpack.c.b16 %v605, %v599
      %v756 = vpack.c.b16 %v606, %v600
      %v757 = vpack.c.b16 %v607, %v601
      %v758 = vpack.c.b16 %v608, %v602
      %v759 = vpack.c.b16 %v615, %v609
      %v760 = vpack.c.b16 %v616, %v610
      %v761 = vpack.c.b16 %v617, %v611
      %v762 = vpack.c.b16 %v618, %v612
      %v763 = vpack.c.b16 %v619, %v613
      %v764 = vpack.c.b16 %v620, %v614
      %v765 = vpack.c.b16 %v627, %v621
      %v766 = vpack.c.b16 %v628, %v622
      %v767 = vpack.c.b16 %v629, %v623
      %v768 = vpack.c.b16 %v630, %v624
      %v769 = vpack.c.b16 %v631, %v625
      %v770 = vpack.c.b16 %v632, %v626
      %v771 = vpack.c.b16 %v639, %v633
      %v772 = vpack.c.b16 %v640, %v634
      %v773 = vpack.c.b16 %v641, %v635
      %v774 = vpack.c.b16 %v642, %v636
      %v775 = vpack.c.b16 %v643, %v637
      %v776 = vpack.c.b16 %v644, %v638
      %v777 = vpack.c.b16 %v651, %v645
      %v778 = vpack.c.b16 %v652, %v646
      %v779 = vpack.c.b16 %v653, %v647
      %v780 = vpack.c.b16 %v654, %v648
      %v781 = vpack.c.b16 %v655, %v649
      %v782 = vpack.c.b16 %v656, %v650
      %v783 = vpack.c.b16 %v663, %v657
      %v784 = vpack.c.b16 %v664, %v658
      %v785 = vpack.c.b16 %v665, %v659
      %v786 = vpack.c.b16 %v666, %v660
      %v787 = vpack.c.b16 %v667, %v661
      %v788 = vpack.c.b16 %v668, %v662
      %v789 = vpack.c.b16 %v675, %v669
      %v790 = vpack.c.b16 %v676, %v670
      %v791 = vpack.c.b16 %v677, %v671
      %v792 = vpack.c.b16 %v678, %v672
      %v793 = vpack.c.b16 %v679, %v673
      %v794 = vpack.c.b16 %v680, %v674
      %v795 = vpack.c.b16 %v687, %v681
      %v796 = vpack.c.b16 %v688, %v682
      %v797 = vpack.c.b16 %v689, %v683
      %v798 = vpack.c.b16 %v690, %v684
      %v799 = vpack.c.b16 %v691, %v685
      %v800 = vpack.c.b16 %v692, %v686
      %v801 = vpack.c.b16 %v699, %v693
      %v802 = vpack.c.b16 %v700, %v694
      %v803 = vpack.c.b16 %v701, %v695
      %v804 = vpack.c.b16 %v702, %v696
      %v805 = vpack.c.b16 %v703, %v697
      %v806 = vpack.c.b16 %v704, %v698
      %v807 = vpack.c.b16 %v711, %v705
      %v808 = vpack.c.b16 %v712, %v706
      %v809 = vpack.c.b16 %v713, %v707
      %v810 = vpack.c.b16 %v714, %v708
      %v811 = vpack.c.b16 %v715, %v709
      %v812 = vpack.c.b16 %v716, %v710
      %909 = vmatprep.subr.bf16.mxu0 %v718
      %910 = vmatpush1.bf16.msra.mxu0 %v717
      %911 = vmatprep.subr.bf16.mxu0 %v724
      %912 = vmatpush1.bf16.msra.mxu0 %v723
      %913 = vmatprep.subr.bf16.mxu0 %v730
      %914 = vmatpush1.bf16.msra.mxu0 %v729
      %915 = vmatprep.subr.bf16.mxu0 %v736
      %916 = vmatpush1.bf16.msra.mxu0 %v735
      %917 = vmatprep.subr.bf16.mxu0 %v742
      %918 = vmatpush1.bf16.msra.mxu0 %v741
      %919 = vmatprep.subr.bf16.mxu0 %v748
      %920 = vmatpush1.bf16.msra.mxu0 %v747
      %921 = vmatprep.subr.bf16.mxu0 %v754
      %922 = vmatpush1.bf16.msra.mxu0 %v753
      %923 = vmatprep.subr.bf16.mxu0 %v760
      %924 = vmatpush1.bf16.msra.mxu0 %v759
      %925 = vmatprep.subr.bf16.mxu0 %v766
      %926 = vmatpush1.bf16.msra.mxu0 %v765
      %927 = vmatprep.subr.bf16.mxu0 %v772
      %928 = vmatpush1.bf16.msra.mxu0 %v771
      %929 = vmatprep.subr.bf16.mxu0 %v778
      %930 = vmatpush1.bf16.msra.mxu0 %v777
      %931 = vmatprep.subr.bf16.mxu0 %v784
      %932 = vmatpush1.bf16.msra.mxu0 %v783
      %933 = vmatprep.subr.bf16.mxu0 %v790
      %934 = vmatpush1.bf16.msra.mxu0 %v789
      %935 = vmatprep.subr.bf16.mxu0 %v796
      %936 = vmatpush1.bf16.msra.mxu0 %v795
      %937 = vmatprep.subr.bf16.mxu0 %v802
      %938 = vmatpush1.bf16.msra.mxu0 %v801
      %939 = vmatprep.subr.bf16.mxu0 %v808
      %940 = vmatpush1.bf16.msra.mxu0 %v807
      %941 = vmatprep.mubr.bf16.mxu0 %v332
      %942 = vmatmul.mubr.bf16.gmra.mrb[0].mxu0 %v331
      %v943 = vpop.f32.mrb[0].mxu0
      %v944 = vadd.f32 0.0, %v943
      %v945 = vpop.f32.mrb[0].mxu0
      %v946 = vadd.f32 0.0, %v945
      %v947 = vpop.f32.mrb[0].mxu0
      %v948 = vpop.f32.mrb[0].mxu0
      %949 = vdwg.mxu0
      %950 = vmatprep.subr.bf16.mxu0 %v720
      %951 = vmatpush1.bf16.msra.mxu0 %v719
      %952 = vmatprep.subr.bf16.mxu0 %v726
      %953 = vmatpush1.bf16.msra.mxu0 %v725
      %954 = vmatprep.subr.bf16.mxu0 %v732
      %955 = vmatpush1.bf16.msra.mxu0 %v731
      %956 = vmatprep.subr.bf16.mxu0 %v738
      %957 = vmatpush1.bf16.msra.mxu0 %v737
      %958 = vmatprep.subr.bf16.mxu0 %v744
      %959 = vmatpush1.bf16.msra.mxu0 %v743
      %960 = vmatprep.subr.bf16.mxu0 %v750
      %961 = vmatpush1.bf16.msra.mxu0 %v749
      %962 = vmatprep.subr.bf16.mxu0 %v756
      %963 = vmatpush1.bf16.msra.mxu0 %v755
      %964 = vmatprep.subr.bf16.mxu0 %v762
      %965 = vmatpush1.bf16.msra.mxu0 %v761
      %966 = vmatprep.subr.bf16.mxu0 %v768
      %967 = vmatpush1.bf16.msra.mxu0 %v767
      %968 = vmatprep.subr.bf16.mxu0 %v774
      %969 = vmatpush1.bf16.msra.mxu0 %v773
      %970 = vmatprep.subr.bf16.mxu0 %v780
      %971 = vmatpush1.bf16.msra.mxu0 %v779
      %972 = vmatprep.subr.bf16.mxu0 %v786
      %973 = vmatpush1.bf16.msra.mxu0 %v785
      %974 = vmatprep.subr.bf16.mxu0 %v792
      %975 = vmatpush1.bf16.msra.mxu0 %v791
      %976 = vmatprep.subr.bf16.mxu0 %v798
      %977 = vmatpush1.bf16.msra.mxu0 %v797
      %978 = vmatprep.subr.bf16.mxu0 %v804
      %979 = vmatpush1.bf16.msra.mxu0 %v803
      %980 = vmatprep.subr.bf16.mxu0 %v810
      %981 = vmatpush1.bf16.msra.mxu0 %v809
      %982 = vmatprep.mubr.bf16.mxu0 %v332
      %983 = vmatmul.mubr.bf16.gmra.mrb[0].mxu0 %v331
      %v984 = vpop.f32.mrb[0].mxu0
      %v985 = vadd.f32 0.0, %v984
      %v986 = vpop.f32.mrb[0].mxu0
      %v987 = vadd.f32 0.0, %v986
      %v988 = vpop.f32.mrb[0].mxu0
      %v989 = vpop.f32.mrb[0].mxu0
      %990 = vdwg.mxu0
      %991 = vmatprep.subr.bf16.mxu0 %v722
      %992 = vmatpush1.bf16.msra.mxu0 %v721
      %993 = vmatprep.subr.bf16.mxu0 %v728
      %994 = vmatpush1.bf16.msra.mxu0 %v727
      %995 = vmatprep.subr.bf16.mxu0 %v734
      %996 = vmatpush1.bf16.msra.mxu0 %v733
      %997 = vmatprep.subr.bf16.mxu0 %v740
      %998 = vmatpush1.bf16.msra.mxu0 %v739
      %999 = vmatprep.subr.bf16.mxu0 %v746
      %1000 = vmatpush1.bf16.msra.mxu0 %v745
      %1001 = vmatprep.subr.bf16.mxu0 %v752
      %1002 = vmatpush1.bf16.msra.mxu0 %v751
      %1003 = vmatprep.subr.bf16.mxu0 %v758
      %1004 = vmatpush1.bf16.msra.mxu0 %v757
      %1005 = vmatprep.subr.bf16.mxu0 %v764
      %1006 = vmatpush1.bf16.msra.mxu0 %v763
      %1007 = vmatprep.subr.bf16.mxu0 %v770
      %1008 = vmatpush1.bf16.msra.mxu0 %v769
      %1009 = vmatprep.subr.bf16.mxu0 %v776
      %1010 = vmatpush1.bf16.msra.mxu0 %v775
      %1011 = vmatprep.subr.bf16.mxu0 %v782
      %1012 = vmatpush1.bf16.msra.mxu0 %v781
      %1013 = vmatprep.subr.bf16.mxu0 %v788
      %1014 = vmatpush1.bf16.msra.mxu0 %v787
      %1015 = vmatprep.subr.bf16.mxu0 %v794
      %1016 = vmatpush1.bf16.msra.mxu0 %v793
      %1017 = vmatprep.subr.bf16.mxu0 %v800
      %1018 = vmatpush1.bf16.msra.mxu0 %v799
      %1019 = vmatprep.subr.bf16.mxu0 %v806
      %1020 = vmatpush1.bf16.msra.mxu0 %v805
      %1021 = vmatprep.subr.bf16.mxu0 %v812
      %1022 = vmatpush1.bf16.msra.mxu0 %v811
      %1023 = vmatprep.mubr.bf16.mxu0 %v332
      %1024 = vmatmul.mubr.bf16.gmra.mrb[0].mxu0 %v331
      %v1025 = vpop.f32.mrb[0].mxu0
      %v1026 = vadd.f32 0.0, %v1025
      %v1027 = vpop.f32.mrb[0].mxu0
      %v1028 = vadd.f32 0.0, %v1027
      %v1029 = vpop.f32.mrb[0].mxu0
      %v1030 = vpop.f32.mrb[0].mxu0
      %1031 = vdwg.mxu0
      %v1032 = vld [vmem:[%s2] sm:$0xff]
      %v1033 = vld [vmem:[%s3] sm:$0xff]
      %v1034 = vld [vmem:[%s287] sm:$0x1]
      %vm1035 = vcmp.gt.f32.partialorder %v1034, 0.0
      %v1036 = vsel %vm1035, 0.0, -1e+30
      %v1037 = vmul.f32 %v944, %v1032
      %1038 = vrot.lane.b32.xlu0 %v944, 64
      %v1039 = vpop.permute.xlu0 %1038
      %v1040 = vmul.f32 %v1039, %v1033
      %v1041 = vadd.f32 %v1037, %v1040
      %v1042 = vmul.f32 %v985, %v1032
      %1043 = vrot.lane.b32.xlu0 %v985, 64
      %v1044 = vpop.permute.xlu0 %1043
      %v1045 = vmul.f32 %v1044, %v1033
      %v1046 = vadd.f32 %v1042, %v1045
      %v1047 = vpack.c.bf16 %v1041, %v1041
      %v1048 = vpack.c.bf16 %v1046, %v1046
      %v1050 = vlaneseq
      %v1051 = vshrl.u32 %v1050, 7
      %v1052 = vsub.s32 0, %v1051
      %v1053 = vrot.slane %v1036, %v1052
      %1055 = vmatprep.subr.bf16.mxu0 0
      %1056 = vmatpush1.bf16.xpose.msra.mxu0 %v1048
      %1057 = vmatprep.subr.bf16.mxu0 0
      %1058 = vmatpush1.bf16.xpose.msra.mxu0 0
      %1059 = vmatprep.subr.bf16.mxu0 0
      %1060 = vmatpush1.bf16.xpose.msra.mxu0 0
      %1061 = vmatprep.subr.bf16.mxu0 0
      %1062 = vmatpush1.bf16.xpose.msra.mxu0 0
      %1063 = vmatprep.subr.bf16.mxu0 0
      %1064 = vmatpush1.bf16.xpose.msra.mxu0 0
      %1065 = vmatprep.subr.bf16.mxu0 0
      %1066 = vmatpush1.bf16.xpose.msra.mxu0 0
      %1067 = vmatprep.subr.bf16.mxu0 0
      %1068 = vmatpush1.bf16.xpose.msra.mxu0 0
      %1069 = vmatprep.subr.bf16.mxu0 0
      %1070 = vmatpush1.bf16.xpose.msra.mxu0 0
      %1071 = vmatprep.subr.bf16.mxu0 0
      %1072 = vmatpush1.bf16.xpose.msra.mxu0 0
      %1073 = vmatprep.subr.bf16.mxu0 0
      %1074 = vmatpush1.bf16.xpose.msra.mxu0 0
      %1075 = vmatprep.subr.bf16.mxu0 0
      %1076 = vmatpush1.bf16.xpose.msra.mxu0 0
      %1077 = vmatprep.subr.bf16.mxu0 0
      %1078 = vmatpush1.bf16.xpose.msra.mxu0 0
      %1079 = vmatprep.subr.bf16.mxu0 0
      %1080 = vmatpush1.bf16.xpose.msra.mxu0 0
      %1081 = vmatprep.subr.bf16.mxu0 0
      %1082 = vmatpush1.bf16.xpose.msra.mxu0 0
      %1083 = vmatprep.subr.bf16.mxu0 0
      %1084 = vmatpush1.bf16.xpose.msra.mxu0 0
      %1085 = vmatprep.subr.bf16.mxu0 0
      %1086 = vmatpush1.bf16.xpose.msra.mxu0 0
      %1087 = vmatprep.mubr.bf16.mxu0 0
      %1088 = vmatmul.mubr.bf16.gmra.mrb[0].mxu0 %v1047
      %v1089 = vpop.f32.mrb[0].mxu0
      %v1090 = vadd.f32 %v1053, %v1089
      %v1091 = vpop.f32.mrb[0].mxu0
      %v1092 = vpop.f32.mrb[0].mxu0
      %v1093 = vpop.f32.mrb[0].mxu0
      %1094 = vdwg.mxu0
      %vm1095 = vcmask 64512
      %v1096 = vsel %vm1095, %v1090, -inf
      %1097 = vmax.xlane.f32.xlu0 %v1096
      %v1098 = vpop.xlane.xlu0 %1097
      %v1099 = vsub.f32 %v1090, %v1098
      %v1100 = vmul.f32 %v1099, 1.442695
      %v1101 = vpow.pop %v1100
      %v1102 = vsel %vm1095, %v1101, 0.0
      %1103 = vadd.xlane.f32.xlu0 %v1102
      %v1104 = vpop.xlane.xlu0 %1103
      %v1105 = vrcp.pop %v1104
      %v1106 = vmul.f32 %v1101, %v1105
      %v1107 = vpack.c.bf16 %v1106, %v1106
      %v1108 = vpack.c.bf16 %v1026, %v1026
      %v1110 = vsel %vm1095, %v1107, 0
      %vm1112 = vcmask 1043456
      %v1114 = vsel %vm1112, %v1108, 0
      %1116 = vmatprep.subr.bf16.mxu0 0
      %1117 = vmatpush1.bf16.msra.mxu0 %v1114
      %1118 = vmatprep.subr.bf16.mxu0 0
      %1119 = vmatpush1.bf16.msra.mxu0 0
      %1120 = vmatprep.subr.bf16.mxu0 0
      %1121 = vmatpush1.bf16.msra.mxu0 0
      %1122 = vmatprep.subr.bf16.mxu0 0
      %1123 = vmatpush1.bf16.msra.mxu0 0
      %1124 = vmatprep.subr.bf16.mxu0 0
      %1125 = vmatpush1.bf16.msra.mxu0 0
      %1126 = vmatprep.subr.bf16.mxu0 0
      %1127 = vmatpush1.bf16.msra.mxu0 0
      %1128 = vmatprep.subr.bf16.mxu0 0
      %1129 = vmatpush1.bf16.msra.mxu0 0
      %1130 = vmatprep.subr.bf16.mxu0 0
      %1131 = vmatpush1.bf16.msra.mxu0 0
      %1132 = vmatprep.subr.bf16.mxu0 0
      %1133 = vmatpush1.bf16.msra.mxu0 0
      %1134 = vmatprep.subr.bf16.mxu0 0
      %1135 = vmatpush1.bf16.msra.mxu0 0
      %1136 = vmatprep.subr.bf16.mxu0 0
      %1137 = vmatpush1.bf16.msra.mxu0 0
      %1138 = vmatprep.subr.bf16.mxu0 0
      %1139 = vmatpush1.bf16.msra.mxu0 0
      %1140 = vmatprep.subr.bf16.mxu0 0
      %1141 = vmatpush1.bf16.msra.mxu0 0
      %1142 = vmatprep.subr.bf16.mxu0 0
      %1143 = vmatpush1.bf16.msra.mxu0 0
      %1144 = vmatprep.subr.bf16.mxu0 0
      %1145 = vmatpush1.bf16.msra.mxu0 0
      %1146 = vmatprep.subr.bf16.mxu0 0
      %1147 = vmatpush1.bf16.msra.mxu0 0
      %1148 = vmatprep.mubr.bf16.mxu0 0
      %1149 = vmatmul.mubr.bf16.gmra.mrb[0].mxu0 %v1110
      %v1150 = vpop.f32.mrb[0].mxu0
      %v1151 = vadd.f32 0.0, %v1150
      %v1152 = vpop.f32.mrb[0].mxu0
      %v1153 = vpop.f32.mrb[0].mxu0
      %v1154 = vpop.f32.mrb[0].mxu0
      %1155 = vdwg.mxu0
      %v1156 = vmul.f32 %v946, %v1032
      %1157 = vrot.lane.b32.xlu0 %v946, 64
      %v1158 = vpop.permute.xlu0 %1157
      %v1159 = vmul.f32 %v1158, %v1033
      %v1160 = vadd.f32 %v1156, %v1159
      %v1161 = vmul.f32 %v987, %v1032
      %1162 = vrot.lane.b32.xlu0 %v987, 64
      %v1163 = vpop.permute.xlu0 %1162
      %v1164 = vmul.f32 %v1163, %v1033
      %v1165 = vadd.f32 %v1161, %v1164
      %v1166 = vpack.c.bf16 %v1160, %v1160
      %v1167 = vpack.c.bf16 %v1165, %v1165
      %1168 = vmatprep.subr.bf16.mxu0 0
      %1169 = vmatpush1.bf16.xpose.msra.mxu0 %v1167
      %1170 = vmatprep.subr.bf16.mxu0 0
      %1171 = vmatpush1.bf16.xpose.msra.mxu0 0
      %1172 = vmatprep.subr.bf16.mxu0 0
      %1173 = vmatpush1.bf16.xpose.msra.mxu0 0
      %1174 = vmatprep.subr.bf16.mxu0 0
      %1175 = vmatpush1.bf16.xpose.msra.mxu0 0
      %1176 = vmatprep.subr.bf16.mxu0 0
      %1177 = vmatpush1.bf16.xpose.msra.mxu0 0
      %1178 = vmatprep.subr.bf16.mxu0 0
      %1179 = vmatpush1.bf16.xpose.msra.mxu0 0
      %1180 = vmatprep.subr.bf16.mxu0 0
      %1181 = vmatpush1.bf16.xpose.msra.mxu0 0
      %1182 = vmatprep.subr.bf16.mxu0 0
      %1183 = vmatpush1.bf16.xpose.msra.mxu0 0
      %1184 = vmatprep.subr.bf16.mxu0 0
      %1185 = vmatpush1.bf16.xpose.msra.mxu0 0
      %1186 = vmatprep.subr.bf16.mxu0 0
      %1187 = vmatpush1.bf16.xpose.msra.mxu0 0
      %1188 = vmatprep.subr.bf16.mxu0 0
      %1189 = vmatpush1.bf16.xpose.msra.mxu0 0
      %1190 = vmatprep.subr.bf16.mxu0 0
      %1191 = vmatpush1.bf16.xpose.msra.mxu0 0
      %1192 = vmatprep.subr.bf16.mxu0 0
      %1193 = vmatpush1.bf16.xpose.msra.mxu0 0
      %1194 = vmatprep.subr.bf16.mxu0 0
      %1195 = vmatpush1.bf16.xpose.msra.mxu0 0
      %1196 = vmatprep.subr.bf16.mxu0 0
      %1197 = vmatpush1.bf16.xpose.msra.mxu0 0
      %1198 = vmatprep.subr.bf16.mxu0 0
      %1199 = vmatpush1.bf16.xpose.msra.mxu0 0
      %1200 = vmatprep.mubr.bf16.mxu0 0
      %1201 = vmatmul.mubr.bf16.gmra.mrb[0].mxu0 %v1166
      %v1202 = vpop.f32.mrb[0].mxu0
      %v1203 = vadd.f32 %v1053, %v1202
      %v1204 = vpop.f32.mrb[0].mxu0
      %v1205 = vpop.f32.mrb[0].mxu0
      %v1206 = vpop.f32.mrb[0].mxu0
      %1207 = vdwg.mxu0
      %v1208 = vsel %vm1095, %v1203, -inf
      %1209 = vmax.xlane.f32.xlu0 %v1208
      %v1210 = vpop.xlane.xlu0 %1209
      %v1211 = vsub.f32 %v1203, %v1210
      %v1212 = vmul.f32 %v1211, 1.442695
      %v1213 = vpow.pop %v1212
      %v1214 = vsel %vm1095, %v1213, 0.0
      %1215 = vadd.xlane.f32.xlu0 %v1214
      %v1216 = vpop.xlane.xlu0 %1215
      %v1217 = vrcp.pop %v1216
      %v1218 = vmul.f32 %v1213, %v1217
      %v1219 = vpack.c.bf16 %v1218, %v1218
      %v1220 = vpack.c.bf16 %v1028, %v1028
      %v1222 = vsel %vm1095, %v1219, 0
      %v1225 = vsel %vm1112, %v1220, 0
      %1227 = vmatprep.subr.bf16.mxu0 0
      %1228 = vmatpush1.bf16.msra.mxu0 %v1225
      %1229 = vmatprep.subr.bf16.mxu0 0
      %1230 = vmatpush1.bf16.msra.mxu0 0
      %1231 = vmatprep.subr.bf16.mxu0 0
      %1232 = vmatpush1.bf16.msra.mxu0 0
      %1233 = vmatprep.subr.bf16.mxu0 0
      %1234 = vmatpush1.bf16.msra.mxu0 0
      %1235 = vmatprep.subr.bf16.mxu0 0
      %1236 = vmatpush1.bf16.msra.mxu0 0
      %1237 = vmatprep.subr.bf16.mxu0 0
      %1238 = vmatpush1.bf16.msra.mxu0 0
      %1239 = vmatprep.subr.bf16.mxu0 0
      %1240 = vmatpush1.bf16.msra.mxu0 0
      %1241 = vmatprep.subr.bf16.mxu0 0
      %1242 = vmatpush1.bf16.msra.mxu0 0
      %1243 = vmatprep.subr.bf16.mxu0 0
      %1244 = vmatpush1.bf16.msra.mxu0 0
      %1245 = vmatprep.subr.bf16.mxu0 0
      %1246 = vmatpush1.bf16.msra.mxu0 0
      %1247 = vmatprep.subr.bf16.mxu0 0
      %1248 = vmatpush1.bf16.msra.mxu0 0
      %1249 = vmatprep.subr.bf16.mxu0 0
      %1250 = vmatpush1.bf16.msra.mxu0 0
      %1251 = vmatprep.subr.bf16.mxu0 0
      %1252 = vmatpush1.bf16.msra.mxu0 0
      %1253 = vmatprep.subr.bf16.mxu0 0
      %1254 = vmatpush1.bf16.msra.mxu0 0
      %1255 = vmatprep.subr.bf16.mxu0 0
      %1256 = vmatpush1.bf16.msra.mxu0 0
      %1257 = vmatprep.subr.bf16.mxu0 0
      %1258 = vmatpush1.bf16.msra.mxu0 0
      %1259 = vmatprep.mubr.bf16.mxu0 0
      %1260 = vmatmul.mubr.bf16.gmra.mrb[0].mxu0 %v1222
      %v1261 = vpop.f32.mrb[0].mxu0
      %v1262 = vadd.f32 0.0, %v1261
      %v1263 = vpop.f32.mrb[0].mxu0
      %v1264 = vpop.f32.mrb[0].mxu0
      %v1265 = vpop.f32.mrb[0].mxu0
      %1266 = vdwg.mxu0
      %v1267 = vpack.c.bf16 %v1151, %v1151
      %v1268 = vpack.c.bf16 %v1262, %v1262
      %v1269 = vld [vmem:[%s6] sm:$0xff]
      %v1270 = vld [vmem:[%s6 + $0x8] sm:$0xff]
      %v1271 = vld [vmem:[%s6 + $0x10] sm:$0xff]
      %v1272 = vld [vmem:[%s6 + $0x18] sm:$0xff]
      %v1273 = vld [vmem:[%s6 + $0x20] sm:$0xff]
      %v1274 = vld [vmem:[%s6 + $0x28] sm:$0xff]
      %v1275 = vld [vmem:[%s6 + $0x30] sm:$0xff]
      %v1276 = vld [vmem:[%s6 + $0x38] sm:$0xff]
      %v1277 = vld [vmem:[%s6 + $0x40] sm:$0xff]
      %v1278 = vld [vmem:[%s6 + $0x48] sm:$0xff]
      %v1279 = vld [vmem:[%s6 + $0x50] sm:$0xff]
      %v1280 = vld [vmem:[%s6 + $0x58] sm:$0xff]
      %v1281 = vld [vmem:[%s6 + $0x60] sm:$0xff]
      %v1282 = vld [vmem:[%s6 + $0x68] sm:$0xff]
      %v1283 = vld [vmem:[%s6 + $0x70] sm:$0xff]
      %v1284 = vld [vmem:[%s6 + $0x78] sm:$0xff]
      %v1285 = vld [vmem:[%s6 + $0x80] sm:$0xff]
      %v1286 = vld [vmem:[%s6 + $0x88] sm:$0xff]
      %v1287 = vld [vmem:[%s6 + $0x90] sm:$0xff]
      %v1288 = vld [vmem:[%s6 + $0x98] sm:$0xff]
      %v1289 = vld [vmem:[%s6 + $0xa0] sm:$0xff]
      %v1290 = vld [vmem:[%s6 + $0xa8] sm:$0xff]
      %v1291 = vld [vmem:[%s6 + $0xb0] sm:$0xff]
      %v1292 = vld [vmem:[%s6 + $0xb8] sm:$0xff]
      %v1293 = vld [vmem:[%s6 + $0xc0] sm:$0xff]
      %v1294 = vld [vmem:[%s6 + $0xc8] sm:$0xff]
      %v1295 = vld [vmem:[%s6 + $0xd0] sm:$0xff]
      %v1296 = vld [vmem:[%s6 + $0xd8] sm:$0xff]
      %v1297 = vld [vmem:[%s6 + $0xe0] sm:$0xff]
      %v1298 = vld [vmem:[%s6 + $0xe8] sm:$0xff]
      %v1299 = vld [vmem:[%s6 + $0xf0] sm:$0xff]
      %v1300 = vld [vmem:[%s6 + $0xf8] sm:$0xff]
      %v1333 = vunpack.c.l.b16 %v1269
      %v1334 = vunpack.c.h.b16 %v1269
      %v1335 = vunpack.c.l.b16 %v1270
      %v1336 = vunpack.c.h.b16 %v1270
      %v1337 = vunpack.c.l.b16 %v1271
      %v1338 = vunpack.c.h.b16 %v1271
      %v1339 = vunpack.c.l.b16 %v1272
      %v1340 = vunpack.c.h.b16 %v1272
      %v1341 = vunpack.c.l.b16 %v1273
      %v1342 = vunpack.c.h.b16 %v1273
      %v1343 = vunpack.c.l.b16 %v1274
      %v1344 = vunpack.c.h.b16 %v1274
      %v1345 = vunpack.c.l.b16 %v1275
      %v1346 = vunpack.c.h.b16 %v1275
      %v1347 = vunpack.c.l.b16 %v1276
      %v1348 = vunpack.c.h.b16 %v1276
      %v1349 = vunpack.c.l.b16 %v1277
      %v1350 = vunpack.c.h.b16 %v1277
      %v1351 = vunpack.c.l.b16 %v1278
      %v1352 = vunpack.c.h.b16 %v1278
      %v1353 = vunpack.c.l.b16 %v1279
      %v1354 = vunpack.c.h.b16 %v1279
      %v1355 = vunpack.c.l.b16 %v1280
      %v1356 = vunpack.c.h.b16 %v1280
      %v1357 = vunpack.c.l.b16 %v1281
      %v1358 = vunpack.c.h.b16 %v1281
      %v1359 = vunpack.c.l.b16 %v1282
      %v1360 = vunpack.c.h.b16 %v1282
      %v1361 = vunpack.c.l.b16 %v1283
      %v1362 = vunpack.c.h.b16 %v1283
      %v1363 = vunpack.c.l.b16 %v1284
      %v1364 = vunpack.c.h.b16 %v1284
      %v1365 = vunpack.c.l.b16 %v1285
      %v1366 = vunpack.c.h.b16 %v1285
      %v1367 = vunpack.c.l.b16 %v1286
      %v1368 = vunpack.c.h.b16 %v1286
      %v1369 = vunpack.c.l.b16 %v1287
      %v1370 = vunpack.c.h.b16 %v1287
      %v1371 = vunpack.c.l.b16 %v1288
      %v1372 = vunpack.c.h.b16 %v1288
      %v1373 = vunpack.c.l.b16 %v1289
      %v1374 = vunpack.c.h.b16 %v1289
      %v1375 = vunpack.c.l.b16 %v1290
      %v1376 = vunpack.c.h.b16 %v1290
      %v1377 = vunpack.c.l.b16 %v1291
      %v1378 = vunpack.c.h.b16 %v1291
      %v1379 = vunpack.c.l.b16 %v1292
      %v1380 = vunpack.c.h.b16 %v1292
      %v1381 = vunpack.c.l.b16 %v1293
      %v1382 = vunpack.c.h.b16 %v1293
      %v1383 = vunpack.c.l.b16 %v1294
      %v1384 = vunpack.c.h.b16 %v1294
      %v1385 = vunpack.c.l.b16 %v1295
      %v1386 = vunpack.c.h.b16 %v1295
      %v1387 = vunpack.c.l.b16 %v1296
      %v1388 = vunpack.c.h.b16 %v1296
      %v1389 = vunpack.c.l.b16 %v1297
      %v1390 = vunpack.c.h.b16 %v1297
      %v1391 = vunpack.c.l.b16 %v1298
      %v1392 = vunpack.c.h.b16 %v1298
      %v1393 = vunpack.c.l.b16 %v1299
      %v1394 = vunpack.c.h.b16 %v1299
      %v1395 = vunpack.c.l.b16 %v1300
      %v1396 = vunpack.c.h.b16 %v1300
      %v1397 = vpack.c.b16 %v1335, %v1333
      %v1398 = vpack.c.b16 %v1336, %v1334
      %v1399 = vpack.c.b16 %v1339, %v1337
      %v1400 = vpack.c.b16 %v1340, %v1338
      %v1401 = vpack.c.b16 %v1343, %v1341
      %v1402 = vpack.c.b16 %v1344, %v1342
      %v1403 = vpack.c.b16 %v1347, %v1345
      %v1404 = vpack.c.b16 %v1348, %v1346
      %v1405 = vpack.c.b16 %v1351, %v1349
      %v1406 = vpack.c.b16 %v1352, %v1350
      %v1407 = vpack.c.b16 %v1355, %v1353
      %v1408 = vpack.c.b16 %v1356, %v1354
      %v1409 = vpack.c.b16 %v1359, %v1357
      %v1410 = vpack.c.b16 %v1360, %v1358
      %v1411 = vpack.c.b16 %v1363, %v1361
      %v1412 = vpack.c.b16 %v1364, %v1362
      %v1413 = vpack.c.b16 %v1367, %v1365
      %v1414 = vpack.c.b16 %v1368, %v1366
      %v1415 = vpack.c.b16 %v1371, %v1369
      %v1416 = vpack.c.b16 %v1372, %v1370
      %v1417 = vpack.c.b16 %v1375, %v1373
      %v1418 = vpack.c.b16 %v1376, %v1374
      %v1419 = vpack.c.b16 %v1379, %v1377
      %v1420 = vpack.c.b16 %v1380, %v1378
      %v1421 = vpack.c.b16 %v1383, %v1381
      %v1422 = vpack.c.b16 %v1384, %v1382
      %v1423 = vpack.c.b16 %v1387, %v1385
      %v1424 = vpack.c.b16 %v1388, %v1386
      %v1425 = vpack.c.b16 %v1391, %v1389
      %v1426 = vpack.c.b16 %v1392, %v1390
      %v1427 = vpack.c.b16 %v1395, %v1393
      %v1428 = vpack.c.b16 %v1396, %v1394
      %1461 = vmatprep.subr.bf16.mxu0 %v1398
      %1462 = vmatpush1.bf16.msra.mxu0 %v1397
      %1463 = vmatprep.subr.bf16.mxu0 %v1400
      %1464 = vmatpush1.bf16.msra.mxu0 %v1399
      %1465 = vmatprep.subr.bf16.mxu0 %v1402
      %1466 = vmatpush1.bf16.msra.mxu0 %v1401
      %1467 = vmatprep.subr.bf16.mxu0 %v1404
      %1468 = vmatpush1.bf16.msra.mxu0 %v1403
      %1469 = vmatprep.subr.bf16.mxu0 %v1406
      %1470 = vmatpush1.bf16.msra.mxu0 %v1405
      %1471 = vmatprep.subr.bf16.mxu0 %v1408
      %1472 = vmatpush1.bf16.msra.mxu0 %v1407
      %1473 = vmatprep.subr.bf16.mxu0 %v1410
      %1474 = vmatpush1.bf16.msra.mxu0 %v1409
      %1475 = vmatprep.subr.bf16.mxu0 %v1412
      %1476 = vmatpush1.bf16.msra.mxu0 %v1411
      %1477 = vmatprep.subr.bf16.mxu0 %v1414
      %1478 = vmatpush1.bf16.msra.mxu0 %v1413
      %1479 = vmatprep.subr.bf16.mxu0 %v1416
      %1480 = vmatpush1.bf16.msra.mxu0 %v1415
      %1481 = vmatprep.subr.bf16.mxu0 %v1418
      %1482 = vmatpush1.bf16.msra.mxu0 %v1417
      %1483 = vmatprep.subr.bf16.mxu0 %v1420
      %1484 = vmatpush1.bf16.msra.mxu0 %v1419
      %1485 = vmatprep.subr.bf16.mxu0 %v1422
      %1486 = vmatpush1.bf16.msra.mxu0 %v1421
      %1487 = vmatprep.subr.bf16.mxu0 %v1424
      %1488 = vmatpush1.bf16.msra.mxu0 %v1423
      %1489 = vmatprep.subr.bf16.mxu0 %v1426
      %1490 = vmatpush1.bf16.msra.mxu0 %v1425
      %1491 = vmatprep.subr.bf16.mxu0 %v1428
      %1492 = vmatpush1.bf16.msra.mxu0 %v1427
      %1493 = vmatprep.mubr.bf16.mxu0 %v1268
      %1494 = vmatmul.mubr.bf16.gmra.mrb[0].mxu0 %v1267
      %v1495 = vpop.f32.mrb[0].mxu0
      %v1496 = vadd.f32 0.0, %v1495
      %v1497 = vpop.f32.mrb[0].mxu0
      %v1498 = vadd.f32 0.0, %v1497
      %v1499 = vpop.f32.mrb[0].mxu0
      %v1500 = vpop.f32.mrb[0].mxu0
      %1501 = vdwg.mxu0
      %v1502 = vadd.f32 %v295, %v1496
      %v1503 = vadd.f32 %v296, %v1498
      %v1504 = vpack.c.bf16 %v1502, %v1502
      %v1505 = vpack.c.bf16 %v1503, %v1503
      %v1508 = vunpack.c.l.b16 %v1504
      %v1509 = vunpack.c.l.b16 %v1505
      %v1510 = vpack.c.b16 %v1509, %v1508
      %1512 = vst [vmem:[%s292] sm:$0xff] %v1510
      %p1513 = scmp.lt.s32.totalorder %s18, 1
      %s1514 = scalar_select %p1513, %s18, 1
      %s1515 = smul.addr %s1514, 2
      %s1516 = smul.addr %s1515, 4
      %s1517 = scalar_lea.vmem %s7, %s1516
      // Predicated region
      $region49: #{encoder_forward.7} parent=47 // pred_check
        %p1518 = pneg %p193
      $region50: #{encoder_forward.7} parent=47 // pred_check_branch
        %1520 = sbr.rel (%p1518) target = $region52
      $region51: #{encoder_forward.7} parent=47 // pred_region
        _
      $region52: #{encoder_forward.7} parent=47 // pred_fallthru
        _
    $region48: #{encoder_forward.7} parent=5 // pred_fallthru
      _
    %p1521 = scmp.le.s32.totalorder 2, %s13
    // Predicated region
    $region53: #{encoder_forward.7} parent=5 // pred_check
      %p1522 = pneg %p1521
    $region54: #{encoder_forward.7} parent=5 // pred_check_branch
      %1524 = sbr.rel (%p1522) target = $region56
    $region55: #{encoder_forward.7} parent=5 // pred_region
      %s1525 = ssub.s32 %s13, 2
      // Predicated region
      $region57: #{encoder_forward.7} parent=55 // pred_check
        %p1526 = pneg %p199
      $region58: #{encoder_forward.7} parent=55 // pred_check_branch
        %1528 = sbr.rel (%p1526) target = $region60
      $region59: #{encoder_forward.7} parent=55 // pred_region
        %p1529 = scmp.lt.s32.totalorder %s19, 1
        %s1530 = scalar_select %p1529, %s19, 1
        %s1531 = smul.addr %s1530, 2
        %s1532 = smul.addr %s1531, 4
        %s1533 = scalar_lea.vmem %s7, %s1532
      $region60: #{encoder_forward.7} parent=55 // pred_fallthru
        _
    $region56: #{encoder_forward.7} parent=5 // pred_fallthru
      _
  $region6: #{encoder_forward.7} parent=0 // loop_footer
    %s17 = sadd.s32 1, %s13
  $region7: #{encoder_forward.7} parent=0 // loop_footer_branch
    %12 = sbr.rel target = $region3
  $region8: #{encoder_forward.7} parent=0 // loop_exit
    _

// kernel: encoder_forward.6
$region0: #{encoder_forward.6}
  #allocation0 [shape = 'u32[]', space=smem, size = 0x4, offset = 0x4, fixed_abs, tag = 'smem constant byte address 0x4 - core index']
  #allocation1 [shape = 'u32[144,128]{1,0:T(1,128)}', space=vmem, size = 0x12000, scoped, tag = 'internal scratch']
  %s0 = inlined_call_operand.vmem [shape: bf16[2,8,256], index: 0, kind: input, shape index: {}, may-alias: {0,4}]
  %s1 = inlined_call_operand.vmem [shape: bf16[1,256], index: 1, kind: input, shape index: {}]
  %s2 = inlined_call_operand.vmem [shape: bf16[256,1024], index: 2, kind: input, shape index: {}]
  %s3 = inlined_call_operand.hbm [shape: bf16[512,256], index: 3, kind: input, shape index: {}]
  %s4 = inlined_call_operand.vmem [shape: bf16[2,8,256], index: 4, kind: output, shape index: {}, may-alias: {0,4}]
  %s5 = sld [smem:[#allocation0]]
  $region53: #{encoder_forward.6} parent=0
    _
  %s7 = ssub.s32 1, %s5
  %s8 = scalar_select 0, %s7, %s5
  $region1: #{encoder_forward.6} parent=0
    #allocation2 [shape = 'u8[262144]{0}', space=vmem, size = 0x40000, scoped, tag = 'input window, operand 3, single buffered']
    #allocation3 [shape = 's32[2]{0}', space=sflag, size = 0x8, scoped, tag = 'scoped memory for encoder_forward.6']
    %9 = vsyncpa [#allocation3], 0
    loop: start=0, step=1, limit=4
    $region2: #{encoder_forward.6} parent=1 // loop_pre_header
      _
    $region3: #{encoder_forward.6} parent=1 // loop_header
      %s11 = sphi 0, %s15
      %p12 = scmp.ge.s32.totalorder %s11, 4
      %s21 = sphi 0, %s23
      %s24 = sphi 0, %s21
      %s25 = sphi 0, %s24
      %s41 = sphi 0, %s25
      %s45 = sphi 0, %s45
      %s47 = sphi 0, %s45
      %s48 = sphi 0, %s47
      %s62 = sphi 0, %s48
      %s66 = sphi 0, %s66
      %s68 = sphi 0, %s66
      %s69 = sphi 0, %s68
      %s83 = sphi 0, %s69
      %s87 = sphi 0, %s87
      %s89 = sphi 0, %s87
      %s90 = sphi 0, %s89
      %s104 = sphi 0, %s90
      %s110 = sphi 0, %s112
      %s113 = sphi 0, %s110
      %s114 = sphi 0, %s113
      %s130 = sphi 0, %s114
    $region4: #{encoder_forward.6} parent=1 // loop_header_branch
      %14 = sbr.rel (%p12) target = $region8
    $region5: #{encoder_forward.6} parent=1 // loop_body
      %s16 = ssub.s32 %s11, 1
      %s17 = ssub.s32 %s11, 2
      %s18 = sadd.s32 %s11, 1
      %s19 = ssub.s32 %s11, %s18
      %p20 = scmp.eq.s32.totalorder %s19, 0
      %s22 = sadd.s32 %s21, 1
      %s23 = scalar_select %p20, %s21, %s22
      %p26 = pneg %p20
      %p27 = scmp.eq.s32.totalorder %s11, 1
      %p28 = por %p26, %p27
      %p29 = scmp.ne.s32.totalorder %s21, %s24
      %p30 = scmp.eq.s32.totalorder %s11, 0
      %p31 = por %p29, %p30
      %p32 = scmp.ne.s32.totalorder %s21, %s24
      %p33 = scmp.eq.s32.totalorder %s16, 1
      %p34 = por %p32, %p33
      %p35 = scmp.ne.s32.totalorder %s24, %s25
      %p36 = scmp.eq.s32.totalorder %s16, 0
      %p37 = por %p35, %p36
      %p38 = scmp.ne.s32.totalorder %s24, %s25
      %p39 = scmp.eq.s32.totalorder %s17, 1
      %p40 = por %p38, %p39
      %p42 = scmp.ne.s32.totalorder %s25, %s41
      %p43 = scmp.eq.s32.totalorder %s17, 0
      %p44 = por %p42, %p43
      %s46 = sadd.s32 %s45, 1
      %p49 = scmp.eq.s32.totalorder %s11, 1
      %p50 = scmp.ne.s32.totalorder %s45, %s47
      %p51 = scmp.eq.s32.totalorder %s11, 0
      %p52 = por %p50, %p51
      %p53 = scmp.ne.s32.totalorder %s45, %s47
      %p54 = scmp.eq.s32.totalorder %s16, 1
      %p55 = por %p53, %p54
      %p56 = scmp.ne.s32.totalorder %s47, %s48
      %p57 = scmp.eq.s32.totalorder %s16, 0
      %p58 = por %p56, %p57
      %p59 = scmp.ne.s32.totalorder %s47, %s48
      %p60 = scmp.eq.s32.totalorder %s17, 1
      %p61 = por %p59, %p60
      %p63 = scmp.ne.s32.totalorder %s48, %s62
      %p64 = scmp.eq.s32.totalorder %s17, 0
      %p65 = por %p63, %p64
      %s67 = sadd.s32 %s66, 1
      %p70 = scmp.eq.s32.totalorder %s11, 1
      %p71 = scmp.ne.s32.totalorder %s66, %s68
      %p72 = scmp.eq.s32.totalorder %s11, 0
      %p73 = por %p71, %p72
      %p74 = scmp.ne.s32.totalorder %s66, %s68
      %p75 = scmp.eq.s32.totalorder %s16, 1
      %p76 = por %p74, %p75
      %p77 = scmp.ne.s32.totalorder %s68, %s69
      %p78 = scmp.eq.s32.totalorder %s16, 0
      %p79 = por %p77, %p78
      %p80 = scmp.ne.s32.totalorder %s68, %s69
      %p81 = scmp.eq.s32.totalorder %s17, 1
      %p82 = por %p80, %p81
      %p84 = scmp.ne.s32.totalorder %s69, %s83
      %p85 = scmp.eq.s32.totalorder %s17, 0
      %p86 = por %p84, %p85
      %s88 = sadd.s32 %s87, 1
      %p91 = scmp.eq.s32.totalorder %s11, 1
      %p92 = scmp.ne.s32.totalorder %s87, %s89
      %p93 = scmp.eq.s32.totalorder %s11, 0
      %p94 = por %p92, %p93
      %p95 = scmp.ne.s32.totalorder %s87, %s89
      %p96 = scmp.eq.s32.totalorder %s16, 1
      %p97 = por %p95, %p96
      %p98 = scmp.ne.s32.totalorder %s89, %s90
      %p99 = scmp.eq.s32.totalorder %s16, 0
      %p100 = por %p98, %p99
      %p101 = scmp.ne.s32.totalorder %s89, %s90
      %p102 = scmp.eq.s32.totalorder %s17, 1
      %p103 = por %p101, %p102
      %p105 = scmp.ne.s32.totalorder %s90, %s104
      %p106 = scmp.eq.s32.totalorder %s17, 0
      %p107 = por %p105, %p106
      %s108 = ssub.s32 %s11, %s18
      %p109 = scmp.eq.s32.totalorder %s108, 0
      %s111 = sadd.s32 %s110, 1
      %s112 = scalar_select %p109, %s110, %s111
      %p115 = pneg %p109
      %p116 = scmp.eq.s32.totalorder %s11, 1
      %p117 = por %p115, %p116
      %p118 = scmp.ne.s32.totalorder %s110, %s113
      %p119 = scmp.eq.s32.totalorder %s11, 0
      %p120 = por %p118, %p119
      %p121 = scmp.ne.s32.totalorder %s110, %s113
      %p122 = scmp.eq.s32.totalorder %s16, 1
      %p123 = por %p121, %p122
      %p124 = scmp.ne.s32.totalorder %s113, %s114
      %p125 = scmp.eq.s32.totalorder %s16, 0
      %p126 = por %p124, %p125
      %p127 = scmp.ne.s32.totalorder %s113, %s114
      %p128 = scmp.eq.s32.totalorder %s17, 1
      %p129 = por %p127, %p128
      %p131 = scmp.ne.s32.totalorder %s114, %s130
      %p132 = scmp.eq.s32.totalorder %s17, 0
      %p133 = por %p131, %p132
      %p134 = scmp.le.s32.totalorder 1, %s11
      %p135 = scmp.lt.s32.totalorder %s11, 3
      %p136 = pnand %p134, %p135
      %p137 = pneg %p136
      // Predicated region
      $region9: #{encoder_forward.6} parent=5 // pred_check
        _
      $region10: #{encoder_forward.6} parent=5 // pred_check_branch
        %139 = sbr.rel (%p136) target = $region12
      $region11: #{encoder_forward.6} parent=5 // pred_region
        %s140 = ssub.s32 %s11, 1
        // Predicated region
        $region13: #{encoder_forward.6} parent=11 // pred_check
          %p141 = pneg %p58
        $region14: #{encoder_forward.6} parent=11 // pred_check_branch
          %143 = sbr.rel (%p141) target = $region16
        $region15: #{encoder_forward.6} parent=11 // pred_region
          _
        $region16: #{encoder_forward.6} parent=11 // pred_fallthru
          _
        // Predicated region
        $region17: #{encoder_forward.6} parent=11 // pred_check
          %p144 = pneg %p79
        $region18: #{encoder_forward.6} parent=11 // pred_check_branch
          %146 = sbr.rel (%p144) target = $region20
        $region19: #{encoder_forward.6} parent=11 // pred_region
          _
        $region20: #{encoder_forward.6} parent=11 // pred_fallthru
          _
        // Predicated region
        $region21: #{encoder_forward.6} parent=11 // pred_check
          %p147 = pneg %p100
        $region22: #{encoder_forward.6} parent=11 // pred_check_branch
          %149 = sbr.rel (%p147) target = $region24
        $region23: #{encoder_forward.6} parent=11 // pred_region
          %s151 = ssub.s32 8192, 8192
          %152 = vsyncadd [#allocation3], %s151
          %s153 = sshll.u32 [#allocation2], 4
          %s154 = int_to_ptr.vmem [resolvable:$true] %s153
          %159 = dma.hbm_to_vmem [thread:$0]  %s3, 8192, %s154, [#allocation3], 128, 128, 8
        $region24: #{encoder_forward.6} parent=11 // pred_fallthru
          _
      $region12: #{encoder_forward.6} parent=5 // pred_fallthru
        _
      %p160 = scmp.lt.s32.totalorder %s11, 2
      // Predicated region
      $region25: #{encoder_forward.6} parent=5 // pred_check
        %p161 = pneg %p160
      $region26: #{encoder_forward.6} parent=5 // pred_check_branch
        %163 = sbr.rel (%p161) target = $region28
      $region27: #{encoder_forward.6} parent=5 // pred_region
        // Predicated region
        $region29: #{encoder_forward.6} parent=27 // pred_check
          %p164 = pneg %p31
        $region30: #{encoder_forward.6} parent=27 // pred_check_branch
          %166 = sbr.rel (%p164) target = $region32
        $region31: #{encoder_forward.6} parent=27 // pred_region
          %p167 = scmp.lt.s32.totalorder %s11, 1
          %s168 = scalar_select %p167, %s11, 1
          %s169 = smul.addr %s168, 2
          %s170 = smul.addr %s169, 4
          %s171 = scalar_lea.vmem %s0, %s170
        $region32: #{encoder_forward.6} parent=27 // pred_fallthru
          _
      $region28: #{encoder_forward.6} parent=5 // pred_fallthru
        _
      %p172 = scmp.le.s32.totalorder 1, %s11
      %p173 = scmp.lt.s32.totalorder %s11, 3
      %p174 = pnand %p172, %p173
      %p175 = pneg %p174
      // Predicated region
      $region33: #{encoder_forward.6} parent=5 // pred_check
        _
      $region34: #{encoder_forward.6} parent=5 // pred_check_branch
        %177 = sbr.rel (%p174) target = $region36
      $region35: #{encoder_forward.6} parent=5 // pred_region
        %s178 = ssub.s32 %s11, 1
        // Predicated region
        $region37: #{encoder_forward.6} parent=35 // pred_check
          %p179 = pneg %p100
        $region38: #{encoder_forward.6} parent=35 // pred_check_branch
          %181 = sbr.rel (%p179) target = $region40
        $region39: #{encoder_forward.6} parent=35 // pred_region
          %182 = dma.done [#allocation3], 8192
        $region40: #{encoder_forward.6} parent=35 // pred_fallthru
          _
        %p183 = scmp.lt.s32.totalorder %s16, 1
        %s184 = scalar_select %p183, %s16, 1
        %s185 = smul.addr %s184, 2
        %s186 = smul.addr %s185, 4
        %s187 = scalar_lea.vmem %s0, %s186
        %p188 = pneg %p37
        %p189 = pneg %p34
        %p190 = pneg %p58
        %p191 = pneg %p55
        %p192 = pneg %p79
        %p193 = pneg %p76
        %p194 = pneg %p100
        %p195 = pneg %p97
        %p196 = pneg %p126
        %p197 = pneg %p123
        %p198 = scmp.lt.s32.totalorder %s16, 1
        %s199 = scalar_select %p198, %s16, 1
        %s200 = smul.addr %s199, 2
        %s201 = smul.addr %s200, 4
        %s202 = scalar_lea.vmem %s4, %s201
        %p203 = scmp.lt.s32.totalorder %s16, 1
        %s204 = scalar_select %p203, %s16, 1
        %s205 = smul.addr %s204, 2
        %s206 = smul.addr %s205, 4
        %s207 = scalar_lea.vmem %s0, %s206
        %p208 = scmp.lt.s32.totalorder %s16, 1
        %s209 = scalar_select %p208, %s16, 1
        %s210 = smul.addr %s209, 2
        %s211 = smul.addr %s210, 4
        %s212 = scalar_lea.vmem %s4, %s211
        %v213 = vld [vmem:[%s207] sm:$0xff]
        %v214 = vunpack.c.l.bf16 %v213
        %v215 = vunpack.c.h.bf16 %v213
        %v216 = vld [vmem:[%s1] sm:$0x3]
        %v217 = vunpack.c.l.bf16 %v216
        %v218 = vmul.f32 %v214, %v214
        %v219 = vmul.f32 %v215, %v215
        %v220 = vadd.f32 %v218, %v219
        %221 = vadd.xlane.f32.xlu0 %v220
        %v222 = vpop.xlane.xlu0 %221
        %v223 = vrcp.pop 256.0
        %v224 = vmul.f32 %v222, %v223
        %v225 = vadd.f32 %v224, 1e-06
        %v226 = vrsqrt.pop %v225
        %v227 = vmul.f32 %v214, %v226
        %v228 = vmul.f32 %v215, %v226
        %v230 = vlaneseq
        %v231 = vshrl.u32 %v230, 7
        %v232 = vsub.s32 0, %v231
        %v233 = vrot.slane %v217, %v232
        %v234 = vlaneseq
        %v235 = vshrl.u32 %v234, 7
        %v236 = vsub.s32 2, %v235
        %v237 = vrot.slane %v217, %v236
        %v240 = vlaneseq
        %v241 = vshrl.u32 %v240, 7
        %v242 = vsub.s32 0, %v241
        %v243 = vrot.slane %v233, %v242
        %v244 = vlaneseq
        %v245 = vshrl.u32 %v244, 7
        %v246 = vsub.s32 0, %v245
        %v247 = vrot.slane %v237, %v246
        %v248 = vmul.f32 %v227, %v243
        %v249 = vmul.f32 %v228, %v247
        %v250 = vpack.c.bf16 %v248, %v248
        %v251 = vpack.c.bf16 %v249, %v249
        %v252 = vld [vmem:[%s2] sm:$0xff]
        %v253 = vld [vmem:[%s2 + $0x8] sm:$0xff]
        %v254 = vld [vmem:[%s2 + $0x10] sm:$0xff]
        %v255 = vld [vmem:[%s2 + $0x18] sm:$0xff]
        %v256 = vld [vmem:[%s2 + $0x20] sm:$0xff]
        %v257 = vld [vmem:[%s2 + $0x28] sm:$0xff]
        %v258 = vld [vmem:[%s2 + $0x30] sm:$0xff]
        %v259 = vld [vmem:[%s2 + $0x38] sm:$0xff]
        %v260 = vld [vmem:[%s2 + $0x40] sm:$0xff]
        %v261 = vld [vmem:[%s2 + $0x48] sm:$0xff]
        %v262 = vld [vmem:[%s2 + $0x50] sm:$0xff]
        %v263 = vld [vmem:[%s2 + $0x58] sm:$0xff]
        %v264 = vld [vmem:[%s2 + $0x60] sm:$0xff]
        %v265 = vld [vmem:[%s2 + $0x68] sm:$0xff]
        %v266 = vld [vmem:[%s2 + $0x70] sm:$0xff]
        %v267 = vld [vmem:[%s2 + $0x78] sm:$0xff]
        %v268 = vld [vmem:[%s2 + $0x80] sm:$0xff]
        %v269 = vld [vmem:[%s2 + $0x88] sm:$0xff]
        %v270 = vld [vmem:[%s2 + $0x90] sm:$0xff]
        %v271 = vld [vmem:[%s2 + $0x98] sm:$0xff]
        %v272 = vld [vmem:[%s2 + $0xa0] sm:$0xff]
        %v273 = vld [vmem:[%s2 + $0xa8] sm:$0xff]
        %v274 = vld [vmem:[%s2 + $0xb0] sm:$0xff]
        %v275 = vld [vmem:[%s2 + $0xb8] sm:$0xff]
        %v276 = vld [vmem:[%s2 + $0xc0] sm:$0xff]
        %v277 = vld [vmem:[%s2 + $0xc8] sm:$0xff]
        %v278 = vld [vmem:[%s2 + $0xd0] sm:$0xff]
        %v279 = vld [vmem:[%s2 + $0xd8] sm:$0xff]
        %v280 = vld [vmem:[%s2 + $0xe0] sm:$0xff]
        %v281 = vld [vmem:[%s2 + $0xe8] sm:$0xff]
        %v282 = vld [vmem:[%s2 + $0xf0] sm:$0xff]
        %v283 = vld [vmem:[%s2 + $0xf8] sm:$0xff]
        %v284 = vld [vmem:[%s2 + $0x100] sm:$0xff]
        %v285 = vld [vmem:[%s2 + $0x108] sm:$0xff]
        %v286 = vld [vmem:[%s2 + $0x110] sm:$0xff]
        %v287 = vld [vmem:[%s2 + $0x118] sm:$0xff]
        %v288 = vld [vmem:[%s2 + $0x120] sm:$0xff]
        %v289 = vld [vmem:[%s2 + $0x128] sm:$0xff]
        %v290 = vld [vmem:[%s2 + $0x130] sm:$0xff]
        %v291 = vld [vmem:[%s2 + $0x138] sm:$0xff]
        %v292 = vld [vmem:[%s2 + $0x140] sm:$0xff]
        %v293 = vld [vmem:[%s2 + $0x148] sm:$0xff]
        %v294 = vld [vmem:[%s2 + $0x150] sm:$0xff]
        %v295 = vld [vmem:[%s2 + $0x158] sm:$0xff]
        %v296 = vld [vmem:[%s2 + $0x160] sm:$0xff]
        %v297 = vld [vmem:[%s2 + $0x168] sm:$0xff]
        %v298 = vld [vmem:[%s2 + $0x170] sm:$0xff]
        %v299 = vld [vmem:[%s2 + $0x178] sm:$0xff]
        %v300 = vld [vmem:[%s2 + $0x180] sm:$0xff]
        %v301 = vld [vmem:[%s2 + $0x188] sm:$0xff]
        %v302 = vld [vmem:[%s2 + $0x190] sm:$0xff]
        %v303 = vld [vmem:[%s2 + $0x198] sm:$0xff]
        %v304 = vld [vmem:[%s2 + $0x1a0] sm:$0xff]
        %v305 = vld [vmem:[%s2 + $0x1a8] sm:$0xff]
        %v306 = vld [vmem:[%s2 + $0x1b0] sm:$0xff]
        %v307 = vld [vmem:[%s2 + $0x1b8] sm:$0xff]
        %v308 = vld [vmem:[%s2 + $0x1c0] sm:$0xff]
        %v309 = vld [vmem:[%s2 + $0x1c8] sm:$0xff]
        %v310 = vld [vmem:[%s2 + $0x1d0] sm:$0xff]
        %v311 = vld [vmem:[%s2 + $0x1d8] sm:$0xff]
        %v312 = vld [vmem:[%s2 + $0x1e0] sm:$0xff]
        %v313 = vld [vmem:[%s2 + $0x1e8] sm:$0xff]
        %v314 = vld [vmem:[%s2 + $0x1f0] sm:$0xff]
        %v315 = vld [vmem:[%s2 + $0x1f8] sm:$0xff]
        %v316 = vld [vmem:[%s2 + $0x200] sm:$0xff]
        %v317 = vld [vmem:[%s2 + $0x208] sm:$0xff]
        %v318 = vld [vmem:[%s2 + $0x210] sm:$0xff]
        %v319 = vld [vmem:[%s2 + $0x218] sm:$0xff]
        %v320 = vld [vmem:[%s2 + $0x220] sm:$0xff]
        %v321 = vld [vmem:[%s2 + $0x228] sm:$0xff]
        %v322 = vld [vmem:[%s2 + $0x230] sm:$0xff]
        %v323 = vld [vmem:[%s2 + $0x238] sm:$0xff]
        %v324 = vld [vmem:[%s2 + $0x240] sm:$0xff]
        %v325 = vld [vmem:[%s2 + $0x248] sm:$0xff]
        %v326 = vld [vmem:[%s2 + $0x250] sm:$0xff]
        %v327 = vld [vmem:[%s2 + $0x258] sm:$0xff]
        %v328 = vld [vmem:[%s2 + $0x260] sm:$0xff]
        %v329 = vld [vmem:[%s2 + $0x268] sm:$0xff]
        %v330 = vld [vmem:[%s2 + $0x270] sm:$0xff]
        %v331 = vld [vmem:[%s2 + $0x278] sm:$0xff]
        %v332 = vld [vmem:[%s2 + $0x280] sm:$0xff]
        %v333 = vld [vmem:[%s2 + $0x288] sm:$0xff]
        %v334 = vld [vmem:[%s2 + $0x290] sm:$0xff]
        %v335 = vld [vmem:[%s2 + $0x298] sm:$0xff]
        %v336 = vld [vmem:[%s2 + $0x2a0] sm:$0xff]
        %v337 = vld [vmem:[%s2 + $0x2a8] sm:$0xff]
        %v338 = vld [vmem:[%s2 + $0x2b0] sm:$0xff]
        %v339 = vld [vmem:[%s2 + $0x2b8] sm:$0xff]
        %v340 = vld [vmem:[%s2 + $0x2c0] sm:$0xff]
        %v341 = vld [vmem:[%s2 + $0x2c8] sm:$0xff]
        %v342 = vld [vmem:[%s2 + $0x2d0] sm:$0xff]
        %v343 = vld [vmem:[%s2 + $0x2d8] sm:$0xff]
        %v344 = vld [vmem:[%s2 + $0x2e0] sm:$0xff]
        %v345 = vld [vmem:[%s2 + $0x2e8] sm:$0xff]
        %v346 = vld [vmem:[%s2 + $0x2f0] sm:$0xff]
        %v347 = vld [vmem:[%s2 + $0x2f8] sm:$0xff]
        %v348 = vld [vmem:[%s2 + $0x300] sm:$0xff]
        %v349 = vld [vmem:[%s2 + $0x308] sm:$0xff]
        %v350 = vld [vmem:[%s2 + $0x310] sm:$0xff]
        %v351 = vld [vmem:[%s2 + $0x318] sm:$0xff]
        %v352 = vld [vmem:[%s2 + $0x320] sm:$0xff]
        %v353 = vld [vmem:[%s2 + $0x328] sm:$0xff]
        %v354 = vld [vmem:[%s2 + $0x330] sm:$0xff]
        %v355 = vld [vmem:[%s2 + $0x338] sm:$0xff]
        %v356 = vld [vmem:[%s2 + $0x340] sm:$0xff]
        %v357 = vld [vmem:[%s2 + $0x348] sm:$0xff]
        %v358 = vld [vmem:[%s2 + $0x350] sm:$0xff]
        %v359 = vld [vmem:[%s2 + $0x358] sm:$0xff]
        %v360 = vld [vmem:[%s2 + $0x360] sm:$0xff]
        %v361 = vld [vmem:[%s2 + $0x368] sm:$0xff]
        %v362 = vld [vmem:[%s2 + $0x370] sm:$0xff]
        %v363 = vld [vmem:[%s2 + $0x378] sm:$0xff]
        %v364 = vld [vmem:[%s2 + $0x380] sm:$0xff]
        %v365 = vld [vmem:[%s2 + $0x388] sm:$0xff]
        %v366 = vld [vmem:[%s2 + $0x390] sm:$0xff]
        %v367 = vld [vmem:[%s2 + $0x398] sm:$0xff]
        %v368 = vld [vmem:[%s2 + $0x3a0] sm:$0xff]
        %v369 = vld [vmem:[%s2 + $0x3a8] sm:$0xff]
        %v370 = vld [vmem:[%s2 + $0x3b0] sm:$0xff]
        %v371 = vld [vmem:[%s2 + $0x3b8] sm:$0xff]
        %v372 = vld [vmem:[%s2 + $0x3c0] sm:$0xff]
        %v373 = vld [vmem:[%s2 + $0x3c8] sm:$0xff]
        %v374 = vld [vmem:[%s2 + $0x3d0] sm:$0xff]
        %v375 = vld [vmem:[%s2 + $0x3d8] sm:$0xff]
        %v376 = vld [vmem:[%s2 + $0x3e0] sm:$0xff]
        %v377 = vld [vmem:[%s2 + $0x3e8] sm:$0xff]
        %v378 = vld [vmem:[%s2 + $0x3f0] sm:$0xff]
        %v379 = vld [vmem:[%s2 + $0x3f8] sm:$0xff]
        %v508 = vunpack.c.l.b16 %v252
        %v509 = vunpack.c.h.b16 %v252
        %v510 = vunpack.c.l.b16 %v253
        %v511 = vunpack.c.h.b16 %v253
        %v512 = vunpack.c.l.b16 %v254
        %v513 = vunpack.c.h.b16 %v254
        %v514 = vunpack.c.l.b16 %v255
        %v515 = vunpack.c.h.b16 %v255
        %v516 = vunpack.c.l.b16 %v256
        %v517 = vunpack.c.h.b16 %v256
        %v518 = vunpack.c.l.b16 %v257
        %v519 = vunpack.c.h.b16 %v257
        %v520 = vunpack.c.l.b16 %v258
        %v521 = vunpack.c.h.b16 %v258
        %v522 = vunpack.c.l.b16 %v259
        %v523 = vunpack.c.h.b16 %v259
        %v524 = vunpack.c.l.b16 %v260
        %v525 = vunpack.c.h.b16 %v260
        %v526 = vunpack.c.l.b16 %v261
        %v527 = vunpack.c.h.b16 %v261
        %v528 = vunpack.c.l.b16 %v262
        %v529 = vunpack.c.h.b16 %v262
        %v530 = vunpack.c.l.b16 %v263
        %v531 = vunpack.c.h.b16 %v263
        %v532 = vunpack.c.l.b16 %v264
        %v533 = vunpack.c.h.b16 %v264
        %v534 = vunpack.c.l.b16 %v265
        %v535 = vunpack.c.h.b16 %v265
        %v536 = vunpack.c.l.b16 %v266
        %v537 = vunpack.c.h.b16 %v266
        %v538 = vunpack.c.l.b16 %v267
        %v539 = vunpack.c.h.b16 %v267
        %v540 = vunpack.c.l.b16 %v268
        %v541 = vunpack.c.h.b16 %v268
        %v542 = vunpack.c.l.b16 %v269
        %v543 = vunpack.c.h.b16 %v269
        %v544 = vunpack.c.l.b16 %v270
        %v545 = vunpack.c.h.b16 %v270
        %v546 = vunpack.c.l.b16 %v271
        %v547 = vunpack.c.h.b16 %v271
        %v548 = vunpack.c.l.b16 %v272
        %v549 = vunpack.c.h.b16 %v272
        %v550 = vunpack.c.l.b16 %v273
        %v551 = vunpack.c.h.b16 %v273
        %v552 = vunpack.c.l.b16 %v274
        %v553 = vunpack.c.h.b16 %v274
        %v554 = vunpack.c.l.b16 %v275
        %v555 = vunpack.c.h.b16 %v275
        %v556 = vunpack.c.l.b16 %v276
        %v557 = vunpack.c.h.b16 %v276
        %v558 = vunpack.c.l.b16 %v277
        %v559 = vunpack.c.h.b16 %v277
        %v560 = vunpack.c.l.b16 %v278
        %v561 = vunpack.c.h.b16 %v278
        %v562 = vunpack.c.l.b16 %v279
        %v563 = vunpack.c.h.b16 %v279
        %v564 = vunpack.c.l.b16 %v280
        %v565 = vunpack.c.h.b16 %v280
        %v566 = vunpack.c.l.b16 %v281
        %v567 = vunpack.c.h.b16 %v281
        %v568 = vunpack.c.l.b16 %v282
        %v569 = vunpack.c.h.b16 %v282
        %v570 = vunpack.c.l.b16 %v283
        %v571 = vunpack.c.h.b16 %v283
        %v572 = vunpack.c.l.b16 %v284
        %v573 = vunpack.c.h.b16 %v284
        %v574 = vunpack.c.l.b16 %v285
        %v575 = vunpack.c.h.b16 %v285
        %v576 = vunpack.c.l.b16 %v286
        %v577 = vunpack.c.h.b16 %v286
        %v578 = vunpack.c.l.b16 %v287
        %v579 = vunpack.c.h.b16 %v287
        %v580 = vunpack.c.l.b16 %v288
        %v581 = vunpack.c.h.b16 %v288
        %v582 = vunpack.c.l.b16 %v289
        %v583 = vunpack.c.h.b16 %v289
        %v584 = vunpack.c.l.b16 %v290
        %v585 = vunpack.c.h.b16 %v290
        %v586 = vunpack.c.l.b16 %v291
        %v587 = vunpack.c.h.b16 %v291
        %v588 = vunpack.c.l.b16 %v292
        %v589 = vunpack.c.h.b16 %v292
        %v590 = vunpack.c.l.b16 %v293
        %v591 = vunpack.c.h.b16 %v293
        %v592 = vunpack.c.l.b16 %v294
        %v593 = vunpack.c.h.b16 %v294
        %v594 = vunpack.c.l.b16 %v295
        %v595 = vunpack.c.h.b16 %v295
        %v596 = vunpack.c.l.b16 %v296
        %v597 = vunpack.c.h.b16 %v296
        %v598 = vunpack.c.l.b16 %v297
        %v599 = vunpack.c.h.b16 %v297
        %v600 = vunpack.c.l.b16 %v298
        %v601 = vunpack.c.h.b16 %v298
        %v602 = vunpack.c.l.b16 %v299
        %v603 = vunpack.c.h.b16 %v299
        %v604 = vunpack.c.l.b16 %v300
        %v605 = vunpack.c.h.b16 %v300
        %v606 = vunpack.c.l.b16 %v301
        %v607 = vunpack.c.h.b16 %v301
        %v608 = vunpack.c.l.b16 %v302
        %v609 = vunpack.c.h.b16 %v302
        %v610 = vunpack.c.l.b16 %v303
        %v611 = vunpack.c.h.b16 %v303
        %v612 = vunpack.c.l.b16 %v304
        %v613 = vunpack.c.h.b16 %v304
        %v614 = vunpack.c.l.b16 %v305
        %v615 = vunpack.c.h.b16 %v305
        %v616 = vunpack.c.l.b16 %v306
        %v617 = vunpack.c.h.b16 %v306
        %v618 = vunpack.c.l.b16 %v307
        %v619 = vunpack.c.h.b16 %v307
        %v620 = vunpack.c.l.b16 %v308
        %v621 = vunpack.c.h.b16 %v308
        %v622 = vunpack.c.l.b16 %v309
        %v623 = vunpack.c.h.b16 %v309
        %v624 = vunpack.c.l.b16 %v310
        %v625 = vunpack.c.h.b16 %v310
        %v626 = vunpack.c.l.b16 %v311
        %v627 = vunpack.c.h.b16 %v311
        %v628 = vunpack.c.l.b16 %v312
        %v629 = vunpack.c.h.b16 %v312
        %v630 = vunpack.c.l.b16 %v313
        %v631 = vunpack.c.h.b16 %v313
        %v632 = vunpack.c.l.b16 %v314
        %v633 = vunpack.c.h.b16 %v314
        %v634 = vunpack.c.l.b16 %v315
        %v635 = vunpack.c.h.b16 %v315
        %v636 = vunpack.c.l.b16 %v316
        %v637 = vunpack.c.h.b16 %v316
        %v638 = vunpack.c.l.b16 %v317
        %v639 = vunpack.c.h.b16 %v317
        %v640 = vunpack.c.l.b16 %v318
        %v641 = vunpack.c.h.b16 %v318
        %v642 = vunpack.c.l.b16 %v319
        %v643 = vunpack.c.h.b16 %v319
        %v644 = vunpack.c.l.b16 %v320
        %v645 = vunpack.c.h.b16 %v320
        %v646 = vunpack.c.l.b16 %v321
        %v647 = vunpack.c.h.b16 %v321
        %v648 = vunpack.c.l.b16 %v322
        %v649 = vunpack.c.h.b16 %v322
        %v650 = vunpack.c.l.b16 %v323
        %v651 = vunpack.c.h.b16 %v323
        %v652 = vunpack.c.l.b16 %v324
        %v653 = vunpack.c.h.b16 %v324
        %v654 = vunpack.c.l.b16 %v325
        %v655 = vunpack.c.h.b16 %v325
        %v656 = vunpack.c.l.b16 %v326
        %v657 = vunpack.c.h.b16 %v326
        %v658 = vunpack.c.l.b16 %v327
        %v659 = vunpack.c.h.b16 %v327
        %v660 = vunpack.c.l.b16 %v328
        %v661 = vunpack.c.h.b16 %v328
        %v662 = vunpack.c.l.b16 %v329
        %v663 = vunpack.c.h.b16 %v329
        %v664 = vunpack.c.l.b16 %v330
        %v665 = vunpack.c.h.b16 %v330
        %v666 = vunpack.c.l.b16 %v331
        %v667 = vunpack.c.h.b16 %v331
        %v668 = vunpack.c.l.b16 %v332
        %v669 = vunpack.c.h.b16 %v332
        %v670 = vunpack.c.l.b16 %v333
        %v671 = vunpack.c.h.b16 %v333
        %v672 = vunpack.c.l.b16 %v334
        %v673 = vunpack.c.h.b16 %v334
        %v674 = vunpack.c.l.b16 %v335
        %v675 = vunpack.c.h.b16 %v335
        %v676 = vunpack.c.l.b16 %v336
        %v677 = vunpack.c.h.b16 %v336
        %v678 = vunpack.c.l.b16 %v337
        %v679 = vunpack.c.h.b16 %v337
        %v680 = vunpack.c.l.b16 %v338
        %v681 = vunpack.c.h.b16 %v338
        %v682 = vunpack.c.l.b16 %v339
        %v683 = vunpack.c.h.b16 %v339
        %v684 = vunpack.c.l.b16 %v340
        %v685 = vunpack.c.h.b16 %v340
        %v686 = vunpack.c.l.b16 %v341
        %v687 = vunpack.c.h.b16 %v341
        %v688 = vunpack.c.l.b16 %v342
        %v689 = vunpack.c.h.b16 %v342
        %v690 = vunpack.c.l.b16 %v343
        %v691 = vunpack.c.h.b16 %v343
        %v692 = vunpack.c.l.b16 %v344
        %v693 = vunpack.c.h.b16 %v344
        %v694 = vunpack.c.l.b16 %v345
        %v695 = vunpack.c.h.b16 %v345
        %v696 = vunpack.c.l.b16 %v346
        %v697 = vunpack.c.h.b16 %v346
        %v698 = vunpack.c.l.b16 %v347
        %v699 = vunpack.c.h.b16 %v347
        %v700 = vunpack.c.l.b16 %v348
        %v701 = vunpack.c.h.b16 %v348
        %v702 = vunpack.c.l.b16 %v349
        %v703 = vunpack.c.h.b16 %v349
        %v704 = vunpack.c.l.b16 %v350
        %v705 = vunpack.c.h.b16 %v350
        %v706 = vunpack.c.l.b16 %v351
        %v707 = vunpack.c.h.b16 %v351
        %v708 = vunpack.c.l.b16 %v352
        %v709 = vunpack.c.h.b16 %v352
        %v710 = vunpack.c.l.b16 %v353
        %v711 = vunpack.c.h.b16 %v353
        %v712 = vunpack.c.l.b16 %v354
        %v713 = vunpack.c.h.b16 %v354
        %v714 = vunpack.c.l.b16 %v355
        %v715 = vunpack.c.h.b16 %v355
        %v716 = vunpack.c.l.b16 %v356
        %v717 = vunpack.c.h.b16 %v356
        %v718 = vunpack.c.l.b16 %v357
        %v719 = vunpack.c.h.b16 %v357
        %v720 = vunpack.c.l.b16 %v358
        %v721 = vunpack.c.h.b16 %v358
        %v722 = vunpack.c.l.b16 %v359
        %v723 = vunpack.c.h.b16 %v359
        %v724 = vunpack.c.l.b16 %v360
        %v725 = vunpack.c.h.b16 %v360
        %v726 = vunpack.c.l.b16 %v361
        %v727 = vunpack.c.h.b16 %v361
        %v728 = vunpack.c.l.b16 %v362
        %v729 = vunpack.c.h.b16 %v362
        %v730 = vunpack.c.l.b16 %v363
        %v731 = vunpack.c.h.b16 %v363
        %v732 = vunpack.c.l.b16 %v364
        %v733 = vunpack.c.h.b16 %v364
        %v734 = vunpack.c.l.b16 %v365
        %v735 = vunpack.c.h.b16 %v365
        %v736 = vunpack.c.l.b16 %v366
        %v737 = vunpack.c.h.b16 %v366
        %v738 = vunpack.c.l.b16 %v367
        %v739 = vunpack.c.h.b16 %v367
        %v740 = vunpack.c.l.b16 %v368
        %v741 = vunpack.c.h.b16 %v368
        %v742 = vunpack.c.l.b16 %v369
        %v743 = vunpack.c.h.b16 %v369
        %v744 = vunpack.c.l.b16 %v370
        %v745 = vunpack.c.h.b16 %v370
        %v746 = vunpack.c.l.b16 %v371
        %v747 = vunpack.c.h.b16 %v371
        %v748 = vunpack.c.l.b16 %v372
        %v749 = vunpack.c.h.b16 %v372
        %v750 = vunpack.c.l.b16 %v373
        %v751 = vunpack.c.h.b16 %v373
        %v752 = vunpack.c.l.b16 %v374
        %v753 = vunpack.c.h.b16 %v374
        %v754 = vunpack.c.l.b16 %v375
        %v755 = vunpack.c.h.b16 %v375
        %v756 = vunpack.c.l.b16 %v376
        %v757 = vunpack.c.h.b16 %v376
        %v758 = vunpack.c.l.b16 %v377
        %v759 = vunpack.c.h.b16 %v377
        %v760 = vunpack.c.l.b16 %v378
        %v761 = vunpack.c.h.b16 %v378
        %v762 = vunpack.c.l.b16 %v379
        %v763 = vunpack.c.h.b16 %v379
        %v764 = vpack.c.b16 %v516, %v508
        %v765 = vpack.c.b16 %v517, %v509
        %v766 = vpack.c.b16 %v518, %v510
        %v767 = vpack.c.b16 %v519, %v511
        %v768 = vpack.c.b16 %v520, %v512
        %v769 = vpack.c.b16 %v521, %v513
        %v770 = vpack.c.b16 %v522, %v514
        %v771 = vpack.c.b16 %v523, %v515
        %v772 = vpack.c.b16 %v532, %v524
        %v773 = vpack.c.b16 %v533, %v525
        %v774 = vpack.c.b16 %v534, %v526
        %v775 = vpack.c.b16 %v535, %v527
        %v776 = vpack.c.b16 %v536, %v528
        %v777 = vpack.c.b16 %v537, %v529
        %v778 = vpack.c.b16 %v538, %v530
        %v779 = vpack.c.b16 %v539, %v531
        %v780 = vpack.c.b16 %v548, %v540
        %v781 = vpack.c.b16 %v549, %v541
        %v782 = vpack.c.b16 %v550, %v542
        %v783 = vpack.c.b16 %v551, %v543
        %v784 = vpack.c.b16 %v552, %v544
        %v785 = vpack.c.b16 %v553, %v545
        %v786 = vpack.c.b16 %v554, %v546
        %v787 = vpack.c.b16 %v555, %v547
        %v788 = vpack.c.b16 %v564, %v556
        %v789 = vpack.c.b16 %v565, %v557
        %v790 = vpack.c.b16 %v566, %v558
        %v791 = vpack.c.b16 %v567, %v559
        %v792 = vpack.c.b16 %v568, %v560
        %v793 = vpack.c.b16 %v569, %v561
        %v794 = vpack.c.b16 %v570, %v562
        %v795 = vpack.c.b16 %v571, %v563
        %v796 = vpack.c.b16 %v580, %v572
        %v797 = vpack.c.b16 %v581, %v573
        %v798 = vpack.c.b16 %v582, %v574
        %v799 = vpack.c.b16 %v583, %v575
        %v800 = vpack.c.b16 %v584, %v576
        %v801 = vpack.c.b16 %v585, %v577
        %v802 = vpack.c.b16 %v586, %v578
        %v803 = vpack.c.b16 %v587, %v579
        %v804 = vpack.c.b16 %v596, %v588
        %v805 = vpack.c.b16 %v597, %v589
        %v806 = vpack.c.b16 %v598, %v590
        %v807 = vpack.c.b16 %v599, %v591
        %v808 = vpack.c.b16 %v600, %v592
        %v809 = vpack.c.b16 %v601, %v593
        %v810 = vpack.c.b16 %v602, %v594
        %v811 = vpack.c.b16 %v603, %v595
        %v812 = vpack.c.b16 %v612, %v604
        %v813 = vpack.c.b16 %v613, %v605
        %v814 = vpack.c.b16 %v614, %v606
        %v815 = vpack.c.b16 %v615, %v607
        %v816 = vpack.c.b16 %v616, %v608
        %v817 = vpack.c.b16 %v617, %v609
        %v818 = vpack.c.b16 %v618, %v610
        %v819 = vpack.c.b16 %v619, %v611
        %v820 = vpack.c.b16 %v628, %v620
        %v821 = vpack.c.b16 %v629, %v621
        %v822 = vpack.c.b16 %v630, %v622
        %v823 = vpack.c.b16 %v631, %v623
        %v824 = vpack.c.b16 %v632, %v624
        %v825 = vpack.c.b16 %v633, %v625
        %v826 = vpack.c.b16 %v634, %v626
        %v827 = vpack.c.b16 %v635, %v627
        %v828 = vpack.c.b16 %v644, %v636
        %v829 = vpack.c.b16 %v645, %v637
        %v830 = vpack.c.b16 %v646, %v638
        %v831 = vpack.c.b16 %v647, %v639
        %v832 = vpack.c.b16 %v648, %v640
        %v833 = vpack.c.b16 %v649, %v641
        %v834 = vpack.c.b16 %v650, %v642
        %v835 = vpack.c.b16 %v651, %v643
        %v836 = vpack.c.b16 %v660, %v652
        %v837 = vpack.c.b16 %v661, %v653
        %v838 = vpack.c.b16 %v662, %v654
        %v839 = vpack.c.b16 %v663, %v655
        %v840 = vpack.c.b16 %v664, %v656
        %v841 = vpack.c.b16 %v665, %v657
        %v842 = vpack.c.b16 %v666, %v658
        %v843 = vpack.c.b16 %v667, %v659
        %v844 = vpack.c.b16 %v676, %v668
        %v845 = vpack.c.b16 %v677, %v669
        %v846 = vpack.c.b16 %v678, %v670
        %v847 = vpack.c.b16 %v679, %v671
        %v848 = vpack.c.b16 %v680, %v672
        %v849 = vpack.c.b16 %v681, %v673
        %v850 = vpack.c.b16 %v682, %v674
        %v851 = vpack.c.b16 %v683, %v675
        %v852 = vpack.c.b16 %v692, %v684
        %v853 = vpack.c.b16 %v693, %v685
        %v854 = vpack.c.b16 %v694, %v686
        %v855 = vpack.c.b16 %v695, %v687
        %v856 = vpack.c.b16 %v696, %v688
        %v857 = vpack.c.b16 %v697, %v689
        %v858 = vpack.c.b16 %v698, %v690
        %v859 = vpack.c.b16 %v699, %v691
        %v860 = vpack.c.b16 %v708, %v700
        %v861 = vpack.c.b16 %v709, %v701
        %v862 = vpack.c.b16 %v710, %v702
        %v863 = vpack.c.b16 %v711, %v703
        %v864 = vpack.c.b16 %v712, %v704
        %v865 = vpack.c.b16 %v713, %v705
        %v866 = vpack.c.b16 %v714, %v706
        %v867 = vpack.c.b16 %v715, %v707
        %v868 = vpack.c.b16 %v724, %v716
        %v869 = vpack.c.b16 %v725, %v717
        %v870 = vpack.c.b16 %v726, %v718
        %v871 = vpack.c.b16 %v727, %v719
        %v872 = vpack.c.b16 %v728, %v720
        %v873 = vpack.c.b16 %v729, %v721
        %v874 = vpack.c.b16 %v730, %v722
        %v875 = vpack.c.b16 %v731, %v723
        %v876 = vpack.c.b16 %v740, %v732
        %v877 = vpack.c.b16 %v741, %v733
        %v878 = vpack.c.b16 %v742, %v734
        %v879 = vpack.c.b16 %v743, %v735
        %v880 = vpack.c.b16 %v744, %v736
        %v881 = vpack.c.b16 %v745, %v737
        %v882 = vpack.c.b16 %v746, %v738
        %v883 = vpack.c.b16 %v747, %v739
        %v884 = vpack.c.b16 %v756, %v748
        %v885 = vpack.c.b16 %v757, %v749
        %v886 = vpack.c.b16 %v758, %v750
        %v887 = vpack.c.b16 %v759, %v751
        %v888 = vpack.c.b16 %v760, %v752
        %v889 = vpack.c.b16 %v761, %v753
        %v890 = vpack.c.b16 %v762, %v754
        %v891 = vpack.c.b16 %v763, %v755
        %1020 = vmatprep.subr.bf16.mxu0 %v765
        %1021 = vmatpush1.bf16.msra.mxu0 %v764
        %1022 = vmatprep.subr.bf16.mxu0 %v773
        %1023 = vmatpush1.bf16.msra.mxu0 %v772
        %1024 = vmatprep.subr.bf16.mxu0 %v781
        %1025 = vmatpush1.bf16.msra.mxu0 %v780
        %1026 = vmatprep.subr.bf16.mxu0 %v789
        %1027 = vmatpush1.bf16.msra.mxu0 %v788
        %1028 = vmatprep.subr.bf16.mxu0 %v797
        %1029 = vmatpush1.bf16.msra.mxu0 %v796
        %1030 = vmatprep.subr.bf16.mxu0 %v805
        %1031 = vmatpush1.bf16.msra.mxu0 %v804
        %1032 = vmatprep.subr.bf16.mxu0 %v813
        %1033 = vmatpush1.bf16.msra.mxu0 %v812
        %1034 = vmatprep.subr.bf16.mxu0 %v821
        %1035 = vmatpush1.bf16.msra.mxu0 %v820
        %1036 = vmatprep.subr.bf16.mxu0 %v829
        %1037 = vmatpush1.bf16.msra.mxu0 %v828
        %1038 = vmatprep.subr.bf16.mxu0 %v837
        %1039 = vmatpush1.bf16.msra.mxu0 %v836
        %1040 = vmatprep.subr.bf16.mxu0 %v845
        %1041 = vmatpush1.bf16.msra.mxu0 %v844
        %1042 = vmatprep.subr.bf16.mxu0 %v853
        %1043 = vmatpush1.bf16.msra.mxu0 %v852
        %1044 = vmatprep.subr.bf16.mxu0 %v861
        %1045 = vmatpush1.bf16.msra.mxu0 %v860
        %1046 = vmatprep.subr.bf16.mxu0 %v869
        %1047 = vmatpush1.bf16.msra.mxu0 %v868
        %1048 = vmatprep.subr.bf16.mxu0 %v877
        %1049 = vmatpush1.bf16.msra.mxu0 %v876
        %1050 = vmatprep.subr.bf16.mxu0 %v885
        %1051 = vmatpush1.bf16.msra.mxu0 %v884
        %1052 = vmatprep.mubr.bf16.mxu0 %v251
        %1053 = vmatmul.mubr.bf16.gmra.mrb[0].mxu0 %v250
        %v1054 = vpop.f32.mrb[0].mxu0
        %v1055 = vadd.f32 0.0, %v1054
        %v1056 = vpop.f32.mrb[0].mxu0
        %v1057 = vadd.f32 0.0, %v1056
        %v1058 = vpop.f32.mrb[0].mxu0
        %v1059 = vpop.f32.mrb[0].mxu0
        %1060 = vdwg.mxu0
        %1061 = vmatprep.subr.bf16.mxu0 %v767
        %1062 = vmatpush1.bf16.msra.mxu0 %v766
        %1063 = vmatprep.subr.bf16.mxu0 %v775
        %1064 = vmatpush1.bf16.msra.mxu0 %v774
        %1065 = vmatprep.subr.bf16.mxu0 %v783
        %1066 = vmatpush1.bf16.msra.mxu0 %v782
        %1067 = vmatprep.subr.bf16.mxu0 %v791
        %1068 = vmatpush1.bf16.msra.mxu0 %v790
        %1069 = vmatprep.subr.bf16.mxu0 %v799
        %1070 = vmatpush1.bf16.msra.mxu0 %v798
        %1071 = vmatprep.subr.bf16.mxu0 %v807
        %1072 = vmatpush1.bf16.msra.mxu0 %v806
        %1073 = vmatprep.subr.bf16.mxu0 %v815
        %1074 = vmatpush1.bf16.msra.mxu0 %v814
        %1075 = vmatprep.subr.bf16.mxu0 %v823
        %1076 = vmatpush1.bf16.msra.mxu0 %v822
        %1077 = vmatprep.subr.bf16.mxu0 %v831
        %1078 = vmatpush1.bf16.msra.mxu0 %v830
        %1079 = vmatprep.subr.bf16.mxu0 %v839
        %1080 = vmatpush1.bf16.msra.mxu0 %v838
        %1081 = vmatprep.subr.bf16.mxu0 %v847
        %1082 = vmatpush1.bf16.msra.mxu0 %v846
        %1083 = vmatprep.subr.bf16.mxu0 %v855
        %1084 = vmatpush1.bf16.msra.mxu0 %v854
        %1085 = vmatprep.subr.bf16.mxu0 %v863
        %1086 = vmatpush1.bf16.msra.mxu0 %v862
        %1087 = vmatprep.subr.bf16.mxu0 %v871
        %1088 = vmatpush1.bf16.msra.mxu0 %v870
        %1089 = vmatprep.subr.bf16.mxu0 %v879
        %1090 = vmatpush1.bf16.msra.mxu0 %v878
        %1091 = vmatprep.subr.bf16.mxu0 %v887
        %1092 = vmatpush1.bf16.msra.mxu0 %v886
        %1093 = vmatprep.mubr.bf16.mxu0 %v251
        %1094 = vmatmul.mubr.bf16.gmra.mrb[0].mxu0 %v250
        %v1095 = vpop.f32.mrb[0].mxu0
        %v1096 = vadd.f32 0.0, %v1095
        %v1097 = vpop.f32.mrb[0].mxu0
        %v1098 = vadd.f32 0.0, %v1097
        %v1099 = vpop.f32.mrb[0].mxu0
        %v1100 = vpop.f32.mrb[0].mxu0
        %1101 = vdwg.mxu0
        %1102 = vmatprep.subr.bf16.mxu0 %v769
        %1103 = vmatpush1.bf16.msra.mxu0 %v768
        %1104 = vmatprep.subr.bf16.mxu0 %v777
        %1105 = vmatpush1.bf16.msra.mxu0 %v776
        %1106 = vmatprep.subr.bf16.mxu0 %v785
        %1107 = vmatpush1.bf16.msra.mxu0 %v784
        %1108 = vmatprep.subr.bf16.mxu0 %v793
        %1109 = vmatpush1.bf16.msra.mxu0 %v792
        %1110 = vmatprep.subr.bf16.mxu0 %v801
        %1111 = vmatpush1.bf16.msra.mxu0 %v800
        %1112 = vmatprep.subr.bf16.mxu0 %v809
        %1113 = vmatpush1.bf16.msra.mxu0 %v808
        %1114 = vmatprep.subr.bf16.mxu0 %v817
        %1115 = vmatpush1.bf16.msra.mxu0 %v816
        %1116 = vmatprep.subr.bf16.mxu0 %v825
        %1117 = vmatpush1.bf16.msra.mxu0 %v824
        %1118 = vmatprep.subr.bf16.mxu0 %v833
        %1119 = vmatpush1.bf16.msra.mxu0 %v832
        %1120 = vmatprep.subr.bf16.mxu0 %v841
        %1121 = vmatpush1.bf16.msra.mxu0 %v840
        %1122 = vmatprep.subr.bf16.mxu0 %v849
        %1123 = vmatpush1.bf16.msra.mxu0 %v848
        %1124 = vmatprep.subr.bf16.mxu0 %v857
        %1125 = vmatpush1.bf16.msra.mxu0 %v856
        %1126 = vmatprep.subr.bf16.mxu0 %v865
        %1127 = vmatpush1.bf16.msra.mxu0 %v864
        %1128 = vmatprep.subr.bf16.mxu0 %v873
        %1129 = vmatpush1.bf16.msra.mxu0 %v872
        %1130 = vmatprep.subr.bf16.mxu0 %v881
        %1131 = vmatpush1.bf16.msra.mxu0 %v880
        %1132 = vmatprep.subr.bf16.mxu0 %v889
        %1133 = vmatpush1.bf16.msra.mxu0 %v888
        %1134 = vmatprep.mubr.bf16.mxu0 %v251
        %1135 = vmatmul.mubr.bf16.gmra.mrb[0].mxu0 %v250
        %v1136 = vpop.f32.mrb[0].mxu0
        %v1137 = vadd.f32 0.0, %v1136
        %v1138 = vpop.f32.mrb[0].mxu0
        %v1139 = vadd.f32 0.0, %v1138
        %v1140 = vpop.f32.mrb[0].mxu0
        %v1141 = vpop.f32.mrb[0].mxu0
        %1142 = vdwg.mxu0
        %1143 = vmatprep.subr.bf16.mxu0 %v771
        %1144 = vmatpush1.bf16.msra.mxu0 %v770
        %1145 = vmatprep.subr.bf16.mxu0 %v779
        %1146 = vmatpush1.bf16.msra.mxu0 %v778
        %1147 = vmatprep.subr.bf16.mxu0 %v787
        %1148 = vmatpush1.bf16.msra.mxu0 %v786
        %1149 = vmatprep.subr.bf16.mxu0 %v795
        %1150 = vmatpush1.bf16.msra.mxu0 %v794
        %1151 = vmatprep.subr.bf16.mxu0 %v803
        %1152 = vmatpush1.bf16.msra.mxu0 %v802
        %1153 = vmatprep.subr.bf16.mxu0 %v811
        %1154 = vmatpush1.bf16.msra.mxu0 %v810
        %1155 = vmatprep.subr.bf16.mxu0 %v819
        %1156 = vmatpush1.bf16.msra.mxu0 %v818
        %1157 = vmatprep.subr.bf16.mxu0 %v827
        %1158 = vmatpush1.bf16.msra.mxu0 %v826
        %1159 = vmatprep.subr.bf16.mxu0 %v835
        %1160 = vmatpush1.bf16.msra.mxu0 %v834
        %1161 = vmatprep.subr.bf16.mxu0 %v843
        %1162 = vmatpush1.bf16.msra.mxu0 %v842
        %1163 = vmatprep.subr.bf16.mxu0 %v851
        %1164 = vmatpush1.bf16.msra.mxu0 %v850
        %1165 = vmatprep.subr.bf16.mxu0 %v859
        %1166 = vmatpush1.bf16.msra.mxu0 %v858
        %1167 = vmatprep.subr.bf16.mxu0 %v867
        %1168 = vmatpush1.bf16.msra.mxu0 %v866
        %1169 = vmatprep.subr.bf16.mxu0 %v875
        %1170 = vmatpush1.bf16.msra.mxu0 %v874
        %1171 = vmatprep.subr.bf16.mxu0 %v883
        %1172 = vmatpush1.bf16.msra.mxu0 %v882
        %1173 = vmatprep.subr.bf16.mxu0 %v891
        %1174 = vmatpush1.bf16.msra.mxu0 %v890
        %1175 = vmatprep.mubr.bf16.mxu0 %v251
        %1176 = vmatmul.mubr.bf16.gmra.mrb[0].mxu0 %v250
        %v1177 = vpop.f32.mrb[0].mxu0
        %v1178 = vadd.f32 0.0, %v1177
        %v1179 = vpop.f32.mrb[0].mxu0
        %v1180 = vadd.f32 0.0, %v1179
        %v1181 = vpop.f32.mrb[0].mxu0
        %v1182 = vpop.f32.mrb[0].mxu0
        %1183 = vdwg.mxu0
        %v1184 = vsub.f32 0.0, %v1055
        %v1185 = vsub.f32 0.0, %v1057
        %v1186 = vsub.f32 0.0, %v1096
        %v1187 = vsub.f32 0.0, %v1098
        %v1188 = vmul.f32 %v1184, 1.442695
        %v1189 = vpow.pop %v1188
        %v1190 = vmul.f32 %v1185, 1.442695
        %v1191 = vpow.pop %v1190
        %v1192 = vmul.f32 %v1186, 1.442695
        %v1193 = vpow.pop %v1192
        %v1194 = vmul.f32 %v1187, 1.442695
        %v1195 = vpow.pop %v1194
        %v1196 = vadd.f32 %v1189, 1.0
        %v1197 = vadd.f32 %v1191, 1.0
        %v1198 = vadd.f32 %v1193, 1.0
        %v1199 = vadd.f32 %v1195, 1.0
        %v1200 = vrcp.pop %v1196
        %v1201 = vrcp.pop %v1197
        %v1202 = vrcp.pop %v1198
        %v1203 = vrcp.pop %v1199
        %v1204 = vmul.f32 %v1055, %v1200
        %v1205 = vmul.f32 %v1057, %v1201
        %v1206 = vmul.f32 %v1096, %v1202
        %v1207 = vmul.f32 %v1098, %v1203
        %v1208 = vmul.f32 %v1204, %v1137
        %v1209 = vmul.f32 %v1205, %v1139
        %v1210 = vmul.f32 %v1206, %v1178
        %v1211 = vmul.f32 %v1207, %v1180
        %v1212 = vpack.c.bf16 %v1208, %v1208
        %v1213 = vpack.c.bf16 %v1209, %v1209
        %v1214 = vpack.c.bf16 %v1210, %v1210
        %v1215 = vpack.c.bf16 %v1211, %v1211
        %v1216 = vld [vmem:[#allocation2] sm:$0xff]
        %v1217 = vld [vmem:[#allocation2 + $0x8] sm:$0xff]
        %v1218 = vld [vmem:[#allocation2 + $0x10] sm:$0xff]
        %v1219 = vld [vmem:[#allocation2 + $0x18] sm:$0xff]
        %v1220 = vld [vmem:[#allocation2 + $0x20] sm:$0xff]
        %v1221 = vld [vmem:[#allocation2 + $0x28] sm:$0xff]
        %v1222 = vld [vmem:[#allocation2 + $0x30] sm:$0xff]
        %v1223 = vld [vmem:[#allocation2 + $0x38] sm:$0xff]
        %v1224 = vld [vmem:[#allocation2 + $0x40] sm:$0xff]
        %v1225 = vld [vmem:[#allocation2 + $0x48] sm:$0xff]
        %v1226 = vld [vmem:[#allocation2 + $0x50] sm:$0xff]
        %v1227 = vld [vmem:[#allocation2 + $0x58] sm:$0xff]
        %v1228 = vld [vmem:[#allocation2 + $0x60] sm:$0xff]
        %v1229 = vld [vmem:[#allocation2 + $0x68] sm:$0xff]
        %v1230 = vld [vmem:[#allocation2 + $0x70] sm:$0xff]
        %v1231 = vld [vmem:[#allocation2 + $0x78] sm:$0xff]
        %v1232 = vld [vmem:[#allocation2 + $0x80] sm:$0xff]
        %v1233 = vld [vmem:[#allocation2 + $0x88] sm:$0xff]
        %v1234 = vld [vmem:[#allocation2 + $0x90] sm:$0xff]
        %v1235 = vld [vmem:[#allocation2 + $0x98] sm:$0xff]
        %v1236 = vld [vmem:[#allocation2 + $0xa0] sm:$0xff]
        %v1237 = vld [vmem:[#allocation2 + $0xa8] sm:$0xff]
        %v1238 = vld [vmem:[#allocation2 + $0xb0] sm:$0xff]
        %v1239 = vld [vmem:[#allocation2 + $0xb8] sm:$0xff]
        %v1240 = vld [vmem:[#allocation2 + $0xc0] sm:$0xff]
        %v1241 = vld [vmem:[#allocation2 + $0xc8] sm:$0xff]
        %v1242 = vld [vmem:[#allocation2 + $0xd0] sm:$0xff]
        %v1243 = vld [vmem:[#allocation2 + $0xd8] sm:$0xff]
        %v1244 = vld [vmem:[#allocation2 + $0xe0] sm:$0xff]
        %v1245 = vld [vmem:[#allocation2 + $0xe8] sm:$0xff]
        %v1246 = vld [vmem:[#allocation2 + $0xf0] sm:$0xff]
        %v1247 = vld [vmem:[#allocation2 + $0xf8] sm:$0xff]
        %v1248 = vld [vmem:[#allocation2 + $0x100] sm:$0xff]
        %v1249 = vld [vmem:[#allocation2 + $0x108] sm:$0xff]
        %v1250 = vld [vmem:[#allocation2 + $0x110] sm:$0xff]
        %v1251 = vld [vmem:[#allocation2 + $0x118] sm:$0xff]
        %v1252 = vld [vmem:[#allocation2 + $0x120] sm:$0xff]
        %v1253 = vld [vmem:[#allocation2 + $0x128] sm:$0xff]
        %v1254 = vld [vmem:[#allocation2 + $0x130] sm:$0xff]
        %v1255 = vld [vmem:[#allocation2 + $0x138] sm:$0xff]
        %v1256 = vld [vmem:[#allocation2 + $0x140] sm:$0xff]
        %v1257 = vld [vmem:[#allocation2 + $0x148] sm:$0xff]
        %v1258 = vld [vmem:[#allocation2 + $0x150] sm:$0xff]
        %v1259 = vld [vmem:[#allocation2 + $0x158] sm:$0xff]
        %v1260 = vld [vmem:[#allocation2 + $0x160] sm:$0xff]
        %v1261 = vld [vmem:[#allocation2 + $0x168] sm:$0xff]
        %v1262 = vld [vmem:[#allocation2 + $0x170] sm:$0xff]
        %v1263 = vld [vmem:[#allocation2 + $0x178] sm:$0xff]
        %v1264 = vld [vmem:[#allocation2 + $0x180] sm:$0xff]
        %v1265 = vld [vmem:[#allocation2 + $0x188] sm:$0xff]
        %v1266 = vld [vmem:[#allocation2 + $0x190] sm:$0xff]
        %v1267 = vld [vmem:[#allocation2 + $0x198] sm:$0xff]
        %v1268 = vld [vmem:[#allocation2 + $0x1a0] sm:$0xff]
        %v1269 = vld [vmem:[#allocation2 + $0x1a8] sm:$0xff]
        %v1270 = vld [vmem:[#allocation2 + $0x1b0] sm:$0xff]
        %v1271 = vld [vmem:[#allocation2 + $0x1b8] sm:$0xff]
        %v1272 = vld [vmem:[#allocation2 + $0x1c0] sm:$0xff]
        %v1273 = vld [vmem:[#allocation2 + $0x1c8] sm:$0xff]
        %v1274 = vld [vmem:[#allocation2 + $0x1d0] sm:$0xff]
        %v1275 = vld [vmem:[#allocation2 + $0x1d8] sm:$0xff]
        %v1276 = vld [vmem:[#allocation2 + $0x1e0] sm:$0xff]
        %v1277 = vld [vmem:[#allocation2 + $0x1e8] sm:$0xff]
        %v1278 = vld [vmem:[#allocation2 + $0x1f0] sm:$0xff]
        %v1279 = vld [vmem:[#allocation2 + $0x1f8] sm:$0xff]
        %v1344 = vunpack.c.l.b16 %v1216
        %v1345 = vunpack.c.h.b16 %v1216
        %v1346 = vunpack.c.l.b16 %v1217
        %v1347 = vunpack.c.h.b16 %v1217
        %v1348 = vunpack.c.l.b16 %v1218
        %v1349 = vunpack.c.h.b16 %v1218
        %v1350 = vunpack.c.l.b16 %v1219
        %v1351 = vunpack.c.h.b16 %v1219
        %v1352 = vunpack.c.l.b16 %v1220
        %v1353 = vunpack.c.h.b16 %v1220
        %v1354 = vunpack.c.l.b16 %v1221
        %v1355 = vunpack.c.h.b16 %v1221
        %v1356 = vunpack.c.l.b16 %v1222
        %v1357 = vunpack.c.h.b16 %v1222
        %v1358 = vunpack.c.l.b16 %v1223
        %v1359 = vunpack.c.h.b16 %v1223
        %v1360 = vunpack.c.l.b16 %v1224
        %v1361 = vunpack.c.h.b16 %v1224
        %v1362 = vunpack.c.l.b16 %v1225
        %v1363 = vunpack.c.h.b16 %v1225
        %v1364 = vunpack.c.l.b16 %v1226
        %v1365 = vunpack.c.h.b16 %v1226
        %v1366 = vunpack.c.l.b16 %v1227
        %v1367 = vunpack.c.h.b16 %v1227
        %v1368 = vunpack.c.l.b16 %v1228
        %v1369 = vunpack.c.h.b16 %v1228
        %v1370 = vunpack.c.l.b16 %v1229
        %v1371 = vunpack.c.h.b16 %v1229
        %v1372 = vunpack.c.l.b16 %v1230
        %v1373 = vunpack.c.h.b16 %v1230
        %v1374 = vunpack.c.l.b16 %v1231
        %v1375 = vunpack.c.h.b16 %v1231
        %v1376 = vunpack.c.l.b16 %v1232
        %v1377 = vunpack.c.h.b16 %v1232
        %v1378 = vunpack.c.l.b16 %v1233
        %v1379 = vunpack.c.h.b16 %v1233
        %v1380 = vunpack.c.l.b16 %v1234
        %v1381 = vunpack.c.h.b16 %v1234
        %v1382 = vunpack.c.l.b16 %v1235
        %v1383 = vunpack.c.h.b16 %v1235
        %v1384 = vunpack.c.l.b16 %v1236
        %v1385 = vunpack.c.h.b16 %v1236
        %v1386 = vunpack.c.l.b16 %v1237
        %v1387 = vunpack.c.h.b16 %v1237
        %v1388 = vunpack.c.l.b16 %v1238
        %v1389 = vunpack.c.h.b16 %v1238
        %v1390 = vunpack.c.l.b16 %v1239
        %v1391 = vunpack.c.h.b16 %v1239
        %v1392 = vunpack.c.l.b16 %v1240
        %v1393 = vunpack.c.h.b16 %v1240
        %v1394 = vunpack.c.l.b16 %v1241
        %v1395 = vunpack.c.h.b16 %v1241
        %v1396 = vunpack.c.l.b16 %v1242
        %v1397 = vunpack.c.h.b16 %v1242
        %v1398 = vunpack.c.l.b16 %v1243
        %v1399 = vunpack.c.h.b16 %v1243
        %v1400 = vunpack.c.l.b16 %v1244
        %v1401 = vunpack.c.h.b16 %v1244
        %v1402 = vunpack.c.l.b16 %v1245
        %v1403 = vunpack.c.h.b16 %v1245
        %v1404 = vunpack.c.l.b16 %v1246
        %v1405 = vunpack.c.h.b16 %v1246
        %v1406 = vunpack.c.l.b16 %v1247
        %v1407 = vunpack.c.h.b16 %v1247
        %v1408 = vunpack.c.l.b16 %v1248
        %v1409 = vunpack.c.h.b16 %v1248
        %v1410 = vunpack.c.l.b16 %v1249
        %v1411 = vunpack.c.h.b16 %v1249
        %v1412 = vunpack.c.l.b16 %v1250
        %v1413 = vunpack.c.h.b16 %v1250
        %v1414 = vunpack.c.l.b16 %v1251
        %v1415 = vunpack.c.h.b16 %v1251
        %v1416 = vunpack.c.l.b16 %v1252
        %v1417 = vunpack.c.h.b16 %v1252
        %v1418 = vunpack.c.l.b16 %v1253
        %v1419 = vunpack.c.h.b16 %v1253
        %v1420 = vunpack.c.l.b16 %v1254
        %v1421 = vunpack.c.h.b16 %v1254
        %v1422 = vunpack.c.l.b16 %v1255
        %v1423 = vunpack.c.h.b16 %v1255
        %v1424 = vunpack.c.l.b16 %v1256
        %v1425 = vunpack.c.h.b16 %v1256
        %v1426 = vunpack.c.l.b16 %v1257
        %v1427 = vunpack.c.h.b16 %v1257
        %v1428 = vunpack.c.l.b16 %v1258
        %v1429 = vunpack.c.h.b16 %v1258
        %v1430 = vunpack.c.l.b16 %v1259
        %v1431 = vunpack.c.h.b16 %v1259
        %v1432 = vunpack.c.l.b16 %v1260
        %v1433 = vunpack.c.h.b16 %v1260
        %v1434 = vunpack.c.l.b16 %v1261
        %v1435 = vunpack.c.h.b16 %v1261
        %v1436 = vunpack.c.l.b16 %v1262
        %v1437 = vunpack.c.h.b16 %v1262
        %v1438 = vunpack.c.l.b16 %v1263
        %v1439 = vunpack.c.h.b16 %v1263
        %v1440 = vunpack.c.l.b16 %v1264
        %v1441 = vunpack.c.h.b16 %v1264
        %v1442 = vunpack.c.l.b16 %v1265
        %v1443 = vunpack.c.h.b16 %v1265
        %v1444 = vunpack.c.l.b16 %v1266
        %v1445 = vunpack.c.h.b16 %v1266
        %v1446 = vunpack.c.l.b16 %v1267
        %v1447 = vunpack.c.h.b16 %v1267
        %v1448 = vunpack.c.l.b16 %v1268
        %v1449 = vunpack.c.h.b16 %v1268
        %v1450 = vunpack.c.l.b16 %v1269
        %v1451 = vunpack.c.h.b16 %v1269
        %v1452 = vunpack.c.l.b16 %v1270
        %v1453 = vunpack.c.h.b16 %v1270
        %v1454 = vunpack.c.l.b16 %v1271
        %v1455 = vunpack.c.h.b16 %v1271
        %v1456 = vunpack.c.l.b16 %v1272
        %v1457 = vunpack.c.h.b16 %v1272
        %v1458 = vunpack.c.l.b16 %v1273
        %v1459 = vunpack.c.h.b16 %v1273
        %v1460 = vunpack.c.l.b16 %v1274
        %v1461 = vunpack.c.h.b16 %v1274
        %v1462 = vunpack.c.l.b16 %v1275
        %v1463 = vunpack.c.h.b16 %v1275
        %v1464 = vunpack.c.l.b16 %v1276
        %v1465 = vunpack.c.h.b16 %v1276
        %v1466 = vunpack.c.l.b16 %v1277
        %v1467 = vunpack.c.h.b16 %v1277
        %v1468 = vunpack.c.l.b16 %v1278
        %v1469 = vunpack.c.h.b16 %v1278
        %v1470 = vunpack.c.l.b16 %v1279
        %v1471 = vunpack.c.h.b16 %v1279
        %v1472 = vpack.c.b16 %v1346, %v1344
        %v1473 = vpack.c.b16 %v1347, %v1345
        %v1474 = vpack.c.b16 %v1350, %v1348
        %v1475 = vpack.c.b16 %v1351, %v1349
        %v1476 = vpack.c.b16 %v1354, %v1352
        %v1477 = vpack.c.b16 %v1355, %v1353
        %v1478 = vpack.c.b16 %v1358, %v1356
        %v1479 = vpack.c.b16 %v1359, %v1357
        %v1480 = vpack.c.b16 %v1362, %v1360
        %v1481 = vpack.c.b16 %v1363, %v1361
        %v1482 = vpack.c.b16 %v1366, %v1364
        %v1483 = vpack.c.b16 %v1367, %v1365
        %v1484 = vpack.c.b16 %v1370, %v1368
        %v1485 = vpack.c.b16 %v1371, %v1369
        %v1486 = vpack.c.b16 %v1374, %v1372
        %v1487 = vpack.c.b16 %v1375, %v1373
        %v1488 = vpack.c.b16 %v1378, %v1376
        %v1489 = vpack.c.b16 %v1379, %v1377
        %v1490 = vpack.c.b16 %v1382, %v1380
        %v1491 = vpack.c.b16 %v1383, %v1381
        %v1492 = vpack.c.b16 %v1386, %v1384
        %v1493 = vpack.c.b16 %v1387, %v1385
        %v1494 = vpack.c.b16 %v1390, %v1388
        %v1495 = vpack.c.b16 %v1391, %v1389
        %v1496 = vpack.c.b16 %v1394, %v1392
        %v1497 = vpack.c.b16 %v1395, %v1393
        %v1498 = vpack.c.b16 %v1398, %v1396
        %v1499 = vpack.c.b16 %v1399, %v1397
        %v1500 = vpack.c.b16 %v1402, %v1400
        %v1501 = vpack.c.b16 %v1403, %v1401
        %v1502 = vpack.c.b16 %v1406, %v1404
        %v1503 = vpack.c.b16 %v1407, %v1405
        %v1504 = vpack.c.b16 %v1410, %v1408
        %v1505 = vpack.c.b16 %v1411, %v1409
        %v1506 = vpack.c.b16 %v1414, %v1412
        %v1507 = vpack.c.b16 %v1415, %v1413
        %v1508 = vpack.c.b16 %v1418, %v1416
        %v1509 = vpack.c.b16 %v1419, %v1417
        %v1510 = vpack.c.b16 %v1422, %v1420
        %v1511 = vpack.c.b16 %v1423, %v1421
        %v1512 = vpack.c.b16 %v1426, %v1424
        %v1513 = vpack.c.b16 %v1427, %v1425
        %v1514 = vpack.c.b16 %v1430, %v1428
        %v1515 = vpack.c.b16 %v1431, %v1429
        %v1516 = vpack.c.b16 %v1434, %v1432
        %v1517 = vpack.c.b16 %v1435, %v1433
        %v1518 = vpack.c.b16 %v1438, %v1436
        %v1519 = vpack.c.b16 %v1439, %v1437
        %v1520 = vpack.c.b16 %v1442, %v1440
        %v1521 = vpack.c.b16 %v1443, %v1441
        %v1522 = vpack.c.b16 %v1446, %v1444
        %v1523 = vpack.c.b16 %v1447, %v1445
        %v1524 = vpack.c.b16 %v1450, %v1448
        %v1525 = vpack.c.b16 %v1451, %v1449
        %v1526 = vpack.c.b16 %v1454, %v1452
        %v1527 = vpack.c.b16 %v1455, %v1453
        %v1528 = vpack.c.b16 %v1458, %v1456
        %v1529 = vpack.c.b16 %v1459, %v1457
        %v1530 = vpack.c.b16 %v1462, %v1460
        %v1531 = vpack.c.b16 %v1463, %v1461
        %v1532 = vpack.c.b16 %v1466, %v1464
        %v1533 = vpack.c.b16 %v1467, %v1465
        %v1534 = vpack.c.b16 %v1470, %v1468
        %v1535 = vpack.c.b16 %v1471, %v1469
        %1600 = vmatprep.subr.bf16.mxu0 %v1473
        %1601 = vmatpush1.bf16.msra.mxu0 %v1472
        %1602 = vmatprep.subr.bf16.mxu0 %v1475
        %1603 = vmatpush1.bf16.msra.mxu0 %v1474
        %1604 = vmatprep.subr.bf16.mxu0 %v1477
        %1605 = vmatpush1.bf16.msra.mxu0 %v1476
        %1606 = vmatprep.subr.bf16.mxu0 %v1479
        %1607 = vmatpush1.bf16.msra.mxu0 %v1478
        %1608 = vmatprep.subr.bf16.mxu0 %v1481
        %1609 = vmatpush1.bf16.msra.mxu0 %v1480
        %1610 = vmatprep.subr.bf16.mxu0 %v1483
        %1611 = vmatpush1.bf16.msra.mxu0 %v1482
        %1612 = vmatprep.subr.bf16.mxu0 %v1485
        %1613 = vmatpush1.bf16.msra.mxu0 %v1484
        %1614 = vmatprep.subr.bf16.mxu0 %v1487
        %1615 = vmatpush1.bf16.msra.mxu0 %v1486
        %1616 = vmatprep.subr.bf16.mxu0 %v1489
        %1617 = vmatpush1.bf16.msra.mxu0 %v1488
        %1618 = vmatprep.subr.bf16.mxu0 %v1491
        %1619 = vmatpush1.bf16.msra.mxu0 %v1490
        %1620 = vmatprep.subr.bf16.mxu0 %v1493
        %1621 = vmatpush1.bf16.msra.mxu0 %v1492
        %1622 = vmatprep.subr.bf16.mxu0 %v1495
        %1623 = vmatpush1.bf16.msra.mxu0 %v1494
        %1624 = vmatprep.subr.bf16.mxu0 %v1497
        %1625 = vmatpush1.bf16.msra.mxu0 %v1496
        %1626 = vmatprep.subr.bf16.mxu0 %v1499
        %1627 = vmatpush1.bf16.msra.mxu0 %v1498
        %1628 = vmatprep.subr.bf16.mxu0 %v1501
        %1629 = vmatpush1.bf16.msra.mxu0 %v1500
        %1630 = vmatprep.subr.bf16.mxu0 %v1503
        %1631 = vmatpush1.bf16.msra.mxu0 %v1502
        %1632 = vmatprep.mubr.bf16.mxu0 %v1213
        %1633 = vmatmul.mubr.bf16.gmra.mrb[0].mxu0 %v1212
        %v1634 = vpop.f32.mrb[0].mxu0
        %v1635 = vadd.f32 0.0, %v1634
        %v1636 = vpop.f32.mrb[0].mxu0
        %v1637 = vadd.f32 0.0, %v1636
        %v1638 = vpop.f32.mrb[0].mxu0
        %v1639 = vpop.f32.mrb[0].mxu0
        %1640 = vdwg.mxu0
        %1641 = vmatprep.subr.bf16.mxu0 %v1505
        %1642 = vmatpush1.bf16.msra.mxu0 %v1504
        %1643 = vmatprep.subr.bf16.mxu0 %v1507
        %1644 = vmatpush1.bf16.msra.mxu0 %v1506
        %1645 = vmatprep.subr.bf16.mxu0 %v1509
        %1646 = vmatpush1.bf16.msra.mxu0 %v1508
        %1647 = vmatprep.subr.bf16.mxu0 %v1511
        %1648 = vmatpush1.bf16.msra.mxu0 %v1510
        %1649 = vmatprep.subr.bf16.mxu0 %v1513
        %1650 = vmatpush1.bf16.msra.mxu0 %v1512
        %1651 = vmatprep.subr.bf16.mxu0 %v1515
        %1652 = vmatpush1.bf16.msra.mxu0 %v1514
        %1653 = vmatprep.subr.bf16.mxu0 %v1517
        %1654 = vmatpush1.bf16.msra.mxu0 %v1516
        %1655 = vmatprep.subr.bf16.mxu0 %v1519
        %1656 = vmatpush1.bf16.msra.mxu0 %v1518
        %1657 = vmatprep.subr.bf16.mxu0 %v1521
        %1658 = vmatpush1.bf16.msra.mxu0 %v1520
        %1659 = vmatprep.subr.bf16.mxu0 %v1523
        %1660 = vmatpush1.bf16.msra.mxu0 %v1522
        %1661 = vmatprep.subr.bf16.mxu0 %v1525
        %1662 = vmatpush1.bf16.msra.mxu0 %v1524
        %1663 = vmatprep.subr.bf16.mxu0 %v1527
        %1664 = vmatpush1.bf16.msra.mxu0 %v1526
        %1665 = vmatprep.subr.bf16.mxu0 %v1529
        %1666 = vmatpush1.bf16.msra.mxu0 %v1528
        %1667 = vmatprep.subr.bf16.mxu0 %v1531
        %1668 = vmatpush1.bf16.msra.mxu0 %v1530
        %1669 = vmatprep.subr.bf16.mxu0 %v1533
        %1670 = vmatpush1.bf16.msra.mxu0 %v1532
        %1671 = vmatprep.subr.bf16.mxu0 %v1535
        %1672 = vmatpush1.bf16.msra.mxu0 %v1534
        %1673 = vmatprep.mubr.bf16.mxu0 %v1215
        %1674 = vmatmul.mubr.bf16.gmra.mrb[0].mxu0 %v1214
        %v1675 = vpop.f32.mrb[0].mxu0
        %v1676 = vadd.f32 %v1635, %v1675
        %v1677 = vpop.f32.mrb[0].mxu0
        %v1678 = vadd.f32 %v1637, %v1677
        %v1679 = vpop.f32.mrb[0].mxu0
        %v1680 = vpop.f32.mrb[0].mxu0
        %1681 = vdwg.mxu0
        %v1682 = vadd.f32 %v214, %v1676
        %v1683 = vadd.f32 %v215, %v1678
        %v1684 = vpack.c.bf16 %v1682, %v1682
        %v1685 = vpack.c.bf16 %v1683, %v1683
        %v1688 = vunpack.c.l.b16 %v1684
        %v1689 = vunpack.c.l.b16 %v1685
        %v1690 = vpack.c.b16 %v1689, %v1688
        %1692 = vst [vmem:[%s212] sm:$0xff] %v1690
        %p1693 = scmp.lt.s32.totalorder %s16, 1
        %s1694 = scalar_select %p1693, %s16, 1
        %s1695 = smul.addr %s1694, 2
        %s1696 = smul.addr %s1695, 4
        %s1697 = scalar_lea.vmem %s4, %s1696
        // Predicated region
        $region41: #{encoder_forward.6} parent=35 // pred_check
          %p1698 = pneg %p123
        $region42: #{encoder_forward.6} parent=35 // pred_check_branch
          %1700 = sbr.rel (%p1698) target = $region44
        $region43: #{encoder_forward.6} parent=35 // pred_region
          _
        $region44: #{encoder_forward.6} parent=35 // pred_fallthru
          _
      $region36: #{encoder_forward.6} parent=5 // pred_fallthru
        _
      %p1701 = scmp.le.s32.totalorder 2, %s11
      // Predicated region
      $region45: #{encoder_forward.6} parent=5 // pred_check
        %p1702 = pneg %p1701
      $region46: #{encoder_forward.6} parent=5 // pred_check_branch
        %1704 = sbr.rel (%p1702) target = $region48
      $region47: #{encoder_forward.6} parent=5 // pred_region
        %s1705 = ssub.s32 %s11, 2
        // Predicated region
        $region49: #{encoder_forward.6} parent=47 // pred_check
          %p1706 = pneg %p129
        $region50: #{encoder_forward.6} parent=47 // pred_check_branch
          %1708 = sbr.rel (%p1706) target = $region52
        $region51: #{encoder_forward.6} parent=47 // pred_region
          %p1709 = scmp.lt.s32.totalorder %s17, 1
          %s1710 = scalar_select %p1709, %s17, 1
          %s1711 = smul.addr %s1710, 2
          %s1712 = smul.addr %s1711, 4
          %s1713 = scalar_lea.vmem %s4, %s1712
        $region52: #{encoder_forward.6} parent=47 // pred_fallthru
          _
      $region48: #{encoder_forward.6} parent=5 // pred_fallthru
        _
    $region6: #{encoder_forward.6} parent=1 // loop_footer
      %s15 = sadd.s32 1, %s11
    $region7: #{encoder_forward.6} parent=1 // loop_footer_branch
      %10 = sbr.rel target = $region3
    $region8: #{encoder_forward.6} parent=1 // loop_exit
      _
    %1714 = vsyncpa [#allocation3], 1
    %s1715 = scalar_lea.sflag [#allocation3], 1
    %1716 = vsyncpa %s1715, 1

// kernel: encoder_forward.9
$region0: #{encoder_forward.9}
  #allocation0 [shape = 'u32[]', space=smem, size = 0x4, offset = 0x4, fixed_abs, tag = 'smem constant byte address 0x4 - core index']
  #allocation1 [shape = 'u32[144,128]{1,0:T(1,128)}', space=vmem, size = 0x12000, scoped, tag = 'internal scratch']
  %s0 = inlined_call_operand.vmem [shape: bf16[2,8,256], index: 0, kind: input, shape index: {}]
  %s1 = inlined_call_operand.vmem [shape: f32[2,8,1], index: 1, kind: input, shape index: {}]
  %s2 = inlined_call_operand.vmem [shape: bf16[1,256], index: 2, kind: input, shape index: {}]
  %s3 = inlined_call_operand.vmem [shape: bf16[2,1,256], index: 3, kind: output, shape index: {}]
  %s4 = sld [smem:[#allocation0]]
  $region45: #{encoder_forward.9} parent=0
    _
  %s6 = ssub.s32 1, %s4
  %s7 = scalar_select 0, %s6, %s4
  loop: start=0, step=1, limit=4
  $region2: #{encoder_forward.9} parent=0 // loop_pre_header
    _
  $region3: #{encoder_forward.9} parent=0 // loop_header
    %s9 = sphi 0, %s13
    %p10 = scmp.ge.s32.totalorder %s9, 4
    %s19 = sphi 0, %s21
    %s22 = sphi 0, %s19
    %s23 = sphi 0, %s22
    %s39 = sphi 0, %s23
    %s45 = sphi 0, %s47
    %s48 = sphi 0, %s45
    %s49 = sphi 0, %s48
    %s65 = sphi 0, %s49
    %s69 = sphi 0, %s69
    %s71 = sphi 0, %s69
    %s72 = sphi 0, %s71
    %s86 = sphi 0, %s72
    %s92 = sphi 0, %s94
    %s95 = sphi 0, %s92
    %s96 = sphi 0, %s95
    %s112 = sphi 0, %s96
  $region4: #{encoder_forward.9} parent=0 // loop_header_branch
    %12 = sbr.rel (%p10) target = $region8
  $region5: #{encoder_forward.9} parent=0 // loop_body
    %s14 = ssub.s32 %s9, 1
    %s15 = ssub.s32 %s9, 2
    %s16 = sadd.s32 %s9, 1
    %s17 = ssub.s32 %s9, %s16
    %p18 = scmp.eq.s32.totalorder %s17, 0
    %s20 = sadd.s32 %s19, 1
    %s21 = scalar_select %p18, %s19, %s20
    %p24 = pneg %p18
    %p25 = scmp.eq.s32.totalorder %s9, 1
    %p26 = por %p24, %p25
    %p27 = scmp.ne.s32.totalorder %s19, %s22
    %p28 = scmp.eq.s32.totalorder %s9, 0
    %p29 = por %p27, %p28
    %p30 = scmp.ne.s32.totalorder %s19, %s22
    %p31 = scmp.eq.s32.totalorder %s14, 1
    %p32 = por %p30, %p31
    %p33 = scmp.ne.s32.totalorder %s22, %s23
    %p34 = scmp.eq.s32.totalorder %s14, 0
    %p35 = por %p33, %p34
    %p36 = scmp.ne.s32.totalorder %s22, %s23
    %p37 = scmp.eq.s32.totalorder %s15, 1
    %p38 = por %p36, %p37
    %p40 = scmp.ne.s32.totalorder %s23, %s39
    %p41 = scmp.eq.s32.totalorder %s15, 0
    %p42 = por %p40, %p41
    %s43 = ssub.s32 %s9, %s16
    %p44 = scmp.eq.s32.totalorder %s43, 0
    %s46 = sadd.s32 %s45, 1
    %s47 = scalar_select %p44, %s45, %s46
    %p50 = pneg %p44
    %p51 = scmp.eq.s32.totalorder %s9, 1
    %p52 = por %p50, %p51
    %p53 = scmp.ne.s32.totalorder %s45, %s48
    %p54 = scmp.eq.s32.totalorder %s9, 0
    %p55 = por %p53, %p54
    %p56 = scmp.ne.s32.totalorder %s45, %s48
    %p57 = scmp.eq.s32.totalorder %s14, 1
    %p58 = por %p56, %p57
    %p59 = scmp.ne.s32.totalorder %s48, %s49
    %p60 = scmp.eq.s32.totalorder %s14, 0
    %p61 = por %p59, %p60
    %p62 = scmp.ne.s32.totalorder %s48, %s49
    %p63 = scmp.eq.s32.totalorder %s15, 1
    %p64 = por %p62, %p63
    %p66 = scmp.ne.s32.totalorder %s49, %s65
    %p67 = scmp.eq.s32.totalorder %s15, 0
    %p68 = por %p66, %p67
    %s70 = sadd.s32 %s69, 1
    %p73 = scmp.eq.s32.totalorder %s9, 1
    %p74 = scmp.ne.s32.totalorder %s69, %s71
    %p75 = scmp.eq.s32.totalorder %s9, 0
    %p76 = por %p74, %p75
    %p77 = scmp.ne.s32.totalorder %s69, %s71
    %p78 = scmp.eq.s32.totalorder %s14, 1
    %p79 = por %p77, %p78
    %p80 = scmp.ne.s32.totalorder %s71, %s72
    %p81 = scmp.eq.s32.totalorder %s14, 0
    %p82 = por %p80, %p81
    %p83 = scmp.ne.s32.totalorder %s71, %s72
    %p84 = scmp.eq.s32.totalorder %s15, 1
    %p85 = por %p83, %p84
    %p87 = scmp.ne.s32.totalorder %s72, %s86
    %p88 = scmp.eq.s32.totalorder %s15, 0
    %p89 = por %p87, %p88
    %s90 = ssub.s32 %s9, %s16
    %p91 = scmp.eq.s32.totalorder %s90, 0
    %s93 = sadd.s32 %s92, 1
    %s94 = scalar_select %p91, %s92, %s93
    %p97 = pneg %p91
    %p98 = scmp.eq.s32.totalorder %s9, 1
    %p99 = por %p97, %p98
    %p100 = scmp.ne.s32.totalorder %s92, %s95
    %p101 = scmp.eq.s32.totalorder %s9, 0
    %p102 = por %p100, %p101
    %p103 = scmp.ne.s32.totalorder %s92, %s95
    %p104 = scmp.eq.s32.totalorder %s14, 1
    %p105 = por %p103, %p104
    %p106 = scmp.ne.s32.totalorder %s95, %s96
    %p107 = scmp.eq.s32.totalorder %s14, 0
    %p108 = por %p106, %p107
    %p109 = scmp.ne.s32.totalorder %s95, %s96
    %p110 = scmp.eq.s32.totalorder %s15, 1
    %p111 = por %p109, %p110
    %p113 = scmp.ne.s32.totalorder %s96, %s112
    %p114 = scmp.eq.s32.totalorder %s15, 0
    %p115 = por %p113, %p114
    %p116 = scmp.le.s32.totalorder 1, %s9
    %p117 = scmp.lt.s32.totalorder %s9, 3
    %p118 = pnand %p116, %p117
    %p119 = pneg %p118
    // Predicated region
    $region9: #{encoder_forward.9} parent=5 // pred_check
      _
    $region10: #{encoder_forward.9} parent=5 // pred_check_branch
      %121 = sbr.rel (%p118) target = $region12
    $region11: #{encoder_forward.9} parent=5 // pred_region
      %s122 = ssub.s32 %s9, 1
      // Predicated region
      $region13: #{encoder_forward.9} parent=11 // pred_check
        %p123 = pneg %p82
      $region14: #{encoder_forward.9} parent=11 // pred_check_branch
        %125 = sbr.rel (%p123) target = $region16
      $region15: #{encoder_forward.9} parent=11 // pred_region
        _
      $region16: #{encoder_forward.9} parent=11 // pred_fallthru
        _
    $region12: #{encoder_forward.9} parent=5 // pred_fallthru
      _
    %p126 = scmp.lt.s32.totalorder %s9, 2
    // Predicated region
    $region17: #{encoder_forward.9} parent=5 // pred_check
      %p127 = pneg %p126
    $region18: #{encoder_forward.9} parent=5 // pred_check_branch
      %129 = sbr.rel (%p127) target = $region20
    $region19: #{encoder_forward.9} parent=5 // pred_region
      // Predicated region
      $region21: #{encoder_forward.9} parent=19 // pred_check
        %p130 = pneg %p29
      $region22: #{encoder_forward.9} parent=19 // pred_check_branch
        %132 = sbr.rel (%p130) target = $region24
      $region23: #{encoder_forward.9} parent=19 // pred_region
        %p133 = scmp.lt.s32.totalorder %s9, 1
        %s134 = scalar_select %p133, %s9, 1
        %s135 = smul.addr %s134, 2
        %s136 = smul.addr %s135, 4
        %s137 = scalar_lea.vmem %s0, %s136
      $region24: #{encoder_forward.9} parent=19 // pred_fallthru
        _
      // Predicated region
      $region25: #{encoder_forward.9} parent=19 // pred_check
        %p138 = pneg %p55
      $region26: #{encoder_forward.9} parent=19 // pred_check_branch
        %140 = sbr.rel (%p138) target = $region28
      $region27: #{encoder_forward.9} parent=19 // pred_region
        %p141 = scmp.lt.s32.totalorder %s9, 1
        %s142 = scalar_select %p141, %s9, 1
        %s143 = smul.addr %s142, 8
        %s144 = scalar_lea.vmem %s1, %s143
      $region28: #{encoder_forward.9} parent=19 // pred_fallthru
        _
    $region20: #{encoder_forward.9} parent=5 // pred_fallthru
      _
    %p145 = scmp.le.s32.totalorder 1, %s9
    %p146 = scmp.lt.s32.totalorder %s9, 3
    %p147 = pnand %p145, %p146
    %p148 = pneg %p147
    // Predicated region
    $region29: #{encoder_forward.9} parent=5 // pred_check
      _
    $region30: #{encoder_forward.9} parent=5 // pred_check_branch
      %150 = sbr.rel (%p147) target = $region32
    $region31: #{encoder_forward.9} parent=5 // pred_region
      %s151 = ssub.s32 %s9, 1
      %p152 = scmp.lt.s32.totalorder %s14, 1
      %s153 = scalar_select %p152, %s14, 1
      %s154 = smul.addr %s153, 2
      %s155 = smul.addr %s154, 4
      %s156 = scalar_lea.vmem %s0, %s155
      %p157 = pneg %p35
      %p158 = pneg %p32
      %p159 = scmp.lt.s32.totalorder %s14, 1
      %s160 = scalar_select %p159, %s14, 1
      %s161 = smul.addr %s160, 8
      %s162 = scalar_lea.vmem %s1, %s161
      %p163 = pneg %p61
      %p164 = pneg %p58
      %p165 = pneg %p82
      %p166 = pneg %p79
      %p167 = pneg %p108
      %p168 = pneg %p105
      %p169 = scmp.lt.s32.totalorder %s14, 1
      %s170 = scalar_select %p169, %s14, 1
      %s171 = smul.addr %s170, 2
      %s172 = scalar_lea.vmem %s3, %s171
      %p173 = scmp.lt.s32.totalorder %s14, 1
      %s174 = scalar_select %p173, %s14, 1
      %s175 = smul.addr %s174, 2
      %s176 = smul.addr %s175, 4
      %s177 = scalar_lea.vmem %s0, %s176
      %p178 = scmp.lt.s32.totalorder %s14, 1
      %s179 = scalar_select %p178, %s14, 1
      %s180 = smul.addr %s179, 8
      %s181 = scalar_lea.vmem %s1, %s180
      %p182 = scmp.lt.s32.totalorder %s14, 1
      %s183 = scalar_select %p182, %s14, 1
      %s184 = smul.addr %s183, 2
      %s185 = scalar_lea.vmem %s3, %s184
      %v186 = vld [vmem:[%s177] sm:$0xff]
      %v187 = vunpack.c.l.bf16 %v186
      %v188 = vunpack.c.h.bf16 %v186
      %v189 = vld [vmem:[%s2] sm:$0x3]
      %v190 = vunpack.c.l.bf16 %v189
      %v191 = vmul.f32 %v187, %v187
      %v192 = vmul.f32 %v188, %v188
      %v193 = vadd.f32 %v191, %v192
      %194 = vadd.xlane.f32.xlu0 %v193
      %v195 = vpop.xlane.xlu0 %194
      %v196 = vrcp.pop 256.0
      %v197 = vmul.f32 %v195, %v196
      %v198 = vadd.f32 %v197, 1e-06
      %v199 = vrsqrt.pop %v198
      %v200 = vmul.f32 %v187, %v199
      %v201 = vmul.f32 %v188, %v199
      %v203 = vlaneseq
      %v204 = vshrl.u32 %v203, 7
      %v205 = vsub.s32 0, %v204
      %v206 = vrot.slane %v190, %v205
      %v207 = vlaneseq
      %v208 = vshrl.u32 %v207, 7
      %v209 = vsub.s32 2, %v208
      %v210 = vrot.slane %v190, %v209
      %v213 = vlaneseq
      %v214 = vshrl.u32 %v213, 7
      %v215 = vsub.s32 0, %v214
      %v216 = vrot.slane %v206, %v215
      %v217 = vlaneseq
      %v218 = vshrl.u32 %v217, 7
      %v219 = vsub.s32 0, %v218
      %v220 = vrot.slane %v210, %v219
      %v221 = vmul.f32 %v200, %v216
      %v222 = vmul.f32 %v201, %v220
      %v223 = vld [vmem:[%s181] sm:$0xff]
      %225 = vset.pattern.permute.xlu0 0
      %226 = vperm.xlu0 %225, %v223
      %v227 = vpop.permute.xlu0 %226
      %v229 = vmul.f32 %v221, %v227
      %v230 = vmul.f32 %v222, %v227
      %v231 = vrot.slane %v229, 4
      %v232 = vadd.f32 %v229, %v231
      %v233 = vrot.slane %v232, 2
      %v234 = vadd.f32 %v232, %v233
      %v235 = vrot.slane %v234, 1
      %v236 = vadd.f32 %v234, %v235
      %v237 = vrot.slane %v230, 4
      %v238 = vadd.f32 %v230, %v237
      %v239 = vrot.slane %v238, 2
      %v240 = vadd.f32 %v238, %v239
      %v241 = vrot.slane %v240, 1
      %v242 = vadd.f32 %v240, %v241
      %vm243 = vcmask 7168
      %v244 = vsel %vm243, %v223, 0.0
      %v245 = vrot.slane %v244, 4
      %v246 = vadd.f32 %v244, %v245
      %v247 = vrot.slane %v246, 2
      %v248 = vadd.f32 %v246, %v247
      %v249 = vrot.slane %v248, 1
      %v250 = vadd.f32 %v248, %v249
      %v251 = vmax.f32 %v250, 1e-09
      %253 = vset.pattern.permute.xlu0 0
      %254 = vperm.xlu0 %253, %v251
      %v255 = vpop.permute.xlu0 %254
      %v257 = vrcp.pop %v255
      %v258 = vmul.f32 %v236, %v257
      %v259 = vmul.f32 %v242, %v257
      %v260 = vpack.c.bf16 %v258, %v258
      %v261 = vpack.c.bf16 %v259, %v259
      %v264 = vcombine.low %v260, %v261
      %v266 = vunpack.c.l.s4 1966171168
      %v267 = vunpack.c.0.s8 %v266
      %v268 = vlaneseq
      %v269 = vshrl.u32 %v268, 7
      %v270 = vsub.s32 %v267, %v269
      %v271 = vrot.slane %v264, %v270
      %v273 = vunpack.c.l.s4 1966171168
      %v274 = vunpack.c.0.s8 %v273
      %v275 = vlaneseq
      %v276 = vshrl.u32 %v275, 7
      %v277 = vsub.s32 %v274, %v276
      %v278 = vrot.slane %v271, %v277
      %vm280 = vcmask 1040384
      %vm281 = vsmask.f32 256
      %vm282 = vmand %vm280, %vm281
      %vm283 = vcmask 1041409
      %vm284 = vsmask.f32 1280
      %vm285 = vmand %vm283, %vm284
      %vm286 = vmor %vm285, %vm282
      %v287 = vld [vmem:[%s185] sm:$0x3]
      %v288 = vsel %vm286, %v278, %v287
      %289 = vst [vmem:[%s185] sm:$0x3] %v288
      %p290 = scmp.lt.s32.totalorder %s14, 1
      %s291 = scalar_select %p290, %s14, 1
      %s292 = smul.addr %s291, 2
      %s293 = scalar_lea.vmem %s3, %s292
      // Predicated region
      $region33: #{encoder_forward.9} parent=31 // pred_check
        %p294 = pneg %p105
      $region34: #{encoder_forward.9} parent=31 // pred_check_branch
        %296 = sbr.rel (%p294) target = $region36
      $region35: #{encoder_forward.9} parent=31 // pred_region
        _
      $region36: #{encoder_forward.9} parent=31 // pred_fallthru
        _
    $region32: #{encoder_forward.9} parent=5 // pred_fallthru
      _
    %p297 = scmp.le.s32.totalorder 2, %s9
    // Predicated region
    $region37: #{encoder_forward.9} parent=5 // pred_check
      %p298 = pneg %p297
    $region38: #{encoder_forward.9} parent=5 // pred_check_branch
      %300 = sbr.rel (%p298) target = $region40
    $region39: #{encoder_forward.9} parent=5 // pred_region
      %s301 = ssub.s32 %s9, 2
      // Predicated region
      $region41: #{encoder_forward.9} parent=39 // pred_check
        %p302 = pneg %p111
      $region42: #{encoder_forward.9} parent=39 // pred_check_branch
        %304 = sbr.rel (%p302) target = $region44
      $region43: #{encoder_forward.9} parent=39 // pred_region
        %p305 = scmp.lt.s32.totalorder %s15, 1
        %s306 = scalar_select %p305, %s15, 1
        %s307 = smul.addr %s306, 2
        %s308 = scalar_lea.vmem %s3, %s307
      $region44: #{encoder_forward.9} parent=39 // pred_fallthru
        _
    $region40: #{encoder_forward.9} parent=5 // pred_fallthru
      _
  $region6: #{encoder_forward.9} parent=0 // loop_footer
    %s13 = sadd.s32 1, %s9
  $region7: #{encoder_forward.9} parent=0 // loop_footer_branch
    %8 = sbr.rel target = $region3
  $region8: #{encoder_forward.9} parent=0 // loop_exit
    _

</llo_original>
